<compile_context>
chip_gen: v7x
topology: tpu7x:2x2x1
jax: 0.10.0
libtpu: 0.0.40
codegen_flags: <defaults>
</compile_context>

<pallas_src>
import functools

import jax
import jax.numpy as jnp
from jax.experimental import pallas as pl
from jax.experimental.pallas import tpu as pltpu

_TAPS = [(dy, dx) for dy in range(3) for dx in range(3)]
_MIB = 1024 * 1024


@functools.lru_cache(maxsize=None)
def _vmem_limit_bytes():
    """Generation-aware scoped-VMEM limit (~100 MiB v5e/v6e, ~52 MiB v7x)."""
    default = 48 * _MIB
    try:
        cap = getattr(pltpu.get_tpu_info(), "vmem_capacity_bytes", None)
        if not cap:
            return default
        return max(default, min(100 * _MIB, int(cap) - 12 * _MIB))
    except Exception:
        return default


def _pick_tile_rows(H, W):
    """Row-tile height: smallest divisor of H in {8,16,32,64} whose matmul M
    (= TH*W) is >= 256 (full MXU tiles on v6e); fall back to whole image."""
    divisors = [t for t in (8, 16, 32, 64) if t < H and H % t == 0]
    if not divisors:
        return H
    for t in divisors:
        if t * W >= 256:
            return t
    return divisors[-1]


# ----------------------------------------------------------------------------
# Shared conv body: 9 accumulating MXU dots over shifted halo-scratch views.
# ----------------------------------------------------------------------------
def _accum_taps(pad_ref, w_ref, th, W, c, cpad):
    acc = jnp.zeros((th * W, cpad), jnp.float32)
    for t, (dy, dx) in enumerate(_TAPS):
        lhs = pad_ref[dy:dy + th, dx:dx + W, :].reshape(th * W, c)   # bf16
        acc = acc + jnp.dot(lhs, w_ref[t], preferred_element_type=jnp.float32)
    return acc                                                        # f32


def _write_stats(st_ref, y2d):
    st_ref[0, 0] = jnp.concatenate(
        [jnp.sum(y2d, axis=0, keepdims=True),
         jnp.sum(y2d * y2d, axis=0, keepdims=True)], axis=0)


# ----------------------------------------------------------------------------
# Kernel A: 3x3 same conv (row tile + halo rows) + per-step sum / sumsq.
# ----------------------------------------------------------------------------
def _conv_stats_kernel(xm_ref, xt_ref, xb_ref, w_ref, y_ref, st_ref, pad_ref):
    # xm_ref: (1, TH, W, Cin)   row tile of the input
    # xt/xb:  (1, 1, W, Cin)    halo rows above / below (ignored at edges)
    # w_ref:  (9, Cin, Cpad)    bf16 packed weight (constant across grid)
    # y_ref:  (1, TH, W, Cpad)  f32 conv output tile
    # st_ref: (1, 1, 2, Cpad)   per-step [sum; sumsq] (reduced in the wrapper)
    # pad_ref:(TH+2, W+2, Cin)  bf16 zero-halo scratch
    th, W = y_ref.shape[1], y_ref.shape[2]
    cin, cpad = xm_ref.shape[3], y_ref.shape[3]
    r = pl.program_id(1)

    pad_ref[...] = jnp.zeros_like(pad_ref)
    pad_ref[1:th + 1, 1:W + 1, :] = xm_ref[0].astype(pad_ref.dtype)

    @pl.when(r > 0)
    def _():
        pad_ref[0, 1:W + 1, :] = xt_ref[0, 0].astype(pad_ref.dtype)

    @pl.when(r < pl.num_programs(1) - 1)
    def _():
        pad_ref[th + 1, 1:W + 1, :] = xb_ref[0, 0].astype(pad_ref.dtype)

    y = _accum_taps(pad_ref, w_ref, th, W, cin, cpad)
    y_ref[0] = y.reshape(th, W, cpad)
    _write_stats(st_ref, y)


def conv3x3_stats(x_nhwc, w_k, cpad, th):
    N, H, W, cin = x_nhwc.shape
    R = H // th
    return pl.pallas_call(
        _conv_stats_kernel,
        out_shape=(jax.ShapeDtypeStruct((N, H, W, cpad), jnp.float32),
                   jax.ShapeDtypeStruct((N, R, 2, cpad), jnp.float32)),
        grid=(N, R),
        in_specs=[
            pl.BlockSpec((1, th, W, cin), lambda n, r: (n, r, 0, 0)),
            pl.BlockSpec((1, 1, W, cin),
                         lambda n, r: (n, jnp.maximum(r * th - 1, 0), 0, 0)),
            pl.BlockSpec((1, 1, W, cin),
                         lambda n, r: (n, jnp.minimum(r * th + th, H - 1), 0, 0)),
            pl.BlockSpec((9, cin, cpad), lambda n, r: (0, 0, 0)),
        ],
        out_specs=(
            pl.BlockSpec((1, th, W, cpad), lambda n, r: (n, r, 0, 0)),
            pl.BlockSpec((1, 1, 2, cpad), lambda n, r: (n, r, 0, 0)),
        ),
        scratch_shapes=[pltpu.VMEM((th + 2, W + 2, cin), jnp.bfloat16)],
        compiler_params=pltpu.CompilerParams(
            dimension_semantics=("parallel", "parallel"),
            vmem_limit_bytes=_vmem_limit_bytes()),
    )(x_nhwc, x_nhwc, x_nhwc, w_k)


# ----------------------------------------------------------------------------
# Kernel B: fused BN(stage1)+ReLU -> 3x3 conv (row tile + halo) + stage-2 stats.
# ----------------------------------------------------------------------------
def _bn_relu_conv_stats_kernel(ym_ref, yt_ref, yb_ref, sc_ref, sh_ref, w_ref,
                               o_ref, st_ref, pad_ref):
    th, W = o_ref.shape[1], o_ref.shape[2]
    c, cpad = ym_ref.shape[3], o_ref.shape[3]
    r = pl.program_id(1)
    scale = sc_ref[...]
    shift = sh_ref[...]

    def act(v):   # BN with precomputed batch affine, ReLU, staged as bf16
        return jnp.maximum(v * scale + shift, 0.0).astype(pad_ref.dtype)

    pad_ref[...] = jnp.zeros_like(pad_ref)
    pad_ref[1:th + 1, 1:W + 1, :] = act(ym_ref[0])

    @pl.when(r > 0)
    def _():
        pad_ref[0, 1:W + 1, :] = act(yt_ref[0, 0])

    @pl.when(r < pl.num_programs(1) - 1)
    def _():
        pad_ref[th + 1, 1:W + 1, :] = act(yb_ref[0, 0])

    y = _accum_taps(pad_ref, w_ref, th, W, c, cpad)
    o_ref[0] = y.reshape(th, W, cpad)
    _write_stats(st_ref, y)


def bn_relu_conv3x3_stats(y_nhwc, scale, shift, w_k, cpad, th):
    N, H, W, c = y_nhwc.shape
    R = H // th
    return pl.pallas_call(
        _bn_relu_conv_stats_kernel,
        out_shape=(jax.ShapeDtypeStruct((N, H, W, cpad), jnp.float32),
                   jax.ShapeDtypeStruct((N, R, 2, cpad), jnp.float32)),
        grid=(N, R),
        in_specs=[
            pl.BlockSpec((1, th, W, c), lambda n, r: (n, r, 0, 0)),
            pl.BlockSpec((1, 1, W, c),
                         lambda n, r: (n, jnp.maximum(r * th - 1, 0), 0, 0)),
            pl.BlockSpec((1, 1, W, c),
                         lambda n, r: (n, jnp.minimum(r * th + th, H - 1), 0, 0)),
            pl.BlockSpec((1, c), lambda n, r: (0, 0)),
            pl.BlockSpec((1, c), lambda n, r: (0, 0)),
            pl.BlockSpec((9, c, cpad), lambda n, r: (0, 0, 0)),
        ],
        out_specs=(
            pl.BlockSpec((1, th, W, cpad), lambda n, r: (n, r, 0, 0)),
            pl.BlockSpec((1, 1, 2, cpad), lambda n, r: (n, r, 0, 0)),
        ),
        scratch_shapes=[pltpu.VMEM((th + 2, W + 2, c), jnp.bfloat16)],
        compiler_params=pltpu.CompilerParams(
            dimension_semantics=("parallel", "parallel"),
            vmem_limit_bytes=_vmem_limit_bytes()),
    )(y_nhwc, y_nhwc, y_nhwc, scale, shift, w_k)


# ----------------------------------------------------------------------------
# Kernel C: final BN + ReLU; writes only the real cout channels (slice fused).
# ----------------------------------------------------------------------------
def _bn_relu_out_kernel(y_ref, sc_ref, sh_ref, o_ref):
    cout = o_ref.shape[3]
    a = jnp.maximum(y_ref[0] * sc_ref[...] + sh_ref[...], 0.0)
    o_ref[0] = a[:, :, :cout]


def bn_relu_out(y_nhwc, scale, shift, cout, th):
    N, H, W, c = y_nhwc.shape
    R = H // th
    return pl.pallas_call(
        _bn_relu_out_kernel,
        out_shape=jax.ShapeDtypeStruct((N, H, W, cout), jnp.float32),
        grid=(N, R),
        in_specs=[
            pl.BlockSpec((1, th, W, c), lambda n, r: (n, r, 0, 0)),
            pl.BlockSpec((1, c), lambda n, r: (0, 0)),
            pl.BlockSpec((1, c), lambda n, r: (0, 0)),
        ],
        out_specs=pl.BlockSpec((1, th, W, cout), lambda n, r: (n, r, 0, 0)),
        compiler_params=pltpu.CompilerParams(
            dimension_semantics=("parallel", "parallel"),
            vmem_limit_bytes=_vmem_limit_bytes()),
    )(y_nhwc, scale, shift)


# ----------------------------------------------------------------------------
# Wrapper-side helpers (tiny XLA ops on weights / per-channel vectors).
# ----------------------------------------------------------------------------
def _round_up(x, m):
    return ((x + m - 1) // m) * m


def _prep_conv_weight(w_oihw, cpad_out, cpad_in=None):
    """(Cout,Cin,3,3) -> (9, Cin[_pad], Cpad_out) bf16; tap order (dy, dx)."""
    cout, cin, kh, kw = w_oihw.shape
    w = jnp.transpose(w_oihw, (2, 3, 1, 0)).astype(jnp.float32)  # (kh,kw,cin,cout)
    if cpad_in is not None and cpad_in > cin:
        w = jnp.pad(w, ((0, 0), (0, 0), (0, cpad_in - cin), (0, 0)))
        cin = cpad_in
    if cpad_out > cout:
        w = jnp.pad(w, ((0, 0), (0, 0), (0, 0), (0, cpad_out - cout)))
    return w.reshape(kh * kw, cin, cpad_out).astype(jnp.bfloat16)


def _pad_vec(v, cpad):
    # NOTE: padded gamma/beta lanes MUST be zero so the padded channels stay
    # identically zero through conv2 (they are load-bearing, do not pad with 1).
    c = v.shape[0]
    if cpad > c:
        v = jnp.pad(v, (0, cpad - c))
    return v.astype(jnp.float32).reshape(1, cpad)


def _finalize_bn(stats, gamma_pad, beta_pad, count, eps=1e-5):
    """stats (2,Cpad)=[sum;sumsq] -> per-channel affine scale/shift, (1,Cpad)."""
    mean = stats[0:1, :] / count
    var = jnp.maximum(stats[1:2, :] / count - mean * mean, 0.0)  # biased batch var
    inv = jax.lax.rsqrt(var + eps)
    scale = gamma_pad * inv
    shift = beta_pad - mean * scale
    return scale, shift


# ----------------------------------------------------------------------------
# DoubleConv forward (NCHW in / NCHW out, matching the PyTorch module).
# ----------------------------------------------------------------------------
def double_conv_forward(x_nchw, params):
    w1, g1, b1, w2, g2, b2 = params
    N, cin, H, W = x_nchw.shape
    cout = w1.shape[0]
    cpad = _round_up(max(cout, 1), 128)        # lane-dense channel padding
    th = _pick_tile_rows(H, W)                 # row-tile height (divides H)

    x = jnp.transpose(x_nchw, (0, 2, 3, 1))                       # NCHW -> NHWC

    w1k = _prep_conv_weight(w1, cpad_out=cpad)                    # (9,cin,cpad)
    w2k = _prep_conv_weight(w2, cpad_out=cpad, cpad_in=cpad)      # (9,cpad,cpad)
    g1p, b1p = _pad_vec(g1, cpad), _pad_vec(b1, cpad)
    g2p, b2p = _pad_vec(g2, cpad), _pad_vec(b2, cpad)
    count = N * H * W

    y1, s1 = conv3x3_stats(x, w1k, cpad, th)                      # conv1 + stats1
    scale1, shift1 = _finalize_bn(jnp.sum(s1, axis=(0, 1)), g1p, b1p, count)
    y2, s2 = bn_relu_conv3x3_stats(y1, scale1, shift1, w2k, cpad, th)
    scale2, shift2 = _finalize_bn(jnp.sum(s2, axis=(0, 1)), g2p, b2p, count)
    out_nhwc = bn_relu_out(y2, scale2, shift2, cout, th)          # BN2+ReLU+slice

    return jnp.transpose(out_nhwc, (0, 3, 1, 2))                  # NHWC -> NCHW


def init_double_conv_params(key, in_channels, out_channels):
    """Deterministic init mirroring the module's parameter shapes."""
    k1, k2 = jax.random.split(key, 2)
    bound1 = 1.0 / jnp.sqrt(in_channels * 9)
    bound2 = 1.0 / jnp.sqrt(out_channels * 9)
    w1 = jax.random.uniform(k1, (out_channels, in_channels, 3, 3),
                            jnp.float32, -bound1, bound1)
    w2 = jax.random.uniform(k2, (out_channels, out_channels, 3, 3),
                            jnp.float32, -bound2, bound2)
    g1 = jnp.ones((out_channels,), jnp.float32)   # BatchNorm2d defaults
    b1 = jnp.zeros((out_channels,), jnp.float32)
    g2 = jnp.ones((out_channels,), jnp.float32)
    b2 = jnp.zeros((out_channels,), jnp.float32)
    return (w1, g1, b1, w2, g2, b2)


# Pure-JAX f32 reference for correctness checking.
def _double_conv_ref(x_nchw, params):
    w1, g1, b1, w2, g2, b2 = params

    def conv(x, w):
        return jax.lax.conv_general_dilated(
            x, w, window_strides=(1, 1), padding="SAME",
            dimension_numbers=("NCHW", "OIHW", "NCHW"))

    def bn_relu_ref(y, g, b, eps=1e-5):
        mean = jnp.mean(y, axis=(0, 2, 3), keepdims=True)
        var = jnp.mean((y - mean) ** 2, axis=(0, 2, 3), keepdims=True)
        yn = (y - mean) * jax.lax.rsqrt(var + eps)
        yn = yn * g.reshape(1, -1, 1, 1) + b.reshape(1, -1, 1, 1)
        return jnp.maximum(yn, 0.0)

    y = bn_relu_ref(conv(x_nchw, w1), g1, b1)
    return bn_relu_ref(conv(y, w2), g2, b2)


if __name__ == "__main__":
    key = jax.random.PRNGKey(0)
    k_x, k_p = jax.random.split(key)

    in_channels, out_channels = 4, 8
    N, H, W = 2, 16, 16

    x = jax.random.normal(k_x, (N, in_channels, H, W), dtype=jnp.float32)
    params = init_double_conv_params(k_p, in_channels, out_channels)

    out = jax.jit(double_conv_forward)(x, params)
    out = jax.block_until_ready(out)

    assert out.shape == (N, out_channels, H, W), out.shape
    assert bool(jnp.all(jnp.isfinite(out)))

    ref = _double_conv_ref(x, params)
    # bf16 MXU operands (with f32 accumulation) leave ~1e-2 absolute error
    # after the unit-variance BatchNorms; 5e-2 keeps a comfortable margin.
    max_err = float(jnp.max(jnp.abs(out - ref)))
    assert jnp.allclose(out, ref, atol=5e-2, rtol=5e-2), max_err

    print("KERNEL_OK")
</pallas_src>

<mosaic_0001>
module attributes {stable_mosaic.version = 11 : i64} {
  func.func @_bn_relu_out_kernel(%arg0: i32, %arg1: i32, %arg2: memref<1x8x16x128xf32, #tpu.memory_space<vmem>>, %arg3: memref<1x128xf32, #tpu.memory_space<vmem>>, %arg4: memref<1x128xf32, #tpu.memory_space<vmem>>, %arg5: memref<1x8x16x8xf32, #tpu.memory_space<vmem>>) attributes {dimension_semantics = [#tpu.dimension_semantics<parallel>, #tpu.dimension_semantics<parallel>], iteration_bounds = array<i64: 2, 2>, scalar_prefetch = 0 : i64, scratch_operands = 0 : i64, tpu.core_type = #tpu.core_type<tc>, window_params = [{transform_indices = @transform_0, window_bounds = array<i64: 1, 8, 16, 128>}, {pipeline_mode = #tpu.pipeline_mode<synchronous>, transform_indices = @transform_1, window_bounds = array<i64: 1, 128>}, {pipeline_mode = #tpu.pipeline_mode<synchronous>, transform_indices = @transform_2, window_bounds = array<i64: 1, 128>}, {transform_indices = @transform_3, window_bounds = array<i64: 1, 8, 16, 8>}]} {
    %c0 = arith.constant 0 : index
    %c0_0 = arith.constant 0 : index
    %c0_1 = arith.constant 0 : index
    %c0_2 = arith.constant 0 : index
    %0 = vector.load %arg2[%c0, %c0_0, %c0_1, %c0_2] : memref<1x8x16x128xf32, #tpu.memory_space<vmem>>, vector<1x8x16x128xf32>
    %1 = vector.shape_cast %0 : vector<1x8x16x128xf32> to vector<8x16x128xf32>
    %c0_3 = arith.constant 0 : index
    %c0_4 = arith.constant 0 : index
    %2 = vector.load %arg3[%c0_3, %c0_4] : memref<1x128xf32, #tpu.memory_space<vmem>>, vector<1x128xf32>
    %3 = vector.shape_cast %2 : vector<1x128xf32> to vector<1x1x128xf32>
    %4 = vector.broadcast %3 : vector<1x1x128xf32> to vector<8x16x128xf32>
    %5 = arith.mulf %1, %4 : vector<8x16x128xf32>
    %c0_5 = arith.constant 0 : index
    %c0_6 = arith.constant 0 : index
    %6 = vector.load %arg4[%c0_5, %c0_6] : memref<1x128xf32, #tpu.memory_space<vmem>>, vector<1x128xf32>
    %7 = vector.shape_cast %6 : vector<1x128xf32> to vector<1x1x128xf32>
    %8 = vector.broadcast %7 : vector<1x1x128xf32> to vector<8x16x128xf32>
    %9 = arith.addf %5, %8 : vector<8x16x128xf32>
    %cst = arith.constant 0.000000e+00 : f32
    %10 = vector.broadcast %cst : f32 to vector<8x16x128xf32>
    %11 = arith.maximumf %9, %10 : vector<8x16x128xf32>
    %12 = vector.extract_strided_slice %11 {offsets = [0, 0, 0], sizes = [8, 16, 8], strides = [1, 1, 1]} : vector<8x16x128xf32> to vector<8x16x8xf32>
    %c0_7 = arith.constant 0 : index
    %c0_8 = arith.constant 0 : index
    %c0_9 = arith.constant 0 : index
    %c0_10 = arith.constant 0 : index
    %13 = vector.load %arg5[%c0_7, %c0_8, %c0_9, %c0_10] : memref<1x8x16x8xf32, #tpu.memory_space<vmem>>, vector<1x8x16x8xf32>
    %14 = vector.shape_cast %13 : vector<1x8x16x8xf32> to vector<8x16x8xf32>
    %15 = vector.shape_cast %12 : vector<8x16x8xf32> to vector<1x8x16x8xf32>
    tpu.vector_store %arg5[%c0_7, %c0_8, %c0_9, %c0_10], %15 {strides = array<i32>} : memref<1x8x16x8xf32, #tpu.memory_space<vmem>>, vector<1x8x16x8xf32>,
    return
  }
  func.func @transform_0(%arg0: i32, %arg1: i32) -> (i32, i32, i32, i32) {
    %c0_i32 = arith.constant 0 : i32
    %c0_i32_0 = arith.constant 0 : i32
    %c0_i32_1 = arith.constant 0 : i32
    return %arg0, %arg1, %c0_i32, %c0_i32_0 : i32, i32, i32, i32
  }
  func.func @transform_1(%arg0: i32, %arg1: i32) -> (i32, i32) {
    %c0_i32 = arith.constant 0 : i32
    %c0_i32_0 = arith.constant 0 : i32
    %c0_i32_1 = arith.constant 0 : i32
    return %c0_i32, %c0_i32_0 : i32, i32
  }
  func.func @transform_2(%arg0: i32, %arg1: i32) -> (i32, i32) {
    %c0_i32 = arith.constant 0 : i32
    %c0_i32_0 = arith.constant 0 : i32
    %c0_i32_1 = arith.constant 0 : i32
    return %c0_i32, %c0_i32_0 : i32, i32
  }
  func.func @transform_3(%arg0: i32, %arg1: i32) -> (i32, i32, i32, i32) {
    %c0_i32 = arith.constant 0 : i32
    %c0_i32_0 = arith.constant 0 : i32
    %c0_i32_1 = arith.constant 0 : i32
    return %arg0, %arg1, %c0_i32, %c0_i32_0 : i32, i32, i32, i32
  }
}

module attributes {stable_mosaic.version = 11 : i64} {
  func.func @_conv_stats_kernel(%arg0: i32, %arg1: i32, %arg2: memref<1x8x16x4xf32, #tpu.memory_space<vmem>>, %arg3: memref<1x1x16x4xf32, #tpu.memory_space<vmem>>, %arg4: memref<1x1x16x4xf32, #tpu.memory_space<vmem>>, %arg5: memref<9x4x128xbf16, #tpu.memory_space<vmem>>, %arg6: memref<1x8x16x128xf32, #tpu.memory_space<vmem>>, %arg7: memref<1x1x2x128xf32, #tpu.memory_space<vmem>>, %arg8: memref<10x18x4xbf16, #tpu.memory_space<vmem>>) attributes {dimension_semantics = [#tpu.dimension_semantics<parallel>, #tpu.dimension_semantics<parallel>], iteration_bounds = array<i64: 2, 2>, scalar_prefetch = 0 : i64, scratch_operands = 1 : i64, tpu.core_type = #tpu.core_type<tc>, window_params = [{transform_indices = @transform_0, window_bounds = array<i64: 1, 8, 16, 4>}, {transform_indices = @transform_1, window_bounds = array<i64: 1, 1, 16, 4>}, {transform_indices = @transform_2, window_bounds = array<i64: 1, 1, 16, 4>}, {pipeline_mode = #tpu.pipeline_mode<synchronous>, transform_indices = @transform_3, window_bounds = array<i64: 9, 4, 128>}, {transform_indices = @transform_4, window_bounds = array<i64: 1, 8, 16, 128>}, {transform_indices = @transform_5, window_bounds = array<i64: 1, 1, 2, 128>}]} {
    %cst = arith.constant 0.000000e+00 : bf16
    %0 = vector.broadcast %cst : bf16 to vector<10x18x4xbf16>
    %c0 = arith.constant 0 : index
    %c0_0 = arith.constant 0 : index
    %c0_1 = arith.constant 0 : index
    %1 = vector.load %arg8[%c0, %c0_0, %c0_1] : memref<10x18x4xbf16, #tpu.memory_space<vmem>>, vector<10x18x4xbf16>
    tpu.vector_store %arg8[%c0, %c0_0, %c0_1], %0 {strides = array<i32>} : memref<10x18x4xbf16, #tpu.memory_space<vmem>>, vector<10x18x4xbf16>,
    %c0_2 = arith.constant 0 : index
    %c0_3 = arith.constant 0 : index
    %c0_4 = arith.constant 0 : index
    %c0_5 = arith.constant 0 : index
    %2 = vector.load %arg2[%c0_2, %c0_3, %c0_4, %c0_5] : memref<1x8x16x4xf32, #tpu.memory_space<vmem>>, vector<1x8x16x4xf32>
    %3 = vector.shape_cast %2 : vector<1x8x16x4xf32> to vector<8x16x4xf32>
    %4 = arith.truncf %3 : vector<8x16x4xf32> to vector<8x16x4xbf16>
    %c1 = arith.constant 1 : index
    %c1_6 = arith.constant 1 : index
    %c0_7 = arith.constant 0 : index
    %5 = vector.load %arg8[%c1, %c1_6, %c0_7] : memref<10x18x4xbf16, #tpu.memory_space<vmem>>, vector<8x16x4xbf16>
    tpu.vector_store %arg8[%c1, %c1_6, %c0_7], %4 {strides = array<i32>} : memref<10x18x4xbf16, #tpu.memory_space<vmem>>, vector<8x16x4xbf16>,
    %c0_i32 = arith.constant 0 : i32
    %6 = arith.cmpi sgt, %arg1, %c0_i32 : i32
    %7 = arith.extui %6 : i1 to i32
    %c0_i32_8 = arith.constant 0 : i32
    %8 = arith.cmpi ne, %7, %c0_i32_8 : i32
    scf.if %8 {
      %c0_77 = arith.constant 0 : index
      %c0_78 = arith.constant 0 : index
      %c0_79 = arith.constant 0 : index
      %c0_80 = arith.constant 0 : index
      %80 = vector.load %arg3[%c0_77, %c0_78, %c0_79, %c0_80] : memref<1x1x16x4xf32, #tpu.memory_space<vmem>>, vector<1x1x16x4xf32>
      %81 = vector.shape_cast %80 : vector<1x1x16x4xf32> to vector<16x4xf32>
      %82 = arith.truncf %81 : vector<16x4xf32> to vector<16x4xbf16>
      %c0_81 = arith.constant 0 : index
      %c1_82 = arith.constant 1 : index
      %c0_83 = arith.constant 0 : index
      %83 = vector.load %arg8[%c0_81, %c1_82, %c0_83] : memref<10x18x4xbf16, #tpu.memory_space<vmem>>, vector<1x16x4xbf16>
      %84 = vector.shape_cast %83 : vector<1x16x4xbf16> to vector<16x4xbf16>
      %85 = vector.shape_cast %82 : vector<16x4xbf16> to vector<1x16x4xbf16>
      tpu.vector_store %arg8[%c0_81, %c1_82, %c0_83], %85 {strides = array<i32>} : memref<10x18x4xbf16, #tpu.memory_space<vmem>>, vector<1x16x4xbf16>,
    } else {
    }
    %c1_i32 = arith.constant 1 : i32
    %9 = arith.cmpi slt, %arg1, %c1_i32 : i32
    %10 = arith.extui %9 : i1 to i32
    %c0_i32_9 = arith.constant 0 : i32
    %11 = arith.cmpi ne, %10, %c0_i32_9 : i32
    scf.if %11 {
      %c0_77 = arith.constant 0 : index
      %c0_78 = arith.constant 0 : index
      %c0_79 = arith.constant 0 : index
      %c0_80 = arith.constant 0 : index
      %80 = vector.load %arg4[%c0_77, %c0_78, %c0_79, %c0_80] : memref<1x1x16x4xf32, #tpu.memory_space<vmem>>, vector<1x1x16x4xf32>
      %81 = vector.shape_cast %80 : vector<1x1x16x4xf32> to vector<16x4xf32>
      %82 = arith.truncf %81 : vector<16x4xf32> to vector<16x4xbf16>
      %c9 = arith.constant 9 : index
      %c1_81 = arith.constant 1 : index
      %c0_82 = arith.constant 0 : index
      %83 = vector.load %arg8[%c9, %c1_81, %c0_82] : memref<10x18x4xbf16, #tpu.memory_space<vmem>>, vector<1x16x4xbf16>
      %84 = vector.shape_cast %83 : vector<1x16x4xbf16> to vector<16x4xbf16>
      %85 = vector.shape_cast %82 : vector<16x4xbf16> to vector<1x16x4xbf16>
      tpu.vector_store %arg8[%c9, %c1_81, %c0_82], %85 {strides = array<i32>} : memref<10x18x4xbf16, #tpu.memory_space<vmem>>, vector<1x16x4xbf16>,
    } else {
    }
    %cst_10 = arith.constant 0.000000e+00 : f32
    %12 = vector.broadcast %cst_10 : f32 to vector<128x128xf32>
    %c0_11 = arith.constant 0 : index
    %c0_12 = arith.constant 0 : index
    %c0_13 = arith.constant 0 : index
    %13 = vector.load %arg8[%c0_11, %c0_12, %c0_13] : memref<10x18x4xbf16, #tpu.memory_space<vmem>>, vector<8x16x4xbf16>
    %14 = vector.shape_cast %13 : vector<8x16x4xbf16> to vector<128x4xbf16>
    %c0_14 = arith.constant 0 : index
    %c0_15 = arith.constant 0 : index
    %c0_16 = arith.constant 0 : index
    %15 = vector.load %arg5[%c0_14, %c0_15, %c0_16] : memref<9x4x128xbf16, #tpu.memory_space<vmem>>, vector<1x4x128xbf16>
    %16 = vector.shape_cast %15 : vector<1x4x128xbf16> to vector<4x128xbf16>
    %cst_17 = arith.constant dense<0.000000e+00> : vector<128x128xf32>
    %17 = tpu.matmul %14, %16, %cst_17 {dimension_numbers = #tpu.dot_dimension_numbers<[1], [0], [0], [1], [0, 0, 1, 1], [], []>} : vector<128x4xbf16>, vector<4x128xbf16>, vector<128x128xf32> -> vector<128x128xf32>
    %18 = arith.addf %12, %17 : vector<128x128xf32>
    %c0_18 = arith.constant 0 : index
    %c1_19 = arith.constant 1 : index
    %c0_20 = arith.constant 0 : index
    %19 = vector.load %arg8[%c0_18, %c1_19, %c0_20] : memref<10x18x4xbf16, #tpu.memory_space<vmem>>, vector<8x16x4xbf16>
    %20 = vector.shape_cast %19 : vector<8x16x4xbf16> to vector<128x4xbf16>
    %c1_21 = arith.constant 1 : index
    %c0_22 = arith.constant 0 : index
    %c0_23 = arith.constant 0 : index
    %21 = vector.load %arg5[%c1_21, %c0_22, %c0_23] : memref<9x4x128xbf16, #tpu.memory_space<vmem>>, vector<1x4x128xbf16>
    %22 = vector.shape_cast %21 : vector<1x4x128xbf16> to vector<4x128xbf16>
    %cst_24 = arith.constant dense<0.000000e+00> : vector<128x128xf32>
    %23 = tpu.matmul %20, %22, %cst_24 {dimension_numbers = #tpu.dot_dimension_numbers<[1], [0], [0], [1], [0, 0, 1, 1], [], []>} : vector<128x4xbf16>, vector<4x128xbf16>, vector<128x128xf32> -> vector<128x128xf32>
    %24 = arith.addf %18, %23 : vector<128x128xf32>
    %c0_25 = arith.constant 0 : index
    %c2 = arith.constant 2 : index
    %c0_26 = arith.constant 0 : index
    %25 = vector.load %arg8[%c0_25, %c2, %c0_26] : memref<10x18x4xbf16, #tpu.memory_space<vmem>>, vector<8x16x4xbf16>
    %26 = vector.shape_cast %25 : vector<8x16x4xbf16> to vector<128x4xbf16>
    %c2_27 = arith.constant 2 : index
    %c0_28 = arith.constant 0 : index
    %c0_29 = arith.constant 0 : index
    %27 = vector.load %arg5[%c2_27, %c0_28, %c0_29] : memref<9x4x128xbf16, #tpu.memory_space<vmem>>, vector<1x4x128xbf16>
    %28 = vector.shape_cast %27 : vector<1x4x128xbf16> to vector<4x128xbf16>
    %cst_30 = arith.constant dense<0.000000e+00> : vector<128x128xf32>
    %29 = tpu.matmul %26, %28, %cst_30 {dimension_numbers = #tpu.dot_dimension_numbers<[1], [0], [0], [1], [0, 0, 1, 1], [], []>} : vector<128x4xbf16>, vector<4x128xbf16>, vector<128x128xf32> -> vector<128x128xf32>
    %30 = arith.addf %24, %29 : vector<128x128xf32>
    %c1_31 = arith.constant 1 : index
    %c0_32 = arith.constant 0 : index
    %c0_33 = arith.constant 0 : index
    %31 = vector.load %arg8[%c1_31, %c0_32, %c0_33] : memref<10x18x4xbf16, #tpu.memory_space<vmem>>, vector<8x16x4xbf16>
    %32 = vector.shape_cast %31 : vector<8x16x4xbf16> to vector<128x4xbf16>
    %c3 = arith.constant 3 : index
    %c0_34 = arith.constant 0 : index
    %c0_35 = arith.constant 0 : index
    %33 = vector.load %arg5[%c3, %c0_34, %c0_35] : memref<9x4x128xbf16, #tpu.memory_space<vmem>>, vector<1x4x128xbf16>
    %34 = vector.shape_cast %33 : vector<1x4x128xbf16> to vector<4x128xbf16>
    %cst_36 = arith.constant dense<0.000000e+00> : vector<128x128xf32>
    %35 = tpu.matmul %32, %34, %cst_36 {dimension_numbers = #tpu.dot_dimension_numbers<[1], [0], [0], [1], [0, 0, 1, 1], [], []>} : vector<128x4xbf16>, vector<4x128xbf16>, vector<128x128xf32> -> vector<128x128xf32>
    %36 = arith.addf %30, %35 : vector<128x128xf32>
    %c1_37 = arith.constant 1 : index
    %c1_38 = arith.constant 1 : index
    %c0_39 = arith.constant 0 : index
    %37 = vector.load %arg8[%c1_37, %c1_38, %c0_39] : memref<10x18x4xbf16, #tpu.memory_space<vmem>>, vector<8x16x4xbf16>
    %38 = vector.shape_cast %37 : vector<8x16x4xbf16> to vector<128x4xbf16>
    %c4 = arith.constant 4 : index
    %c0_40 = arith.constant 0 : index
    %c0_41 = arith.constant 0 : index
    %39 = vector.load %arg5[%c4, %c0_40, %c0_41] : memref<9x4x128xbf16, #tpu.memory_space<vmem>>, vector<1x4x128xbf16>
    %40 = vector.shape_cast %39 : vector<1x4x128xbf16> to vector<4x128xbf16>
    %cst_42 = arith.constant dense<0.000000e+00> : vector<128x128xf32>
    %41 = tpu.matmul %38, %40, %cst_42 {dimension_numbers = #tpu.dot_dimension_numbers<[1], [0], [0], [1], [0, 0, 1, 1], [], []>} : vector<128x4xbf16>, vector<4x128xbf16>, vector<128x128xf32> -> vector<128x128xf32>
    %42 = arith.addf %36, %41 : vector<128x128xf32>
    %c1_43 = arith.constant 1 : index
    %c2_44 = arith.constant 2 : index
    %c0_45 = arith.constant 0 : index
    %43 = vector.load %arg8[%c1_43, %c2_44, %c0_45] : memref<10x18x4xbf16, #tpu.memory_space<vmem>>, vector<8x16x4xbf16>
    %44 = vector.shape_cast %43 : vector<8x16x4xbf16> to vector<128x4xbf16>
    %c5 = arith.constant 5 : index
    %c0_46 = arith.constant 0 : index
    %c0_47 = arith.constant 0 : index
    %45 = vector.load %arg5[%c5, %c0_46, %c0_47] : memref<9x4x128xbf16, #tpu.memory_space<vmem>>, vector<1x4x128xbf16>
    %46 = vector.shape_cast %45 : vector<1x4x128xbf16> to vector<4x128xbf16>
    %cst_48 = arith.constant dense<0.000000e+00> : vector<128x128xf32>
    %47 = tpu.matmul %44, %46, %cst_48 {dimension_numbers = #tpu.dot_dimension_numbers<[1], [0], [0], [1], [0, 0, 1, 1], [], []>} : vector<128x4xbf16>, vector<4x128xbf16>, vector<128x128xf32> -> vector<128x128xf32>
    %48 = arith.addf %42, %47 : vector<128x128xf32>
    %c2_49 = arith.constant 2 : index
    %c0_50 = arith.constant 0 : index
    %c0_51 = arith.constant 0 : index
    %49 = vector.load %arg8[%c2_49, %c0_50, %c0_51] : memref<10x18x4xbf16, #tpu.memory_space<vmem>>, vector<8x16x4xbf16>
    %50 = vector.shape_cast %49 : vector<8x16x4xbf16> to vector<128x4xbf16>
    %c6 = arith.constant 6 : index
    %c0_52 = arith.constant 0 : index
    %c0_53 = arith.constant 0 : index
    %51 = vector.load %arg5[%c6, %c0_52, %c0_53] : memref<9x4x128xbf16, #tpu.memory_space<vmem>>, vector<1x4x128xbf16>
    %52 = vector.shape_cast %51 : vector<1x4x128xbf16> to vector<4x128xbf16>
    %cst_54 = arith.constant dense<0.000000e+00> : vector<128x128xf32>
    %53 = tpu.matmul %50, %52, %cst_54 {dimension_numbers = #tpu.dot_dimension_numbers<[1], [0], [0], [1], [0, 0, 1, 1], [], []>} : vector<128x4xbf16>, vector<4x128xbf16>, vector<128x128xf32> -> vector<128x128xf32>
    %54 = arith.addf %48, %53 : vector<128x128xf32>
    %c2_55 = arith.constant 2 : index
    %c1_56 = arith.constant 1 : index
    %c0_57 = arith.constant 0 : index
    %55 = vector.load %arg8[%c2_55, %c1_56, %c0_57] : memref<10x18x4xbf16, #tpu.memory_space<vmem>>, vector<8x16x4xbf16>
    %56 = vector.shape_cast %55 : vector<8x16x4xbf16> to vector<128x4xbf16>
    %c7 = arith.constant 7 : index
    %c0_58 = arith.constant 0 : index
    %c0_59 = arith.constant 0 : index
    %57 = vector.load %arg5[%c7, %c0_58, %c0_59] : memref<9x4x128xbf16, #tpu.memory_space<vmem>>, vector<1x4x128xbf16>
    %58 = vector.shape_cast %57 : vector<1x4x128xbf16> to vector<4x128xbf16>
    %cst_60 = arith.constant dense<0.000000e+00> : vector<128x128xf32>
    %59 = tpu.matmul %56, %58, %cst_60 {dimension_numbers = #tpu.dot_dimension_numbers<[1], [0], [0], [1], [0, 0, 1, 1], [], []>} : vector<128x4xbf16>, vector<4x128xbf16>, vector<128x128xf32> -> vector<128x128xf32>
    %60 = arith.addf %54, %59 : vector<128x128xf32>
    %c2_61 = arith.constant 2 : index
    %c2_62 = arith.constant 2 : index
    %c0_63 = arith.constant 0 : index
    %61 = vector.load %arg8[%c2_61, %c2_62, %c0_63] : memref<10x18x4xbf16, #tpu.memory_space<vmem>>, vector<8x16x4xbf16>
    %62 = vector.shape_cast %61 : vector<8x16x4xbf16> to vector<128x4xbf16>
    %c8 = arith.constant 8 : index
    %c0_64 = arith.constant 0 : index
    %c0_65 = arith.constant 0 : index
    %63 = vector.load %arg5[%c8, %c0_64, %c0_65] : memref<9x4x128xbf16, #tpu.memory_space<vmem>>, vector<1x4x128xbf16>
    %64 = vector.shape_cast %63 : vector<1x4x128xbf16> to vector<4x128xbf16>
    %cst_66 = arith.constant dense<0.000000e+00> : vector<128x128xf32>
    %65 = tpu.matmul %62, %64, %cst_66 {dimension_numbers = #tpu.dot_dimension_numbers<[1], [0], [0], [1], [0, 0, 1, 1], [], []>} : vector<128x4xbf16>, vector<4x128xbf16>, vector<128x128xf32> -> vector<128x128xf32>
    %66 = arith.addf %60, %65 : vector<128x128xf32>
    %67 = vector.shape_cast %66 : vector<128x128xf32> to vector<8x16x128xf32>
    %c0_67 = arith.constant 0 : index
    %c0_68 = arith.constant 0 : index
    %c0_69 = arith.constant 0 : index
    %c0_70 = arith.constant 0 : index
    %68 = vector.load %arg6[%c0_67, %c0_68, %c0_69, %c0_70] : memref<1x8x16x128xf32, #tpu.memory_space<vmem>>, vector<1x8x16x128xf32>
    %69 = vector.shape_cast %68 : vector<1x8x16x128xf32> to vector<8x16x128xf32>
    %70 = vector.shape_cast %67 : vector<8x16x128xf32> to vector<1x8x16x128xf32>
    tpu.vector_store %arg6[%c0_67, %c0_68, %c0_69, %c0_70], %70 {strides = array<i32>} : memref<1x8x16x128xf32, #tpu.memory_space<vmem>>, vector<1x8x16x128xf32>,
    %cst_71 = arith.constant dense<0.000000e+00> : vector<128xf32>
    %71 = vector.multi_reduction <add>, %66, %cst_71 [0] : vector<128x128xf32> to vector<128xf32>
    %72 = vector.shape_cast %71 : vector<128xf32> to vector<1x128xf32>
    %73 = arith.mulf %66, %66 : vector<128x128xf32>
    %cst_72 = arith.constant dense<0.000000e+00> : vector<128xf32>
    %74 = vector.multi_reduction <add>, %73, %cst_72 [0] : vector<128x128xf32> to vector<128xf32>
    %75 = vector.shape_cast %74 : vector<128xf32> to vector<1x128xf32>
    %76 = tpu.concatenate %72, %75 in 0 : vector<1x128xf32>, vector<1x128xf32> -> vector<2x128xf32>
    %c0_73 = arith.constant 0 : index
    %c0_74 = arith.constant 0 : index
    %c0_75 = arith.constant 0 : index
    %c0_76 = arith.constant 0 : index
    %77 = vector.load %arg7[%c0_73, %c0_74, %c0_75, %c0_76] : memref<1x1x2x128xf32, #tpu.memory_space<vmem>>, vector<1x1x2x128xf32>
    %78 = vector.shape_cast %77 : vector<1x1x2x128xf32> to vector<2x128xf32>
    %79 = vector.shape_cast %76 : vector<2x128xf32> to vector<1x1x2x128xf32>
    tpu.vector_store %arg7[%c0_73, %c0_74, %c0_75, %c0_76], %79 {strides = array<i32>} : memref<1x1x2x128xf32, #tpu.memory_space<vmem>>, vector<1x1x2x128xf32>,
    return
  }
  func.func @transform_0(%arg0: i32, %arg1: i32) -> (i32, i32, i32, i32) {
    %c0_i32 = arith.constant 0 : i32
    %c0_i32_0 = arith.constant 0 : i32
    %c0_i32_1 = arith.constant 0 : i32
    return %arg0, %arg1, %c0_i32, %c0_i32_0 : i32, i32, i32, i32
  }
  func.func @transform_1(%arg0: i32, %arg1: i32) -> (i32, i32, i32, i32) {
    %c8_i32 = arith.constant 8 : i32
    %0 = arith.muli %arg1, %c8_i32 : i32
    %c1_i32 = arith.constant 1 : i32
    %1 = arith.subi %0, %c1_i32 : i32
    %c0_i32 = arith.constant 0 : i32
    %2 = arith.maxsi %1, %c0_i32 : i32
    %c0_i32_0 = arith.constant 0 : i32
    %c0_i32_1 = arith.constant 0 : i32
    %c0_i32_2 = arith.constant 0 : i32
    return %arg0, %2, %c0_i32_0, %c0_i32_1 : i32, i32, i32, i32
  }
  func.func @transform_2(%arg0: i32, %arg1: i32) -> (i32, i32, i32, i32) {
    %c8_i32 = arith.constant 8 : i32
    %0 = arith.muli %arg1, %c8_i32 : i32
    %c8_i32_0 = arith.constant 8 : i32
    %1 = arith.addi %0, %c8_i32_0 : i32
    %c15_i32 = arith.constant 15 : i32
    %2 = arith.minsi %1, %c15_i32 : i32
    %c0_i32 = arith.constant 0 : i32
    %c0_i32_1 = arith.constant 0 : i32
    %c0_i32_2 = arith.constant 0 : i32
    return %arg0, %2, %c0_i32, %c0_i32_1 : i32, i32, i32, i32
  }
  func.func @transform_3(%arg0: i32, %arg1: i32) -> (i32, i32, i32) {
    %c0_i32 = arith.constant 0 : i32
    %c0_i32_0 = arith.constant 0 : i32
    %c0_i32_1 = arith.constant 0 : i32
    %c0_i32_2 = arith.constant 0 : i32
    return %c0_i32, %c0_i32_0, %c0_i32_1 : i32, i32, i32
  }
  func.func @transform_4(%arg0: i32, %arg1: i32) -> (i32, i32, i32, i32) {
    %c0_i32 = arith.constant 0 : i32
    %c0_i32_0 = arith.constant 0 : i32
    %c0_i32_1 = arith.constant 0 : i32
    return %arg0, %arg1, %c0_i32, %c0_i32_0 : i32, i32, i32, i32
  }
  func.func @transform_5(%arg0: i32, %arg1: i32) -> (i32, i32, i32, i32) {
    %c0_i32 = arith.constant 0 : i32
    %c0_i32_0 = arith.constant 0 : i32
    %c0_i32_1 = arith.constant 0 : i32
    return %arg0, %arg1, %c0_i32, %c0_i32_0 : i32, i32, i32, i32
  }
}

module attributes {stable_mosaic.version = 11 : i64} {
  func.func @_bn_relu_conv_stats_kernel(%arg0: i32, %arg1: i32, %arg2: memref<1x8x16x128xf32, #tpu.memory_space<vmem>>, %arg3: memref<1x1x16x128xf32, #tpu.memory_space<vmem>>, %arg4: memref<1x1x16x128xf32, #tpu.memory_space<vmem>>, %arg5: memref<1x128xf32, #tpu.memory_space<vmem>>, %arg6: memref<1x128xf32, #tpu.memory_space<vmem>>, %arg7: memref<9x128x128xbf16, #tpu.memory_space<vmem>>, %arg8: memref<1x8x16x128xf32, #tpu.memory_space<vmem>>, %arg9: memref<1x1x2x128xf32, #tpu.memory_space<vmem>>, %arg10: memref<10x18x128xbf16, #tpu.memory_space<vmem>>) attributes {dimension_semantics = [#tpu.dimension_semantics<parallel>, #tpu.dimension_semantics<parallel>], iteration_bounds = array<i64: 2, 2>, scalar_prefetch = 0 : i64, scratch_operands = 1 : i64, tpu.core_type = #tpu.core_type<tc>, window_params = [{transform_indices = @transform_0, window_bounds = array<i64: 1, 8, 16, 128>}, {transform_indices = @transform_1, window_bounds = array<i64: 1, 1, 16, 128>}, {transform_indices = @transform_2, window_bounds = array<i64: 1, 1, 16, 128>}, {pipeline_mode = #tpu.pipeline_mode<synchronous>, transform_indices = @transform_3, window_bounds = array<i64: 1, 128>}, {pipeline_mode = #tpu.pipeline_mode<synchronous>, transform_indices = @transform_4, window_bounds = array<i64: 1, 128>}, {pipeline_mode = #tpu.pipeline_mode<synchronous>, transform_indices = @transform_5, window_bounds = array<i64: 9, 128, 128>}, {transform_indices = @transform_6, window_bounds = array<i64: 1, 8, 16, 128>}, {transform_indices = @transform_7, window_bounds = array<i64: 1, 1, 2, 128>}]} {
    %c0 = arith.constant 0 : index
    %c0_0 = arith.constant 0 : index
    %0 = vector.load %arg5[%c0, %c0_0] : memref<1x128xf32, #tpu.memory_space<vmem>>, vector<1x128xf32>
    %c0_1 = arith.constant 0 : index
    %c0_2 = arith.constant 0 : index
    %1 = vector.load %arg6[%c0_1, %c0_2] : memref<1x128xf32, #tpu.memory_space<vmem>>, vector<1x128xf32>
    %cst = arith.constant 0.000000e+00 : bf16
    %2 = vector.broadcast %cst : bf16 to vector<10x18x128xbf16>
    %c0_3 = arith.constant 0 : index
    %c0_4 = arith.constant 0 : index
    %c0_5 = arith.constant 0 : index
    %3 = vector.load %arg10[%c0_3, %c0_4, %c0_5] : memref<10x18x128xbf16, #tpu.memory_space<vmem>>, vector<10x18x128xbf16>
    tpu.vector_store %arg10[%c0_3, %c0_4, %c0_5], %2 {strides = array<i32>} : memref<10x18x128xbf16, #tpu.memory_space<vmem>>, vector<10x18x128xbf16>,
    %c0_6 = arith.constant 0 : index
    %c0_7 = arith.constant 0 : index
    %c0_8 = arith.constant 0 : index
    %c0_9 = arith.constant 0 : index
    %4 = vector.load %arg2[%c0_6, %c0_7, %c0_8, %c0_9] : memref<1x8x16x128xf32, #tpu.memory_space<vmem>>, vector<1x8x16x128xf32>
    %5 = vector.shape_cast %4 : vector<1x8x16x128xf32> to vector<8x16x128xf32>
    %6 = vector.shape_cast %0 : vector<1x128xf32> to vector<1x1x128xf32>
    %7 = vector.broadcast %6 : vector<1x1x128xf32> to vector<8x16x128xf32>
    %8 = arith.mulf %5, %7 : vector<8x16x128xf32>
    %9 = vector.shape_cast %1 : vector<1x128xf32> to vector<1x1x128xf32>
    %10 = vector.broadcast %9 : vector<1x1x128xf32> to vector<8x16x128xf32>
    %11 = arith.addf %8, %10 : vector<8x16x128xf32>
    %cst_10 = arith.constant 0.000000e+00 : f32
    %12 = vector.broadcast %cst_10 : f32 to vector<8x16x128xf32>
    %13 = arith.maximumf %11, %12 : vector<8x16x128xf32>
    %14 = arith.truncf %13 : vector<8x16x128xf32> to vector<8x16x128xbf16>
    %c1 = arith.constant 1 : index
    %c1_11 = arith.constant 1 : index
    %c0_12 = arith.constant 0 : index
    %15 = vector.load %arg10[%c1, %c1_11, %c0_12] : memref<10x18x128xbf16, #tpu.memory_space<vmem>>, vector<8x16x128xbf16>
    tpu.vector_store %arg10[%c1, %c1_11, %c0_12], %14 {strides = array<i32>} : memref<10x18x128xbf16, #tpu.memory_space<vmem>>, vector<8x16x128xbf16>,
    %c0_i32 = arith.constant 0 : i32
    %16 = arith.cmpi sgt, %arg1, %c0_i32 : i32
    %17 = arith.extui %16 : i1 to i32
    %c0_i32_13 = arith.constant 0 : i32
    %18 = arith.cmpi ne, %17, %c0_i32_13 : i32
    scf.if %18 {
      %c0_82 = arith.constant 0 : index
      %c0_83 = arith.constant 0 : index
      %c0_84 = arith.constant 0 : index
      %c0_85 = arith.constant 0 : index
      %90 = vector.load %arg3[%c0_82, %c0_83, %c0_84, %c0_85] : memref<1x1x16x128xf32, #tpu.memory_space<vmem>>, vector<1x1x16x128xf32>
      %91 = vector.shape_cast %90 : vector<1x1x16x128xf32> to vector<16x128xf32>
      %92 = vector.broadcast %0 : vector<1x128xf32> to vector<16x128xf32>
      %93 = arith.mulf %91, %92 : vector<16x128xf32>
      %94 = vector.broadcast %1 : vector<1x128xf32> to vector<16x128xf32>
      %95 = arith.addf %93, %94 : vector<16x128xf32>
      %cst_86 = arith.constant 0.000000e+00 : f32
      %96 = vector.broadcast %cst_86 : f32 to vector<16x128xf32>
      %97 = arith.maximumf %95, %96 : vector<16x128xf32>
      %98 = arith.truncf %97 : vector<16x128xf32> to vector<16x128xbf16>
      %c0_87 = arith.constant 0 : index
      %c1_88 = arith.constant 1 : index
      %c0_89 = arith.constant 0 : index
      %99 = vector.load %arg10[%c0_87, %c1_88, %c0_89] : memref<10x18x128xbf16, #tpu.memory_space<vmem>>, vector<1x16x128xbf16>
      %100 = vector.shape_cast %99 : vector<1x16x128xbf16> to vector<16x128xbf16>
      %101 = vector.shape_cast %98 : vector<16x128xbf16> to vector<1x16x128xbf16>
      tpu.vector_store %arg10[%c0_87, %c1_88, %c0_89], %101 {strides = array<i32>} : memref<10x18x128xbf16, #tpu.memory_space<vmem>>, vector<1x16x128xbf16>,
    } else {
    }
    %c1_i32 = arith.constant 1 : i32
    %19 = arith.cmpi slt, %arg1, %c1_i32 : i32
    %20 = arith.extui %19 : i1 to i32
    %c0_i32_14 = arith.constant 0 : i32
    %21 = arith.cmpi ne, %20, %c0_i32_14 : i32
    scf.if %21 {
      %c0_82 = arith.constant 0 : index
      %c0_83 = arith.constant 0 : index
      %c0_84 = arith.constant 0 : index
      %c0_85 = arith.constant 0 : index
      %90 = vector.load %arg4[%c0_82, %c0_83, %c0_84, %c0_85] : memref<1x1x16x128xf32, #tpu.memory_space<vmem>>, vector<1x1x16x128xf32>
      %91 = vector.shape_cast %90 : vector<1x1x16x128xf32> to vector<16x128xf32>
      %92 = vector.broadcast %0 : vector<1x128xf32> to vector<16x128xf32>
      %93 = arith.mulf %91, %92 : vector<16x128xf32>
      %94 = vector.broadcast %1 : vector<1x128xf32> to vector<16x128xf32>
      %95 = arith.addf %93, %94 : vector<16x128xf32>
      %cst_86 = arith.constant 0.000000e+00 : f32
      %96 = vector.broadcast %cst_86 : f32 to vector<16x128xf32>
      %97 = arith.maximumf %95, %96 : vector<16x128xf32>
      %98 = arith.truncf %97 : vector<16x128xf32> to vector<16x128xbf16>
      %c9 = arith.constant 9 : index
      %c1_87 = arith.constant 1 : index
      %c0_88 = arith.constant 0 : index
      %99 = vector.load %arg10[%c9, %c1_87, %c0_88] : memref<10x18x128xbf16, #tpu.memory_space<vmem>>, vector<1x16x128xbf16>
      %100 = vector.shape_cast %99 : vector<1x16x128xbf16> to vector<16x128xbf16>
      %101 = vector.shape_cast %98 : vector<16x128xbf16> to vector<1x16x128xbf16>
      tpu.vector_store %arg10[%c9, %c1_87, %c0_88], %101 {strides = array<i32>} : memref<10x18x128xbf16, #tpu.memory_space<vmem>>, vector<1x16x128xbf16>,
    } else {
    }
    %cst_15 = arith.constant 0.000000e+00 : f32
    %22 = vector.broadcast %cst_15 : f32 to vector<128x128xf32>
    %c0_16 = arith.constant 0 : index
    %c0_17 = arith.constant 0 : index
    %c0_18 = arith.constant 0 : index
    %23 = vector.load %arg10[%c0_16, %c0_17, %c0_18] : memref<10x18x128xbf16, #tpu.memory_space<vmem>>, vector<8x16x128xbf16>
    %24 = vector.shape_cast %23 : vector<8x16x128xbf16> to vector<128x128xbf16>
    %c0_19 = arith.constant 0 : index
    %c0_20 = arith.constant 0 : index
    %c0_21 = arith.constant 0 : index
    %25 = vector.load %arg7[%c0_19, %c0_20, %c0_21] : memref<9x128x128xbf16, #tpu.memory_space<vmem>>, vector<1x128x128xbf16>
    %26 = vector.shape_cast %25 : vector<1x128x128xbf16> to vector<128x128xbf16>
    %cst_22 = arith.constant dense<0.000000e+00> : vector<128x128xf32>
    %27 = tpu.matmul %24, %26, %cst_22 {dimension_numbers = #tpu.dot_dimension_numbers<[1], [0], [0], [1], [0, 0, 1, 1], [], []>} : vector<128x128xbf16>, vector<128x128xbf16>, vector<128x128xf32> -> vector<128x128xf32>
    %28 = arith.addf %22, %27 : vector<128x128xf32>
    %c0_23 = arith.constant 0 : index
    %c1_24 = arith.constant 1 : index
    %c0_25 = arith.constant 0 : index
    %29 = vector.load %arg10[%c0_23, %c1_24, %c0_25] : memref<10x18x128xbf16, #tpu.memory_space<vmem>>, vector<8x16x128xbf16>
    %30 = vector.shape_cast %29 : vector<8x16x128xbf16> to vector<128x128xbf16>
    %c1_26 = arith.constant 1 : index
    %c0_27 = arith.constant 0 : index
    %c0_28 = arith.constant 0 : index
    %31 = vector.load %arg7[%c1_26, %c0_27, %c0_28] : memref<9x128x128xbf16, #tpu.memory_space<vmem>>, vector<1x128x128xbf16>
    %32 = vector.shape_cast %31 : vector<1x128x128xbf16> to vector<128x128xbf16>
    %cst_29 = arith.constant dense<0.000000e+00> : vector<128x128xf32>
    %33 = tpu.matmul %30, %32, %cst_29 {dimension_numbers = #tpu.dot_dimension_numbers<[1], [0], [0], [1], [0, 0, 1, 1], [], []>} : vector<128x128xbf16>, vector<128x128xbf16>, vector<128x128xf32> -> vector<128x128xf32>
    %34 = arith.addf %28, %33 : vector<128x128xf32>
    %c0_30 = arith.constant 0 : index
    %c2 = arith.constant 2 : index
    %c0_31 = arith.constant 0 : index
    %35 = vector.load %arg10[%c0_30, %c2, %c0_31] : memref<10x18x128xbf16, #tpu.memory_space<vmem>>, vector<8x16x128xbf16>
    %36 = vector.shape_cast %35 : vector<8x16x128xbf16> to vector<128x128xbf16>
    %c2_32 = arith.constant 2 : index
    %c0_33 = arith.constant 0 : index
    %c0_34 = arith.constant 0 : index
    %37 = vector.load %arg7[%c2_32, %c0_33, %c0_34] : memref<9x128x128xbf16, #tpu.memory_space<vmem>>, vector<1x128x128xbf16>
    %38 = vector.shape_cast %37 : vector<1x128x128xbf16> to vector<128x128xbf16>
    %cst_35 = arith.constant dense<0.000000e+00> : vector<128x128xf32>
    %39 = tpu.matmul %36, %38, %cst_35 {dimension_numbers = #tpu.dot_dimension_numbers<[1], [0], [0], [1], [0, 0, 1, 1], [], []>} : vector<128x128xbf16>, vector<128x128xbf16>, vector<128x128xf32> -> vector<128x128xf32>
    %40 = arith.addf %34, %39 : vector<128x128xf32>
    %c1_36 = arith.constant 1 : index
    %c0_37 = arith.constant 0 : index
    %c0_38 = arith.constant 0 : index
    %41 = vector.load %arg10[%c1_36, %c0_37, %c0_38] : memref<10x18x128xbf16, #tpu.memory_space<vmem>>, vector<8x16x128xbf16>
    %42 = vector.shape_cast %41 : vector<8x16x128xbf16> to vector<128x128xbf16>
    %c3 = arith.constant 3 : index
    %c0_39 = arith.constant 0 : index
    %c0_40 = arith.constant 0 : index
    %43 = vector.load %arg7[%c3, %c0_39, %c0_40] : memref<9x128x128xbf16, #tpu.memory_space<vmem>>, vector<1x128x128xbf16>
    %44 = vector.shape_cast %43 : vector<1x128x128xbf16> to vector<128x128xbf16>
    %cst_41 = arith.constant dense<0.000000e+00> : vector<128x128xf32>
    %45 = tpu.matmul %42, %44, %cst_41 {dimension_numbers = #tpu.dot_dimension_numbers<[1], [0], [0], [1], [0, 0, 1, 1], [], []>} : vector<128x128xbf16>, vector<128x128xbf16>, vector<128x128xf32> -> vector<128x128xf32>
    %46 = arith.addf %40, %45 : vector<128x128xf32>
    %c1_42 = arith.constant 1 : index
    %c1_43 = arith.constant 1 : index
    %c0_44 = arith.constant 0 : index
    %47 = vector.load %arg10[%c1_42, %c1_43, %c0_44] : memref<10x18x128xbf16, #tpu.memory_space<vmem>>, vector<8x16x128xbf16>
    %48 = vector.shape_cast %47 : vector<8x16x128xbf16> to vector<128x128xbf16>
    %c4 = arith.constant 4 : index
    %c0_45 = arith.constant 0 : index
    %c0_46 = arith.constant 0 : index
    %49 = vector.load %arg7[%c4, %c0_45, %c0_46] : memref<9x128x128xbf16, #tpu.memory_space<vmem>>, vector<1x128x128xbf16>
    %50 = vector.shape_cast %49 : vector<1x128x128xbf16> to vector<128x128xbf16>
    %cst_47 = arith.constant dense<0.000000e+00> : vector<128x128xf32>
    %51 = tpu.matmul %48, %50, %cst_47 {dimension_numbers = #tpu.dot_dimension_numbers<[1], [0], [0], [1], [0, 0, 1, 1], [], []>} : vector<128x128xbf16>, vector<128x128xbf16>, vector<128x128xf32> -> vector<128x128xf32>
    %52 = arith.addf %46, %51 : vector<128x128xf32>
    %c1_48 = arith.constant 1 : index
    %c2_49 = arith.constant 2 : index
    %c0_50 = arith.constant 0 : index
    %53 = vector.load %arg10[%c1_48, %c2_49, %c0_50] : memref<10x18x128xbf16, #tpu.memory_space<vmem>>, vector<8x16x128xbf16>
    %54 = vector.shape_cast %53 : vector<8x16x128xbf16> to vector<128x128xbf16>
    %c5 = arith.constant 5 : index
    %c0_51 = arith.constant 0 : index
    %c0_52 = arith.constant 0 : index
    %55 = vector.load %arg7[%c5, %c0_51, %c0_52] : memref<9x128x128xbf16, #tpu.memory_space<vmem>>, vector<1x128x128xbf16>
    %56 = vector.shape_cast %55 : vector<1x128x128xbf16> to vector<128x128xbf16>
    %cst_53 = arith.constant dense<0.000000e+00> : vector<128x128xf32>
    %57 = tpu.matmul %54, %56, %cst_53 {dimension_numbers = #tpu.dot_dimension_numbers<[1], [0], [0], [1], [0, 0, 1, 1], [], []>} : vector<128x128xbf16>, vector<128x128xbf16>, vector<128x128xf32> -> vector<128x128xf32>
    %58 = arith.addf %52, %57 : vector<128x128xf32>
    %c2_54 = arith.constant 2 : index
    %c0_55 = arith.constant 0 : index
    %c0_56 = arith.constant 0 : index
    %59 = vector.load %arg10[%c2_54, %c0_55, %c0_56] : memref<10x18x128xbf16, #tpu.memory_space<vmem>>, vector<8x16x128xbf16>
    %60 = vector.shape_cast %59 : vector<8x16x128xbf16> to vector<128x128xbf16>
    %c6 = arith.constant 6 : index
    %c0_57 = arith.constant 0 : index
    %c0_58 = arith.constant 0 : index
    %61 = vector.load %arg7[%c6, %c0_57, %c0_58] : memref<9x128x128xbf16, #tpu.memory_space<vmem>>, vector<1x128x128xbf16>
    %62 = vector.shape_cast %61 : vector<1x128x128xbf16> to vector<128x128xbf16>
    %cst_59 = arith.constant dense<0.000000e+00> : vector<128x128xf32>
    %63 = tpu.matmul %60, %62, %cst_59 {dimension_numbers = #tpu.dot_dimension_numbers<[1], [0], [0], [1], [0, 0, 1, 1], [], []>} : vector<128x128xbf16>, vector<128x128xbf16>, vector<128x128xf32> -> vector<128x128xf32>
    %64 = arith.addf %58, %63 : vector<128x128xf32>
    %c2_60 = arith.constant 2 : index
    %c1_61 = arith.constant 1 : index
    %c0_62 = arith.constant 0 : index
    %65 = vector.load %arg10[%c2_60, %c1_61, %c0_62] : memref<10x18x128xbf16, #tpu.memory_space<vmem>>, vector<8x16x128xbf16>
    %66 = vector.shape_cast %65 : vector<8x16x128xbf16> to vector<128x128xbf16>
    %c7 = arith.constant 7 : index
    %c0_63 = arith.constant 0 : index
    %c0_64 = arith.constant 0 : index
    %67 = vector.load %arg7[%c7, %c0_63, %c0_64] : memref<9x128x128xbf16, #tpu.memory_space<vmem>>, vector<1x128x128xbf16>
    %68 = vector.shape_cast %67 : vector<1x128x128xbf16> to vector<128x128xbf16>
    %cst_65 = arith.constant dense<0.000000e+00> : vector<128x128xf32>
    %69 = tpu.matmul %66, %68, %cst_65 {dimension_numbers = #tpu.dot_dimension_numbers<[1], [0], [0], [1], [0, 0, 1, 1], [], []>} : vector<128x128xbf16>, vector<128x128xbf16>, vector<128x128xf32> -> vector<128x128xf32>
    %70 = arith.addf %64, %69 : vector<128x128xf32>
    %c2_66 = arith.constant 2 : index
    %c2_67 = arith.constant 2 : index
    %c0_68 = arith.constant 0 : index
    %71 = vector.load %arg10[%c2_66, %c2_67, %c0_68] : memref<10x18x128xbf16, #tpu.memory_space<vmem>>, vector<8x16x128xbf16>
    %72 = vector.shape_cast %71 : vector<8x16x128xbf16> to vector<128x128xbf16>
    %c8 = arith.constant 8 : index
    %c0_69 = arith.constant 0 : index
    %c0_70 = arith.constant 0 : index
    %73 = vector.load %arg7[%c8, %c0_69, %c0_70] : memref<9x128x128xbf16, #tpu.memory_space<vmem>>, vector<1x128x128xbf16>
    %74 = vector.shape_cast %73 : vector<1x128x128xbf16> to vector<128x128xbf16>
    %cst_71 = arith.constant dense<0.000000e+00> : vector<128x128xf32>
    %75 = tpu.matmul %72, %74, %cst_71 {dimension_numbers = #tpu.dot_dimension_numbers<[1], [0], [0], [1], [0, 0, 1, 1], [], []>} : vector<128x128xbf16>, vector<128x128xbf16>, vector<128x128xf32> -> vector<128x128xf32>
    %76 = arith.addf %70, %75 : vector<128x128xf32>
    %77 = vector.shape_cast %76 : vector<128x128xf32> to vector<8x16x128xf32>
    %c0_72 = arith.constant 0 : index
    %c0_73 = arith.constant 0 : index
    %c0_74 = arith.constant 0 : index
    %c0_75 = arith.constant 0 : index
    %78 = vector.load %arg8[%c0_72, %c0_73, %c0_74, %c0_75] : memref<1x8x16x128xf32, #tpu.memory_space<vmem>>, vector<1x8x16x128xf32>
    %79 = vector.shape_cast %78 : vector<1x8x16x128xf32> to vector<8x16x128xf32>
    %80 = vector.shape_cast %77 : vector<8x16x128xf32> to vector<1x8x16x128xf32>
    tpu.vector_store %arg8[%c0_72, %c0_73, %c0_74, %c0_75], %80 {strides = array<i32>} : memref<1x8x16x128xf32, #tpu.memory_space<vmem>>, vector<1x8x16x128xf32>,
    %cst_76 = arith.constant dense<0.000000e+00> : vector<128xf32>
    %81 = vector.multi_reduction <add>, %76, %cst_76 [0] : vector<128x128xf32> to vector<128xf32>
    %82 = vector.shape_cast %81 : vector<128xf32> to vector<1x128xf32>
    %83 = arith.mulf %76, %76 : vector<128x128xf32>
    %cst_77 = arith.constant dense<0.000000e+00> : vector<128xf32>
    %84 = vector.multi_reduction <add>, %83, %cst_77 [0] : vector<128x128xf32> to vector<128xf32>
    %85 = vector.shape_cast %84 : vector<128xf32> to vector<1x128xf32>
    %86 = tpu.concatenate %82, %85 in 0 : vector<1x128xf32>, vector<1x128xf32> -> vector<2x128xf32>
    %c0_78 = arith.constant 0 : index
    %c0_79 = arith.constant 0 : index
    %c0_80 = arith.constant 0 : index
    %c0_81 = arith.constant 0 : index
    %87 = vector.load %arg9[%c0_78, %c0_79, %c0_80, %c0_81] : memref<1x1x2x128xf32, #tpu.memory_space<vmem>>, vector<1x1x2x128xf32>
    %88 = vector.shape_cast %87 : vector<1x1x2x128xf32> to vector<2x128xf32>
    %89 = vector.shape_cast %86 : vector<2x128xf32> to vector<1x1x2x128xf32>
    tpu.vector_store %arg9[%c0_78, %c0_79, %c0_80, %c0_81], %89 {strides = array<i32>} : memref<1x1x2x128xf32, #tpu.memory_space<vmem>>, vector<1x1x2x128xf32>,
    return
  }
  func.func @transform_0(%arg0: i32, %arg1: i32) -> (i32, i32, i32, i32) {
    %c0_i32 = arith.constant 0 : i32
    %c0_i32_0 = arith.constant 0 : i32
    %c0_i32_1 = arith.constant 0 : i32
    return %arg0, %arg1, %c0_i32, %c0_i32_0 : i32, i32, i32, i32
  }
  func.func @transform_1(%arg0: i32, %arg1: i32) -> (i32, i32, i32, i32) {
    %c8_i32 = arith.constant 8 : i32
    %0 = arith.muli %arg1, %c8_i32 : i32
    %c1_i32 = arith.constant 1 : i32
    %1 = arith.subi %0, %c1_i32 : i32
    %c0_i32 = arith.constant 0 : i32
    %2 = arith.maxsi %1, %c0_i32 : i32
    %c0_i32_0 = arith.constant 0 : i32
    %c0_i32_1 = arith.constant 0 : i32
    %c0_i32_2 = arith.constant 0 : i32
    return %arg0, %2, %c0_i32_0, %c0_i32_1 : i32, i32, i32, i32
  }
  func.func @transform_2(%arg0: i32, %arg1: i32) -> (i32, i32, i32, i32) {
    %c8_i32 = arith.constant 8 : i32
    %0 = arith.muli %arg1, %c8_i32 : i32
    %c8_i32_0 = arith.constant 8 : i32
    %1 = arith.addi %0, %c8_i32_0 : i32
    %c15_i32 = arith.constant 15 : i32
    %2 = arith.minsi %1, %c15_i32 : i32
    %c0_i32 = arith.constant 0 : i32
    %c0_i32_1 = arith.constant 0 : i32
    %c0_i32_2 = arith.constant 0 : i32
    return %arg0, %2, %c0_i32, %c0_i32_1 : i32, i32, i32, i32
  }
  func.func @transform_3(%arg0: i32, %arg1: i32) -> (i32, i32) {
    %c0_i32 = arith.constant 0 : i32
    %c0_i32_0 = arith.constant 0 : i32
    %c0_i32_1 = arith.constant 0 : i32
    return %c0_i32, %c0_i32_0 : i32, i32
  }
  func.func @transform_4(%arg0: i32, %arg1: i32) -> (i32, i32) {
    %c0_i32 = arith.constant 0 : i32
    %c0_i32_0 = arith.constant 0 : i32
    %c0_i32_1 = arith.constant 0 : i32
    return %c0_i32, %c0_i32_0 : i32, i32
  }
  func.func @transform_5(%arg0: i32, %arg1: i32) -> (i32, i32, i32) {
    %c0_i32 = arith.constant 0 : i32
    %c0_i32_0 = arith.constant 0 : i32
    %c0_i32_1 = arith.constant 0 : i32
    %c0_i32_2 = arith.constant 0 : i32
    return %c0_i32, %c0_i32_0, %c0_i32_1 : i32, i32, i32
  }
  func.func @transform_6(%arg0: i32, %arg1: i32) -> (i32, i32, i32, i32) {
    %c0_i32 = arith.constant 0 : i32
    %c0_i32_0 = arith.constant 0 : i32
    %c0_i32_1 = arith.constant 0 : i32
    return %arg0, %arg1, %c0_i32, %c0_i32_0 : i32, i32, i32, i32
  }
  func.func @transform_7(%arg0: i32, %arg1: i32) -> (i32, i32, i32, i32) {
    %c0_i32 = arith.constant 0 : i32
    %c0_i32_0 = arith.constant 0 : i32
    %c0_i32_1 = arith.constant 0 : i32
    return %arg0, %arg1, %c0_i32, %c0_i32_0 : i32, i32, i32, i32
  }
}

</mosaic_0001>

<llo_original>
// kernel: double_conv_forward.5
$region0: #{double_conv_forward.5}
  #allocation0 [shape = 'u32[]', space=smem, size = 0x4, offset = 0x4, fixed_abs, tag = 'smem constant byte address 0x4 - core index']
  #allocation1 [shape = 'u32[144,128]{1,0:T(1,128)}', space=vmem, size = 0x12000, scoped, tag = 'internal scratch']
  %s0 = inlined_call_operand.vmem [shape: f32[2,16,16,128], index: 0, kind: input, shape index: {}]
  %s1 = inlined_call_operand.vmem [shape: f32[1,128], index: 1, kind: input, shape index: {}]
  %s2 = inlined_call_operand.vmem [shape: f32[1,128], index: 2, kind: input, shape index: {}]
  %s3 = inlined_call_operand.vmem [shape: f32[2,16,16,8], index: 3, kind: output, shape index: {}]
  %s4 = sld [smem:[#allocation0]]
  $region45: #{double_conv_forward.5} parent=0
    _
  %s6 = ssub.s32 1, %s4
  %s7 = scalar_select 0, %s6, %s4
  loop: start=0, step=1, limit=6
  $region2: #{double_conv_forward.5} parent=0 // loop_pre_header
    _
  $region3: #{double_conv_forward.5} parent=0 // loop_header
    %s9 = sphi 0, %s13
    %p10 = scmp.ge.s32.totalorder %s9, 6
    %s16 = sphi 0, %s28
    %s17 = sphi 0, %s24
    %s18 = sphi 0, %s16
    %s19 = sphi 0, %s17
    %s20 = sphi 0, %s18
    %s21 = sphi 0, %s19
    %s33 = sphi 0, %s35
    %s36 = sphi 0, %s33
    %s37 = sphi 0, %s36
    %s53 = sphi 0, %s37
    %s57 = sphi 0, %s57
    %s59 = sphi 0, %s57
    %s60 = sphi 0, %s59
    %s74 = sphi 0, %s60
    %s78 = sphi 0, %s78
    %s80 = sphi 0, %s78
    %s81 = sphi 0, %s80
    %s95 = sphi 0, %s81
    %s103 = sphi 0, %s105
    %s106 = sphi 0, %s103
    %s107 = sphi 0, %s106
    %s123 = sphi 0, %s107
  $region4: #{double_conv_forward.5} parent=0 // loop_header_branch
    %12 = sbr.rel (%p10) target = $region8
  $region5: #{double_conv_forward.5} parent=0 // loop_body
    %s14 = ssub.s32 %s9, 1
    %s15 = ssub.s32 %s9, 2
    %s22 = sadd.s32 1, %s17
    %p23 = scmp.ge.s32.totalorder %s22, 2
    %s24 = scalar_select %p23, 0, %s22
    %s25 = sadd.s32 1, %s16
    %s26 = scalar_select %p23, %s25, %s16
    %p27 = scmp.ge.s32.totalorder %s26, 2
    %s28 = scalar_select %p27, 0, %s26
    %s29 = ssub.s32 %s16, %s28
    %s30 = ssub.s32 %s17, %s24
    %s31 = sor.u32 %s29, %s30
    %p32 = scmp.eq.s32.totalorder %s31, 0
    %s34 = sadd.s32 %s33, 1
    %s35 = scalar_select %p32, %s33, %s34
    %p38 = pneg %p32
    %p39 = scmp.eq.s32.totalorder %s9, 3
    %p40 = por %p38, %p39
    %p41 = scmp.ne.s32.totalorder %s33, %s36
    %p42 = scmp.eq.s32.totalorder %s9, 0
    %p43 = por %p41, %p42
    %p44 = scmp.ne.s32.totalorder %s33, %s36
    %p45 = scmp.eq.s32.totalorder %s14, 3
    %p46 = por %p44, %p45
    %p47 = scmp.ne.s32.totalorder %s36, %s37
    %p48 = scmp.eq.s32.totalorder %s14, 0
    %p49 = por %p47, %p48
    %p50 = scmp.ne.s32.totalorder %s36, %s37
    %p51 = scmp.eq.s32.totalorder %s15, 3
    %p52 = por %p50, %p51
    %p54 = scmp.ne.s32.totalorder %s37, %s53
    %p55 = scmp.eq.s32.totalorder %s15, 0
    %p56 = por %p54, %p55
    %s58 = sadd.s32 %s57, 1
    %p61 = scmp.eq.s32.totalorder %s9, 3
    %p62 = scmp.ne.s32.totalorder %s57, %s59
    %p63 = scmp.eq.s32.totalorder %s9, 0
    %p64 = por %p62, %p63
    %p65 = scmp.ne.s32.totalorder %s57, %s59
    %p66 = scmp.eq.s32.totalorder %s14, 3
    %p67 = por %p65, %p66
    %p68 = scmp.ne.s32.totalorder %s59, %s60
    %p69 = scmp.eq.s32.totalorder %s14, 0
    %p70 = por %p68, %p69
    %p71 = scmp.ne.s32.totalorder %s59, %s60
    %p72 = scmp.eq.s32.totalorder %s15, 3
    %p73 = por %p71, %p72
    %p75 = scmp.ne.s32.totalorder %s60, %s74
    %p76 = scmp.eq.s32.totalorder %s15, 0
    %p77 = por %p75, %p76
    %s79 = sadd.s32 %s78, 1
    %p82 = scmp.eq.s32.totalorder %s9, 3
    %p83 = scmp.ne.s32.totalorder %s78, %s80
    %p84 = scmp.eq.s32.totalorder %s9, 0
    %p85 = por %p83, %p84
    %p86 = scmp.ne.s32.totalorder %s78, %s80
    %p87 = scmp.eq.s32.totalorder %s14, 3
    %p88 = por %p86, %p87
    %p89 = scmp.ne.s32.totalorder %s80, %s81
    %p90 = scmp.eq.s32.totalorder %s14, 0
    %p91 = por %p89, %p90
    %p92 = scmp.ne.s32.totalorder %s80, %s81
    %p93 = scmp.eq.s32.totalorder %s15, 3
    %p94 = por %p92, %p93
    %p96 = scmp.ne.s32.totalorder %s81, %s95
    %p97 = scmp.eq.s32.totalorder %s15, 0
    %p98 = por %p96, %p97
    %s99 = ssub.s32 %s16, %s28
    %s100 = ssub.s32 %s17, %s24
    %s101 = sor.u32 %s99, %s100
    %p102 = scmp.eq.s32.totalorder %s101, 0
    %s104 = sadd.s32 %s103, 1
    %s105 = scalar_select %p102, %s103, %s104
    %p108 = pneg %p102
    %p109 = scmp.eq.s32.totalorder %s9, 3
    %p110 = por %p108, %p109
    %p111 = scmp.ne.s32.totalorder %s103, %s106
    %p112 = scmp.eq.s32.totalorder %s9, 0
    %p113 = por %p111, %p112
    %p114 = scmp.ne.s32.totalorder %s103, %s106
    %p115 = scmp.eq.s32.totalorder %s14, 3
    %p116 = por %p114, %p115
    %p117 = scmp.ne.s32.totalorder %s106, %s107
    %p118 = scmp.eq.s32.totalorder %s14, 0
    %p119 = por %p117, %p118
    %p120 = scmp.ne.s32.totalorder %s106, %s107
    %p121 = scmp.eq.s32.totalorder %s15, 3
    %p122 = por %p120, %p121
    %p124 = scmp.ne.s32.totalorder %s107, %s123
    %p125 = scmp.eq.s32.totalorder %s15, 0
    %p126 = por %p124, %p125
    %p127 = scmp.le.s32.totalorder 1, %s9
    %p128 = scmp.lt.s32.totalorder %s9, 5
    %p129 = pnand %p127, %p128
    %p130 = pneg %p129
    // Predicated region
    $region9: #{double_conv_forward.5} parent=5 // pred_check
      _
    $region10: #{double_conv_forward.5} parent=5 // pred_check_branch
      %132 = sbr.rel (%p129) target = $region12
    $region11: #{double_conv_forward.5} parent=5 // pred_region
      %s133 = ssub.s32 %s9, 1
      // Predicated region
      $region13: #{double_conv_forward.5} parent=11 // pred_check
        %p134 = pneg %p70
      $region14: #{double_conv_forward.5} parent=11 // pred_check_branch
        %136 = sbr.rel (%p134) target = $region16
      $region15: #{double_conv_forward.5} parent=11 // pred_region
        _
      $region16: #{double_conv_forward.5} parent=11 // pred_fallthru
        _
      // Predicated region
      $region17: #{double_conv_forward.5} parent=11 // pred_check
        %p137 = pneg %p91
      $region18: #{double_conv_forward.5} parent=11 // pred_check_branch
        %139 = sbr.rel (%p137) target = $region20
      $region19: #{double_conv_forward.5} parent=11 // pred_region
        _
      $region20: #{double_conv_forward.5} parent=11 // pred_fallthru
        _
    $region12: #{double_conv_forward.5} parent=5 // pred_fallthru
      _
    %p140 = scmp.lt.s32.totalorder %s9, 4
    // Predicated region
    $region21: #{double_conv_forward.5} parent=5 // pred_check
      %p141 = pneg %p140
    $region22: #{double_conv_forward.5} parent=5 // pred_check_branch
      %143 = sbr.rel (%p141) target = $region24
    $region23: #{double_conv_forward.5} parent=5 // pred_region
      // Predicated region
      $region25: #{double_conv_forward.5} parent=23 // pred_check
        %p144 = pneg %p43
      $region26: #{double_conv_forward.5} parent=23 // pred_check_branch
        %146 = sbr.rel (%p144) target = $region28
      $region27: #{double_conv_forward.5} parent=23 // pred_region
        %s147 = smul.u32 8, %s17
        %p148 = scmp.lt.s32.totalorder %s16, 1
        %s149 = scalar_select %p148, %s16, 1
        %p150 = scmp.lt.s32.totalorder %s147, 15
        %s151 = scalar_select %p150, %s147, 15
        %s152 = smul.addr %s151, 2
        %s153 = smul.addr %s149, 32
        %s154 = sadd.s32 %s152, %s153
        %s155 = smul.addr %s154, 8
        %s156 = scalar_lea.vmem %s0, %s155
        %s157 = smul.u32 8, %s17
      $region28: #{double_conv_forward.5} parent=23 // pred_fallthru
        _
    $region24: #{double_conv_forward.5} parent=5 // pred_fallthru
      _
    %p158 = scmp.le.s32.totalorder 1, %s9
    %p159 = scmp.lt.s32.totalorder %s9, 5
    %p160 = pnand %p158, %p159
    %p161 = pneg %p160
    // Predicated region
    $region29: #{double_conv_forward.5} parent=5 // pred_check
      _
    $region30: #{double_conv_forward.5} parent=5 // pred_check_branch
      %163 = sbr.rel (%p160) target = $region32
    $region31: #{double_conv_forward.5} parent=5 // pred_region
      %s164 = ssub.s32 %s9, 1
      %s165 = smul.u32 8, %s19
      %p166 = scmp.lt.s32.totalorder %s18, 1
      %s167 = scalar_select %p166, %s18, 1
      %p168 = scmp.lt.s32.totalorder %s165, 15
      %s169 = scalar_select %p168, %s165, 15
      %s170 = smul.addr %s169, 2
      %s171 = smul.addr %s167, 32
      %s172 = sadd.s32 %s170, %s171
      %s173 = smul.addr %s172, 8
      %s174 = scalar_lea.vmem %s0, %s173
      %p175 = pneg %p49
      %p176 = pneg %p46
      %p177 = pneg %p70
      %p178 = pneg %p67
      %p179 = pneg %p91
      %p180 = pneg %p88
      %p181 = pneg %p119
      %p182 = pneg %p116
      %s183 = smul.u32 8, %s19
      %p184 = scmp.lt.s32.totalorder %s18, 1
      %s185 = scalar_select %p184, %s18, 1
      %p186 = scmp.lt.s32.totalorder %s183, 15
      %s187 = scalar_select %p186, %s183, 15
      %s188 = smul.addr %s187, 2
      %s189 = smul.addr %s185, 32
      %s190 = sadd.s32 %s188, %s189
      %s191 = smul.addr %s190, 8
      %s192 = scalar_lea.vmem %s3, %s191
      %s193 = smul.u32 8, %s19
      %p194 = scmp.lt.s32.totalorder %s18, 1
      %s195 = scalar_select %p194, %s18, 1
      %p196 = scmp.lt.s32.totalorder %s193, 15
      %s197 = scalar_select %p196, %s193, 15
      %s198 = smul.addr %s197, 2
      %s199 = smul.addr %s195, 32
      %s200 = sadd.s32 %s198, %s199
      %s201 = smul.addr %s200, 8
      %s202 = scalar_lea.vmem %s0, %s201
      %s203 = smul.u32 8, %s19
      %s204 = smul.u32 8, %s19
      %p205 = scmp.lt.s32.totalorder %s18, 1
      %s206 = scalar_select %p205, %s18, 1
      %p207 = scmp.lt.s32.totalorder %s204, 15
      %s208 = scalar_select %p207, %s204, 15
      %s209 = smul.addr %s208, 2
      %s210 = smul.addr %s206, 32
      %s211 = sadd.s32 %s209, %s210
      %s212 = smul.addr %s211, 8
      %s213 = scalar_lea.vmem %s3, %s212
      %s214 = smul.u32 8, %s19
      %v215 = vld [vmem:[%s202] sm:$0xff]
      %v216 = vld [vmem:[%s202 + $0x8] sm:$0xff]
      %v217 = vld [vmem:[%s202 + $0x10] sm:$0xff]
      %v218 = vld [vmem:[%s202 + $0x18] sm:$0xff]
      %v219 = vld [vmem:[%s202 + $0x20] sm:$0xff]
      %v220 = vld [vmem:[%s202 + $0x28] sm:$0xff]
      %v221 = vld [vmem:[%s202 + $0x30] sm:$0xff]
      %v222 = vld [vmem:[%s202 + $0x38] sm:$0xff]
      %v223 = vld [vmem:[%s202 + $0x40] sm:$0xff]
      %v224 = vld [vmem:[%s202 + $0x48] sm:$0xff]
      %v225 = vld [vmem:[%s202 + $0x50] sm:$0xff]
      %v226 = vld [vmem:[%s202 + $0x58] sm:$0xff]
      %v227 = vld [vmem:[%s202 + $0x60] sm:$0xff]
      %v228 = vld [vmem:[%s202 + $0x68] sm:$0xff]
      %v229 = vld [vmem:[%s202 + $0x70] sm:$0xff]
      %v230 = vld [vmem:[%s202 + $0x78] sm:$0xff]
      %v231 = vld [vmem:[%s1] sm:$0x1]
      %v233 = vlaneseq
      %v234 = vshrl.u32 %v233, 7
      %v235 = vsub.s32 0, %v234
      %v236 = vrot.slane %v231, %v235
      %v238 = vmul.f32 %v215, %v236
      %v239 = vmul.f32 %v216, %v236
      %v240 = vmul.f32 %v217, %v236
      %v241 = vmul.f32 %v218, %v236
      %v242 = vmul.f32 %v219, %v236
      %v243 = vmul.f32 %v220, %v236
      %v244 = vmul.f32 %v221, %v236
      %v245 = vmul.f32 %v222, %v236
      %v246 = vmul.f32 %v223, %v236
      %v247 = vmul.f32 %v224, %v236
      %v248 = vmul.f32 %v225, %v236
      %v249 = vmul.f32 %v226, %v236
      %v250 = vmul.f32 %v227, %v236
      %v251 = vmul.f32 %v228, %v236
      %v252 = vmul.f32 %v229, %v236
      %v253 = vmul.f32 %v230, %v236
      %v254 = vld [vmem:[%s2] sm:$0x1]
      %v256 = vlaneseq
      %v257 = vshrl.u32 %v256, 7
      %v258 = vsub.s32 0, %v257
      %v259 = vrot.slane %v254, %v258
      %v261 = vadd.f32 %v238, %v259
      %v262 = vadd.f32 %v239, %v259
      %v263 = vadd.f32 %v240, %v259
      %v264 = vadd.f32 %v241, %v259
      %v265 = vadd.f32 %v242, %v259
      %v266 = vadd.f32 %v243, %v259
      %v267 = vadd.f32 %v244, %v259
      %v268 = vadd.f32 %v245, %v259
      %v269 = vadd.f32 %v246, %v259
      %v270 = vadd.f32 %v247, %v259
      %v271 = vadd.f32 %v248, %v259
      %v272 = vadd.f32 %v249, %v259
      %v273 = vadd.f32 %v250, %v259
      %v274 = vadd.f32 %v251, %v259
      %v275 = vadd.f32 %v252, %v259
      %v276 = vadd.f32 %v253, %v259
      %v277 = vmax.f32 %v261, 0.0
      %v278 = vmax.f32 %v262, 0.0
      %v279 = vmax.f32 %v263, 0.0
      %v280 = vmax.f32 %v264, 0.0
      %v281 = vmax.f32 %v265, 0.0
      %v282 = vmax.f32 %v266, 0.0
      %v283 = vmax.f32 %v267, 0.0
      %v284 = vmax.f32 %v268, 0.0
      %v285 = vmax.f32 %v269, 0.0
      %v286 = vmax.f32 %v270, 0.0
      %v287 = vmax.f32 %v271, 0.0
      %v288 = vmax.f32 %v272, 0.0
      %v289 = vmax.f32 %v273, 0.0
      %v290 = vmax.f32 %v274, 0.0
      %v291 = vmax.f32 %v275, 0.0
      %v292 = vmax.f32 %v276, 0.0
      %vm293 = vcmask 64512
      %294 = vst.msk [vmem:[%s213] sm:$0xff] %vm293, %v277
      %295 = vst.msk [vmem:[%s213 + $0x8] sm:$0xff] %vm293, %v278
      %296 = vst.msk [vmem:[%s213 + $0x10] sm:$0xff] %vm293, %v279
      %297 = vst.msk [vmem:[%s213 + $0x18] sm:$0xff] %vm293, %v280
      %298 = vst.msk [vmem:[%s213 + $0x20] sm:$0xff] %vm293, %v281
      %299 = vst.msk [vmem:[%s213 + $0x28] sm:$0xff] %vm293, %v282
      %300 = vst.msk [vmem:[%s213 + $0x30] sm:$0xff] %vm293, %v283
      %301 = vst.msk [vmem:[%s213 + $0x38] sm:$0xff] %vm293, %v284
      %302 = vst.msk [vmem:[%s213 + $0x40] sm:$0xff] %vm293, %v285
      %303 = vst.msk [vmem:[%s213 + $0x48] sm:$0xff] %vm293, %v286
      %304 = vst.msk [vmem:[%s213 + $0x50] sm:$0xff] %vm293, %v287
      %305 = vst.msk [vmem:[%s213 + $0x58] sm:$0xff] %vm293, %v288
      %306 = vst.msk [vmem:[%s213 + $0x60] sm:$0xff] %vm293, %v289
      %307 = vst.msk [vmem:[%s213 + $0x68] sm:$0xff] %vm293, %v290
      %308 = vst.msk [vmem:[%s213 + $0x70] sm:$0xff] %vm293, %v291
      %309 = vst.msk [vmem:[%s213 + $0x78] sm:$0xff] %vm293, %v292
      %s310 = smul.u32 8, %s19
      %p311 = scmp.lt.s32.totalorder %s18, 1
      %s312 = scalar_select %p311, %s18, 1
      %p313 = scmp.lt.s32.totalorder %s310, 15
      %s314 = scalar_select %p313, %s310, 15
      %s315 = smul.addr %s314, 2
      %s316 = smul.addr %s312, 32
      %s317 = sadd.s32 %s315, %s316
      %s318 = smul.addr %s317, 8
      %s319 = scalar_lea.vmem %s3, %s318
      // Predicated region
      $region33: #{double_conv_forward.5} parent=31 // pred_check
        %p320 = pneg %p116
      $region34: #{double_conv_forward.5} parent=31 // pred_check_branch
        %322 = sbr.rel (%p320) target = $region36
      $region35: #{double_conv_forward.5} parent=31 // pred_region
        %s323 = smul.u32 8, %s19
      $region36: #{double_conv_forward.5} parent=31 // pred_fallthru
        _
    $region32: #{double_conv_forward.5} parent=5 // pred_fallthru
      _
    %p324 = scmp.le.s32.totalorder 2, %s9
    // Predicated region
    $region37: #{double_conv_forward.5} parent=5 // pred_check
      %p325 = pneg %p324
    $region38: #{double_conv_forward.5} parent=5 // pred_check_branch
      %327 = sbr.rel (%p325) target = $region40
    $region39: #{double_conv_forward.5} parent=5 // pred_region
      %s328 = ssub.s32 %s9, 2
      // Predicated region
      $region41: #{double_conv_forward.5} parent=39 // pred_check
        %p329 = pneg %p122
      $region42: #{double_conv_forward.5} parent=39 // pred_check_branch
        %331 = sbr.rel (%p329) target = $region44
      $region43: #{double_conv_forward.5} parent=39 // pred_region
        %s332 = smul.u32 8, %s21
        %p333 = scmp.lt.s32.totalorder %s20, 1
        %s334 = scalar_select %p333, %s20, 1
        %p335 = scmp.lt.s32.totalorder %s332, 15
        %s336 = scalar_select %p335, %s332, 15
        %s337 = smul.addr %s336, 2
        %s338 = smul.addr %s334, 32
        %s339 = sadd.s32 %s337, %s338
        %s340 = smul.addr %s339, 8
        %s341 = scalar_lea.vmem %s3, %s340
      $region44: #{double_conv_forward.5} parent=39 // pred_fallthru
        _
    $region40: #{double_conv_forward.5} parent=5 // pred_fallthru
      _
  $region6: #{double_conv_forward.5} parent=0 // loop_footer
    %s13 = sadd.s32 1, %s9
  $region7: #{double_conv_forward.5} parent=0 // loop_footer_branch
    %8 = sbr.rel target = $region3
  $region8: #{double_conv_forward.5} parent=0 // loop_exit
    _

// kernel: double_conv_forward.3
$region0: #{double_conv_forward.3}
  #allocation0 [shape = 'u32[]', space=smem, size = 0x4, offset = 0x4, fixed_abs, tag = 'smem constant byte address 0x4 - core index']
  #allocation1 [shape = 'u32[144,128]{1,0:T(1,128)}', space=vmem, size = 0x12000, scoped, tag = 'internal scratch']
  #allocation2 [shape = 'bf16[10,18,4]{2,1,0:T(8,128)(2,1)}', space=vmem, size = 0xf000, scoped, tag = 'scratch operand']
  %s0 = inlined_call_operand.vmem [shape: f32[2,16,16,4], index: 0, kind: input, shape index: {}, may-alias: {0,1,2}]
  %s1 = inlined_call_operand.vmem [shape: f32[2,16,16,4], index: 1, kind: input, shape index: {}, may-alias: {0,1,2}]
  %s2 = inlined_call_operand.vmem [shape: f32[2,16,16,4], index: 2, kind: input, shape index: {}, may-alias: {0,1,2}]
  %s3 = inlined_call_operand.vmem [shape: bf16[9,4,128], index: 3, kind: input, shape index: {}]
  %s4 = inlined_call_operand.vmem [shape: f32[2,16,16,128], index: 4, kind: output, shape index: {0}]
  %s5 = inlined_call_operand.vmem [shape: f32[2,2,2,128], index: 5, kind: output, shape index: {1}]
  %6 = xla_tuple %s4, %s5
  %s7 = sld [smem:[#allocation0]]
  $region65: #{double_conv_forward.3} parent=0
    _
  %s9 = ssub.s32 1, %s7
  %s10 = scalar_select 0, %s9, %s7
  loop: start=0, step=1, limit=6
  $region2: #{double_conv_forward.3} parent=0 // loop_pre_header
    _
  $region3: #{double_conv_forward.3} parent=0 // loop_header
    %s12 = sphi 0, %s16
    %p13 = scmp.ge.s32.totalorder %s12, 6
    %s19 = sphi 0, %s31
    %s20 = sphi 0, %s27
    %s21 = sphi 0, %s19
    %s22 = sphi 0, %s20
    %s23 = sphi 0, %s21
    %s24 = sphi 0, %s22
    %s36 = sphi 0, %s38
    %s39 = sphi 0, %s36
    %s40 = sphi 0, %s39
    %s56 = sphi 0, %s40
    %s72 = sphi 0, %s74
    %s75 = sphi 0, %s72
    %s76 = sphi 0, %s75
    %s92 = sphi 0, %s76
    %s108 = sphi 0, %s110
    %s111 = sphi 0, %s108
    %s112 = sphi 0, %s111
    %s128 = sphi 0, %s112
    %s132 = sphi 0, %s132
    %s134 = sphi 0, %s132
    %s135 = sphi 0, %s134
    %s149 = sphi 0, %s135
    %s157 = sphi 0, %s159
    %s160 = sphi 0, %s157
    %s161 = sphi 0, %s160
    %s177 = sphi 0, %s161
    %s185 = sphi 0, %s187
    %s188 = sphi 0, %s185
    %s189 = sphi 0, %s188
    %s205 = sphi 0, %s189
  $region4: #{double_conv_forward.3} parent=0 // loop_header_branch
    %15 = sbr.rel (%p13) target = $region8
  $region5: #{double_conv_forward.3} parent=0 // loop_body
    %s17 = ssub.s32 %s12, 1
    %s18 = ssub.s32 %s12, 2
    %s25 = sadd.s32 1, %s20
    %p26 = scmp.ge.s32.totalorder %s25, 2
    %s27 = scalar_select %p26, 0, %s25
    %s28 = sadd.s32 1, %s19
    %s29 = scalar_select %p26, %s28, %s19
    %p30 = scmp.ge.s32.totalorder %s29, 2
    %s31 = scalar_select %p30, 0, %s29
    %s32 = ssub.s32 %s19, %s31
    %s33 = ssub.s32 %s20, %s27
    %s34 = sor.u32 %s32, %s33
    %p35 = scmp.eq.s32.totalorder %s34, 0
    %s37 = sadd.s32 %s36, 1
    %s38 = scalar_select %p35, %s36, %s37
    %p41 = pneg %p35
    %p42 = scmp.eq.s32.totalorder %s12, 3
    %p43 = por %p41, %p42
    %p44 = scmp.ne.s32.totalorder %s36, %s39
    %p45 = scmp.eq.s32.totalorder %s12, 0
    %p46 = por %p44, %p45
    %p47 = scmp.ne.s32.totalorder %s36, %s39
    %p48 = scmp.eq.s32.totalorder %s17, 3
    %p49 = por %p47, %p48
    %p50 = scmp.ne.s32.totalorder %s39, %s40
    %p51 = scmp.eq.s32.totalorder %s17, 0
    %p52 = por %p50, %p51
    %p53 = scmp.ne.s32.totalorder %s39, %s40
    %p54 = scmp.eq.s32.totalorder %s18, 3
    %p55 = por %p53, %p54
    %p57 = scmp.ne.s32.totalorder %s40, %s56
    %p58 = scmp.eq.s32.totalorder %s18, 0
    %p59 = por %p57, %p58
    %s60 = smul.u32 %s20, 8
    %s61 = ssub.s32 %s60, 1
    %p62 = scmp.gt.s32.totalorder %s61, 0
    %s63 = scalar_select %p62, %s61, 0
    %s64 = smul.u32 %s27, 8
    %s65 = ssub.s32 %s64, 1
    %p66 = scmp.gt.s32.totalorder %s65, 0
    %s67 = scalar_select %p66, %s65, 0
    %s68 = ssub.s32 %s19, %s31
    %s69 = ssub.s32 %s63, %s67
    %s70 = sor.u32 %s68, %s69
    %p71 = scmp.eq.s32.totalorder %s70, 0
    %s73 = sadd.s32 %s72, 1
    %s74 = scalar_select %p71, %s72, %s73
    %p77 = pneg %p71
    %p78 = scmp.eq.s32.totalorder %s12, 3
    %p79 = por %p77, %p78
    %p80 = scmp.ne.s32.totalorder %s72, %s75
    %p81 = scmp.eq.s32.totalorder %s12, 0
    %p82 = por %p80, %p81
    %p83 = scmp.ne.s32.totalorder %s72, %s75
    %p84 = scmp.eq.s32.totalorder %s17, 3
    %p85 = por %p83, %p84
    %p86 = scmp.ne.s32.totalorder %s75, %s76
    %p87 = scmp.eq.s32.totalorder %s17, 0
    %p88 = por %p86, %p87
    %p89 = scmp.ne.s32.totalorder %s75, %s76
    %p90 = scmp.eq.s32.totalorder %s18, 3
    %p91 = por %p89, %p90
    %p93 = scmp.ne.s32.totalorder %s76, %s92
    %p94 = scmp.eq.s32.totalorder %s18, 0
    %p95 = por %p93, %p94
    %s96 = smul.u32 %s20, 8
    %s97 = sadd.s32 %s96, 8
    %p98 = scmp.lt.s32.totalorder %s97, 15
    %s99 = scalar_select %p98, %s97, 15
    %s100 = smul.u32 %s27, 8
    %s101 = sadd.s32 %s100, 8
    %p102 = scmp.lt.s32.totalorder %s101, 15
    %s103 = scalar_select %p102, %s101, 15
    %s104 = ssub.s32 %s19, %s31
    %s105 = ssub.s32 %s99, %s103
    %s106 = sor.u32 %s104, %s105
    %p107 = scmp.eq.s32.totalorder %s106, 0
    %s109 = sadd.s32 %s108, 1
    %s110 = scalar_select %p107, %s108, %s109
    %p113 = pneg %p107
    %p114 = scmp.eq.s32.totalorder %s12, 3
    %p115 = por %p113, %p114
    %p116 = scmp.ne.s32.totalorder %s108, %s111
    %p117 = scmp.eq.s32.totalorder %s12, 0
    %p118 = por %p116, %p117
    %p119 = scmp.ne.s32.totalorder %s108, %s111
    %p120 = scmp.eq.s32.totalorder %s17, 3
    %p121 = por %p119, %p120
    %p122 = scmp.ne.s32.totalorder %s111, %s112
    %p123 = scmp.eq.s32.totalorder %s17, 0
    %p124 = por %p122, %p123
    %p125 = scmp.ne.s32.totalorder %s111, %s112
    %p126 = scmp.eq.s32.totalorder %s18, 3
    %p127 = por %p125, %p126
    %p129 = scmp.ne.s32.totalorder %s112, %s128
    %p130 = scmp.eq.s32.totalorder %s18, 0
    %p131 = por %p129, %p130
    %s133 = sadd.s32 %s132, 1
    %p136 = scmp.eq.s32.totalorder %s12, 3
    %p137 = scmp.ne.s32.totalorder %s132, %s134
    %p138 = scmp.eq.s32.totalorder %s12, 0
    %p139 = por %p137, %p138
    %p140 = scmp.ne.s32.totalorder %s132, %s134
    %p141 = scmp.eq.s32.totalorder %s17, 3
    %p142 = por %p140, %p141
    %p143 = scmp.ne.s32.totalorder %s134, %s135
    %p144 = scmp.eq.s32.totalorder %s17, 0
    %p145 = por %p143, %p144
    %p146 = scmp.ne.s32.totalorder %s134, %s135
    %p147 = scmp.eq.s32.totalorder %s18, 3
    %p148 = por %p146, %p147
    %p150 = scmp.ne.s32.totalorder %s135, %s149
    %p151 = scmp.eq.s32.totalorder %s18, 0
    %p152 = por %p150, %p151
    %s153 = ssub.s32 %s19, %s31
    %s154 = ssub.s32 %s20, %s27
    %s155 = sor.u32 %s153, %s154
    %p156 = scmp.eq.s32.totalorder %s155, 0
    %s158 = sadd.s32 %s157, 1
    %s159 = scalar_select %p156, %s157, %s158
    %p162 = pneg %p156
    %p163 = scmp.eq.s32.totalorder %s12, 3
    %p164 = por %p162, %p163
    %p165 = scmp.ne.s32.totalorder %s157, %s160
    %p166 = scmp.eq.s32.totalorder %s12, 0
    %p167 = por %p165, %p166
    %p168 = scmp.ne.s32.totalorder %s157, %s160
    %p169 = scmp.eq.s32.totalorder %s17, 3
    %p170 = por %p168, %p169
    %p171 = scmp.ne.s32.totalorder %s160, %s161
    %p172 = scmp.eq.s32.totalorder %s17, 0
    %p173 = por %p171, %p172
    %p174 = scmp.ne.s32.totalorder %s160, %s161
    %p175 = scmp.eq.s32.totalorder %s18, 3
    %p176 = por %p174, %p175
    %p178 = scmp.ne.s32.totalorder %s161, %s177
    %p179 = scmp.eq.s32.totalorder %s18, 0
    %p180 = por %p178, %p179
    %s181 = ssub.s32 %s19, %s31
    %s182 = ssub.s32 %s20, %s27
    %s183 = sor.u32 %s181, %s182
    %p184 = scmp.eq.s32.totalorder %s183, 0
    %s186 = sadd.s32 %s185, 1
    %s187 = scalar_select %p184, %s185, %s186
    %p190 = pneg %p184
    %p191 = scmp.eq.s32.totalorder %s12, 3
    %p192 = por %p190, %p191
    %p193 = scmp.ne.s32.totalorder %s185, %s188
    %p194 = scmp.eq.s32.totalorder %s12, 0
    %p195 = por %p193, %p194
    %p196 = scmp.ne.s32.totalorder %s185, %s188
    %p197 = scmp.eq.s32.totalorder %s17, 3
    %p198 = por %p196, %p197
    %p199 = scmp.ne.s32.totalorder %s188, %s189
    %p200 = scmp.eq.s32.totalorder %s17, 0
    %p201 = por %p199, %p200
    %p202 = scmp.ne.s32.totalorder %s188, %s189
    %p203 = scmp.eq.s32.totalorder %s18, 3
    %p204 = por %p202, %p203
    %p206 = scmp.ne.s32.totalorder %s189, %s205
    %p207 = scmp.eq.s32.totalorder %s18, 0
    %p208 = por %p206, %p207
    %p209 = scmp.le.s32.totalorder 1, %s12
    %p210 = scmp.lt.s32.totalorder %s12, 5
    %p211 = pnand %p209, %p210
    %p212 = pneg %p211
    // Predicated region
    $region9: #{double_conv_forward.3} parent=5 // pred_check
      _
    $region10: #{double_conv_forward.3} parent=5 // pred_check_branch
      %214 = sbr.rel (%p211) target = $region12
    $region11: #{double_conv_forward.3} parent=5 // pred_region
      %s215 = ssub.s32 %s12, 1
      // Predicated region
      $region13: #{double_conv_forward.3} parent=11 // pred_check
        %p216 = pneg %p145
      $region14: #{double_conv_forward.3} parent=11 // pred_check_branch
        %218 = sbr.rel (%p216) target = $region16
      $region15: #{double_conv_forward.3} parent=11 // pred_region
        _
      $region16: #{double_conv_forward.3} parent=11 // pred_fallthru
        _
    $region12: #{double_conv_forward.3} parent=5 // pred_fallthru
      _
    %p219 = scmp.lt.s32.totalorder %s12, 4
    // Predicated region
    $region17: #{double_conv_forward.3} parent=5 // pred_check
      %p220 = pneg %p219
    $region18: #{double_conv_forward.3} parent=5 // pred_check_branch
      %222 = sbr.rel (%p220) target = $region20
    $region19: #{double_conv_forward.3} parent=5 // pred_region
      // Predicated region
      $region21: #{double_conv_forward.3} parent=19 // pred_check
        %p223 = pneg %p46
      $region22: #{double_conv_forward.3} parent=19 // pred_check_branch
        %225 = sbr.rel (%p223) target = $region24
      $region23: #{double_conv_forward.3} parent=19 // pred_region
        %s226 = smul.u32 8, %s20
        %p227 = scmp.lt.s32.totalorder %s19, 1
        %s228 = scalar_select %p227, %s19, 1
        %p229 = scmp.lt.s32.totalorder %s226, 15
        %s230 = scalar_select %p229, %s226, 15
        %s231 = smul.addr %s230, 2
        %s232 = smul.addr %s228, 32
        %s233 = sadd.s32 %s231, %s232
        %s234 = smul.addr %s233, 8
        %s235 = scalar_lea.vmem %s0, %s234
        %s236 = smul.u32 8, %s20
      $region24: #{double_conv_forward.3} parent=19 // pred_fallthru
        _
      // Predicated region
      $region25: #{double_conv_forward.3} parent=19 // pred_check
        %p237 = pneg %p82
      $region26: #{double_conv_forward.3} parent=19 // pred_check_branch
        %239 = sbr.rel (%p237) target = $region28
      $region27: #{double_conv_forward.3} parent=19 // pred_region
        %s240 = smul.u32 %s20, 8
        %s241 = ssub.s32 %s240, 1
        %p242 = scmp.gt.s32.totalorder %s241, 0
        %s243 = scalar_select %p242, %s241, 0
        %p244 = scmp.lt.s32.totalorder %s19, 1
        %s245 = scalar_select %p244, %s19, 1
        %p246 = scmp.lt.s32.totalorder %s243, 15
        %s247 = scalar_select %p246, %s243, 15
        %s248 = smul.addr %s247, 2
        %s249 = smul.addr %s245, 32
        %s250 = sadd.s32 %s248, %s249
        %s251 = smul.addr %s250, 8
        %s252 = scalar_lea.vmem %s1, %s251
        %s253 = smul.u32 %s20, 8
        %s254 = ssub.s32 %s253, 1
        %p255 = scmp.gt.s32.totalorder %s254, 0
        %s256 = scalar_select %p255, %s254, 0
      $region28: #{double_conv_forward.3} parent=19 // pred_fallthru
        _
      // Predicated region
      $region29: #{double_conv_forward.3} parent=19 // pred_check
        %p257 = pneg %p118
      $region30: #{double_conv_forward.3} parent=19 // pred_check_branch
        %259 = sbr.rel (%p257) target = $region32
      $region31: #{double_conv_forward.3} parent=19 // pred_region
        %s260 = smul.u32 %s20, 8
        %s261 = sadd.s32 %s260, 8
        %p262 = scmp.lt.s32.totalorder %s261, 15
        %s263 = scalar_select %p262, %s261, 15
        %p264 = scmp.lt.s32.totalorder %s19, 1
        %s265 = scalar_select %p264, %s19, 1
        %p266 = scmp.lt.s32.totalorder %s263, 15
        %s267 = scalar_select %p266, %s263, 15
        %s268 = smul.addr %s267, 2
        %s269 = smul.addr %s265, 32
        %s270 = sadd.s32 %s268, %s269
        %s271 = smul.addr %s270, 8
        %s272 = scalar_lea.vmem %s2, %s271
        %s273 = smul.u32 %s20, 8
        %s274 = sadd.s32 %s273, 8
        %p275 = scmp.lt.s32.totalorder %s274, 15
        %s276 = scalar_select %p275, %s274, 15
      $region32: #{double_conv_forward.3} parent=19 // pred_fallthru
        _
    $region20: #{double_conv_forward.3} parent=5 // pred_fallthru
      _
    %p277 = scmp.le.s32.totalorder 1, %s12
    %p278 = scmp.lt.s32.totalorder %s12, 5
    %p279 = pnand %p277, %p278
    %p280 = pneg %p279
    // Predicated region
    $region33: #{double_conv_forward.3} parent=5 // pred_check
      _
    $region34: #{double_conv_forward.3} parent=5 // pred_check_branch
      %282 = sbr.rel (%p279) target = $region36
    $region35: #{double_conv_forward.3} parent=5 // pred_region
      %s283 = ssub.s32 %s12, 1
      %s284 = smul.u32 8, %s22
      %p285 = scmp.lt.s32.totalorder %s21, 1
      %s286 = scalar_select %p285, %s21, 1
      %p287 = scmp.lt.s32.totalorder %s284, 15
      %s288 = scalar_select %p287, %s284, 15
      %s289 = smul.addr %s288, 2
      %s290 = smul.addr %s286, 32
      %s291 = sadd.s32 %s289, %s290
      %s292 = smul.addr %s291, 8
      %s293 = scalar_lea.vmem %s0, %s292
      %p294 = pneg %p52
      %p295 = pneg %p49
      %s296 = smul.u32 %s22, 8
      %s297 = ssub.s32 %s296, 1
      %p298 = scmp.gt.s32.totalorder %s297, 0
      %s299 = scalar_select %p298, %s297, 0
      %p300 = scmp.lt.s32.totalorder %s21, 1
      %s301 = scalar_select %p300, %s21, 1
      %p302 = scmp.lt.s32.totalorder %s299, 15
      %s303 = scalar_select %p302, %s299, 15
      %s304 = smul.addr %s303, 2
      %s305 = smul.addr %s301, 32
      %s306 = sadd.s32 %s304, %s305
      %s307 = smul.addr %s306, 8
      %s308 = scalar_lea.vmem %s1, %s307
      %p309 = pneg %p88
      %p310 = pneg %p85
      %s311 = smul.u32 %s22, 8
      %s312 = sadd.s32 %s311, 8
      %p313 = scmp.lt.s32.totalorder %s312, 15
      %s314 = scalar_select %p313, %s312, 15
      %p315 = scmp.lt.s32.totalorder %s21, 1
      %s316 = scalar_select %p315, %s21, 1
      %p317 = scmp.lt.s32.totalorder %s314, 15
      %s318 = scalar_select %p317, %s314, 15
      %s319 = smul.addr %s318, 2
      %s320 = smul.addr %s316, 32
      %s321 = sadd.s32 %s319, %s320
      %s322 = smul.addr %s321, 8
      %s323 = scalar_lea.vmem %s2, %s322
      %p324 = pneg %p124
      %p325 = pneg %p121
      %p326 = pneg %p145
      %p327 = pneg %p142
      %p328 = pneg %p173
      %p329 = pneg %p170
      %s330 = smul.u32 8, %s22
      %p331 = scmp.lt.s32.totalorder %s21, 1
      %s332 = scalar_select %p331, %s21, 1
      %p333 = scmp.lt.s32.totalorder %s330, 15
      %s334 = scalar_select %p333, %s330, 15
      %s335 = smul.addr %s334, 2
      %s336 = smul.addr %s332, 32
      %s337 = sadd.s32 %s335, %s336
      %s338 = smul.addr %s337, 8
      %s339 = scalar_lea.vmem %s4, %s338
      %p340 = pneg %p201
      %p341 = pneg %p198
      %p342 = scmp.lt.s32.totalorder %s21, 1
      %s343 = scalar_select %p342, %s21, 1
      %p344 = scmp.lt.s32.totalorder %s22, 1
      %s345 = scalar_select %p344, %s22, 1
      %s346 = smul.addr %s343, 2
      %s347 = sadd.s32 %s345, %s346
      %s348 = smul.addr %s347, 2
      %s349 = scalar_lea.vmem %s5, %s348
      %s350 = smul.u32 8, %s22
      %p351 = scmp.lt.s32.totalorder %s21, 1
      %s352 = scalar_select %p351, %s21, 1
      %p353 = scmp.lt.s32.totalorder %s350, 15
      %s354 = scalar_select %p353, %s350, 15
      %s355 = smul.addr %s354, 2
      %s356 = smul.addr %s352, 32
      %s357 = sadd.s32 %s355, %s356
      %s358 = smul.addr %s357, 8
      %s359 = scalar_lea.vmem %s0, %s358
      %s360 = smul.u32 8, %s22
      %s361 = smul.u32 %s22, 8
      %s362 = ssub.s32 %s361, 1
      %p363 = scmp.gt.s32.totalorder %s362, 0
      %s364 = scalar_select %p363, %s362, 0
      %p365 = scmp.lt.s32.totalorder %s21, 1
      %s366 = scalar_select %p365, %s21, 1
      %p367 = scmp.lt.s32.totalorder %s364, 15
      %s368 = scalar_select %p367, %s364, 15
      %s369 = smul.addr %s368, 2
      %s370 = smul.addr %s366, 32
      %s371 = sadd.s32 %s369, %s370
      %s372 = smul.addr %s371, 8
      %s373 = scalar_lea.vmem %s1, %s372
      %s374 = smul.u32 %s22, 8
      %s375 = ssub.s32 %s374, 1
      %p376 = scmp.gt.s32.totalorder %s375, 0
      %s377 = scalar_select %p376, %s375, 0
      %s378 = smul.u32 %s22, 8
      %s379 = sadd.s32 %s378, 8
      %p380 = scmp.lt.s32.totalorder %s379, 15
      %s381 = scalar_select %p380, %s379, 15
      %p382 = scmp.lt.s32.totalorder %s21, 1
      %s383 = scalar_select %p382, %s21, 1
      %p384 = scmp.lt.s32.totalorder %s381, 15
      %s385 = scalar_select %p384, %s381, 15
      %s386 = smul.addr %s385, 2
      %s387 = smul.addr %s383, 32
      %s388 = sadd.s32 %s386, %s387
      %s389 = smul.addr %s388, 8
      %s390 = scalar_lea.vmem %s2, %s389
      %s391 = smul.u32 %s22, 8
      %s392 = sadd.s32 %s391, 8
      %p393 = scmp.lt.s32.totalorder %s392, 15
      %s394 = scalar_select %p393, %s392, 15
      %s395 = smul.u32 8, %s22
      %p396 = scmp.lt.s32.totalorder %s21, 1
      %s397 = scalar_select %p396, %s21, 1
      %p398 = scmp.lt.s32.totalorder %s395, 15
      %s399 = scalar_select %p398, %s395, 15
      %s400 = smul.addr %s399, 2
      %s401 = smul.addr %s397, 32
      %s402 = sadd.s32 %s400, %s401
      %s403 = smul.addr %s402, 8
      %s404 = scalar_lea.vmem %s4, %s403
      %s405 = smul.u32 8, %s22
      %p406 = scmp.lt.s32.totalorder %s21, 1
      %s407 = scalar_select %p406, %s21, 1
      %p408 = scmp.lt.s32.totalorder %s22, 1
      %s409 = scalar_select %p408, %s22, 1
      %s410 = smul.addr %s407, 2
      %s411 = sadd.s32 %s409, %s410
      %s412 = smul.addr %s411, 2
      %s413 = scalar_lea.vmem %s5, %s412
      %vm415 = vcmask 27648
      %416 = vst.msk [vmem:[#allocation2] sm:$0xf] %vm415, 0
      %417 = vst.msk [vmem:[#allocation2 + $0x4] sm:$0xf] %vm415, 0
      %vm418 = vcmask 24576
      %419 = vst.msk [vmem:[#allocation2 + $0x8] sm:$0x1] %vm418, 0
      %420 = vst.msk [vmem:[#allocation2 + $0xc] sm:$0xf] %vm415, 0
      %421 = vst.msk [vmem:[#allocation2 + $0x10] sm:$0xf] %vm415, 0
      %422 = vst.msk [vmem:[#allocation2 + $0x14] sm:$0x1] %vm418, 0
      %423 = vst.msk [vmem:[#allocation2 + $0x18] sm:$0xf] %vm415, 0
      %424 = vst.msk [vmem:[#allocation2 + $0x1c] sm:$0xf] %vm415, 0
      %425 = vst.msk [vmem:[#allocation2 + $0x20] sm:$0x1] %vm418, 0
      %426 = vst.msk [vmem:[#allocation2 + $0x24] sm:$0xf] %vm415, 0
      %427 = vst.msk [vmem:[#allocation2 + $0x28] sm:$0xf] %vm415, 0
      %428 = vst.msk [vmem:[#allocation2 + $0x2c] sm:$0x1] %vm418, 0
      %429 = vst.msk [vmem:[#allocation2 + $0x30] sm:$0xf] %vm415, 0
      %430 = vst.msk [vmem:[#allocation2 + $0x34] sm:$0xf] %vm415, 0
      %431 = vst.msk [vmem:[#allocation2 + $0x38] sm:$0x1] %vm418, 0
      %432 = vst.msk [vmem:[#allocation2 + $0x3c] sm:$0xf] %vm415, 0
      %433 = vst.msk [vmem:[#allocation2 + $0x40] sm:$0xf] %vm415, 0
      %434 = vst.msk [vmem:[#allocation2 + $0x44] sm:$0x1] %vm418, 0
      %435 = vst.msk [vmem:[#allocation2 + $0x48] sm:$0xf] %vm415, 0
      %436 = vst.msk [vmem:[#allocation2 + $0x4c] sm:$0xf] %vm415, 0
      %437 = vst.msk [vmem:[#allocation2 + $0x50] sm:$0x1] %vm418, 0
      %438 = vst.msk [vmem:[#allocation2 + $0x54] sm:$0xf] %vm415, 0
      %439 = vst.msk [vmem:[#allocation2 + $0x58] sm:$0xf] %vm415, 0
      %440 = vst.msk [vmem:[#allocation2 + $0x5c] sm:$0x1] %vm418, 0
      %441 = vst.msk [vmem:[#allocation2 + $0x60] sm:$0xf] %vm415, 0
      %442 = vst.msk [vmem:[#allocation2 + $0x64] sm:$0xf] %vm415, 0
      %443 = vst.msk [vmem:[#allocation2 + $0x68] sm:$0x1] %vm418, 0
      %444 = vst.msk [vmem:[#allocation2 + $0x6c] sm:$0xf] %vm415, 0
      %445 = vst.msk [vmem:[#allocation2 + $0x70] sm:$0xf] %vm415, 0
      %446 = vst.msk [vmem:[#allocation2 + $0x74] sm:$0x1] %vm418, 0
      %v447 = vld [vmem:[%s359] sm:$0xff]
      %v448 = vld [vmem:[%s359 + $0x8] sm:$0xff]
      %v449 = vld [vmem:[%s359 + $0x10] sm:$0xff]
      %v450 = vld [vmem:[%s359 + $0x18] sm:$0xff]
      %v451 = vld [vmem:[%s359 + $0x20] sm:$0xff]
      %v452 = vld [vmem:[%s359 + $0x28] sm:$0xff]
      %v453 = vld [vmem:[%s359 + $0x30] sm:$0xff]
      %v454 = vld [vmem:[%s359 + $0x38] sm:$0xff]
      %v455 = vld [vmem:[%s359 + $0x40] sm:$0xff]
      %v456 = vld [vmem:[%s359 + $0x48] sm:$0xff]
      %v457 = vld [vmem:[%s359 + $0x50] sm:$0xff]
      %v458 = vld [vmem:[%s359 + $0x58] sm:$0xff]
      %v459 = vld [vmem:[%s359 + $0x60] sm:$0xff]
      %v460 = vld [vmem:[%s359 + $0x68] sm:$0xff]
      %v461 = vld [vmem:[%s359 + $0x70] sm:$0xff]
      %v462 = vld [vmem:[%s359 + $0x78] sm:$0xff]
      %v463 = vpack.c.bf16 %v448, %v447
      %v464 = vpack.c.bf16 %v450, %v449
      %v465 = vpack.c.bf16 %v452, %v451
      %v466 = vpack.c.bf16 %v454, %v453
      %v467 = vpack.c.bf16 %v456, %v455
      %v468 = vpack.c.bf16 %v458, %v457
      %v469 = vpack.c.bf16 %v460, %v459
      %v470 = vpack.c.bf16 %v462, %v461
      %v479 = vunpack.c.l.b16 %v463
      %v480 = vunpack.c.h.b16 %v463
      %v481 = vunpack.c.l.b16 %v464
      %v482 = vunpack.c.h.b16 %v464
      %v483 = vunpack.c.l.b16 %v465
      %v484 = vunpack.c.h.b16 %v465
      %v485 = vunpack.c.l.b16 %v466
      %v486 = vunpack.c.h.b16 %v466
      %v487 = vunpack.c.l.b16 %v467
      %v488 = vunpack.c.h.b16 %v467
      %v489 = vunpack.c.l.b16 %v468
      %v490 = vunpack.c.h.b16 %v468
      %v491 = vunpack.c.l.b16 %v469
      %v492 = vunpack.c.h.b16 %v469
      %v493 = vunpack.c.l.b16 %v470
      %v494 = vunpack.c.h.b16 %v470
      %v495 = vpack.c.b16 %v479, %v479
      %v496 = vpack.c.b16 %v480, %v480
      %v497 = vpack.c.b16 %v481, %v481
      %v498 = vpack.c.b16 %v482, %v482
      %v499 = vpack.c.b16 %v483, %v483
      %v500 = vpack.c.b16 %v484, %v484
      %v501 = vpack.c.b16 %v485, %v485
      %v502 = vpack.c.b16 %v486, %v486
      %v503 = vpack.c.b16 %v487, %v487
      %v504 = vpack.c.b16 %v488, %v488
      %v505 = vpack.c.b16 %v489, %v489
      %v506 = vpack.c.b16 %v490, %v490
      %v507 = vpack.c.b16 %v491, %v491
      %v508 = vpack.c.b16 %v492, %v492
      %v509 = vpack.c.b16 %v493, %v493
      %v510 = vpack.c.b16 %v494, %v494
      %vm511 = vsmask.f32 256
      %vm512 = vsmask.f32 4368
      %vm513 = vmor %vm511, %vm512
      %v515 = vshrl.u32 %v495, 16
      %v517 = vrot.slane %v515, 7
      %v518 = vshll.u32 %v495, 16
      %v520 = vor.u32 %v517, %v518
      %v521 = vrot.slane %v517, 4
      %v523 = vshrl.u32 %v496, 16
      %v525 = vrot.slane %v523, 7
      %v526 = vshll.u32 %v496, 16
      %v528 = vor.u32 %v525, %v526
      %v529 = vsel %vm513, %v521, %v528
      %v530 = vrot.slane %v525, 4
      %v532 = vshrl.u32 %v497, 16
      %v534 = vrot.slane %v532, 7
      %v535 = vshll.u32 %v497, 16
      %v537 = vor.u32 %v534, %v535
      %v538 = vrot.slane %v534, 4
      %v540 = vshrl.u32 %v498, 16
      %v542 = vrot.slane %v540, 7
      %v543 = vshll.u32 %v498, 16
      %v545 = vor.u32 %v542, %v543
      %v546 = vsel %vm513, %v538, %v545
      %v547 = vrot.slane %v542, 4
      %v549 = vshrl.u32 %v499, 16
      %v551 = vrot.slane %v549, 7
      %v552 = vshll.u32 %v499, 16
      %v554 = vor.u32 %v551, %v552
      %v555 = vrot.slane %v551, 4
      %v557 = vshrl.u32 %v500, 16
      %v559 = vrot.slane %v557, 7
      %v560 = vshll.u32 %v500, 16
      %v562 = vor.u32 %v559, %v560
      %v563 = vsel %vm513, %v555, %v562
      %v564 = vrot.slane %v559, 4
      %v566 = vshrl.u32 %v501, 16
      %v568 = vrot.slane %v566, 7
      %v569 = vshll.u32 %v501, 16
      %v571 = vor.u32 %v568, %v569
      %v572 = vrot.slane %v568, 4
      %v574 = vshrl.u32 %v502, 16
      %v576 = vrot.slane %v574, 7
      %v577 = vshll.u32 %v502, 16
      %v579 = vor.u32 %v576, %v577
      %v580 = vsel %vm513, %v572, %v579
      %v581 = vrot.slane %v576, 4
      %v583 = vshrl.u32 %v503, 16
      %v585 = vrot.slane %v583, 7
      %v586 = vshll.u32 %v503, 16
      %v588 = vor.u32 %v585, %v586
      %v589 = vrot.slane %v585, 4
      %v591 = vshrl.u32 %v504, 16
      %v593 = vrot.slane %v591, 7
      %v594 = vshll.u32 %v504, 16
      %v596 = vor.u32 %v593, %v594
      %v597 = vsel %vm513, %v589, %v596
      %v598 = vrot.slane %v593, 4
      %v600 = vshrl.u32 %v505, 16
      %v602 = vrot.slane %v600, 7
      %v603 = vshll.u32 %v505, 16
      %v605 = vor.u32 %v602, %v603
      %v606 = vrot.slane %v602, 4
      %v608 = vshrl.u32 %v506, 16
      %v610 = vrot.slane %v608, 7
      %v611 = vshll.u32 %v506, 16
      %v613 = vor.u32 %v610, %v611
      %v614 = vsel %vm513, %v606, %v613
      %v615 = vrot.slane %v610, 4
      %v617 = vshrl.u32 %v507, 16
      %v619 = vrot.slane %v617, 7
      %v620 = vshll.u32 %v507, 16
      %v622 = vor.u32 %v619, %v620
      %v623 = vrot.slane %v619, 4
      %v625 = vshrl.u32 %v508, 16
      %v627 = vrot.slane %v625, 7
      %v628 = vshll.u32 %v508, 16
      %v630 = vor.u32 %v627, %v628
      %v631 = vsel %vm513, %v623, %v630
      %v632 = vrot.slane %v627, 4
      %v634 = vshrl.u32 %v509, 16
      %v636 = vrot.slane %v634, 7
      %v637 = vshll.u32 %v509, 16
      %v639 = vor.u32 %v636, %v637
      %v640 = vrot.slane %v636, 4
      %v642 = vshrl.u32 %v510, 16
      %v644 = vrot.slane %v642, 7
      %v645 = vshll.u32 %v510, 16
      %v647 = vor.u32 %v644, %v645
      %v648 = vsel %vm513, %v640, %v647
      %v649 = vrot.slane %v644, 4
      %s674 = scalar_lea.vmem [#allocation2], 12
      %vm675 = vcmask 27648
      %vm676 = vsmask.f32 7938
      %vm677 = vmand %vm675, %vm676
      %v678 = vld [vmem:[%s674] sm:$0xf]
      %v679 = vsel %vm677, %v520, %v678
      %680 = vst [vmem:[%s674] sm:$0xf] %v679
      %681 = vst.msk [vmem:[%s674 + $0x4] sm:$0xf] %vm415, %v529
      %vm682 = vcmask 24576
      %vm683 = vmand %vm682, %vm511
      %v684 = vld [vmem:[%s674 + $0x8] sm:$0x1]
      %v685 = vsel %vm683, %v530, %v684
      %686 = vst [vmem:[%s674 + $0x8] sm:$0x1] %v685
      %v687 = vld [vmem:[%s674 + $0xc] sm:$0xf]
      %v688 = vsel %vm677, %v537, %v687
      %689 = vst [vmem:[%s674 + $0xc] sm:$0xf] %v688
      %690 = vst.msk [vmem:[%s674 + $0x10] sm:$0xf] %vm415, %v546
      %v691 = vld [vmem:[%s674 + $0x14] sm:$0x1]
      %v692 = vsel %vm683, %v547, %v691
      %693 = vst [vmem:[%s674 + $0x14] sm:$0x1] %v692
      %v694 = vld [vmem:[%s674 + $0x18] sm:$0xf]
      %v695 = vsel %vm677, %v554, %v694
      %696 = vst [vmem:[%s674 + $0x18] sm:$0xf] %v695
      %697 = vst.msk [vmem:[%s674 + $0x1c] sm:$0xf] %vm415, %v563
      %v698 = vld [vmem:[%s674 + $0x20] sm:$0x1]
      %v699 = vsel %vm683, %v564, %v698
      %700 = vst [vmem:[%s674 + $0x20] sm:$0x1] %v699
      %v701 = vld [vmem:[%s674 + $0x24] sm:$0xf]
      %v702 = vsel %vm677, %v571, %v701
      %703 = vst [vmem:[%s674 + $0x24] sm:$0xf] %v702
      %704 = vst.msk [vmem:[%s674 + $0x28] sm:$0xf] %vm415, %v580
      %v705 = vld [vmem:[%s674 + $0x2c] sm:$0x1]
      %v706 = vsel %vm683, %v581, %v705
      %707 = vst [vmem:[%s674 + $0x2c] sm:$0x1] %v706
      %v708 = vld [vmem:[%s674 + $0x30] sm:$0xf]
      %v709 = vsel %vm677, %v588, %v708
      %710 = vst [vmem:[%s674 + $0x30] sm:$0xf] %v709
      %711 = vst.msk [vmem:[%s674 + $0x34] sm:$0xf] %vm415, %v597
      %v712 = vld [vmem:[%s674 + $0x38] sm:$0x1]
      %v713 = vsel %vm683, %v598, %v712
      %714 = vst [vmem:[%s674 + $0x38] sm:$0x1] %v713
      %v715 = vld [vmem:[%s674 + $0x3c] sm:$0xf]
      %v716 = vsel %vm677, %v605, %v715
      %717 = vst [vmem:[%s674 + $0x3c] sm:$0xf] %v716
      %718 = vst.msk [vmem:[%s674 + $0x40] sm:$0xf] %vm415, %v614
      %v719 = vld [vmem:[%s674 + $0x44] sm:$0x1]
      %v720 = vsel %vm683, %v615, %v719
      %721 = vst [vmem:[%s674 + $0x44] sm:$0x1] %v720
      %v722 = vld [vmem:[%s674 + $0x48] sm:$0xf]
      %v723 = vsel %vm677, %v622, %v722
      %724 = vst [vmem:[%s674 + $0x48] sm:$0xf] %v723
      %725 = vst.msk [vmem:[%s674 + $0x4c] sm:$0xf] %vm415, %v631
      %v726 = vld [vmem:[%s674 + $0x50] sm:$0x1]
      %v727 = vsel %vm683, %v632, %v726
      %728 = vst [vmem:[%s674 + $0x50] sm:$0x1] %v727
      %v729 = vld [vmem:[%s674 + $0x54] sm:$0xf]
      %v730 = vsel %vm677, %v639, %v729
      %731 = vst [vmem:[%s674 + $0x54] sm:$0xf] %v730
      %732 = vst.msk [vmem:[%s674 + $0x58] sm:$0xf] %vm415, %v648
      %v733 = vld [vmem:[%s674 + $0x5c] sm:$0x1]
      %v734 = vsel %vm683, %v649, %v733
      %735 = vst [vmem:[%s674 + $0x5c] sm:$0x1] %v734
      %p736 = scmp.gt.s32.totalorder %s22, 0
      // Predicated region
      $region37: #{double_conv_forward.3} parent=35 // pred_check
        %p737 = pneg %p736
      $region38: #{double_conv_forward.3} parent=35 // pred_check_branch
        %739 = sbr.rel (%p737) target = $region40
      $region39: #{double_conv_forward.3} parent=35 // pred_region
        %v740 = vld [vmem:[%s373] sm:$0xff]
        %v741 = vld [vmem:[%s373 + $0x8] sm:$0xff]
        %v742 = vpack.c.bf16 %v741, %v740
        %v744 = vunpack.c.l.b16 %v742
        %v745 = vunpack.c.h.b16 %v742
        %v746 = vpack.c.b16 %v744, %v744
        %v747 = vpack.c.b16 %v745, %v745
        %v749 = vshrl.u32 %v746, 16
        %v751 = vrot.slane %v749, 7
        %v752 = vshll.u32 %v746, 16
        %v754 = vor.u32 %v751, %v752
        %v755 = vrot.slane %v751, 4
        %v757 = vshrl.u32 %v747, 16
        %v759 = vrot.slane %v757, 7
        %v760 = vshll.u32 %v747, 16
        %v762 = vor.u32 %v759, %v760
        %v763 = vsel %vm513, %v755, %v762
        %v764 = vrot.slane %v759, 4
        %v768 = vld [vmem:[#allocation2] sm:$0xf]
        %v769 = vsel %vm677, %v754, %v768
        %770 = vst [vmem:[#allocation2] sm:$0xf] %v769
        %771 = vst.msk [vmem:[#allocation2 + $0x4] sm:$0xf] %vm415, %v763
        %v772 = vld [vmem:[#allocation2 + $0x8] sm:$0x1]
        %v773 = vsel %vm683, %v764, %v772
        %774 = vst [vmem:[#allocation2 + $0x8] sm:$0x1] %v773
      $region40: #{double_conv_forward.3} parent=35 // pred_fallthru
        _
      %p775 = scmp.lt.s32.totalorder %s22, 1
      // Predicated region
      $region41: #{double_conv_forward.3} parent=35 // pred_check
        %p776 = pneg %p775
      $region42: #{double_conv_forward.3} parent=35 // pred_check_branch
        %778 = sbr.rel (%p776) target = $region44
      $region43: #{double_conv_forward.3} parent=35 // pred_region
        %v779 = vld [vmem:[%s390] sm:$0xff]
        %v780 = vld [vmem:[%s390 + $0x8] sm:$0xff]
        %v781 = vpack.c.bf16 %v780, %v779
        %v783 = vunpack.c.l.b16 %v781
        %v784 = vunpack.c.h.b16 %v781
        %v785 = vpack.c.b16 %v783, %v783
        %v786 = vpack.c.b16 %v784, %v784
        %v788 = vshrl.u32 %v785, 16
        %v790 = vrot.slane %v788, 7
        %v791 = vshll.u32 %v785, 16
        %v793 = vor.u32 %v790, %v791
        %v794 = vrot.slane %v790, 4
        %v796 = vshrl.u32 %v786, 16
        %v798 = vrot.slane %v796, 7
        %v799 = vshll.u32 %v786, 16
        %v801 = vor.u32 %v798, %v799
        %v802 = vsel %vm513, %v794, %v801
        %v803 = vrot.slane %v798, 4
        %s807 = scalar_lea.vmem [#allocation2], 108
        %v808 = vld [vmem:[%s807] sm:$0xf]
        %v809 = vsel %vm677, %v793, %v808
        %810 = vst [vmem:[%s807] sm:$0xf] %v809
        %811 = vst.msk [vmem:[%s807 + $0x4] sm:$0xf] %vm415, %v802
        %v812 = vld [vmem:[%s807 + $0x8] sm:$0x1]
        %v813 = vsel %vm683, %v803, %v812
        %814 = vst [vmem:[%s807 + $0x8] sm:$0x1] %v813
      $region44: #{double_conv_forward.3} parent=35 // pred_fallthru
        _
      %v815 = vld [vmem:[#allocation2] sm:$0xf]
      %v816 = vld [vmem:[#allocation2 + $0x4] sm:$0xf]
      %v817 = vld [vmem:[#allocation2 + $0xc] sm:$0xf]
      %v818 = vld [vmem:[#allocation2 + $0x10] sm:$0xf]
      %v819 = vld [vmem:[#allocation2 + $0x18] sm:$0xf]
      %v820 = vld [vmem:[#allocation2 + $0x1c] sm:$0xf]
      %v821 = vld [vmem:[#allocation2 + $0x24] sm:$0xf]
      %v822 = vld [vmem:[#allocation2 + $0x28] sm:$0xf]
      %v823 = vld [vmem:[#allocation2 + $0x30] sm:$0xf]
      %v824 = vld [vmem:[#allocation2 + $0x34] sm:$0xf]
      %v825 = vld [vmem:[#allocation2 + $0x3c] sm:$0xf]
      %v826 = vld [vmem:[#allocation2 + $0x40] sm:$0xf]
      %v827 = vld [vmem:[#allocation2 + $0x48] sm:$0xf]
      %v828 = vld [vmem:[#allocation2 + $0x4c] sm:$0xf]
      %v829 = vld [vmem:[#allocation2 + $0x54] sm:$0xf]
      %v830 = vld [vmem:[#allocation2 + $0x58] sm:$0xf]
      %v831 = vld [vmem:[%s3] sm:$0x3]
      %v832 = vld [vmem:[#allocation2 + $0x8] sm:$0x1]
      %v833 = vld [vmem:[#allocation2 + $0x14] sm:$0x1]
      %v834 = vld [vmem:[#allocation2 + $0x20] sm:$0x1]
      %v835 = vld [vmem:[#allocation2 + $0x2c] sm:$0x1]
      %v836 = vld [vmem:[#allocation2 + $0x38] sm:$0x1]
      %v837 = vld [vmem:[#allocation2 + $0x44] sm:$0x1]
      %v838 = vld [vmem:[#allocation2 + $0x50] sm:$0x1]
      %v839 = vld [vmem:[#allocation2 + $0x5c] sm:$0x1]
      %vm840 = vsmask.f32 3328
      %vm841 = vsmask.f32 7440
      %vm842 = vmor %vm840, %vm841
      %v844 = vshrl.u32 %v815, 16
      %v846 = vrot.slane %v844, 4
      %v847 = vshll.u32 %v815, 16
      %v849 = vrot.slane %v847, 5
      %v850 = vor.u32 %v846, %v849
      %v851 = vrot.slane %v850, 4
      %v853 = vshll.u32 %v816, 16
      %v855 = vrot.slane %v853, 5
      %v856 = vsel %vm842, %v851, %v855
      %v857 = vshrl.u32 %v816, 16
      %v859 = vrot.slane %v857, 4
      %v860 = vor.u32 %v859, %v855
      %v861 = vrot.slane %v860, 4
      %v863 = vshll.u32 %v832, 16
      %v865 = vrot.slane %v863, 5
      %v866 = vsel %vm842, %v861, %v865
      %v868 = vshrl.u32 %v817, 16
      %v870 = vrot.slane %v868, 4
      %v871 = vshll.u32 %v817, 16
      %v873 = vrot.slane %v871, 5
      %v874 = vor.u32 %v870, %v873
      %v875 = vrot.slane %v874, 4
      %v877 = vshll.u32 %v818, 16
      %v879 = vrot.slane %v877, 5
      %v880 = vsel %vm842, %v875, %v879
      %v881 = vshrl.u32 %v818, 16
      %v883 = vrot.slane %v881, 4
      %v884 = vor.u32 %v883, %v879
      %v885 = vrot.slane %v884, 4
      %v887 = vshll.u32 %v833, 16
      %v889 = vrot.slane %v887, 5
      %v890 = vsel %vm842, %v885, %v889
      %v892 = vshrl.u32 %v819, 16
      %v894 = vrot.slane %v892, 4
      %v895 = vshll.u32 %v819, 16
      %v897 = vrot.slane %v895, 5
      %v898 = vor.u32 %v894, %v897
      %v899 = vrot.slane %v898, 4
      %v901 = vshll.u32 %v820, 16
      %v903 = vrot.slane %v901, 5
      %v904 = vsel %vm842, %v899, %v903
      %v905 = vshrl.u32 %v820, 16
      %v907 = vrot.slane %v905, 4
      %v908 = vor.u32 %v907, %v903
      %v909 = vrot.slane %v908, 4
      %v911 = vshll.u32 %v834, 16
      %v913 = vrot.slane %v911, 5
      %v914 = vsel %vm842, %v909, %v913
      %v916 = vshrl.u32 %v821, 16
      %v918 = vrot.slane %v916, 4
      %v919 = vshll.u32 %v821, 16
      %v921 = vrot.slane %v919, 5
      %v922 = vor.u32 %v918, %v921
      %v923 = vrot.slane %v922, 4
      %v925 = vshll.u32 %v822, 16
      %v927 = vrot.slane %v925, 5
      %v928 = vsel %vm842, %v923, %v927
      %v929 = vshrl.u32 %v822, 16
      %v931 = vrot.slane %v929, 4
      %v932 = vor.u32 %v931, %v927
      %v933 = vrot.slane %v932, 4
      %v935 = vshll.u32 %v835, 16
      %v937 = vrot.slane %v935, 5
      %v938 = vsel %vm842, %v933, %v937
      %v940 = vshrl.u32 %v823, 16
      %v942 = vrot.slane %v940, 4
      %v943 = vshll.u32 %v823, 16
      %v945 = vrot.slane %v943, 5
      %v946 = vor.u32 %v942, %v945
      %v947 = vrot.slane %v946, 4
      %v949 = vshll.u32 %v824, 16
      %v951 = vrot.slane %v949, 5
      %v952 = vsel %vm842, %v947, %v951
      %v953 = vshrl.u32 %v824, 16
      %v955 = vrot.slane %v953, 4
      %v956 = vor.u32 %v955, %v951
      %v957 = vrot.slane %v956, 4
      %v959 = vshll.u32 %v836, 16
      %v961 = vrot.slane %v959, 5
      %v962 = vsel %vm842, %v957, %v961
      %v964 = vshrl.u32 %v825, 16
      %v966 = vrot.slane %v964, 4
      %v967 = vshll.u32 %v825, 16
      %v969 = vrot.slane %v967, 5
      %v970 = vor.u32 %v966, %v969
      %v971 = vrot.slane %v970, 4
      %v973 = vshll.u32 %v826, 16
      %v975 = vrot.slane %v973, 5
      %v976 = vsel %vm842, %v971, %v975
      %v977 = vshrl.u32 %v826, 16
      %v979 = vrot.slane %v977, 4
      %v980 = vor.u32 %v979, %v975
      %v981 = vrot.slane %v980, 4
      %v983 = vshll.u32 %v837, 16
      %v985 = vrot.slane %v983, 5
      %v986 = vsel %vm842, %v981, %v985
      %v988 = vshrl.u32 %v827, 16
      %v990 = vrot.slane %v988, 4
      %v991 = vshll.u32 %v827, 16
      %v993 = vrot.slane %v991, 5
      %v994 = vor.u32 %v990, %v993
      %v995 = vrot.slane %v994, 4
      %v997 = vshll.u32 %v828, 16
      %v999 = vrot.slane %v997, 5
      %v1000 = vsel %vm842, %v995, %v999
      %v1001 = vshrl.u32 %v828, 16
      %v1003 = vrot.slane %v1001, 4
      %v1004 = vor.u32 %v1003, %v999
      %v1005 = vrot.slane %v1004, 4
      %v1007 = vshll.u32 %v838, 16
      %v1009 = vrot.slane %v1007, 5
      %v1010 = vsel %vm842, %v1005, %v1009
      %v1012 = vshrl.u32 %v829, 16
      %v1014 = vrot.slane %v1012, 4
      %v1015 = vshll.u32 %v829, 16
      %v1017 = vrot.slane %v1015, 5
      %v1018 = vor.u32 %v1014, %v1017
      %v1019 = vrot.slane %v1018, 4
      %v1021 = vshll.u32 %v830, 16
      %v1023 = vrot.slane %v1021, 5
      %v1024 = vsel %vm842, %v1019, %v1023
      %v1025 = vshrl.u32 %v830, 16
      %v1027 = vrot.slane %v1025, 4
      %v1028 = vor.u32 %v1027, %v1023
      %v1029 = vrot.slane %v1028, 4
      %v1031 = vshll.u32 %v839, 16
      %v1033 = vrot.slane %v1031, 5
      %v1034 = vsel %vm842, %v1029, %v1033
      %s1035 = scalar_lea.vmem %s3, 2
      %v1036 = vld [vmem:[%s1035] sm:$0x3]
      %v1037 = vunpack.c.l.b16 %v856
      %v1038 = vunpack.c.l.b16 %v866
      %v1039 = vunpack.c.l.b16 %v880
      %v1040 = vunpack.c.l.b16 %v890
      %v1041 = vunpack.c.l.b16 %v904
      %v1042 = vunpack.c.l.b16 %v914
      %v1043 = vunpack.c.l.b16 %v928
      %v1044 = vunpack.c.l.b16 %v938
      %v1045 = vunpack.c.l.b16 %v952
      %v1046 = vunpack.c.l.b16 %v962
      %v1047 = vunpack.c.l.b16 %v976
      %v1048 = vunpack.c.l.b16 %v986
      %v1049 = vunpack.c.l.b16 %v1000
      %v1050 = vunpack.c.l.b16 %v1010
      %v1051 = vunpack.c.l.b16 %v1024
      %v1052 = vunpack.c.l.b16 %v1034
      %v1053 = vpack.c.b16 %v1038, %v1037
      %v1054 = vpack.c.b16 %v1040, %v1039
      %v1055 = vpack.c.b16 %v1042, %v1041
      %v1056 = vpack.c.b16 %v1044, %v1043
      %v1057 = vpack.c.b16 %v1046, %v1045
      %v1058 = vpack.c.b16 %v1048, %v1047
      %v1059 = vpack.c.b16 %v1050, %v1049
      %v1060 = vpack.c.b16 %v1052, %v1051
      %vm1061 = vcmask 31744
      %v1063 = vsel %vm1061, %v1053, 0
      %v1066 = vsel %vm1061, %v1054, 0
      %v1069 = vsel %vm1061, %v1055, 0
      %v1072 = vsel %vm1061, %v1056, 0
      %v1075 = vsel %vm1061, %v1057, 0
      %v1078 = vsel %vm1061, %v1058, 0
      %v1081 = vsel %vm1061, %v1059, 0
      %v1084 = vsel %vm1061, %v1060, 0
      %vm1086 = vcmask 1041408
      %v1088 = vsel %vm1086, %v1036, 0
      %1090 = vmatprep.subr.bf16.mxu0 0
      %1091 = vmatpush1.bf16.msra.mxu0 %v1088
      %1092 = vmatprep.subr.bf16.mxu0 0
      %1093 = vmatpush1.bf16.msra.mxu0 0
      %1094 = vmatprep.subr.bf16.mxu0 0
      %1095 = vmatpush1.bf16.msra.mxu0 0
      %1096 = vmatprep.subr.bf16.mxu0 0
      %1097 = vmatpush1.bf16.msra.mxu0 0
      %1098 = vmatprep.subr.bf16.mxu0 0
      %1099 = vmatpush1.bf16.msra.mxu0 0
      %1100 = vmatprep.subr.bf16.mxu0 0
      %1101 = vmatpush1.bf16.msra.mxu0 0
      %1102 = vmatprep.subr.bf16.mxu0 0
      %1103 = vmatpush1.bf16.msra.mxu0 0
      %1104 = vmatprep.subr.bf16.mxu0 0
      %1105 = vmatpush1.bf16.msra.mxu0 0
      %1106 = vmatprep.subr.bf16.mxu0 0
      %1107 = vmatpush1.bf16.msra.mxu0 0
      %1108 = vmatprep.subr.bf16.mxu0 0
      %1109 = vmatpush1.bf16.msra.mxu0 0
      %1110 = vmatprep.subr.bf16.mxu0 0
      %1111 = vmatpush1.bf16.msra.mxu0 0
      %1112 = vmatprep.subr.bf16.mxu0 0
      %1113 = vmatpush1.bf16.msra.mxu0 0
      %1114 = vmatprep.subr.bf16.mxu0 0
      %1115 = vmatpush1.bf16.msra.mxu0 0
      %1116 = vmatprep.subr.bf16.mxu0 0
      %1117 = vmatpush1.bf16.msra.mxu0 0
      %1118 = vmatprep.subr.bf16.mxu0 0
      %1119 = vmatpush1.bf16.msra.mxu0 0
      %1120 = vmatprep.subr.bf16.mxu0 0
      %1121 = vmatpush1.bf16.msra.mxu0 0
      %1122 = vmatprep.mubr.bf16.mxu0 0
      %1123 = vmatmul.mubr.bf16.gmra.mrb[0].mxu0 %v1063
      %v1124 = vpop.f32.mrb[0].mxu0
      %v1125 = vadd.f32 0.0, %v1124
      %v1126 = vpop.f32.mrb[0].mxu0
      %v1127 = vpop.f32.mrb[0].mxu0
      %v1128 = vadd.f32 0.0, %v1127
      %v1129 = vpop.f32.mrb[0].mxu0
      %1130 = vmatprep.mubr.bf16.mxu0 0
      %1131 = vmatmul.mubr.bf16.gmra.mrb[0].mxu0 %v1066
      %v1132 = vpop.f32.mrb[0].mxu0
      %v1133 = vadd.f32 0.0, %v1132
      %v1134 = vpop.f32.mrb[0].mxu0
      %v1135 = vpop.f32.mrb[0].mxu0
      %v1136 = vadd.f32 0.0, %v1135
      %v1137 = vpop.f32.mrb[0].mxu0
      %1138 = vmatprep.mubr.bf16.mxu0 0
      %1139 = vmatmul.mubr.bf16.gmra.mrb[0].mxu0 %v1069
      %v1140 = vpop.f32.mrb[0].mxu0
      %v1141 = vadd.f32 0.0, %v1140
      %v1142 = vpop.f32.mrb[0].mxu0
      %v1143 = vpop.f32.mrb[0].mxu0
      %v1144 = vadd.f32 0.0, %v1143
      %v1145 = vpop.f32.mrb[0].mxu0
      %1146 = vmatprep.mubr.bf16.mxu0 0
      %1147 = vmatmul.mubr.bf16.gmra.mrb[0].mxu0 %v1072
      %v1148 = vpop.f32.mrb[0].mxu0
      %v1149 = vadd.f32 0.0, %v1148
      %v1150 = vpop.f32.mrb[0].mxu0
      %v1151 = vpop.f32.mrb[0].mxu0
      %v1152 = vadd.f32 0.0, %v1151
      %v1153 = vpop.f32.mrb[0].mxu0
      %1154 = vmatprep.mubr.bf16.mxu0 0
      %1155 = vmatmul.mubr.bf16.gmra.mrb[0].mxu0 %v1075
      %v1156 = vpop.f32.mrb[0].mxu0
      %v1157 = vadd.f32 0.0, %v1156
      %v1158 = vpop.f32.mrb[0].mxu0
      %v1159 = vpop.f32.mrb[0].mxu0
      %v1160 = vadd.f32 0.0, %v1159
      %v1161 = vpop.f32.mrb[0].mxu0
      %1162 = vmatprep.mubr.bf16.mxu0 0
      %1163 = vmatmul.mubr.bf16.gmra.mrb[0].mxu0 %v1078
      %v1164 = vpop.f32.mrb[0].mxu0
      %v1165 = vadd.f32 0.0, %v1164
      %v1166 = vpop.f32.mrb[0].mxu0
      %v1167 = vpop.f32.mrb[0].mxu0
      %v1168 = vadd.f32 0.0, %v1167
      %v1169 = vpop.f32.mrb[0].mxu0
      %1170 = vmatprep.mubr.bf16.mxu0 0
      %1171 = vmatmul.mubr.bf16.gmra.mrb[0].mxu0 %v1081
      %v1172 = vpop.f32.mrb[0].mxu0
      %v1173 = vadd.f32 0.0, %v1172
      %v1174 = vpop.f32.mrb[0].mxu0
      %v1175 = vpop.f32.mrb[0].mxu0
      %v1176 = vadd.f32 0.0, %v1175
      %v1177 = vpop.f32.mrb[0].mxu0
      %1178 = vmatprep.mubr.bf16.mxu0 0
      %1179 = vmatmul.mubr.bf16.gmra.mrb[0].mxu0 %v1084
      %v1180 = vpop.f32.mrb[0].mxu0
      %v1181 = vadd.f32 0.0, %v1180
      %v1182 = vpop.f32.mrb[0].mxu0
      %v1183 = vpop.f32.mrb[0].mxu0
      %v1184 = vadd.f32 0.0, %v1183
      %v1185 = vpop.f32.mrb[0].mxu0
      %1186 = vdwg.mxu0
      %v1203 = vunpack.c.l.b16 %v815
      %v1204 = vunpack.c.l.b16 %v816
      %v1205 = vunpack.c.l.b16 %v817
      %v1206 = vunpack.c.l.b16 %v818
      %v1207 = vunpack.c.l.b16 %v819
      %v1208 = vunpack.c.l.b16 %v820
      %v1209 = vunpack.c.l.b16 %v821
      %v1210 = vunpack.c.l.b16 %v822
      %v1211 = vunpack.c.l.b16 %v823
      %v1212 = vunpack.c.l.b16 %v824
      %v1213 = vunpack.c.l.b16 %v825
      %v1214 = vunpack.c.l.b16 %v826
      %v1215 = vunpack.c.l.b16 %v827
      %v1216 = vunpack.c.l.b16 %v828
      %v1217 = vunpack.c.l.b16 %v829
      %v1218 = vunpack.c.l.b16 %v830
      %v1219 = vpack.c.b16 %v1204, %v1203
      %v1220 = vpack.c.b16 %v1206, %v1205
      %v1221 = vpack.c.b16 %v1208, %v1207
      %v1222 = vpack.c.b16 %v1210, %v1209
      %v1223 = vpack.c.b16 %v1212, %v1211
      %v1224 = vpack.c.b16 %v1214, %v1213
      %v1225 = vpack.c.b16 %v1216, %v1215
      %v1226 = vpack.c.b16 %v1218, %v1217
      %v1228 = vsel %vm1061, %v1219, 0
      %v1231 = vsel %vm1061, %v1220, 0
      %v1234 = vsel %vm1061, %v1221, 0
      %v1237 = vsel %vm1061, %v1222, 0
      %v1240 = vsel %vm1061, %v1223, 0
      %v1243 = vsel %vm1061, %v1224, 0
      %v1246 = vsel %vm1061, %v1225, 0
      %v1249 = vsel %vm1061, %v1226, 0
      %v1252 = vsel %vm1086, %v831, 0
      %1254 = vmatprep.subr.bf16.mxu0 0
      %1255 = vmatpush1.bf16.msra.mxu0 %v1252
      %1256 = vmatprep.subr.bf16.mxu0 0
      %1257 = vmatpush1.bf16.msra.mxu0 0
      %1258 = vmatprep.subr.bf16.mxu0 0
      %1259 = vmatpush1.bf16.msra.mxu0 0
      %1260 = vmatprep.subr.bf16.mxu0 0
      %1261 = vmatpush1.bf16.msra.mxu0 0
      %1262 = vmatprep.subr.bf16.mxu0 0
      %1263 = vmatpush1.bf16.msra.mxu0 0
      %1264 = vmatprep.subr.bf16.mxu0 0
      %1265 = vmatpush1.bf16.msra.mxu0 0
      %1266 = vmatprep.subr.bf16.mxu0 0
      %1267 = vmatpush1.bf16.msra.mxu0 0
      %1268 = vmatprep.subr.bf16.mxu0 0
      %1269 = vmatpush1.bf16.msra.mxu0 0
      %1270 = vmatprep.subr.bf16.mxu0 0
      %1271 = vmatpush1.bf16.msra.mxu0 0
      %1272 = vmatprep.subr.bf16.mxu0 0
      %1273 = vmatpush1.bf16.msra.mxu0 0
      %1274 = vmatprep.subr.bf16.mxu0 0
      %1275 = vmatpush1.bf16.msra.mxu0 0
      %1276 = vmatprep.subr.bf16.mxu0 0
      %1277 = vmatpush1.bf16.msra.mxu0 0
      %1278 = vmatprep.subr.bf16.mxu0 0
      %1279 = vmatpush1.bf16.msra.mxu0 0
      %1280 = vmatprep.subr.bf16.mxu0 0
      %1281 = vmatpush1.bf16.msra.mxu0 0
      %1282 = vmatprep.subr.bf16.mxu0 0
      %1283 = vmatpush1.bf16.msra.mxu0 0
      %1284 = vmatprep.subr.bf16.mxu0 0
      %1285 = vmatpush1.bf16.msra.mxu0 0
      %1286 = vmatprep.mubr.bf16.mxu0 0
      %1287 = vmatmul.mubr.bf16.gmra.mrb[0].mxu0 %v1228
      %v1288 = vpop.f32.mrb[0].mxu0
      %v1289 = vadd.f32 %v1125, %v1288
      %v1290 = vpop.f32.mrb[0].mxu0
      %v1291 = vpop.f32.mrb[0].mxu0
      %v1292 = vadd.f32 %v1128, %v1291
      %v1293 = vpop.f32.mrb[0].mxu0
      %1294 = vmatprep.mubr.bf16.mxu0 0
      %1295 = vmatmul.mubr.bf16.gmra.mrb[0].mxu0 %v1231
      %v1296 = vpop.f32.mrb[0].mxu0
      %v1297 = vadd.f32 %v1133, %v1296
      %v1298 = vpop.f32.mrb[0].mxu0
      %v1299 = vpop.f32.mrb[0].mxu0
      %v1300 = vadd.f32 %v1136, %v1299
      %v1301 = vpop.f32.mrb[0].mxu0
      %1302 = vmatprep.mubr.bf16.mxu0 0
      %1303 = vmatmul.mubr.bf16.gmra.mrb[0].mxu0 %v1234
      %v1304 = vpop.f32.mrb[0].mxu0
      %v1305 = vadd.f32 %v1141, %v1304
      %v1306 = vpop.f32.mrb[0].mxu0
      %v1307 = vpop.f32.mrb[0].mxu0
      %v1308 = vadd.f32 %v1144, %v1307
      %v1309 = vpop.f32.mrb[0].mxu0
      %1310 = vmatprep.mubr.bf16.mxu0 0
      %1311 = vmatmul.mubr.bf16.gmra.mrb[0].mxu0 %v1237
      %v1312 = vpop.f32.mrb[0].mxu0
      %v1313 = vadd.f32 %v1149, %v1312
      %v1314 = vpop.f32.mrb[0].mxu0
      %v1315 = vpop.f32.mrb[0].mxu0
      %v1316 = vadd.f32 %v1152, %v1315
      %v1317 = vpop.f32.mrb[0].mxu0
      %1318 = vmatprep.mubr.bf16.mxu0 0
      %1319 = vmatmul.mubr.bf16.gmra.mrb[0].mxu0 %v1240
      %v1320 = vpop.f32.mrb[0].mxu0
      %v1321 = vadd.f32 %v1157, %v1320
      %v1322 = vpop.f32.mrb[0].mxu0
      %v1323 = vpop.f32.mrb[0].mxu0
      %v1324 = vadd.f32 %v1160, %v1323
      %v1325 = vpop.f32.mrb[0].mxu0
      %1326 = vmatprep.mubr.bf16.mxu0 0
      %1327 = vmatmul.mubr.bf16.gmra.mrb[0].mxu0 %v1243
      %v1328 = vpop.f32.mrb[0].mxu0
      %v1329 = vadd.f32 %v1165, %v1328
      %v1330 = vpop.f32.mrb[0].mxu0
      %v1331 = vpop.f32.mrb[0].mxu0
      %v1332 = vadd.f32 %v1168, %v1331
      %v1333 = vpop.f32.mrb[0].mxu0
      %1334 = vmatprep.mubr.bf16.mxu0 0
      %1335 = vmatmul.mubr.bf16.gmra.mrb[0].mxu0 %v1246
      %v1336 = vpop.f32.mrb[0].mxu0
      %v1337 = vadd.f32 %v1173, %v1336
      %v1338 = vpop.f32.mrb[0].mxu0
      %v1339 = vpop.f32.mrb[0].mxu0
      %v1340 = vadd.f32 %v1176, %v1339
      %v1341 = vpop.f32.mrb[0].mxu0
      %1342 = vmatprep.mubr.bf16.mxu0 0
      %1343 = vmatmul.mubr.bf16.gmra.mrb[0].mxu0 %v1249
      %v1344 = vpop.f32.mrb[0].mxu0
      %v1345 = vadd.f32 %v1181, %v1344
      %v1346 = vpop.f32.mrb[0].mxu0
      %v1347 = vpop.f32.mrb[0].mxu0
      %v1348 = vadd.f32 %v1184, %v1347
      %v1349 = vpop.f32.mrb[0].mxu0
      %1350 = vdwg.mxu0
      %v1351 = vld [vmem:[#allocation2] sm:$0xe]
      %v1352 = vld [vmem:[#allocation2 + $0xc] sm:$0xe]
      %v1353 = vld [vmem:[#allocation2 + $0x18] sm:$0xe]
      %v1354 = vld [vmem:[#allocation2 + $0x24] sm:$0xe]
      %v1355 = vld [vmem:[#allocation2 + $0x30] sm:$0xe]
      %v1356 = vld [vmem:[#allocation2 + $0x3c] sm:$0xe]
      %v1357 = vld [vmem:[#allocation2 + $0x48] sm:$0xe]
      %v1358 = vld [vmem:[#allocation2 + $0x54] sm:$0xe]
      %vm1375 = vcmask 1042432
      %vm1376 = vcmask 1046532
      %vm1377 = vmor %vm1375, %vm1376
      %v1378 = vrot.slane %v1351, 5
      %v1379 = vrot.slane %v1378, 4
      %v1380 = vrot.slane %v816, 5
      %v1381 = vsel %vm1377, %v1379, %v1380
      %v1382 = vrot.slane %v1380, 4
      %v1383 = vrot.slane %v832, 5
      %v1384 = vsel %vm1377, %v1382, %v1383
      %v1385 = vrot.slane %v1352, 5
      %v1386 = vrot.slane %v1385, 4
      %v1387 = vrot.slane %v818, 5
      %v1388 = vsel %vm1377, %v1386, %v1387
      %v1389 = vrot.slane %v1387, 4
      %v1390 = vrot.slane %v833, 5
      %v1391 = vsel %vm1377, %v1389, %v1390
      %v1392 = vrot.slane %v1353, 5
      %v1393 = vrot.slane %v1392, 4
      %v1394 = vrot.slane %v820, 5
      %v1395 = vsel %vm1377, %v1393, %v1394
      %v1396 = vrot.slane %v1394, 4
      %v1397 = vrot.slane %v834, 5
      %v1398 = vsel %vm1377, %v1396, %v1397
      %v1399 = vrot.slane %v1354, 5
      %v1400 = vrot.slane %v1399, 4
      %v1401 = vrot.slane %v822, 5
      %v1402 = vsel %vm1377, %v1400, %v1401
      %v1403 = vrot.slane %v1401, 4
      %v1404 = vrot.slane %v835, 5
      %v1405 = vsel %vm1377, %v1403, %v1404
      %v1406 = vrot.slane %v1355, 5
      %v1407 = vrot.slane %v1406, 4
      %v1408 = vrot.slane %v824, 5
      %v1409 = vsel %vm1377, %v1407, %v1408
      %v1410 = vrot.slane %v1408, 4
      %v1411 = vrot.slane %v836, 5
      %v1412 = vsel %vm1377, %v1410, %v1411
      %v1413 = vrot.slane %v1356, 5
      %v1414 = vrot.slane %v1413, 4
      %v1415 = vrot.slane %v826, 5
      %v1416 = vsel %vm1377, %v1414, %v1415
      %v1417 = vrot.slane %v1415, 4
      %v1418 = vrot.slane %v837, 5
      %v1419 = vsel %vm1377, %v1417, %v1418
      %v1420 = vrot.slane %v1357, 5
      %v1421 = vrot.slane %v1420, 4
      %v1422 = vrot.slane %v828, 5
      %v1423 = vsel %vm1377, %v1421, %v1422
      %v1424 = vrot.slane %v1422, 4
      %v1425 = vrot.slane %v838, 5
      %v1426 = vsel %vm1377, %v1424, %v1425
      %v1427 = vrot.slane %v1358, 5
      %v1428 = vrot.slane %v1427, 4
      %v1429 = vrot.slane %v830, 5
      %v1430 = vsel %vm1377, %v1428, %v1429
      %v1431 = vrot.slane %v1429, 4
      %v1432 = vrot.slane %v839, 5
      %v1433 = vsel %vm1377, %v1431, %v1432
      %s1434 = scalar_lea.vmem %s3, 4
      %v1435 = vld [vmem:[%s1434] sm:$0x3]
      %v1436 = vunpack.c.l.b16 %v1381
      %v1437 = vunpack.c.l.b16 %v1384
      %v1438 = vunpack.c.l.b16 %v1388
      %v1439 = vunpack.c.l.b16 %v1391
      %v1440 = vunpack.c.l.b16 %v1395
      %v1441 = vunpack.c.l.b16 %v1398
      %v1442 = vunpack.c.l.b16 %v1402
      %v1443 = vunpack.c.l.b16 %v1405
      %v1444 = vunpack.c.l.b16 %v1409
      %v1445 = vunpack.c.l.b16 %v1412
      %v1446 = vunpack.c.l.b16 %v1416
      %v1447 = vunpack.c.l.b16 %v1419
      %v1448 = vunpack.c.l.b16 %v1423
      %v1449 = vunpack.c.l.b16 %v1426
      %v1450 = vunpack.c.l.b16 %v1430
      %v1451 = vunpack.c.l.b16 %v1433
      %v1452 = vpack.c.b16 %v1437, %v1436
      %v1453 = vpack.c.b16 %v1439, %v1438
      %v1454 = vpack.c.b16 %v1441, %v1440
      %v1455 = vpack.c.b16 %v1443, %v1442
      %v1456 = vpack.c.b16 %v1445, %v1444
      %v1457 = vpack.c.b16 %v1447, %v1446
      %v1458 = vpack.c.b16 %v1449, %v1448
      %v1459 = vpack.c.b16 %v1451, %v1450
      %v1461 = vsel %vm1061, %v1452, 0
      %v1464 = vsel %vm1061, %v1453, 0
      %v1467 = vsel %vm1061, %v1454, 0
      %v1470 = vsel %vm1061, %v1455, 0
      %v1473 = vsel %vm1061, %v1456, 0
      %v1476 = vsel %vm1061, %v1457, 0
      %v1479 = vsel %vm1061, %v1458, 0
      %v1482 = vsel %vm1061, %v1459, 0
      %v1485 = vsel %vm1086, %v1435, 0
      %1487 = vmatprep.subr.bf16.mxu0 0
      %1488 = vmatpush1.bf16.msra.mxu0 %v1485
      %1489 = vmatprep.subr.bf16.mxu0 0
      %1490 = vmatpush1.bf16.msra.mxu0 0
      %1491 = vmatprep.subr.bf16.mxu0 0
      %1492 = vmatpush1.bf16.msra.mxu0 0
      %1493 = vmatprep.subr.bf16.mxu0 0
      %1494 = vmatpush1.bf16.msra.mxu0 0
      %1495 = vmatprep.subr.bf16.mxu0 0
      %1496 = vmatpush1.bf16.msra.mxu0 0
      %1497 = vmatprep.subr.bf16.mxu0 0
      %1498 = vmatpush1.bf16.msra.mxu0 0
      %1499 = vmatprep.subr.bf16.mxu0 0
      %1500 = vmatpush1.bf16.msra.mxu0 0
      %1501 = vmatprep.subr.bf16.mxu0 0
      %1502 = vmatpush1.bf16.msra.mxu0 0
      %1503 = vmatprep.subr.bf16.mxu0 0
      %1504 = vmatpush1.bf16.msra.mxu0 0
      %1505 = vmatprep.subr.bf16.mxu0 0
      %1506 = vmatpush1.bf16.msra.mxu0 0
      %1507 = vmatprep.subr.bf16.mxu0 0
      %1508 = vmatpush1.bf16.msra.mxu0 0
      %1509 = vmatprep.subr.bf16.mxu0 0
      %1510 = vmatpush1.bf16.msra.mxu0 0
      %1511 = vmatprep.subr.bf16.mxu0 0
      %1512 = vmatpush1.bf16.msra.mxu0 0
      %1513 = vmatprep.subr.bf16.mxu0 0
      %1514 = vmatpush1.bf16.msra.mxu0 0
      %1515 = vmatprep.subr.bf16.mxu0 0
      %1516 = vmatpush1.bf16.msra.mxu0 0
      %1517 = vmatprep.subr.bf16.mxu0 0
      %1518 = vmatpush1.bf16.msra.mxu0 0
      %1519 = vmatprep.mubr.bf16.mxu0 0
      %1520 = vmatmul.mubr.bf16.gmra.mrb[0].mxu0 %v1461
      %v1521 = vpop.f32.mrb[0].mxu0
      %v1522 = vadd.f32 0.0, %v1521
      %v1523 = vpop.f32.mrb[0].mxu0
      %v1524 = vpop.f32.mrb[0].mxu0
      %v1525 = vadd.f32 0.0, %v1524
      %v1526 = vpop.f32.mrb[0].mxu0
      %1527 = vmatprep.mubr.bf16.mxu0 0
      %1528 = vmatmul.mubr.bf16.gmra.mrb[0].mxu0 %v1464
      %v1529 = vpop.f32.mrb[0].mxu0
      %v1530 = vadd.f32 0.0, %v1529
      %v1531 = vpop.f32.mrb[0].mxu0
      %v1532 = vpop.f32.mrb[0].mxu0
      %v1533 = vadd.f32 0.0, %v1532
      %v1534 = vpop.f32.mrb[0].mxu0
      %1535 = vmatprep.mubr.bf16.mxu0 0
      %1536 = vmatmul.mubr.bf16.gmra.mrb[0].mxu0 %v1467
      %v1537 = vpop.f32.mrb[0].mxu0
      %v1538 = vadd.f32 0.0, %v1537
      %v1539 = vpop.f32.mrb[0].mxu0
      %v1540 = vpop.f32.mrb[0].mxu0
      %v1541 = vadd.f32 0.0, %v1540
      %v1542 = vpop.f32.mrb[0].mxu0
      %1543 = vmatprep.mubr.bf16.mxu0 0
      %1544 = vmatmul.mubr.bf16.gmra.mrb[0].mxu0 %v1470
      %v1545 = vpop.f32.mrb[0].mxu0
      %v1546 = vadd.f32 0.0, %v1545
      %v1547 = vpop.f32.mrb[0].mxu0
      %v1548 = vpop.f32.mrb[0].mxu0
      %v1549 = vadd.f32 0.0, %v1548
      %v1550 = vpop.f32.mrb[0].mxu0
      %1551 = vmatprep.mubr.bf16.mxu0 0
      %1552 = vmatmul.mubr.bf16.gmra.mrb[0].mxu0 %v1473
      %v1553 = vpop.f32.mrb[0].mxu0
      %v1554 = vadd.f32 0.0, %v1553
      %v1555 = vpop.f32.mrb[0].mxu0
      %v1556 = vpop.f32.mrb[0].mxu0
      %v1557 = vadd.f32 0.0, %v1556
      %v1558 = vpop.f32.mrb[0].mxu0
      %1559 = vmatprep.mubr.bf16.mxu0 0
      %1560 = vmatmul.mubr.bf16.gmra.mrb[0].mxu0 %v1476
      %v1561 = vpop.f32.mrb[0].mxu0
      %v1562 = vadd.f32 0.0, %v1561
      %v1563 = vpop.f32.mrb[0].mxu0
      %v1564 = vpop.f32.mrb[0].mxu0
      %v1565 = vadd.f32 0.0, %v1564
      %v1566 = vpop.f32.mrb[0].mxu0
      %1567 = vmatprep.mubr.bf16.mxu0 0
      %1568 = vmatmul.mubr.bf16.gmra.mrb[0].mxu0 %v1479
      %v1569 = vpop.f32.mrb[0].mxu0
      %v1570 = vadd.f32 0.0, %v1569
      %v1571 = vpop.f32.mrb[0].mxu0
      %v1572 = vpop.f32.mrb[0].mxu0
      %v1573 = vadd.f32 0.0, %v1572
      %v1574 = vpop.f32.mrb[0].mxu0
      %1575 = vmatprep.mubr.bf16.mxu0 0
      %1576 = vmatmul.mubr.bf16.gmra.mrb[0].mxu0 %v1482
      %v1577 = vpop.f32.mrb[0].mxu0
      %v1578 = vadd.f32 0.0, %v1577
      %v1579 = vpop.f32.mrb[0].mxu0
      %v1580 = vpop.f32.mrb[0].mxu0
      %v1581 = vadd.f32 0.0, %v1580
      %v1582 = vpop.f32.mrb[0].mxu0
      %1583 = vdwg.mxu0
      %v1584 = vadd.f32 %v1289, %v1522
      %v1585 = vadd.f32 %v1292, %v1525
      %v1586 = vadd.f32 %v1297, %v1530
      %v1587 = vadd.f32 %v1300, %v1533
      %v1588 = vadd.f32 %v1305, %v1538
      %v1589 = vadd.f32 %v1308, %v1541
      %v1590 = vadd.f32 %v1313, %v1546
      %v1591 = vadd.f32 %v1316, %v1549
      %v1592 = vadd.f32 %v1321, %v1554
      %v1593 = vadd.f32 %v1324, %v1557
      %v1594 = vadd.f32 %v1329, %v1562
      %v1595 = vadd.f32 %v1332, %v1565
      %v1596 = vadd.f32 %v1337, %v1570
      %v1597 = vadd.f32 %v1340, %v1573
      %v1598 = vadd.f32 %v1345, %v1578
      %v1599 = vadd.f32 %v1348, %v1581
      %v1600 = vld [vmem:[%s674] sm:$0xf]
      %v1601 = vld [vmem:[%s674 + $0x4] sm:$0xf]
      %v1602 = vld [vmem:[%s674 + $0xc] sm:$0xf]
      %v1603 = vld [vmem:[%s674 + $0x10] sm:$0xf]
      %v1604 = vld [vmem:[%s674 + $0x18] sm:$0xf]
      %v1605 = vld [vmem:[%s674 + $0x1c] sm:$0xf]
      %v1606 = vld [vmem:[%s674 + $0x24] sm:$0xf]
      %v1607 = vld [vmem:[%s674 + $0x28] sm:$0xf]
      %v1608 = vld [vmem:[%s674 + $0x30] sm:$0xf]
      %v1609 = vld [vmem:[%s674 + $0x34] sm:$0xf]
      %v1610 = vld [vmem:[%s674 + $0x3c] sm:$0xf]
      %v1611 = vld [vmem:[%s674 + $0x40] sm:$0xf]
      %v1612 = vld [vmem:[%s674 + $0x48] sm:$0xf]
      %v1613 = vld [vmem:[%s674 + $0x4c] sm:$0xf]
      %v1614 = vld [vmem:[%s674 + $0x54] sm:$0xf]
      %v1615 = vld [vmem:[%s674 + $0x58] sm:$0xf]
      %s1616 = scalar_lea.vmem %s3, 6
      %v1617 = vld [vmem:[%s1616] sm:$0x3]
      %v1634 = vunpack.c.l.b16 %v1600
      %v1635 = vunpack.c.l.b16 %v1601
      %v1636 = vunpack.c.l.b16 %v1602
      %v1637 = vunpack.c.l.b16 %v1603
      %v1638 = vunpack.c.l.b16 %v1604
      %v1639 = vunpack.c.l.b16 %v1605
      %v1640 = vunpack.c.l.b16 %v1606
      %v1641 = vunpack.c.l.b16 %v1607
      %v1642 = vunpack.c.l.b16 %v1608
      %v1643 = vunpack.c.l.b16 %v1609
      %v1644 = vunpack.c.l.b16 %v1610
      %v1645 = vunpack.c.l.b16 %v1611
      %v1646 = vunpack.c.l.b16 %v1612
      %v1647 = vunpack.c.l.b16 %v1613
      %v1648 = vunpack.c.l.b16 %v1614
      %v1649 = vunpack.c.l.b16 %v1615
      %v1650 = vpack.c.b16 %v1635, %v1634
      %v1651 = vpack.c.b16 %v1637, %v1636
      %v1652 = vpack.c.b16 %v1639, %v1638
      %v1653 = vpack.c.b16 %v1641, %v1640
      %v1654 = vpack.c.b16 %v1643, %v1642
      %v1655 = vpack.c.b16 %v1645, %v1644
      %v1656 = vpack.c.b16 %v1647, %v1646
      %v1657 = vpack.c.b16 %v1649, %v1648
      %v1659 = vsel %vm1061, %v1650, 0
      %v1662 = vsel %vm1061, %v1651, 0
      %v1665 = vsel %vm1061, %v1652, 0
      %v1668 = vsel %vm1061, %v1653, 0
      %v1671 = vsel %vm1061, %v1654, 0
      %v1674 = vsel %vm1061, %v1655, 0
      %v1677 = vsel %vm1061, %v1656, 0
      %v1680 = vsel %vm1061, %v1657, 0
      %v1683 = vsel %vm1086, %v1617, 0
      %1685 = vmatprep.subr.bf16.mxu0 0
      %1686 = vmatpush1.bf16.msra.mxu0 %v1683
      %1687 = vmatprep.subr.bf16.mxu0 0
      %1688 = vmatpush1.bf16.msra.mxu0 0
      %1689 = vmatprep.subr.bf16.mxu0 0
      %1690 = vmatpush1.bf16.msra.mxu0 0
      %1691 = vmatprep.subr.bf16.mxu0 0
      %1692 = vmatpush1.bf16.msra.mxu0 0
      %1693 = vmatprep.subr.bf16.mxu0 0
      %1694 = vmatpush1.bf16.msra.mxu0 0
      %1695 = vmatprep.subr.bf16.mxu0 0
      %1696 = vmatpush1.bf16.msra.mxu0 0
      %1697 = vmatprep.subr.bf16.mxu0 0
      %1698 = vmatpush1.bf16.msra.mxu0 0
      %1699 = vmatprep.subr.bf16.mxu0 0
      %1700 = vmatpush1.bf16.msra.mxu0 0
      %1701 = vmatprep.subr.bf16.mxu0 0
      %1702 = vmatpush1.bf16.msra.mxu0 0
      %1703 = vmatprep.subr.bf16.mxu0 0
      %1704 = vmatpush1.bf16.msra.mxu0 0
      %1705 = vmatprep.subr.bf16.mxu0 0
      %1706 = vmatpush1.bf16.msra.mxu0 0
      %1707 = vmatprep.subr.bf16.mxu0 0
      %1708 = vmatpush1.bf16.msra.mxu0 0
      %1709 = vmatprep.subr.bf16.mxu0 0
      %1710 = vmatpush1.bf16.msra.mxu0 0
      %1711 = vmatprep.subr.bf16.mxu0 0
      %1712 = vmatpush1.bf16.msra.mxu0 0
      %1713 = vmatprep.subr.bf16.mxu0 0
      %1714 = vmatpush1.bf16.msra.mxu0 0
      %1715 = vmatprep.subr.bf16.mxu0 0
      %1716 = vmatpush1.bf16.msra.mxu0 0
      %1717 = vmatprep.mubr.bf16.mxu0 0
      %1718 = vmatmul.mubr.bf16.gmra.mrb[0].mxu0 %v1659
      %v1719 = vpop.f32.mrb[0].mxu0
      %v1720 = vadd.f32 0.0, %v1719
      %v1721 = vpop.f32.mrb[0].mxu0
      %v1722 = vpop.f32.mrb[0].mxu0
      %v1723 = vadd.f32 0.0, %v1722
      %v1724 = vpop.f32.mrb[0].mxu0
      %1725 = vmatprep.mubr.bf16.mxu0 0
      %1726 = vmatmul.mubr.bf16.gmra.mrb[0].mxu0 %v1662
      %v1727 = vpop.f32.mrb[0].mxu0
      %v1728 = vadd.f32 0.0, %v1727
      %v1729 = vpop.f32.mrb[0].mxu0
      %v1730 = vpop.f32.mrb[0].mxu0
      %v1731 = vadd.f32 0.0, %v1730
      %v1732 = vpop.f32.mrb[0].mxu0
      %1733 = vmatprep.mubr.bf16.mxu0 0
      %1734 = vmatmul.mubr.bf16.gmra.mrb[0].mxu0 %v1665
      %v1735 = vpop.f32.mrb[0].mxu0
      %v1736 = vadd.f32 0.0, %v1735
      %v1737 = vpop.f32.mrb[0].mxu0
      %v1738 = vpop.f32.mrb[0].mxu0
      %v1739 = vadd.f32 0.0, %v1738
      %v1740 = vpop.f32.mrb[0].mxu0
      %1741 = vmatprep.mubr.bf16.mxu0 0
      %1742 = vmatmul.mubr.bf16.gmra.mrb[0].mxu0 %v1668
      %v1743 = vpop.f32.mrb[0].mxu0
      %v1744 = vadd.f32 0.0, %v1743
      %v1745 = vpop.f32.mrb[0].mxu0
      %v1746 = vpop.f32.mrb[0].mxu0
      %v1747 = vadd.f32 0.0, %v1746
      %v1748 = vpop.f32.mrb[0].mxu0
      %1749 = vmatprep.mubr.bf16.mxu0 0
      %1750 = vmatmul.mubr.bf16.gmra.mrb[0].mxu0 %v1671
      %v1751 = vpop.f32.mrb[0].mxu0
      %v1752 = vadd.f32 0.0, %v1751
      %v1753 = vpop.f32.mrb[0].mxu0
      %v1754 = vpop.f32.mrb[0].mxu0
      %v1755 = vadd.f32 0.0, %v1754
      %v1756 = vpop.f32.mrb[0].mxu0
      %1757 = vmatprep.mubr.bf16.mxu0 0
      %1758 = vmatmul.mubr.bf16.gmra.mrb[0].mxu0 %v1674
      %v1759 = vpop.f32.mrb[0].mxu0
      %v1760 = vadd.f32 0.0, %v1759
      %v1761 = vpop.f32.mrb[0].mxu0
      %v1762 = vpop.f32.mrb[0].mxu0
      %v1763 = vadd.f32 0.0, %v1762
      %v1764 = vpop.f32.mrb[0].mxu0
      %1765 = vmatprep.mubr.bf16.mxu0 0
      %1766 = vmatmul.mubr.bf16.gmra.mrb[0].mxu0 %v1677
      %v1767 = vpop.f32.mrb[0].mxu0
      %v1768 = vadd.f32 0.0, %v1767
      %v1769 = vpop.f32.mrb[0].mxu0
      %v1770 = vpop.f32.mrb[0].mxu0
      %v1771 = vadd.f32 0.0, %v1770
      %v1772 = vpop.f32.mrb[0].mxu0
      %1773 = vmatprep.mubr.bf16.mxu0 0
      %1774 = vmatmul.mubr.bf16.gmra.mrb[0].mxu0 %v1680
      %v1775 = vpop.f32.mrb[0].mxu0
      %v1776 = vadd.f32 0.0, %v1775
      %v1777 = vpop.f32.mrb[0].mxu0
      %v1778 = vpop.f32.mrb[0].mxu0
      %v1779 = vadd.f32 0.0, %v1778
      %v1780 = vpop.f32.mrb[0].mxu0
      %1781 = vdwg.mxu0
      %v1782 = vadd.f32 %v1584, %v1720
      %v1783 = vadd.f32 %v1585, %v1723
      %v1784 = vadd.f32 %v1586, %v1728
      %v1785 = vadd.f32 %v1587, %v1731
      %v1786 = vadd.f32 %v1588, %v1736
      %v1787 = vadd.f32 %v1589, %v1739
      %v1788 = vadd.f32 %v1590, %v1744
      %v1789 = vadd.f32 %v1591, %v1747
      %v1790 = vadd.f32 %v1592, %v1752
      %v1791 = vadd.f32 %v1593, %v1755
      %v1792 = vadd.f32 %v1594, %v1760
      %v1793 = vadd.f32 %v1595, %v1763
      %v1794 = vadd.f32 %v1596, %v1768
      %v1795 = vadd.f32 %v1597, %v1771
      %v1796 = vadd.f32 %v1598, %v1776
      %v1797 = vadd.f32 %v1599, %v1779
      %v1798 = vld [vmem:[%s674] sm:$0xf]
      %v1799 = vld [vmem:[%s674 + $0x4] sm:$0xf]
      %v1800 = vld [vmem:[%s674 + $0x8] sm:$0x1]
      %v1801 = vld [vmem:[%s674 + $0xc] sm:$0xf]
      %v1802 = vld [vmem:[%s674 + $0x10] sm:$0xf]
      %v1803 = vld [vmem:[%s674 + $0x14] sm:$0x1]
      %v1804 = vld [vmem:[%s674 + $0x18] sm:$0xf]
      %v1805 = vld [vmem:[%s674 + $0x1c] sm:$0xf]
      %v1806 = vld [vmem:[%s674 + $0x20] sm:$0x1]
      %v1807 = vld [vmem:[%s674 + $0x24] sm:$0xf]
      %v1808 = vld [vmem:[%s674 + $0x28] sm:$0xf]
      %v1809 = vld [vmem:[%s674 + $0x2c] sm:$0x1]
      %v1810 = vld [vmem:[%s674 + $0x30] sm:$0xf]
      %v1811 = vld [vmem:[%s674 + $0x34] sm:$0xf]
      %v1812 = vld [vmem:[%s674 + $0x38] sm:$0x1]
      %v1813 = vld [vmem:[%s674 + $0x3c] sm:$0xf]
      %v1814 = vld [vmem:[%s674 + $0x40] sm:$0xf]
      %v1815 = vld [vmem:[%s674 + $0x44] sm:$0x1]
      %v1816 = vld [vmem:[%s674 + $0x48] sm:$0xf]
      %v1817 = vld [vmem:[%s674 + $0x4c] sm:$0xf]
      %v1818 = vld [vmem:[%s674 + $0x50] sm:$0x1]
      %v1819 = vld [vmem:[%s674 + $0x54] sm:$0xf]
      %v1820 = vld [vmem:[%s674 + $0x58] sm:$0xf]
      %v1821 = vld [vmem:[%s674 + $0x5c] sm:$0x1]
      %v1823 = vshrl.u32 %v1798, 16
      %v1825 = vrot.slane %v1823, 4
      %v1826 = vshll.u32 %v1798, 16
      %v1828 = vrot.slane %v1826, 5
      %v1829 = vor.u32 %v1825, %v1828
      %v1830 = vrot.slane %v1829, 4
      %v1832 = vshll.u32 %v1799, 16
      %v1834 = vrot.slane %v1832, 5
      %v1835 = vsel %vm842, %v1830, %v1834
      %v1836 = vshrl.u32 %v1799, 16
      %v1838 = vrot.slane %v1836, 4
      %v1839 = vor.u32 %v1838, %v1834
      %v1840 = vrot.slane %v1839, 4
      %v1842 = vshll.u32 %v1800, 16
      %v1844 = vrot.slane %v1842, 5
      %v1845 = vsel %vm842, %v1840, %v1844
      %v1847 = vshrl.u32 %v1801, 16
      %v1849 = vrot.slane %v1847, 4
      %v1850 = vshll.u32 %v1801, 16
      %v1852 = vrot.slane %v1850, 5
      %v1853 = vor.u32 %v1849, %v1852
      %v1854 = vrot.slane %v1853, 4
      %v1856 = vshll.u32 %v1802, 16
      %v1858 = vrot.slane %v1856, 5
      %v1859 = vsel %vm842, %v1854, %v1858
      %v1860 = vshrl.u32 %v1802, 16
      %v1862 = vrot.slane %v1860, 4
      %v1863 = vor.u32 %v1862, %v1858
      %v1864 = vrot.slane %v1863, 4
      %v1866 = vshll.u32 %v1803, 16
      %v1868 = vrot.slane %v1866, 5
      %v1869 = vsel %vm842, %v1864, %v1868
      %v1871 = vshrl.u32 %v1804, 16
      %v1873 = vrot.slane %v1871, 4
      %v1874 = vshll.u32 %v1804, 16
      %v1876 = vrot.slane %v1874, 5
      %v1877 = vor.u32 %v1873, %v1876
      %v1878 = vrot.slane %v1877, 4
      %v1880 = vshll.u32 %v1805, 16
      %v1882 = vrot.slane %v1880, 5
      %v1883 = vsel %vm842, %v1878, %v1882
      %v1884 = vshrl.u32 %v1805, 16
      %v1886 = vrot.slane %v1884, 4
      %v1887 = vor.u32 %v1886, %v1882
      %v1888 = vrot.slane %v1887, 4
      %v1890 = vshll.u32 %v1806, 16
      %v1892 = vrot.slane %v1890, 5
      %v1893 = vsel %vm842, %v1888, %v1892
      %v1895 = vshrl.u32 %v1807, 16
      %v1897 = vrot.slane %v1895, 4
      %v1898 = vshll.u32 %v1807, 16
      %v1900 = vrot.slane %v1898, 5
      %v1901 = vor.u32 %v1897, %v1900
      %v1902 = vrot.slane %v1901, 4
      %v1904 = vshll.u32 %v1808, 16
      %v1906 = vrot.slane %v1904, 5
      %v1907 = vsel %vm842, %v1902, %v1906
      %v1908 = vshrl.u32 %v1808, 16
      %v1910 = vrot.slane %v1908, 4
      %v1911 = vor.u32 %v1910, %v1906
      %v1912 = vrot.slane %v1911, 4
      %v1914 = vshll.u32 %v1809, 16
      %v1916 = vrot.slane %v1914, 5
      %v1917 = vsel %vm842, %v1912, %v1916
      %v1919 = vshrl.u32 %v1810, 16
      %v1921 = vrot.slane %v1919, 4
      %v1922 = vshll.u32 %v1810, 16
      %v1924 = vrot.slane %v1922, 5
      %v1925 = vor.u32 %v1921, %v1924
      %v1926 = vrot.slane %v1925, 4
      %v1928 = vshll.u32 %v1811, 16
      %v1930 = vrot.slane %v1928, 5
      %v1931 = vsel %vm842, %v1926, %v1930
      %v1932 = vshrl.u32 %v1811, 16
      %v1934 = vrot.slane %v1932, 4
      %v1935 = vor.u32 %v1934, %v1930
      %v1936 = vrot.slane %v1935, 4
      %v1938 = vshll.u32 %v1812, 16
      %v1940 = vrot.slane %v1938, 5
      %v1941 = vsel %vm842, %v1936, %v1940
      %v1943 = vshrl.u32 %v1813, 16
      %v1945 = vrot.slane %v1943, 4
      %v1946 = vshll.u32 %v1813, 16
      %v1948 = vrot.slane %v1946, 5
      %v1949 = vor.u32 %v1945, %v1948
      %v1950 = vrot.slane %v1949, 4
      %v1952 = vshll.u32 %v1814, 16
      %v1954 = vrot.slane %v1952, 5
      %v1955 = vsel %vm842, %v1950, %v1954
      %v1956 = vshrl.u32 %v1814, 16
      %v1958 = vrot.slane %v1956, 4
      %v1959 = vor.u32 %v1958, %v1954
      %v1960 = vrot.slane %v1959, 4
      %v1962 = vshll.u32 %v1815, 16
      %v1964 = vrot.slane %v1962, 5
      %v1965 = vsel %vm842, %v1960, %v1964
      %v1967 = vshrl.u32 %v1816, 16
      %v1969 = vrot.slane %v1967, 4
      %v1970 = vshll.u32 %v1816, 16
      %v1972 = vrot.slane %v1970, 5
      %v1973 = vor.u32 %v1969, %v1972
      %v1974 = vrot.slane %v1973, 4
      %v1976 = vshll.u32 %v1817, 16
      %v1978 = vrot.slane %v1976, 5
      %v1979 = vsel %vm842, %v1974, %v1978
      %v1980 = vshrl.u32 %v1817, 16
      %v1982 = vrot.slane %v1980, 4
      %v1983 = vor.u32 %v1982, %v1978
      %v1984 = vrot.slane %v1983, 4
      %v1986 = vshll.u32 %v1818, 16
      %v1988 = vrot.slane %v1986, 5
      %v1989 = vsel %vm842, %v1984, %v1988
      %v1991 = vshrl.u32 %v1819, 16
      %v1993 = vrot.slane %v1991, 4
      %v1994 = vshll.u32 %v1819, 16
      %v1996 = vrot.slane %v1994, 5
      %v1997 = vor.u32 %v1993, %v1996
      %v1998 = vrot.slane %v1997, 4
      %v2000 = vshll.u32 %v1820, 16
      %v2002 = vrot.slane %v2000, 5
      %v2003 = vsel %vm842, %v1998, %v2002
      %v2004 = vshrl.u32 %v1820, 16
      %v2006 = vrot.slane %v2004, 4
      %v2007 = vor.u32 %v2006, %v2002
      %v2008 = vrot.slane %v2007, 4
      %v2010 = vshll.u32 %v1821, 16
      %v2012 = vrot.slane %v2010, 5
      %v2013 = vsel %vm842, %v2008, %v2012
      %s2014 = scalar_lea.vmem %s3, 8
      %v2015 = vld [vmem:[%s2014] sm:$0x3]
      %v2016 = vunpack.c.l.b16 %v1835
      %v2017 = vunpack.c.l.b16 %v1845
      %v2018 = vunpack.c.l.b16 %v1859
      %v2019 = vunpack.c.l.b16 %v1869
      %v2020 = vunpack.c.l.b16 %v1883
      %v2021 = vunpack.c.l.b16 %v1893
      %v2022 = vunpack.c.l.b16 %v1907
      %v2023 = vunpack.c.l.b16 %v1917
      %v2024 = vunpack.c.l.b16 %v1931
      %v2025 = vunpack.c.l.b16 %v1941
      %v2026 = vunpack.c.l.b16 %v1955
      %v2027 = vunpack.c.l.b16 %v1965
      %v2028 = vunpack.c.l.b16 %v1979
      %v2029 = vunpack.c.l.b16 %v1989
      %v2030 = vunpack.c.l.b16 %v2003
      %v2031 = vunpack.c.l.b16 %v2013
      %v2032 = vpack.c.b16 %v2017, %v2016
      %v2033 = vpack.c.b16 %v2019, %v2018
      %v2034 = vpack.c.b16 %v2021, %v2020
      %v2035 = vpack.c.b16 %v2023, %v2022
      %v2036 = vpack.c.b16 %v2025, %v2024
      %v2037 = vpack.c.b16 %v2027, %v2026
      %v2038 = vpack.c.b16 %v2029, %v2028
      %v2039 = vpack.c.b16 %v2031, %v2030
      %v2041 = vsel %vm1061, %v2032, 0
      %v2044 = vsel %vm1061, %v2033, 0
      %v2047 = vsel %vm1061, %v2034, 0
      %v2050 = vsel %vm1061, %v2035, 0
      %v2053 = vsel %vm1061, %v2036, 0
      %v2056 = vsel %vm1061, %v2037, 0
      %v2059 = vsel %vm1061, %v2038, 0
      %v2062 = vsel %vm1061, %v2039, 0
      %v2065 = vsel %vm1086, %v2015, 0
      %2067 = vmatprep.subr.bf16.mxu0 0
      %2068 = vmatpush1.bf16.msra.mxu0 %v2065
      %2069 = vmatprep.subr.bf16.mxu0 0
      %2070 = vmatpush1.bf16.msra.mxu0 0
      %2071 = vmatprep.subr.bf16.mxu0 0
      %2072 = vmatpush1.bf16.msra.mxu0 0
      %2073 = vmatprep.subr.bf16.mxu0 0
      %2074 = vmatpush1.bf16.msra.mxu0 0
      %2075 = vmatprep.subr.bf16.mxu0 0
      %2076 = vmatpush1.bf16.msra.mxu0 0
      %2077 = vmatprep.subr.bf16.mxu0 0
      %2078 = vmatpush1.bf16.msra.mxu0 0
      %2079 = vmatprep.subr.bf16.mxu0 0
      %2080 = vmatpush1.bf16.msra.mxu0 0
      %2081 = vmatprep.subr.bf16.mxu0 0
      %2082 = vmatpush1.bf16.msra.mxu0 0
      %2083 = vmatprep.subr.bf16.mxu0 0
      %2084 = vmatpush1.bf16.msra.mxu0 0
      %2085 = vmatprep.subr.bf16.mxu0 0
      %2086 = vmatpush1.bf16.msra.mxu0 0
      %2087 = vmatprep.subr.bf16.mxu0 0
      %2088 = vmatpush1.bf16.msra.mxu0 0
      %2089 = vmatprep.subr.bf16.mxu0 0
      %2090 = vmatpush1.bf16.msra.mxu0 0
      %2091 = vmatprep.subr.bf16.mxu0 0
      %2092 = vmatpush1.bf16.msra.mxu0 0
      %2093 = vmatprep.subr.bf16.mxu0 0
      %2094 = vmatpush1.bf16.msra.mxu0 0
      %2095 = vmatprep.subr.bf16.mxu0 0
      %2096 = vmatpush1.bf16.msra.mxu0 0
      %2097 = vmatprep.subr.bf16.mxu0 0
      %2098 = vmatpush1.bf16.msra.mxu0 0
      %2099 = vmatprep.mubr.bf16.mxu0 0
      %2100 = vmatmul.mubr.bf16.gmra.mrb[0].mxu0 %v2041
      %v2101 = vpop.f32.mrb[0].mxu0
      %v2102 = vadd.f32 0.0, %v2101
      %v2103 = vpop.f32.mrb[0].mxu0
      %v2104 = vpop.f32.mrb[0].mxu0
      %v2105 = vadd.f32 0.0, %v2104
      %v2106 = vpop.f32.mrb[0].mxu0
      %2107 = vmatprep.mubr.bf16.mxu0 0
      %2108 = vmatmul.mubr.bf16.gmra.mrb[0].mxu0 %v2044
      %v2109 = vpop.f32.mrb[0].mxu0
      %v2110 = vadd.f32 0.0, %v2109
      %v2111 = vpop.f32.mrb[0].mxu0
      %v2112 = vpop.f32.mrb[0].mxu0
      %v2113 = vadd.f32 0.0, %v2112
      %v2114 = vpop.f32.mrb[0].mxu0
      %2115 = vmatprep.mubr.bf16.mxu0 0
      %2116 = vmatmul.mubr.bf16.gmra.mrb[0].mxu0 %v2047
      %v2117 = vpop.f32.mrb[0].mxu0
      %v2118 = vadd.f32 0.0, %v2117
      %v2119 = vpop.f32.mrb[0].mxu0
      %v2120 = vpop.f32.mrb[0].mxu0
      %v2121 = vadd.f32 0.0, %v2120
      %v2122 = vpop.f32.mrb[0].mxu0
      %2123 = vmatprep.mubr.bf16.mxu0 0
      %2124 = vmatmul.mubr.bf16.gmra.mrb[0].mxu0 %v2050
      %v2125 = vpop.f32.mrb[0].mxu0
      %v2126 = vadd.f32 0.0, %v2125
      %v2127 = vpop.f32.mrb[0].mxu0
      %v2128 = vpop.f32.mrb[0].mxu0
      %v2129 = vadd.f32 0.0, %v2128
      %v2130 = vpop.f32.mrb[0].mxu0
      %2131 = vmatprep.mubr.bf16.mxu0 0
      %2132 = vmatmul.mubr.bf16.gmra.mrb[0].mxu0 %v2053
      %v2133 = vpop.f32.mrb[0].mxu0
      %v2134 = vadd.f32 0.0, %v2133
      %v2135 = vpop.f32.mrb[0].mxu0
      %v2136 = vpop.f32.mrb[0].mxu0
      %v2137 = vadd.f32 0.0, %v2136
      %v2138 = vpop.f32.mrb[0].mxu0
      %2139 = vmatprep.mubr.bf16.mxu0 0
      %2140 = vmatmul.mubr.bf16.gmra.mrb[0].mxu0 %v2056
      %v2141 = vpop.f32.mrb[0].mxu0
      %v2142 = vadd.f32 0.0, %v2141
      %v2143 = vpop.f32.mrb[0].mxu0
      %v2144 = vpop.f32.mrb[0].mxu0
      %v2145 = vadd.f32 0.0, %v2144
      %v2146 = vpop.f32.mrb[0].mxu0
      %2147 = vmatprep.mubr.bf16.mxu0 0
      %2148 = vmatmul.mubr.bf16.gmra.mrb[0].mxu0 %v2059
      %v2149 = vpop.f32.mrb[0].mxu0
      %v2150 = vadd.f32 0.0, %v2149
      %v2151 = vpop.f32.mrb[0].mxu0
      %v2152 = vpop.f32.mrb[0].mxu0
      %v2153 = vadd.f32 0.0, %v2152
      %v2154 = vpop.f32.mrb[0].mxu0
      %2155 = vmatprep.mubr.bf16.mxu0 0
      %2156 = vmatmul.mubr.bf16.gmra.mrb[0].mxu0 %v2062
      %v2157 = vpop.f32.mrb[0].mxu0
      %v2158 = vadd.f32 0.0, %v2157
      %v2159 = vpop.f32.mrb[0].mxu0
      %v2160 = vpop.f32.mrb[0].mxu0
      %v2161 = vadd.f32 0.0, %v2160
      %v2162 = vpop.f32.mrb[0].mxu0
      %2163 = vdwg.mxu0
      %v2164 = vadd.f32 %v1782, %v2102
      %v2165 = vadd.f32 %v1783, %v2105
      %v2166 = vadd.f32 %v1784, %v2110
      %v2167 = vadd.f32 %v1785, %v2113
      %v2168 = vadd.f32 %v1786, %v2118
      %v2169 = vadd.f32 %v1787, %v2121
      %v2170 = vadd.f32 %v1788, %v2126
      %v2171 = vadd.f32 %v1789, %v2129
      %v2172 = vadd.f32 %v1790, %v2134
      %v2173 = vadd.f32 %v1791, %v2137
      %v2174 = vadd.f32 %v1792, %v2142
      %v2175 = vadd.f32 %v1793, %v2145
      %v2176 = vadd.f32 %v1794, %v2150
      %v2177 = vadd.f32 %v1795, %v2153
      %v2178 = vadd.f32 %v1796, %v2158
      %v2179 = vadd.f32 %v1797, %v2161
      %v2180 = vld [vmem:[%s674] sm:$0xe]
      %v2181 = vld [vmem:[%s674 + $0xc] sm:$0xe]
      %v2182 = vld [vmem:[%s674 + $0x18] sm:$0xe]
      %v2183 = vld [vmem:[%s674 + $0x24] sm:$0xe]
      %v2184 = vld [vmem:[%s674 + $0x30] sm:$0xe]
      %v2185 = vld [vmem:[%s674 + $0x3c] sm:$0xe]
      %v2186 = vld [vmem:[%s674 + $0x48] sm:$0xe]
      %v2187 = vld [vmem:[%s674 + $0x54] sm:$0xe]
      %v2212 = vrot.slane %v2180, 5
      %v2213 = vrot.slane %v2212, 4
      %v2214 = vrot.slane %v1799, 5
      %v2215 = vsel %vm1377, %v2213, %v2214
      %v2216 = vrot.slane %v2214, 4
      %v2217 = vrot.slane %v1800, 5
      %v2218 = vsel %vm1377, %v2216, %v2217
      %v2219 = vrot.slane %v2181, 5
      %v2220 = vrot.slane %v2219, 4
      %v2221 = vrot.slane %v1802, 5
      %v2222 = vsel %vm1377, %v2220, %v2221
      %v2223 = vrot.slane %v2221, 4
      %v2224 = vrot.slane %v1803, 5
      %v2225 = vsel %vm1377, %v2223, %v2224
      %v2226 = vrot.slane %v2182, 5
      %v2227 = vrot.slane %v2226, 4
      %v2228 = vrot.slane %v1805, 5
      %v2229 = vsel %vm1377, %v2227, %v2228
      %v2230 = vrot.slane %v2228, 4
      %v2231 = vrot.slane %v1806, 5
      %v2232 = vsel %vm1377, %v2230, %v2231
      %v2233 = vrot.slane %v2183, 5
      %v2234 = vrot.slane %v2233, 4
      %v2235 = vrot.slane %v1808, 5
      %v2236 = vsel %vm1377, %v2234, %v2235
      %v2237 = vrot.slane %v2235, 4
      %v2238 = vrot.slane %v1809, 5
      %v2239 = vsel %vm1377, %v2237, %v2238
      %v2240 = vrot.slane %v2184, 5
      %v2241 = vrot.slane %v2240, 4
      %v2242 = vrot.slane %v1811, 5
      %v2243 = vsel %vm1377, %v2241, %v2242
      %v2244 = vrot.slane %v2242, 4
      %v2245 = vrot.slane %v1812, 5
      %v2246 = vsel %vm1377, %v2244, %v2245
      %v2247 = vrot.slane %v2185, 5
      %v2248 = vrot.slane %v2247, 4
      %v2249 = vrot.slane %v1814, 5
      %v2250 = vsel %vm1377, %v2248, %v2249
      %v2251 = vrot.slane %v2249, 4
      %v2252 = vrot.slane %v1815, 5
      %v2253 = vsel %vm1377, %v2251, %v2252
      %v2254 = vrot.slane %v2186, 5
      %v2255 = vrot.slane %v2254, 4
      %v2256 = vrot.slane %v1817, 5
      %v2257 = vsel %vm1377, %v2255, %v2256
      %v2258 = vrot.slane %v2256, 4
      %v2259 = vrot.slane %v1818, 5
      %v2260 = vsel %vm1377, %v2258, %v2259
      %v2261 = vrot.slane %v2187, 5
      %v2262 = vrot.slane %v2261, 4
      %v2263 = vrot.slane %v1820, 5
      %v2264 = vsel %vm1377, %v2262, %v2263
      %v2265 = vrot.slane %v2263, 4
      %v2266 = vrot.slane %v1821, 5
      %v2267 = vsel %vm1377, %v2265, %v2266
      %s2268 = scalar_lea.vmem %s3, 10
      %v2269 = vld [vmem:[%s2268] sm:$0x3]
      %v2270 = vunpack.c.l.b16 %v2215
      %v2271 = vunpack.c.l.b16 %v2218
      %v2272 = vunpack.c.l.b16 %v2222
      %v2273 = vunpack.c.l.b16 %v2225
      %v2274 = vunpack.c.l.b16 %v2229
      %v2275 = vunpack.c.l.b16 %v2232
      %v2276 = vunpack.c.l.b16 %v2236
      %v2277 = vunpack.c.l.b16 %v2239
      %v2278 = vunpack.c.l.b16 %v2243
      %v2279 = vunpack.c.l.b16 %v2246
      %v2280 = vunpack.c.l.b16 %v2250
      %v2281 = vunpack.c.l.b16 %v2253
      %v2282 = vunpack.c.l.b16 %v2257
      %v2283 = vunpack.c.l.b16 %v2260
      %v2284 = vunpack.c.l.b16 %v2264
      %v2285 = vunpack.c.l.b16 %v2267
      %v2286 = vpack.c.b16 %v2271, %v2270
      %v2287 = vpack.c.b16 %v2273, %v2272
      %v2288 = vpack.c.b16 %v2275, %v2274
      %v2289 = vpack.c.b16 %v2277, %v2276
      %v2290 = vpack.c.b16 %v2279, %v2278
      %v2291 = vpack.c.b16 %v2281, %v2280
      %v2292 = vpack.c.b16 %v2283, %v2282
      %v2293 = vpack.c.b16 %v2285, %v2284
      %v2295 = vsel %vm1061, %v2286, 0
      %v2298 = vsel %vm1061, %v2287, 0
      %v2301 = vsel %vm1061, %v2288, 0
      %v2304 = vsel %vm1061, %v2289, 0
      %v2307 = vsel %vm1061, %v2290, 0
      %v2310 = vsel %vm1061, %v2291, 0
      %v2313 = vsel %vm1061, %v2292, 0
      %v2316 = vsel %vm1061, %v2293, 0
      %v2319 = vsel %vm1086, %v2269, 0
      %2321 = vmatprep.subr.bf16.mxu0 0
      %2322 = vmatpush1.bf16.msra.mxu0 %v2319
      %2323 = vmatprep.subr.bf16.mxu0 0
      %2324 = vmatpush1.bf16.msra.mxu0 0
      %2325 = vmatprep.subr.bf16.mxu0 0
      %2326 = vmatpush1.bf16.msra.mxu0 0
      %2327 = vmatprep.subr.bf16.mxu0 0
      %2328 = vmatpush1.bf16.msra.mxu0 0
      %2329 = vmatprep.subr.bf16.mxu0 0
      %2330 = vmatpush1.bf16.msra.mxu0 0
      %2331 = vmatprep.subr.bf16.mxu0 0
      %2332 = vmatpush1.bf16.msra.mxu0 0
      %2333 = vmatprep.subr.bf16.mxu0 0
      %2334 = vmatpush1.bf16.msra.mxu0 0
      %2335 = vmatprep.subr.bf16.mxu0 0
      %2336 = vmatpush1.bf16.msra.mxu0 0
      %2337 = vmatprep.subr.bf16.mxu0 0
      %2338 = vmatpush1.bf16.msra.mxu0 0
      %2339 = vmatprep.subr.bf16.mxu0 0
      %2340 = vmatpush1.bf16.msra.mxu0 0
      %2341 = vmatprep.subr.bf16.mxu0 0
      %2342 = vmatpush1.bf16.msra.mxu0 0
      %2343 = vmatprep.subr.bf16.mxu0 0
      %2344 = vmatpush1.bf16.msra.mxu0 0
      %2345 = vmatprep.subr.bf16.mxu0 0
      %2346 = vmatpush1.bf16.msra.mxu0 0
      %2347 = vmatprep.subr.bf16.mxu0 0
      %2348 = vmatpush1.bf16.msra.mxu0 0
      %2349 = vmatprep.subr.bf16.mxu0 0
      %2350 = vmatpush1.bf16.msra.mxu0 0
      %2351 = vmatprep.subr.bf16.mxu0 0
      %2352 = vmatpush1.bf16.msra.mxu0 0
      %2353 = vmatprep.mubr.bf16.mxu0 0
      %2354 = vmatmul.mubr.bf16.gmra.mrb[0].mxu0 %v2295
      %v2355 = vpop.f32.mrb[0].mxu0
      %v2356 = vadd.f32 0.0, %v2355
      %v2357 = vpop.f32.mrb[0].mxu0
      %v2358 = vpop.f32.mrb[0].mxu0
      %v2359 = vadd.f32 0.0, %v2358
      %v2360 = vpop.f32.mrb[0].mxu0
      %2361 = vmatprep.mubr.bf16.mxu0 0
      %2362 = vmatmul.mubr.bf16.gmra.mrb[0].mxu0 %v2298
      %v2363 = vpop.f32.mrb[0].mxu0
      %v2364 = vadd.f32 0.0, %v2363
      %v2365 = vpop.f32.mrb[0].mxu0
      %v2366 = vpop.f32.mrb[0].mxu0
      %v2367 = vadd.f32 0.0, %v2366
      %v2368 = vpop.f32.mrb[0].mxu0
      %2369 = vmatprep.mubr.bf16.mxu0 0
      %2370 = vmatmul.mubr.bf16.gmra.mrb[0].mxu0 %v2301
      %v2371 = vpop.f32.mrb[0].mxu0
      %v2372 = vadd.f32 0.0, %v2371
      %v2373 = vpop.f32.mrb[0].mxu0
      %v2374 = vpop.f32.mrb[0].mxu0
      %v2375 = vadd.f32 0.0, %v2374
      %v2376 = vpop.f32.mrb[0].mxu0
      %2377 = vmatprep.mubr.bf16.mxu0 0
      %2378 = vmatmul.mubr.bf16.gmra.mrb[0].mxu0 %v2304
      %v2379 = vpop.f32.mrb[0].mxu0
      %v2380 = vadd.f32 0.0, %v2379
      %v2381 = vpop.f32.mrb[0].mxu0
      %v2382 = vpop.f32.mrb[0].mxu0
      %v2383 = vadd.f32 0.0, %v2382
      %v2384 = vpop.f32.mrb[0].mxu0
      %2385 = vmatprep.mubr.bf16.mxu0 0
      %2386 = vmatmul.mubr.bf16.gmra.mrb[0].mxu0 %v2307
      %v2387 = vpop.f32.mrb[0].mxu0
      %v2388 = vadd.f32 0.0, %v2387
      %v2389 = vpop.f32.mrb[0].mxu0
      %v2390 = vpop.f32.mrb[0].mxu0
      %v2391 = vadd.f32 0.0, %v2390
      %v2392 = vpop.f32.mrb[0].mxu0
      %2393 = vmatprep.mubr.bf16.mxu0 0
      %2394 = vmatmul.mubr.bf16.gmra.mrb[0].mxu0 %v2310
      %v2395 = vpop.f32.mrb[0].mxu0
      %v2396 = vadd.f32 0.0, %v2395
      %v2397 = vpop.f32.mrb[0].mxu0
      %v2398 = vpop.f32.mrb[0].mxu0
      %v2399 = vadd.f32 0.0, %v2398
      %v2400 = vpop.f32.mrb[0].mxu0
      %2401 = vmatprep.mubr.bf16.mxu0 0
      %2402 = vmatmul.mubr.bf16.gmra.mrb[0].mxu0 %v2313
      %v2403 = vpop.f32.mrb[0].mxu0
      %v2404 = vadd.f32 0.0, %v2403
      %v2405 = vpop.f32.mrb[0].mxu0
      %v2406 = vpop.f32.mrb[0].mxu0
      %v2407 = vadd.f32 0.0, %v2406
      %v2408 = vpop.f32.mrb[0].mxu0
      %2409 = vmatprep.mubr.bf16.mxu0 0
      %2410 = vmatmul.mubr.bf16.gmra.mrb[0].mxu0 %v2316
      %v2411 = vpop.f32.mrb[0].mxu0
      %v2412 = vadd.f32 0.0, %v2411
      %v2413 = vpop.f32.mrb[0].mxu0
      %v2414 = vpop.f32.mrb[0].mxu0
      %v2415 = vadd.f32 0.0, %v2414
      %v2416 = vpop.f32.mrb[0].mxu0
      %2417 = vdwg.mxu0
      %v2418 = vadd.f32 %v2164, %v2356
      %v2419 = vadd.f32 %v2165, %v2359
      %v2420 = vadd.f32 %v2166, %v2364
      %v2421 = vadd.f32 %v2167, %v2367
      %v2422 = vadd.f32 %v2168, %v2372
      %v2423 = vadd.f32 %v2169, %v2375
      %v2424 = vadd.f32 %v2170, %v2380
      %v2425 = vadd.f32 %v2171, %v2383
      %v2426 = vadd.f32 %v2172, %v2388
      %v2427 = vadd.f32 %v2173, %v2391
      %v2428 = vadd.f32 %v2174, %v2396
      %v2429 = vadd.f32 %v2175, %v2399
      %v2430 = vadd.f32 %v2176, %v2404
      %v2431 = vadd.f32 %v2177, %v2407
      %v2432 = vadd.f32 %v2178, %v2412
      %v2433 = vadd.f32 %v2179, %v2415
      %s2434 = scalar_lea.vmem [#allocation2], 24
      %v2435 = vld [vmem:[%s2434] sm:$0xf]
      %v2436 = vld [vmem:[%s2434 + $0x4] sm:$0xf]
      %v2437 = vld [vmem:[%s2434 + $0xc] sm:$0xf]
      %v2438 = vld [vmem:[%s2434 + $0x10] sm:$0xf]
      %v2439 = vld [vmem:[%s2434 + $0x18] sm:$0xf]
      %v2440 = vld [vmem:[%s2434 + $0x1c] sm:$0xf]
      %v2441 = vld [vmem:[%s2434 + $0x24] sm:$0xf]
      %v2442 = vld [vmem:[%s2434 + $0x28] sm:$0xf]
      %v2443 = vld [vmem:[%s2434 + $0x30] sm:$0xf]
      %v2444 = vld [vmem:[%s2434 + $0x34] sm:$0xf]
      %v2445 = vld [vmem:[%s2434 + $0x3c] sm:$0xf]
      %v2446 = vld [vmem:[%s2434 + $0x40] sm:$0xf]
      %v2447 = vld [vmem:[%s2434 + $0x48] sm:$0xf]
      %v2448 = vld [vmem:[%s2434 + $0x4c] sm:$0xf]
      %v2449 = vld [vmem:[%s2434 + $0x54] sm:$0xf]
      %v2450 = vld [vmem:[%s2434 + $0x58] sm:$0xf]
      %s2451 = scalar_lea.vmem %s3, 12
      %v2452 = vld [vmem:[%s2451] sm:$0x3]
      %v2469 = vunpack.c.l.b16 %v2435
      %v2470 = vunpack.c.l.b16 %v2436
      %v2471 = vunpack.c.l.b16 %v2437
      %v2472 = vunpack.c.l.b16 %v2438
      %v2473 = vunpack.c.l.b16 %v2439
      %v2474 = vunpack.c.l.b16 %v2440
      %v2475 = vunpack.c.l.b16 %v2441
      %v2476 = vunpack.c.l.b16 %v2442
      %v2477 = vunpack.c.l.b16 %v2443
      %v2478 = vunpack.c.l.b16 %v2444
      %v2479 = vunpack.c.l.b16 %v2445
      %v2480 = vunpack.c.l.b16 %v2446
      %v2481 = vunpack.c.l.b16 %v2447
      %v2482 = vunpack.c.l.b16 %v2448
      %v2483 = vunpack.c.l.b16 %v2449
      %v2484 = vunpack.c.l.b16 %v2450
      %v2485 = vpack.c.b16 %v2470, %v2469
      %v2486 = vpack.c.b16 %v2472, %v2471
      %v2487 = vpack.c.b16 %v2474, %v2473
      %v2488 = vpack.c.b16 %v2476, %v2475
      %v2489 = vpack.c.b16 %v2478, %v2477
      %v2490 = vpack.c.b16 %v2480, %v2479
      %v2491 = vpack.c.b16 %v2482, %v2481
      %v2492 = vpack.c.b16 %v2484, %v2483
      %v2494 = vsel %vm1061, %v2485, 0
      %v2497 = vsel %vm1061, %v2486, 0
      %v2500 = vsel %vm1061, %v2487, 0
      %v2503 = vsel %vm1061, %v2488, 0
      %v2506 = vsel %vm1061, %v2489, 0
      %v2509 = vsel %vm1061, %v2490, 0
      %v2512 = vsel %vm1061, %v2491, 0
      %v2515 = vsel %vm1061, %v2492, 0
      %v2518 = vsel %vm1086, %v2452, 0
      %2520 = vmatprep.subr.bf16.mxu0 0
      %2521 = vmatpush1.bf16.msra.mxu0 %v2518
      %2522 = vmatprep.subr.bf16.mxu0 0
      %2523 = vmatpush1.bf16.msra.mxu0 0
      %2524 = vmatprep.subr.bf16.mxu0 0
      %2525 = vmatpush1.bf16.msra.mxu0 0
      %2526 = vmatprep.subr.bf16.mxu0 0
      %2527 = vmatpush1.bf16.msra.mxu0 0
      %2528 = vmatprep.subr.bf16.mxu0 0
      %2529 = vmatpush1.bf16.msra.mxu0 0
      %2530 = vmatprep.subr.bf16.mxu0 0
      %2531 = vmatpush1.bf16.msra.mxu0 0
      %2532 = vmatprep.subr.bf16.mxu0 0
      %2533 = vmatpush1.bf16.msra.mxu0 0
      %2534 = vmatprep.subr.bf16.mxu0 0
      %2535 = vmatpush1.bf16.msra.mxu0 0
      %2536 = vmatprep.subr.bf16.mxu0 0
      %2537 = vmatpush1.bf16.msra.mxu0 0
      %2538 = vmatprep.subr.bf16.mxu0 0
      %2539 = vmatpush1.bf16.msra.mxu0 0
      %2540 = vmatprep.subr.bf16.mxu0 0
      %2541 = vmatpush1.bf16.msra.mxu0 0
      %2542 = vmatprep.subr.bf16.mxu0 0
      %2543 = vmatpush1.bf16.msra.mxu0 0
      %2544 = vmatprep.subr.bf16.mxu0 0
      %2545 = vmatpush1.bf16.msra.mxu0 0
      %2546 = vmatprep.subr.bf16.mxu0 0
      %2547 = vmatpush1.bf16.msra.mxu0 0
      %2548 = vmatprep.subr.bf16.mxu0 0
      %2549 = vmatpush1.bf16.msra.mxu0 0
      %2550 = vmatprep.subr.bf16.mxu0 0
      %2551 = vmatpush1.bf16.msra.mxu0 0
      %2552 = vmatprep.mubr.bf16.mxu0 0
      %2553 = vmatmul.mubr.bf16.gmra.mrb[0].mxu0 %v2494
      %v2554 = vpop.f32.mrb[0].mxu0
      %v2555 = vadd.f32 0.0, %v2554
      %v2556 = vpop.f32.mrb[0].mxu0
      %v2557 = vpop.f32.mrb[0].mxu0
      %v2558 = vadd.f32 0.0, %v2557
      %v2559 = vpop.f32.mrb[0].mxu0
      %2560 = vmatprep.mubr.bf16.mxu0 0
      %2561 = vmatmul.mubr.bf16.gmra.mrb[0].mxu0 %v2497
      %v2562 = vpop.f32.mrb[0].mxu0
      %v2563 = vadd.f32 0.0, %v2562
      %v2564 = vpop.f32.mrb[0].mxu0
      %v2565 = vpop.f32.mrb[0].mxu0
      %v2566 = vadd.f32 0.0, %v2565
      %v2567 = vpop.f32.mrb[0].mxu0
      %2568 = vmatprep.mubr.bf16.mxu0 0
      %2569 = vmatmul.mubr.bf16.gmra.mrb[0].mxu0 %v2500
      %v2570 = vpop.f32.mrb[0].mxu0
      %v2571 = vadd.f32 0.0, %v2570
      %v2572 = vpop.f32.mrb[0].mxu0
      %v2573 = vpop.f32.mrb[0].mxu0
      %v2574 = vadd.f32 0.0, %v2573
      %v2575 = vpop.f32.mrb[0].mxu0
      %2576 = vmatprep.mubr.bf16.mxu0 0
      %2577 = vmatmul.mubr.bf16.gmra.mrb[0].mxu0 %v2503
      %v2578 = vpop.f32.mrb[0].mxu0
      %v2579 = vadd.f32 0.0, %v2578
      %v2580 = vpop.f32.mrb[0].mxu0
      %v2581 = vpop.f32.mrb[0].mxu0
      %v2582 = vadd.f32 0.0, %v2581
      %v2583 = vpop.f32.mrb[0].mxu0
      %2584 = vmatprep.mubr.bf16.mxu0 0
      %2585 = vmatmul.mubr.bf16.gmra.mrb[0].mxu0 %v2506
      %v2586 = vpop.f32.mrb[0].mxu0
      %v2587 = vadd.f32 0.0, %v2586
      %v2588 = vpop.f32.mrb[0].mxu0
      %v2589 = vpop.f32.mrb[0].mxu0
      %v2590 = vadd.f32 0.0, %v2589
      %v2591 = vpop.f32.mrb[0].mxu0
      %2592 = vmatprep.mubr.bf16.mxu0 0
      %2593 = vmatmul.mubr.bf16.gmra.mrb[0].mxu0 %v2509
      %v2594 = vpop.f32.mrb[0].mxu0
      %v2595 = vadd.f32 0.0, %v2594
      %v2596 = vpop.f32.mrb[0].mxu0
      %v2597 = vpop.f32.mrb[0].mxu0
      %v2598 = vadd.f32 0.0, %v2597
      %v2599 = vpop.f32.mrb[0].mxu0
      %2600 = vmatprep.mubr.bf16.mxu0 0
      %2601 = vmatmul.mubr.bf16.gmra.mrb[0].mxu0 %v2512
      %v2602 = vpop.f32.mrb[0].mxu0
      %v2603 = vadd.f32 0.0, %v2602
      %v2604 = vpop.f32.mrb[0].mxu0
      %v2605 = vpop.f32.mrb[0].mxu0
      %v2606 = vadd.f32 0.0, %v2605
      %v2607 = vpop.f32.mrb[0].mxu0
      %2608 = vmatprep.mubr.bf16.mxu0 0
      %2609 = vmatmul.mubr.bf16.gmra.mrb[0].mxu0 %v2515
      %v2610 = vpop.f32.mrb[0].mxu0
      %v2611 = vadd.f32 0.0, %v2610
      %v2612 = vpop.f32.mrb[0].mxu0
      %v2613 = vpop.f32.mrb[0].mxu0
      %v2614 = vadd.f32 0.0, %v2613
      %v2615 = vpop.f32.mrb[0].mxu0
      %2616 = vdwg.mxu0
      %v2617 = vadd.f32 %v2418, %v2555
      %v2618 = vadd.f32 %v2419, %v2558
      %v2619 = vadd.f32 %v2420, %v2563
      %v2620 = vadd.f32 %v2421, %v2566
      %v2621 = vadd.f32 %v2422, %v2571
      %v2622 = vadd.f32 %v2423, %v2574
      %v2623 = vadd.f32 %v2424, %v2579
      %v2624 = vadd.f32 %v2425, %v2582
      %v2625 = vadd.f32 %v2426, %v2587
      %v2626 = vadd.f32 %v2427, %v2590
      %v2627 = vadd.f32 %v2428, %v2595
      %v2628 = vadd.f32 %v2429, %v2598
      %v2629 = vadd.f32 %v2430, %v2603
      %v2630 = vadd.f32 %v2431, %v2606
      %v2631 = vadd.f32 %v2432, %v2611
      %v2632 = vadd.f32 %v2433, %v2614
      %v2633 = vld [vmem:[%s2434] sm:$0xf]
      %v2634 = vld [vmem:[%s2434 + $0x4] sm:$0xf]
      %v2635 = vld [vmem:[%s2434 + $0x8] sm:$0x1]
      %v2636 = vld [vmem:[%s2434 + $0xc] sm:$0xf]
      %v2637 = vld [vmem:[%s2434 + $0x10] sm:$0xf]
      %v2638 = vld [vmem:[%s2434 + $0x14] sm:$0x1]
      %v2639 = vld [vmem:[%s2434 + $0x18] sm:$0xf]
      %v2640 = vld [vmem:[%s2434 + $0x1c] sm:$0xf]
      %v2641 = vld [vmem:[%s2434 + $0x20] sm:$0x1]
      %v2642 = vld [vmem:[%s2434 + $0x24] sm:$0xf]
      %v2643 = vld [vmem:[%s2434 + $0x28] sm:$0xf]
      %v2644 = vld [vmem:[%s2434 + $0x2c] sm:$0x1]
      %v2645 = vld [vmem:[%s2434 + $0x30] sm:$0xf]
      %v2646 = vld [vmem:[%s2434 + $0x34] sm:$0xf]
      %v2647 = vld [vmem:[%s2434 + $0x38] sm:$0x1]
      %v2648 = vld [vmem:[%s2434 + $0x3c] sm:$0xf]
      %v2649 = vld [vmem:[%s2434 + $0x40] sm:$0xf]
      %v2650 = vld [vmem:[%s2434 + $0x44] sm:$0x1]
      %v2651 = vld [vmem:[%s2434 + $0x48] sm:$0xf]
      %v2652 = vld [vmem:[%s2434 + $0x4c] sm:$0xf]
      %v2653 = vld [vmem:[%s2434 + $0x50] sm:$0x1]
      %v2654 = vld [vmem:[%s2434 + $0x54] sm:$0xf]
      %v2655 = vld [vmem:[%s2434 + $0x58] sm:$0xf]
      %v2656 = vld [vmem:[%s2434 + $0x5c] sm:$0x1]
      %v2658 = vshrl.u32 %v2633, 16
      %v2660 = vrot.slane %v2658, 4
      %v2661 = vshll.u32 %v2633, 16
      %v2663 = vrot.slane %v2661, 5
      %v2664 = vor.u32 %v2660, %v2663
      %v2665 = vrot.slane %v2664, 4
      %v2667 = vshll.u32 %v2634, 16
      %v2669 = vrot.slane %v2667, 5
      %v2670 = vsel %vm842, %v2665, %v2669
      %v2671 = vshrl.u32 %v2634, 16
      %v2673 = vrot.slane %v2671, 4
      %v2674 = vor.u32 %v2673, %v2669
      %v2675 = vrot.slane %v2674, 4
      %v2677 = vshll.u32 %v2635, 16
      %v2679 = vrot.slane %v2677, 5
      %v2680 = vsel %vm842, %v2675, %v2679
      %v2682 = vshrl.u32 %v2636, 16
      %v2684 = vrot.slane %v2682, 4
      %v2685 = vshll.u32 %v2636, 16
      %v2687 = vrot.slane %v2685, 5
      %v2688 = vor.u32 %v2684, %v2687
      %v2689 = vrot.slane %v2688, 4
      %v2691 = vshll.u32 %v2637, 16
      %v2693 = vrot.slane %v2691, 5
      %v2694 = vsel %vm842, %v2689, %v2693
      %v2695 = vshrl.u32 %v2637, 16
      %v2697 = vrot.slane %v2695, 4
      %v2698 = vor.u32 %v2697, %v2693
      %v2699 = vrot.slane %v2698, 4
      %v2701 = vshll.u32 %v2638, 16
      %v2703 = vrot.slane %v2701, 5
      %v2704 = vsel %vm842, %v2699, %v2703
      %v2706 = vshrl.u32 %v2639, 16
      %v2708 = vrot.slane %v2706, 4
      %v2709 = vshll.u32 %v2639, 16
      %v2711 = vrot.slane %v2709, 5
      %v2712 = vor.u32 %v2708, %v2711
      %v2713 = vrot.slane %v2712, 4
      %v2715 = vshll.u32 %v2640, 16
      %v2717 = vrot.slane %v2715, 5
      %v2718 = vsel %vm842, %v2713, %v2717
      %v2719 = vshrl.u32 %v2640, 16
      %v2721 = vrot.slane %v2719, 4
      %v2722 = vor.u32 %v2721, %v2717
      %v2723 = vrot.slane %v2722, 4
      %v2725 = vshll.u32 %v2641, 16
      %v2727 = vrot.slane %v2725, 5
      %v2728 = vsel %vm842, %v2723, %v2727
      %v2730 = vshrl.u32 %v2642, 16
      %v2732 = vrot.slane %v2730, 4
      %v2733 = vshll.u32 %v2642, 16
      %v2735 = vrot.slane %v2733, 5
      %v2736 = vor.u32 %v2732, %v2735
      %v2737 = vrot.slane %v2736, 4
      %v2739 = vshll.u32 %v2643, 16
      %v2741 = vrot.slane %v2739, 5
      %v2742 = vsel %vm842, %v2737, %v2741
      %v2743 = vshrl.u32 %v2643, 16
      %v2745 = vrot.slane %v2743, 4
      %v2746 = vor.u32 %v2745, %v2741
      %v2747 = vrot.slane %v2746, 4
      %v2749 = vshll.u32 %v2644, 16
      %v2751 = vrot.slane %v2749, 5
      %v2752 = vsel %vm842, %v2747, %v2751
      %v2754 = vshrl.u32 %v2645, 16
      %v2756 = vrot.slane %v2754, 4
      %v2757 = vshll.u32 %v2645, 16
      %v2759 = vrot.slane %v2757, 5
      %v2760 = vor.u32 %v2756, %v2759
      %v2761 = vrot.slane %v2760, 4
      %v2763 = vshll.u32 %v2646, 16
      %v2765 = vrot.slane %v2763, 5
      %v2766 = vsel %vm842, %v2761, %v2765
      %v2767 = vshrl.u32 %v2646, 16
      %v2769 = vrot.slane %v2767, 4
      %v2770 = vor.u32 %v2769, %v2765
      %v2771 = vrot.slane %v2770, 4
      %v2773 = vshll.u32 %v2647, 16
      %v2775 = vrot.slane %v2773, 5
      %v2776 = vsel %vm842, %v2771, %v2775
      %v2778 = vshrl.u32 %v2648, 16
      %v2780 = vrot.slane %v2778, 4
      %v2781 = vshll.u32 %v2648, 16
      %v2783 = vrot.slane %v2781, 5
      %v2784 = vor.u32 %v2780, %v2783
      %v2785 = vrot.slane %v2784, 4
      %v2787 = vshll.u32 %v2649, 16
      %v2789 = vrot.slane %v2787, 5
      %v2790 = vsel %vm842, %v2785, %v2789
      %v2791 = vshrl.u32 %v2649, 16
      %v2793 = vrot.slane %v2791, 4
      %v2794 = vor.u32 %v2793, %v2789
      %v2795 = vrot.slane %v2794, 4
      %v2797 = vshll.u32 %v2650, 16
      %v2799 = vrot.slane %v2797, 5
      %v2800 = vsel %vm842, %v2795, %v2799
      %v2802 = vshrl.u32 %v2651, 16
      %v2804 = vrot.slane %v2802, 4
      %v2805 = vshll.u32 %v2651, 16
      %v2807 = vrot.slane %v2805, 5
      %v2808 = vor.u32 %v2804, %v2807
      %v2809 = vrot.slane %v2808, 4
      %v2811 = vshll.u32 %v2652, 16
      %v2813 = vrot.slane %v2811, 5
      %v2814 = vsel %vm842, %v2809, %v2813
      %v2815 = vshrl.u32 %v2652, 16
      %v2817 = vrot.slane %v2815, 4
      %v2818 = vor.u32 %v2817, %v2813
      %v2819 = vrot.slane %v2818, 4
      %v2821 = vshll.u32 %v2653, 16
      %v2823 = vrot.slane %v2821, 5
      %v2824 = vsel %vm842, %v2819, %v2823
      %v2826 = vshrl.u32 %v2654, 16
      %v2828 = vrot.slane %v2826, 4
      %v2829 = vshll.u32 %v2654, 16
      %v2831 = vrot.slane %v2829, 5
      %v2832 = vor.u32 %v2828, %v2831
      %v2833 = vrot.slane %v2832, 4
      %v2835 = vshll.u32 %v2655, 16
      %v2837 = vrot.slane %v2835, 5
      %v2838 = vsel %vm842, %v2833, %v2837
      %v2839 = vshrl.u32 %v2655, 16
      %v2841 = vrot.slane %v2839, 4
      %v2842 = vor.u32 %v2841, %v2837
      %v2843 = vrot.slane %v2842, 4
      %v2845 = vshll.u32 %v2656, 16
      %v2847 = vrot.slane %v2845, 5
      %v2848 = vsel %vm842, %v2843, %v2847
      %s2849 = scalar_lea.vmem %s3, 14
      %v2850 = vld [vmem:[%s2849] sm:$0x3]
      %v2851 = vunpack.c.l.b16 %v2670
      %v2852 = vunpack.c.l.b16 %v2680
      %v2853 = vunpack.c.l.b16 %v2694
      %v2854 = vunpack.c.l.b16 %v2704
      %v2855 = vunpack.c.l.b16 %v2718
      %v2856 = vunpack.c.l.b16 %v2728
      %v2857 = vunpack.c.l.b16 %v2742
      %v2858 = vunpack.c.l.b16 %v2752
      %v2859 = vunpack.c.l.b16 %v2766
      %v2860 = vunpack.c.l.b16 %v2776
      %v2861 = vunpack.c.l.b16 %v2790
      %v2862 = vunpack.c.l.b16 %v2800
      %v2863 = vunpack.c.l.b16 %v2814
      %v2864 = vunpack.c.l.b16 %v2824
      %v2865 = vunpack.c.l.b16 %v2838
      %v2866 = vunpack.c.l.b16 %v2848
      %v2867 = vpack.c.b16 %v2852, %v2851
      %v2868 = vpack.c.b16 %v2854, %v2853
      %v2869 = vpack.c.b16 %v2856, %v2855
      %v2870 = vpack.c.b16 %v2858, %v2857
      %v2871 = vpack.c.b16 %v2860, %v2859
      %v2872 = vpack.c.b16 %v2862, %v2861
      %v2873 = vpack.c.b16 %v2864, %v2863
      %v2874 = vpack.c.b16 %v2866, %v2865
      %v2876 = vsel %vm1061, %v2867, 0
      %v2879 = vsel %vm1061, %v2868, 0
      %v2882 = vsel %vm1061, %v2869, 0
      %v2885 = vsel %vm1061, %v2870, 0
      %v2888 = vsel %vm1061, %v2871, 0
      %v2891 = vsel %vm1061, %v2872, 0
      %v2894 = vsel %vm1061, %v2873, 0
      %v2897 = vsel %vm1061, %v2874, 0
      %v2900 = vsel %vm1086, %v2850, 0
      %2902 = vmatprep.subr.bf16.mxu0 0
      %2903 = vmatpush1.bf16.msra.mxu0 %v2900
      %2904 = vmatprep.subr.bf16.mxu0 0
      %2905 = vmatpush1.bf16.msra.mxu0 0
      %2906 = vmatprep.subr.bf16.mxu0 0
      %2907 = vmatpush1.bf16.msra.mxu0 0
      %2908 = vmatprep.subr.bf16.mxu0 0
      %2909 = vmatpush1.bf16.msra.mxu0 0
      %2910 = vmatprep.subr.bf16.mxu0 0
      %2911 = vmatpush1.bf16.msra.mxu0 0
      %2912 = vmatprep.subr.bf16.mxu0 0
      %2913 = vmatpush1.bf16.msra.mxu0 0
      %2914 = vmatprep.subr.bf16.mxu0 0
      %2915 = vmatpush1.bf16.msra.mxu0 0
      %2916 = vmatprep.subr.bf16.mxu0 0
      %2917 = vmatpush1.bf16.msra.mxu0 0
      %2918 = vmatprep.subr.bf16.mxu0 0
      %2919 = vmatpush1.bf16.msra.mxu0 0
      %2920 = vmatprep.subr.bf16.mxu0 0
      %2921 = vmatpush1.bf16.msra.mxu0 0
      %2922 = vmatprep.subr.bf16.mxu0 0
      %2923 = vmatpush1.bf16.msra.mxu0 0
      %2924 = vmatprep.subr.bf16.mxu0 0
      %2925 = vmatpush1.bf16.msra.mxu0 0
      %2926 = vmatprep.subr.bf16.mxu0 0
      %2927 = vmatpush1.bf16.msra.mxu0 0
      %2928 = vmatprep.subr.bf16.mxu0 0
      %2929 = vmatpush1.bf16.msra.mxu0 0
      %2930 = vmatprep.subr.bf16.mxu0 0
      %2931 = vmatpush1.bf16.msra.mxu0 0
      %2932 = vmatprep.subr.bf16.mxu0 0
      %2933 = vmatpush1.bf16.msra.mxu0 0
      %2934 = vmatprep.mubr.bf16.mxu0 0
      %2935 = vmatmul.mubr.bf16.gmra.mrb[0].mxu0 %v2876
      %v2936 = vpop.f32.mrb[0].mxu0
      %v2937 = vadd.f32 0.0, %v2936
      %v2938 = vpop.f32.mrb[0].mxu0
      %v2939 = vpop.f32.mrb[0].mxu0
      %v2940 = vadd.f32 0.0, %v2939
      %v2941 = vpop.f32.mrb[0].mxu0
      %2942 = vmatprep.mubr.bf16.mxu0 0
      %2943 = vmatmul.mubr.bf16.gmra.mrb[0].mxu0 %v2879
      %v2944 = vpop.f32.mrb[0].mxu0
      %v2945 = vadd.f32 0.0, %v2944
      %v2946 = vpop.f32.mrb[0].mxu0
      %v2947 = vpop.f32.mrb[0].mxu0
      %v2948 = vadd.f32 0.0, %v2947
      %v2949 = vpop.f32.mrb[0].mxu0
      %2950 = vmatprep.mubr.bf16.mxu0 0
      %2951 = vmatmul.mubr.bf16.gmra.mrb[0].mxu0 %v2882
      %v2952 = vpop.f32.mrb[0].mxu0
      %v2953 = vadd.f32 0.0, %v2952
      %v2954 = vpop.f32.mrb[0].mxu0
      %v2955 = vpop.f32.mrb[0].mxu0
      %v2956 = vadd.f32 0.0, %v2955
      %v2957 = vpop.f32.mrb[0].mxu0
      %2958 = vmatprep.mubr.bf16.mxu0 0
      %2959 = vmatmul.mubr.bf16.gmra.mrb[0].mxu0 %v2885
      %v2960 = vpop.f32.mrb[0].mxu0
      %v2961 = vadd.f32 0.0, %v2960
      %v2962 = vpop.f32.mrb[0].mxu0
      %v2963 = vpop.f32.mrb[0].mxu0
      %v2964 = vadd.f32 0.0, %v2963
      %v2965 = vpop.f32.mrb[0].mxu0
      %2966 = vmatprep.mubr.bf16.mxu0 0
      %2967 = vmatmul.mubr.bf16.gmra.mrb[0].mxu0 %v2888
      %v2968 = vpop.f32.mrb[0].mxu0
      %v2969 = vadd.f32 0.0, %v2968
      %v2970 = vpop.f32.mrb[0].mxu0
      %v2971 = vpop.f32.mrb[0].mxu0
      %v2972 = vadd.f32 0.0, %v2971
      %v2973 = vpop.f32.mrb[0].mxu0
      %2974 = vmatprep.mubr.bf16.mxu0 0
      %2975 = vmatmul.mubr.bf16.gmra.mrb[0].mxu0 %v2891
      %v2976 = vpop.f32.mrb[0].mxu0
      %v2977 = vadd.f32 0.0, %v2976
      %v2978 = vpop.f32.mrb[0].mxu0
      %v2979 = vpop.f32.mrb[0].mxu0
      %v2980 = vadd.f32 0.0, %v2979
      %v2981 = vpop.f32.mrb[0].mxu0
      %2982 = vmatprep.mubr.bf16.mxu0 0
      %2983 = vmatmul.mubr.bf16.gmra.mrb[0].mxu0 %v2894
      %v2984 = vpop.f32.mrb[0].mxu0
      %v2985 = vadd.f32 0.0, %v2984
      %v2986 = vpop.f32.mrb[0].mxu0
      %v2987 = vpop.f32.mrb[0].mxu0
      %v2988 = vadd.f32 0.0, %v2987
      %v2989 = vpop.f32.mrb[0].mxu0
      %2990 = vmatprep.mubr.bf16.mxu0 0
      %2991 = vmatmul.mubr.bf16.gmra.mrb[0].mxu0 %v2897
      %v2992 = vpop.f32.mrb[0].mxu0
      %v2993 = vadd.f32 0.0, %v2992
      %v2994 = vpop.f32.mrb[0].mxu0
      %v2995 = vpop.f32.mrb[0].mxu0
      %v2996 = vadd.f32 0.0, %v2995
      %v2997 = vpop.f32.mrb[0].mxu0
      %2998 = vdwg.mxu0
      %v2999 = vadd.f32 %v2617, %v2937
      %v3000 = vadd.f32 %v2618, %v2940
      %v3001 = vadd.f32 %v2619, %v2945
      %v3002 = vadd.f32 %v2620, %v2948
      %v3003 = vadd.f32 %v2621, %v2953
      %v3004 = vadd.f32 %v2622, %v2956
      %v3005 = vadd.f32 %v2623, %v2961
      %v3006 = vadd.f32 %v2624, %v2964
      %v3007 = vadd.f32 %v2625, %v2969
      %v3008 = vadd.f32 %v2626, %v2972
      %v3009 = vadd.f32 %v2627, %v2977
      %v3010 = vadd.f32 %v2628, %v2980
      %v3011 = vadd.f32 %v2629, %v2985
      %v3012 = vadd.f32 %v2630, %v2988
      %v3013 = vadd.f32 %v2631, %v2993
      %v3014 = vadd.f32 %v2632, %v2996
      %v3015 = vld [vmem:[%s2434] sm:$0xe]
      %v3016 = vld [vmem:[%s2434 + $0xc] sm:$0xe]
      %v3017 = vld [vmem:[%s2434 + $0x18] sm:$0xe]
      %v3018 = vld [vmem:[%s2434 + $0x24] sm:$0xe]
      %v3019 = vld [vmem:[%s2434 + $0x30] sm:$0xe]
      %v3020 = vld [vmem:[%s2434 + $0x3c] sm:$0xe]
      %v3021 = vld [vmem:[%s2434 + $0x48] sm:$0xe]
      %v3022 = vld [vmem:[%s2434 + $0x54] sm:$0xe]
      %v3047 = vrot.slane %v3015, 5
      %v3048 = vrot.slane %v3047, 4
      %v3049 = vrot.slane %v2634, 5
      %v3050 = vsel %vm1377, %v3048, %v3049
      %v3051 = vrot.slane %v3049, 4
      %v3052 = vrot.slane %v2635, 5
      %v3053 = vsel %vm1377, %v3051, %v3052
      %v3054 = vrot.slane %v3016, 5
      %v3055 = vrot.slane %v3054, 4
      %v3056 = vrot.slane %v2637, 5
      %v3057 = vsel %vm1377, %v3055, %v3056
      %v3058 = vrot.slane %v3056, 4
      %v3059 = vrot.slane %v2638, 5
      %v3060 = vsel %vm1377, %v3058, %v3059
      %v3061 = vrot.slane %v3017, 5
      %v3062 = vrot.slane %v3061, 4
      %v3063 = vrot.slane %v2640, 5
      %v3064 = vsel %vm1377, %v3062, %v3063
      %v3065 = vrot.slane %v3063, 4
      %v3066 = vrot.slane %v2641, 5
      %v3067 = vsel %vm1377, %v3065, %v3066
      %v3068 = vrot.slane %v3018, 5
      %v3069 = vrot.slane %v3068, 4
      %v3070 = vrot.slane %v2643, 5
      %v3071 = vsel %vm1377, %v3069, %v3070
      %v3072 = vrot.slane %v3070, 4
      %v3073 = vrot.slane %v2644, 5
      %v3074 = vsel %vm1377, %v3072, %v3073
      %v3075 = vrot.slane %v3019, 5
      %v3076 = vrot.slane %v3075, 4
      %v3077 = vrot.slane %v2646, 5
      %v3078 = vsel %vm1377, %v3076, %v3077
      %v3079 = vrot.slane %v3077, 4
      %v3080 = vrot.slane %v2647, 5
      %v3081 = vsel %vm1377, %v3079, %v3080
      %v3082 = vrot.slane %v3020, 5
      %v3083 = vrot.slane %v3082, 4
      %v3084 = vrot.slane %v2649, 5
      %v3085 = vsel %vm1377, %v3083, %v3084
      %v3086 = vrot.slane %v3084, 4
      %v3087 = vrot.slane %v2650, 5
      %v3088 = vsel %vm1377, %v3086, %v3087
      %v3089 = vrot.slane %v3021, 5
      %v3090 = vrot.slane %v3089, 4
      %v3091 = vrot.slane %v2652, 5
      %v3092 = vsel %vm1377, %v3090, %v3091
      %v3093 = vrot.slane %v3091, 4
      %v3094 = vrot.slane %v2653, 5
      %v3095 = vsel %vm1377, %v3093, %v3094
      %v3096 = vrot.slane %v3022, 5
      %v3097 = vrot.slane %v3096, 4
      %v3098 = vrot.slane %v2655, 5
      %v3099 = vsel %vm1377, %v3097, %v3098
      %v3100 = vrot.slane %v3098, 4
      %v3101 = vrot.slane %v2656, 5
      %v3102 = vsel %vm1377, %v3100, %v3101
      %s3103 = scalar_lea.vmem %s3, 16
      %v3104 = vld [vmem:[%s3103] sm:$0x3]
      %v3105 = vunpack.c.l.b16 %v3050
      %v3106 = vunpack.c.l.b16 %v3053
      %v3107 = vunpack.c.l.b16 %v3057
      %v3108 = vunpack.c.l.b16 %v3060
      %v3109 = vunpack.c.l.b16 %v3064
      %v3110 = vunpack.c.l.b16 %v3067
      %v3111 = vunpack.c.l.b16 %v3071
      %v3112 = vunpack.c.l.b16 %v3074
      %v3113 = vunpack.c.l.b16 %v3078
      %v3114 = vunpack.c.l.b16 %v3081
      %v3115 = vunpack.c.l.b16 %v3085
      %v3116 = vunpack.c.l.b16 %v3088
      %v3117 = vunpack.c.l.b16 %v3092
      %v3118 = vunpack.c.l.b16 %v3095
      %v3119 = vunpack.c.l.b16 %v3099
      %v3120 = vunpack.c.l.b16 %v3102
      %v3121 = vpack.c.b16 %v3106, %v3105
      %v3122 = vpack.c.b16 %v3108, %v3107
      %v3123 = vpack.c.b16 %v3110, %v3109
      %v3124 = vpack.c.b16 %v3112, %v3111
      %v3125 = vpack.c.b16 %v3114, %v3113
      %v3126 = vpack.c.b16 %v3116, %v3115
      %v3127 = vpack.c.b16 %v3118, %v3117
      %v3128 = vpack.c.b16 %v3120, %v3119
      %v3130 = vsel %vm1061, %v3121, 0
      %v3133 = vsel %vm1061, %v3122, 0
      %v3136 = vsel %vm1061, %v3123, 0
      %v3139 = vsel %vm1061, %v3124, 0
      %v3142 = vsel %vm1061, %v3125, 0
      %v3145 = vsel %vm1061, %v3126, 0
      %v3148 = vsel %vm1061, %v3127, 0
      %v3151 = vsel %vm1061, %v3128, 0
      %v3154 = vsel %vm1086, %v3104, 0
      %3156 = vmatprep.subr.bf16.mxu0 0
      %3157 = vmatpush1.bf16.msra.mxu0 %v3154
      %3158 = vmatprep.subr.bf16.mxu0 0
      %3159 = vmatpush1.bf16.msra.mxu0 0
      %3160 = vmatprep.subr.bf16.mxu0 0
      %3161 = vmatpush1.bf16.msra.mxu0 0
      %3162 = vmatprep.subr.bf16.mxu0 0
      %3163 = vmatpush1.bf16.msra.mxu0 0
      %3164 = vmatprep.subr.bf16.mxu0 0
      %3165 = vmatpush1.bf16.msra.mxu0 0
      %3166 = vmatprep.subr.bf16.mxu0 0
      %3167 = vmatpush1.bf16.msra.mxu0 0
      %3168 = vmatprep.subr.bf16.mxu0 0
      %3169 = vmatpush1.bf16.msra.mxu0 0
      %3170 = vmatprep.subr.bf16.mxu0 0
      %3171 = vmatpush1.bf16.msra.mxu0 0
      %3172 = vmatprep.subr.bf16.mxu0 0
      %3173 = vmatpush1.bf16.msra.mxu0 0
      %3174 = vmatprep.subr.bf16.mxu0 0
      %3175 = vmatpush1.bf16.msra.mxu0 0
      %3176 = vmatprep.subr.bf16.mxu0 0
      %3177 = vmatpush1.bf16.msra.mxu0 0
      %3178 = vmatprep.subr.bf16.mxu0 0
      %3179 = vmatpush1.bf16.msra.mxu0 0
      %3180 = vmatprep.subr.bf16.mxu0 0
      %3181 = vmatpush1.bf16.msra.mxu0 0
      %3182 = vmatprep.subr.bf16.mxu0 0
      %3183 = vmatpush1.bf16.msra.mxu0 0
      %3184 = vmatprep.subr.bf16.mxu0 0
      %3185 = vmatpush1.bf16.msra.mxu0 0
      %3186 = vmatprep.subr.bf16.mxu0 0
      %3187 = vmatpush1.bf16.msra.mxu0 0
      %3188 = vmatprep.mubr.bf16.mxu0 0
      %3189 = vmatmul.mubr.bf16.gmra.mrb[0].mxu0 %v3130
      %v3190 = vpop.f32.mrb[0].mxu0
      %v3191 = vadd.f32 0.0, %v3190
      %v3192 = vpop.f32.mrb[0].mxu0
      %v3193 = vpop.f32.mrb[0].mxu0
      %v3194 = vadd.f32 0.0, %v3193
      %v3195 = vpop.f32.mrb[0].mxu0
      %3196 = vmatprep.mubr.bf16.mxu0 0
      %3197 = vmatmul.mubr.bf16.gmra.mrb[0].mxu0 %v3133
      %v3198 = vpop.f32.mrb[0].mxu0
      %v3199 = vadd.f32 0.0, %v3198
      %v3200 = vpop.f32.mrb[0].mxu0
      %v3201 = vpop.f32.mrb[0].mxu0
      %v3202 = vadd.f32 0.0, %v3201
      %v3203 = vpop.f32.mrb[0].mxu0
      %3204 = vmatprep.mubr.bf16.mxu0 0
      %3205 = vmatmul.mubr.bf16.gmra.mrb[0].mxu0 %v3136
      %v3206 = vpop.f32.mrb[0].mxu0
      %v3207 = vadd.f32 0.0, %v3206
      %v3208 = vpop.f32.mrb[0].mxu0
      %v3209 = vpop.f32.mrb[0].mxu0
      %v3210 = vadd.f32 0.0, %v3209
      %v3211 = vpop.f32.mrb[0].mxu0
      %3212 = vmatprep.mubr.bf16.mxu0 0
      %3213 = vmatmul.mubr.bf16.gmra.mrb[0].mxu0 %v3139
      %v3214 = vpop.f32.mrb[0].mxu0
      %v3215 = vadd.f32 0.0, %v3214
      %v3216 = vpop.f32.mrb[0].mxu0
      %v3217 = vpop.f32.mrb[0].mxu0
      %v3218 = vadd.f32 0.0, %v3217
      %v3219 = vpop.f32.mrb[0].mxu0
      %3220 = vmatprep.mubr.bf16.mxu0 0
      %3221 = vmatmul.mubr.bf16.gmra.mrb[0].mxu0 %v3142
      %v3222 = vpop.f32.mrb[0].mxu0
      %v3223 = vadd.f32 0.0, %v3222
      %v3224 = vpop.f32.mrb[0].mxu0
      %v3225 = vpop.f32.mrb[0].mxu0
      %v3226 = vadd.f32 0.0, %v3225
      %v3227 = vpop.f32.mrb[0].mxu0
      %3228 = vmatprep.mubr.bf16.mxu0 0
      %3229 = vmatmul.mubr.bf16.gmra.mrb[0].mxu0 %v3145
      %v3230 = vpop.f32.mrb[0].mxu0
      %v3231 = vadd.f32 0.0, %v3230
      %v3232 = vpop.f32.mrb[0].mxu0
      %v3233 = vpop.f32.mrb[0].mxu0
      %v3234 = vadd.f32 0.0, %v3233
      %v3235 = vpop.f32.mrb[0].mxu0
      %3236 = vmatprep.mubr.bf16.mxu0 0
      %3237 = vmatmul.mubr.bf16.gmra.mrb[0].mxu0 %v3148
      %v3238 = vpop.f32.mrb[0].mxu0
      %v3239 = vadd.f32 0.0, %v3238
      %v3240 = vpop.f32.mrb[0].mxu0
      %v3241 = vpop.f32.mrb[0].mxu0
      %v3242 = vadd.f32 0.0, %v3241
      %v3243 = vpop.f32.mrb[0].mxu0
      %3244 = vmatprep.mubr.bf16.mxu0 0
      %3245 = vmatmul.mubr.bf16.gmra.mrb[0].mxu0 %v3151
      %v3246 = vpop.f32.mrb[0].mxu0
      %v3247 = vadd.f32 0.0, %v3246
      %v3248 = vpop.f32.mrb[0].mxu0
      %v3249 = vpop.f32.mrb[0].mxu0
      %v3250 = vadd.f32 0.0, %v3249
      %v3251 = vpop.f32.mrb[0].mxu0
      %3252 = vdwg.mxu0
      %v3253 = vadd.f32 %v2999, %v3191
      %v3254 = vadd.f32 %v3000, %v3194
      %v3255 = vadd.f32 %v3001, %v3199
      %v3256 = vadd.f32 %v3002, %v3202
      %v3257 = vadd.f32 %v3003, %v3207
      %v3258 = vadd.f32 %v3004, %v3210
      %v3259 = vadd.f32 %v3005, %v3215
      %v3260 = vadd.f32 %v3006, %v3218
      %v3261 = vadd.f32 %v3007, %v3223
      %v3262 = vadd.f32 %v3008, %v3226
      %v3263 = vadd.f32 %v3009, %v3231
      %v3264 = vadd.f32 %v3010, %v3234
      %v3265 = vadd.f32 %v3011, %v3239
      %v3266 = vadd.f32 %v3012, %v3242
      %v3267 = vadd.f32 %v3013, %v3247
      %v3268 = vadd.f32 %v3014, %v3250
      %3269 = vst [vmem:[%s404] sm:$0xff] %v3253
      %3270 = vst [vmem:[%s404 + $0x8] sm:$0xff] %v3254
      %3271 = vst [vmem:[%s404 + $0x10] sm:$0xff] %v3255
      %3272 = vst [vmem:[%s404 + $0x18] sm:$0xff] %v3256
      %3273 = vst [vmem:[%s404 + $0x20] sm:$0xff] %v3257
      %3274 = vst [vmem:[%s404 + $0x28] sm:$0xff] %v3258
      %3275 = vst [vmem:[%s404 + $0x30] sm:$0xff] %v3259
      %3276 = vst [vmem:[%s404 + $0x38] sm:$0xff] %v3260
      %3277 = vst [vmem:[%s404 + $0x40] sm:$0xff] %v3261
      %3278 = vst [vmem:[%s404 + $0x48] sm:$0xff] %v3262
      %3279 = vst [vmem:[%s404 + $0x50] sm:$0xff] %v3263
      %3280 = vst [vmem:[%s404 + $0x58] sm:$0xff] %v3264
      %3281 = vst [vmem:[%s404 + $0x60] sm:$0xff] %v3265
      %3282 = vst [vmem:[%s404 + $0x68] sm:$0xff] %v3266
      %3283 = vst [vmem:[%s404 + $0x70] sm:$0xff] %v3267
      %3284 = vst [vmem:[%s404 + $0x78] sm:$0xff] %v3268
      %v3285 = vadd.f32 %v3253, %v3254
      %v3286 = vadd.f32 %v3285, %v3255
      %v3287 = vadd.f32 %v3286, %v3256
      %v3288 = vadd.f32 %v3287, %v3257
      %v3289 = vadd.f32 %v3288, %v3258
      %v3290 = vadd.f32 %v3289, %v3259
      %v3291 = vadd.f32 %v3290, %v3260
      %v3292 = vadd.f32 %v3291, %v3261
      %v3293 = vadd.f32 %v3292, %v3262
      %v3294 = vadd.f32 %v3293, %v3263
      %v3295 = vadd.f32 %v3294, %v3264
      %v3296 = vadd.f32 %v3295, %v3265
      %v3297 = vadd.f32 %v3296, %v3266
      %v3298 = vadd.f32 %v3297, %v3267
      %v3299 = vadd.f32 %v3298, %v3268
      %v3300 = vrot.slane %v3299, 4
      %v3301 = vadd.f32 %v3299, %v3300
      %v3302 = vrot.slane %v3301, 2
      %v3303 = vadd.f32 %v3301, %v3302
      %v3304 = vrot.slane %v3303, 1
      %v3305 = vadd.f32 %v3303, %v3304
      %v3306 = vmul.f32 %v3253, %v3253
      %v3307 = vmul.f32 %v3254, %v3254
      %v3308 = vmul.f32 %v3255, %v3255
      %v3309 = vmul.f32 %v3256, %v3256
      %v3310 = vmul.f32 %v3257, %v3257
      %v3311 = vmul.f32 %v3258, %v3258
      %v3312 = vmul.f32 %v3259, %v3259
      %v3313 = vmul.f32 %v3260, %v3260
      %v3314 = vmul.f32 %v3261, %v3261
      %v3315 = vmul.f32 %v3262, %v3262
      %v3316 = vmul.f32 %v3263, %v3263
      %v3317 = vmul.f32 %v3264, %v3264
      %v3318 = vmul.f32 %v3265, %v3265
      %v3319 = vmul.f32 %v3266, %v3266
      %v3320 = vmul.f32 %v3267, %v3267
      %v3321 = vmul.f32 %v3268, %v3268
      %v3322 = vadd.f32 %v3306, %v3307
      %v3323 = vadd.f32 %v3322, %v3308
      %v3324 = vadd.f32 %v3323, %v3309
      %v3325 = vadd.f32 %v3324, %v3310
      %v3326 = vadd.f32 %v3325, %v3311
      %v3327 = vadd.f32 %v3326, %v3312
      %v3328 = vadd.f32 %v3327, %v3313
      %v3329 = vadd.f32 %v3328, %v3314
      %v3330 = vadd.f32 %v3329, %v3315
      %v3331 = vadd.f32 %v3330, %v3316
      %v3332 = vadd.f32 %v3331, %v3317
      %v3333 = vadd.f32 %v3332, %v3318
      %v3334 = vadd.f32 %v3333, %v3319
      %v3335 = vadd.f32 %v3334, %v3320
      %v3336 = vadd.f32 %v3335, %v3321
      %v3337 = vrot.slane %v3336, 4
      %v3338 = vadd.f32 %v3336, %v3337
      %v3339 = vrot.slane %v3338, 2
      %v3340 = vadd.f32 %v3338, %v3339
      %v3341 = vrot.slane %v3340, 1
      %v3342 = vadd.f32 %v3340, %v3341
      %vm3343 = vcmask 1040384
      %v3344 = vsel %vm3343, %v3305, %v3342
      %3345 = vst [vmem:[%s413] sm:$0x3] %v3344
      %s3346 = smul.u32 8, %s22
      %p3347 = scmp.lt.s32.totalorder %s21, 1
      %s3348 = scalar_select %p3347, %s21, 1
      %p3349 = scmp.lt.s32.totalorder %s3346, 15
      %s3350 = scalar_select %p3349, %s3346, 15
      %s3351 = smul.addr %s3350, 2
      %s3352 = smul.addr %s3348, 32
      %s3353 = sadd.s32 %s3351, %s3352
      %s3354 = smul.addr %s3353, 8
      %s3355 = scalar_lea.vmem %s4, %s3354
      %p3356 = scmp.lt.s32.totalorder %s21, 1
      %s3357 = scalar_select %p3356, %s21, 1
      %p3358 = scmp.lt.s32.totalorder %s22, 1
      %s3359 = scalar_select %p3358, %s22, 1
      %s3360 = smul.addr %s3357, 2
      %s3361 = sadd.s32 %s3359, %s3360
      %s3362 = smul.addr %s3361, 2
      %s3363 = scalar_lea.vmem %s5, %s3362
      // Predicated region
      $region45: #{double_conv_forward.3} parent=35 // pred_check
        %p3364 = pneg %p170
      $region46: #{double_conv_forward.3} parent=35 // pred_check_branch
        %3366 = sbr.rel (%p3364) target = $region48
      $region47: #{double_conv_forward.3} parent=35 // pred_region
        %s3367 = smul.u32 8, %s22
      $region48: #{double_conv_forward.3} parent=35 // pred_fallthru
        _
      // Predicated region
      $region49: #{double_conv_forward.3} parent=35 // pred_check
        %p3368 = pneg %p198
      $region50: #{double_conv_forward.3} parent=35 // pred_check_branch
        %3370 = sbr.rel (%p3368) target = $region52
      $region51: #{double_conv_forward.3} parent=35 // pred_region
        _
      $region52: #{double_conv_forward.3} parent=35 // pred_fallthru
        _
    $region36: #{double_conv_forward.3} parent=5 // pred_fallthru
      _
    %p3371 = scmp.le.s32.totalorder 2, %s12
    // Predicated region
    $region53: #{double_conv_forward.3} parent=5 // pred_check
      %p3372 = pneg %p3371
    $region54: #{double_conv_forward.3} parent=5 // pred_check_branch
      %3374 = sbr.rel (%p3372) target = $region56
    $region55: #{double_conv_forward.3} parent=5 // pred_region
      %s3375 = ssub.s32 %s12, 2
      // Predicated region
      $region57: #{double_conv_forward.3} parent=55 // pred_check
        %p3376 = pneg %p176
      $region58: #{double_conv_forward.3} parent=55 // pred_check_branch
        %3378 = sbr.rel (%p3376) target = $region60
      $region59: #{double_conv_forward.3} parent=55 // pred_region
        %s3379 = smul.u32 8, %s24
        %p3380 = scmp.lt.s32.totalorder %s23, 1
        %s3381 = scalar_select %p3380, %s23, 1
        %p3382 = scmp.lt.s32.totalorder %s3379, 15
        %s3383 = scalar_select %p3382, %s3379, 15
        %s3384 = smul.addr %s3383, 2
        %s3385 = smul.addr %s3381, 32
        %s3386 = sadd.s32 %s3384, %s3385
        %s3387 = smul.addr %s3386, 8
        %s3388 = scalar_lea.vmem %s4, %s3387
      $region60: #{double_conv_forward.3} parent=55 // pred_fallthru
        _
      // Predicated region
      $region61: #{double_conv_forward.3} parent=55 // pred_check
        %p3389 = pneg %p204
      $region62: #{double_conv_forward.3} parent=55 // pred_check_branch
        %3391 = sbr.rel (%p3389) target = $region64
      $region63: #{double_conv_forward.3} parent=55 // pred_region
        %p3392 = scmp.lt.s32.totalorder %s23, 1
        %s3393 = scalar_select %p3392, %s23, 1
        %p3394 = scmp.lt.s32.totalorder %s24, 1
        %s3395 = scalar_select %p3394, %s24, 1
        %s3396 = smul.addr %s3393, 2
        %s3397 = sadd.s32 %s3395, %s3396
        %s3398 = smul.addr %s3397, 2
        %s3399 = scalar_lea.vmem %s5, %s3398
      $region64: #{double_conv_forward.3} parent=55 // pred_fallthru
        _
    $region56: #{double_conv_forward.3} parent=5 // pred_fallthru
      _
  $region6: #{double_conv_forward.3} parent=0 // loop_footer
    %s16 = sadd.s32 1, %s12
  $region7: #{double_conv_forward.3} parent=0 // loop_footer_branch
    %11 = sbr.rel target = $region3
  $region8: #{double_conv_forward.3} parent=0 // loop_exit
    _

// kernel: double_conv_forward.4
$region0: #{double_conv_forward.4}
  #allocation0 [shape = 'u32[]', space=smem, size = 0x4, offset = 0x4, fixed_abs, tag = 'smem constant byte address 0x4 - core index']
  #allocation1 [shape = 'u32[144,128]{1,0:T(1,128)}', space=vmem, size = 0x12000, scoped, tag = 'internal scratch']
  #allocation2 [shape = 'bf16[10,18,128]{2,1,0:T(8,128)(2,1)}', space=vmem, size = 0xf000, scoped, tag = 'scratch operand']
  %s0 = inlined_call_operand.vmem [shape: f32[2,16,16,128], index: 0, kind: input, shape index: {}, may-alias: {0,1,2}]
  %s1 = inlined_call_operand.vmem [shape: f32[2,16,16,128], index: 1, kind: input, shape index: {}, may-alias: {0,1,2}]
  %s2 = inlined_call_operand.vmem [shape: f32[2,16,16,128], index: 2, kind: input, shape index: {}, may-alias: {0,1,2}]
  %s3 = inlined_call_operand.vmem [shape: f32[1,128], index: 3, kind: input, shape index: {}]
  %s4 = inlined_call_operand.vmem [shape: f32[1,128], index: 4, kind: input, shape index: {}]
  %s5 = inlined_call_operand.vmem [shape: bf16[9,128,128], index: 5, kind: input, shape index: {}]
  %s6 = inlined_call_operand.vmem [shape: f32[2,16,16,128], index: 6, kind: output, shape index: {0}]
  %s7 = inlined_call_operand.vmem [shape: f32[2,2,2,128], index: 7, kind: output, shape index: {1}]
  %8 = xla_tuple %s6, %s7
  %s9 = sld [smem:[#allocation0]]
  $region73: #{double_conv_forward.4} parent=0
    _
  %s11 = ssub.s32 1, %s9
  %s12 = scalar_select 0, %s11, %s9
  loop: start=0, step=1, limit=6
  $region2: #{double_conv_forward.4} parent=0 // loop_pre_header
    _
  $region3: #{double_conv_forward.4} parent=0 // loop_header
    %s14 = sphi 0, %s18
    %p15 = scmp.ge.s32.totalorder %s14, 6
    %s21 = sphi 0, %s33
    %s22 = sphi 0, %s29
    %s23 = sphi 0, %s21
    %s24 = sphi 0, %s22
    %s25 = sphi 0, %s23
    %s26 = sphi 0, %s24
    %s38 = sphi 0, %s40
    %s41 = sphi 0, %s38
    %s42 = sphi 0, %s41
    %s58 = sphi 0, %s42
    %s74 = sphi 0, %s76
    %s77 = sphi 0, %s74
    %s78 = sphi 0, %s77
    %s94 = sphi 0, %s78
    %s110 = sphi 0, %s112
    %s113 = sphi 0, %s110
    %s114 = sphi 0, %s113
    %s130 = sphi 0, %s114
    %s134 = sphi 0, %s134
    %s136 = sphi 0, %s134
    %s137 = sphi 0, %s136
    %s151 = sphi 0, %s137
    %s155 = sphi 0, %s155
    %s157 = sphi 0, %s155
    %s158 = sphi 0, %s157
    %s172 = sphi 0, %s158
    %s176 = sphi 0, %s176
    %s178 = sphi 0, %s176
    %s179 = sphi 0, %s178
    %s193 = sphi 0, %s179
    %s201 = sphi 0, %s203
    %s204 = sphi 0, %s201
    %s205 = sphi 0, %s204
    %s221 = sphi 0, %s205
    %s229 = sphi 0, %s231
    %s232 = sphi 0, %s229
    %s233 = sphi 0, %s232
    %s249 = sphi 0, %s233
  $region4: #{double_conv_forward.4} parent=0 // loop_header_branch
    %17 = sbr.rel (%p15) target = $region8
  $region5: #{double_conv_forward.4} parent=0 // loop_body
    %s19 = ssub.s32 %s14, 1
    %s20 = ssub.s32 %s14, 2
    %s27 = sadd.s32 1, %s22
    %p28 = scmp.ge.s32.totalorder %s27, 2
    %s29 = scalar_select %p28, 0, %s27
    %s30 = sadd.s32 1, %s21
    %s31 = scalar_select %p28, %s30, %s21
    %p32 = scmp.ge.s32.totalorder %s31, 2
    %s33 = scalar_select %p32, 0, %s31
    %s34 = ssub.s32 %s21, %s33
    %s35 = ssub.s32 %s22, %s29
    %s36 = sor.u32 %s34, %s35
    %p37 = scmp.eq.s32.totalorder %s36, 0
    %s39 = sadd.s32 %s38, 1
    %s40 = scalar_select %p37, %s38, %s39
    %p43 = pneg %p37
    %p44 = scmp.eq.s32.totalorder %s14, 3
    %p45 = por %p43, %p44
    %p46 = scmp.ne.s32.totalorder %s38, %s41
    %p47 = scmp.eq.s32.totalorder %s14, 0
    %p48 = por %p46, %p47
    %p49 = scmp.ne.s32.totalorder %s38, %s41
    %p50 = scmp.eq.s32.totalorder %s19, 3
    %p51 = por %p49, %p50
    %p52 = scmp.ne.s32.totalorder %s41, %s42
    %p53 = scmp.eq.s32.totalorder %s19, 0
    %p54 = por %p52, %p53
    %p55 = scmp.ne.s32.totalorder %s41, %s42
    %p56 = scmp.eq.s32.totalorder %s20, 3
    %p57 = por %p55, %p56
    %p59 = scmp.ne.s32.totalorder %s42, %s58
    %p60 = scmp.eq.s32.totalorder %s20, 0
    %p61 = por %p59, %p60
    %s62 = smul.u32 %s22, 8
    %s63 = ssub.s32 %s62, 1
    %p64 = scmp.gt.s32.totalorder %s63, 0
    %s65 = scalar_select %p64, %s63, 0
    %s66 = smul.u32 %s29, 8
    %s67 = ssub.s32 %s66, 1
    %p68 = scmp.gt.s32.totalorder %s67, 0
    %s69 = scalar_select %p68, %s67, 0
    %s70 = ssub.s32 %s21, %s33
    %s71 = ssub.s32 %s65, %s69
    %s72 = sor.u32 %s70, %s71
    %p73 = scmp.eq.s32.totalorder %s72, 0
    %s75 = sadd.s32 %s74, 1
    %s76 = scalar_select %p73, %s74, %s75
    %p79 = pneg %p73
    %p80 = scmp.eq.s32.totalorder %s14, 3
    %p81 = por %p79, %p80
    %p82 = scmp.ne.s32.totalorder %s74, %s77
    %p83 = scmp.eq.s32.totalorder %s14, 0
    %p84 = por %p82, %p83
    %p85 = scmp.ne.s32.totalorder %s74, %s77
    %p86 = scmp.eq.s32.totalorder %s19, 3
    %p87 = por %p85, %p86
    %p88 = scmp.ne.s32.totalorder %s77, %s78
    %p89 = scmp.eq.s32.totalorder %s19, 0
    %p90 = por %p88, %p89
    %p91 = scmp.ne.s32.totalorder %s77, %s78
    %p92 = scmp.eq.s32.totalorder %s20, 3
    %p93 = por %p91, %p92
    %p95 = scmp.ne.s32.totalorder %s78, %s94
    %p96 = scmp.eq.s32.totalorder %s20, 0
    %p97 = por %p95, %p96
    %s98 = smul.u32 %s22, 8
    %s99 = sadd.s32 %s98, 8
    %p100 = scmp.lt.s32.totalorder %s99, 15
    %s101 = scalar_select %p100, %s99, 15
    %s102 = smul.u32 %s29, 8
    %s103 = sadd.s32 %s102, 8
    %p104 = scmp.lt.s32.totalorder %s103, 15
    %s105 = scalar_select %p104, %s103, 15
    %s106 = ssub.s32 %s21, %s33
    %s107 = ssub.s32 %s101, %s105
    %s108 = sor.u32 %s106, %s107
    %p109 = scmp.eq.s32.totalorder %s108, 0
    %s111 = sadd.s32 %s110, 1
    %s112 = scalar_select %p109, %s110, %s111
    %p115 = pneg %p109
    %p116 = scmp.eq.s32.totalorder %s14, 3
    %p117 = por %p115, %p116
    %p118 = scmp.ne.s32.totalorder %s110, %s113
    %p119 = scmp.eq.s32.totalorder %s14, 0
    %p120 = por %p118, %p119
    %p121 = scmp.ne.s32.totalorder %s110, %s113
    %p122 = scmp.eq.s32.totalorder %s19, 3
    %p123 = por %p121, %p122
    %p124 = scmp.ne.s32.totalorder %s113, %s114
    %p125 = scmp.eq.s32.totalorder %s19, 0
    %p126 = por %p124, %p125
    %p127 = scmp.ne.s32.totalorder %s113, %s114
    %p128 = scmp.eq.s32.totalorder %s20, 3
    %p129 = por %p127, %p128
    %p131 = scmp.ne.s32.totalorder %s114, %s130
    %p132 = scmp.eq.s32.totalorder %s20, 0
    %p133 = por %p131, %p132
    %s135 = sadd.s32 %s134, 1
    %p138 = scmp.eq.s32.totalorder %s14, 3
    %p139 = scmp.ne.s32.totalorder %s134, %s136
    %p140 = scmp.eq.s32.totalorder %s14, 0
    %p141 = por %p139, %p140
    %p142 = scmp.ne.s32.totalorder %s134, %s136
    %p143 = scmp.eq.s32.totalorder %s19, 3
    %p144 = por %p142, %p143
    %p145 = scmp.ne.s32.totalorder %s136, %s137
    %p146 = scmp.eq.s32.totalorder %s19, 0
    %p147 = por %p145, %p146
    %p148 = scmp.ne.s32.totalorder %s136, %s137
    %p149 = scmp.eq.s32.totalorder %s20, 3
    %p150 = por %p148, %p149
    %p152 = scmp.ne.s32.totalorder %s137, %s151
    %p153 = scmp.eq.s32.totalorder %s20, 0
    %p154 = por %p152, %p153
    %s156 = sadd.s32 %s155, 1
    %p159 = scmp.eq.s32.totalorder %s14, 3
    %p160 = scmp.ne.s32.totalorder %s155, %s157
    %p161 = scmp.eq.s32.totalorder %s14, 0
    %p162 = por %p160, %p161
    %p163 = scmp.ne.s32.totalorder %s155, %s157
    %p164 = scmp.eq.s32.totalorder %s19, 3
    %p165 = por %p163, %p164
    %p166 = scmp.ne.s32.totalorder %s157, %s158
    %p167 = scmp.eq.s32.totalorder %s19, 0
    %p168 = por %p166, %p167
    %p169 = scmp.ne.s32.totalorder %s157, %s158
    %p170 = scmp.eq.s32.totalorder %s20, 3
    %p171 = por %p169, %p170
    %p173 = scmp.ne.s32.totalorder %s158, %s172
    %p174 = scmp.eq.s32.totalorder %s20, 0
    %p175 = por %p173, %p174
    %s177 = sadd.s32 %s176, 1
    %p180 = scmp.eq.s32.totalorder %s14, 3
    %p181 = scmp.ne.s32.totalorder %s176, %s178
    %p182 = scmp.eq.s32.totalorder %s14, 0
    %p183 = por %p181, %p182
    %p184 = scmp.ne.s32.totalorder %s176, %s178
    %p185 = scmp.eq.s32.totalorder %s19, 3
    %p186 = por %p184, %p185
    %p187 = scmp.ne.s32.totalorder %s178, %s179
    %p188 = scmp.eq.s32.totalorder %s19, 0
    %p189 = por %p187, %p188
    %p190 = scmp.ne.s32.totalorder %s178, %s179
    %p191 = scmp.eq.s32.totalorder %s20, 3
    %p192 = por %p190, %p191
    %p194 = scmp.ne.s32.totalorder %s179, %s193
    %p195 = scmp.eq.s32.totalorder %s20, 0
    %p196 = por %p194, %p195
    %s197 = ssub.s32 %s21, %s33
    %s198 = ssub.s32 %s22, %s29
    %s199 = sor.u32 %s197, %s198
    %p200 = scmp.eq.s32.totalorder %s199, 0
    %s202 = sadd.s32 %s201, 1
    %s203 = scalar_select %p200, %s201, %s202
    %p206 = pneg %p200
    %p207 = scmp.eq.s32.totalorder %s14, 3
    %p208 = por %p206, %p207
    %p209 = scmp.ne.s32.totalorder %s201, %s204
    %p210 = scmp.eq.s32.totalorder %s14, 0
    %p211 = por %p209, %p210
    %p212 = scmp.ne.s32.totalorder %s201, %s204
    %p213 = scmp.eq.s32.totalorder %s19, 3
    %p214 = por %p212, %p213
    %p215 = scmp.ne.s32.totalorder %s204, %s205
    %p216 = scmp.eq.s32.totalorder %s19, 0
    %p217 = por %p215, %p216
    %p218 = scmp.ne.s32.totalorder %s204, %s205
    %p219 = scmp.eq.s32.totalorder %s20, 3
    %p220 = por %p218, %p219
    %p222 = scmp.ne.s32.totalorder %s205, %s221
    %p223 = scmp.eq.s32.totalorder %s20, 0
    %p224 = por %p222, %p223
    %s225 = ssub.s32 %s21, %s33
    %s226 = ssub.s32 %s22, %s29
    %s227 = sor.u32 %s225, %s226
    %p228 = scmp.eq.s32.totalorder %s227, 0
    %s230 = sadd.s32 %s229, 1
    %s231 = scalar_select %p228, %s229, %s230
    %p234 = pneg %p228
    %p235 = scmp.eq.s32.totalorder %s14, 3
    %p236 = por %p234, %p235
    %p237 = scmp.ne.s32.totalorder %s229, %s232
    %p238 = scmp.eq.s32.totalorder %s14, 0
    %p239 = por %p237, %p238
    %p240 = scmp.ne.s32.totalorder %s229, %s232
    %p241 = scmp.eq.s32.totalorder %s19, 3
    %p242 = por %p240, %p241
    %p243 = scmp.ne.s32.totalorder %s232, %s233
    %p244 = scmp.eq.s32.totalorder %s19, 0
    %p245 = por %p243, %p244
    %p246 = scmp.ne.s32.totalorder %s232, %s233
    %p247 = scmp.eq.s32.totalorder %s20, 3
    %p248 = por %p246, %p247
    %p250 = scmp.ne.s32.totalorder %s233, %s249
    %p251 = scmp.eq.s32.totalorder %s20, 0
    %p252 = por %p250, %p251
    %p253 = scmp.le.s32.totalorder 1, %s14
    %p254 = scmp.lt.s32.totalorder %s14, 5
    %p255 = pnand %p253, %p254
    %p256 = pneg %p255
    // Predicated region
    $region9: #{double_conv_forward.4} parent=5 // pred_check
      _
    $region10: #{double_conv_forward.4} parent=5 // pred_check_branch
      %258 = sbr.rel (%p255) target = $region12
    $region11: #{double_conv_forward.4} parent=5 // pred_region
      %s259 = ssub.s32 %s14, 1
      // Predicated region
      $region13: #{double_conv_forward.4} parent=11 // pred_check
        %p260 = pneg %p147
      $region14: #{double_conv_forward.4} parent=11 // pred_check_branch
        %262 = sbr.rel (%p260) target = $region16
      $region15: #{double_conv_forward.4} parent=11 // pred_region
        _
      $region16: #{double_conv_forward.4} parent=11 // pred_fallthru
        _
      // Predicated region
      $region17: #{double_conv_forward.4} parent=11 // pred_check
        %p263 = pneg %p168
      $region18: #{double_conv_forward.4} parent=11 // pred_check_branch
        %265 = sbr.rel (%p263) target = $region20
      $region19: #{double_conv_forward.4} parent=11 // pred_region
        _
      $region20: #{double_conv_forward.4} parent=11 // pred_fallthru
        _
      // Predicated region
      $region21: #{double_conv_forward.4} parent=11 // pred_check
        %p266 = pneg %p189
      $region22: #{double_conv_forward.4} parent=11 // pred_check_branch
        %268 = sbr.rel (%p266) target = $region24
      $region23: #{double_conv_forward.4} parent=11 // pred_region
        _
      $region24: #{double_conv_forward.4} parent=11 // pred_fallthru
        _
    $region12: #{double_conv_forward.4} parent=5 // pred_fallthru
      _
    %p269 = scmp.lt.s32.totalorder %s14, 4
    // Predicated region
    $region25: #{double_conv_forward.4} parent=5 // pred_check
      %p270 = pneg %p269
    $region26: #{double_conv_forward.4} parent=5 // pred_check_branch
      %272 = sbr.rel (%p270) target = $region28
    $region27: #{double_conv_forward.4} parent=5 // pred_region
      // Predicated region
      $region29: #{double_conv_forward.4} parent=27 // pred_check
        %p273 = pneg %p48
      $region30: #{double_conv_forward.4} parent=27 // pred_check_branch
        %275 = sbr.rel (%p273) target = $region32
      $region31: #{double_conv_forward.4} parent=27 // pred_region
        %s276 = smul.u32 8, %s22
        %p277 = scmp.lt.s32.totalorder %s21, 1
        %s278 = scalar_select %p277, %s21, 1
        %p279 = scmp.lt.s32.totalorder %s276, 15
        %s280 = scalar_select %p279, %s276, 15
        %s281 = smul.addr %s280, 2
        %s282 = smul.addr %s278, 32
        %s283 = sadd.s32 %s281, %s282
        %s284 = smul.addr %s283, 8
        %s285 = scalar_lea.vmem %s0, %s284
        %s286 = smul.u32 8, %s22
      $region32: #{double_conv_forward.4} parent=27 // pred_fallthru
        _
      // Predicated region
      $region33: #{double_conv_forward.4} parent=27 // pred_check
        %p287 = pneg %p84
      $region34: #{double_conv_forward.4} parent=27 // pred_check_branch
        %289 = sbr.rel (%p287) target = $region36
      $region35: #{double_conv_forward.4} parent=27 // pred_region
        %s290 = smul.u32 %s22, 8
        %s291 = ssub.s32 %s290, 1
        %p292 = scmp.gt.s32.totalorder %s291, 0
        %s293 = scalar_select %p292, %s291, 0
        %p294 = scmp.lt.s32.totalorder %s21, 1
        %s295 = scalar_select %p294, %s21, 1
        %p296 = scmp.lt.s32.totalorder %s293, 15
        %s297 = scalar_select %p296, %s293, 15
        %s298 = smul.addr %s297, 2
        %s299 = smul.addr %s295, 32
        %s300 = sadd.s32 %s298, %s299
        %s301 = smul.addr %s300, 8
        %s302 = scalar_lea.vmem %s1, %s301
        %s303 = smul.u32 %s22, 8
        %s304 = ssub.s32 %s303, 1
        %p305 = scmp.gt.s32.totalorder %s304, 0
        %s306 = scalar_select %p305, %s304, 0
      $region36: #{double_conv_forward.4} parent=27 // pred_fallthru
        _
      // Predicated region
      $region37: #{double_conv_forward.4} parent=27 // pred_check
        %p307 = pneg %p120
      $region38: #{double_conv_forward.4} parent=27 // pred_check_branch
        %309 = sbr.rel (%p307) target = $region40
      $region39: #{double_conv_forward.4} parent=27 // pred_region
        %s310 = smul.u32 %s22, 8
        %s311 = sadd.s32 %s310, 8
        %p312 = scmp.lt.s32.totalorder %s311, 15
        %s313 = scalar_select %p312, %s311, 15
        %p314 = scmp.lt.s32.totalorder %s21, 1
        %s315 = scalar_select %p314, %s21, 1
        %p316 = scmp.lt.s32.totalorder %s313, 15
        %s317 = scalar_select %p316, %s313, 15
        %s318 = smul.addr %s317, 2
        %s319 = smul.addr %s315, 32
        %s320 = sadd.s32 %s318, %s319
        %s321 = smul.addr %s320, 8
        %s322 = scalar_lea.vmem %s2, %s321
        %s323 = smul.u32 %s22, 8
        %s324 = sadd.s32 %s323, 8
        %p325 = scmp.lt.s32.totalorder %s324, 15
        %s326 = scalar_select %p325, %s324, 15
      $region40: #{double_conv_forward.4} parent=27 // pred_fallthru
        _
    $region28: #{double_conv_forward.4} parent=5 // pred_fallthru
      _
    %p327 = scmp.le.s32.totalorder 1, %s14
    %p328 = scmp.lt.s32.totalorder %s14, 5
    %p329 = pnand %p327, %p328
    %p330 = pneg %p329
    // Predicated region
    $region41: #{double_conv_forward.4} parent=5 // pred_check
      _
    $region42: #{double_conv_forward.4} parent=5 // pred_check_branch
      %332 = sbr.rel (%p329) target = $region44
    $region43: #{double_conv_forward.4} parent=5 // pred_region
      %s333 = ssub.s32 %s14, 1
      %s334 = smul.u32 8, %s24
      %p335 = scmp.lt.s32.totalorder %s23, 1
      %s336 = scalar_select %p335, %s23, 1
      %p337 = scmp.lt.s32.totalorder %s334, 15
      %s338 = scalar_select %p337, %s334, 15
      %s339 = smul.addr %s338, 2
      %s340 = smul.addr %s336, 32
      %s341 = sadd.s32 %s339, %s340
      %s342 = smul.addr %s341, 8
      %s343 = scalar_lea.vmem %s0, %s342
      %p344 = pneg %p54
      %p345 = pneg %p51
      %s346 = smul.u32 %s24, 8
      %s347 = ssub.s32 %s346, 1
      %p348 = scmp.gt.s32.totalorder %s347, 0
      %s349 = scalar_select %p348, %s347, 0
      %p350 = scmp.lt.s32.totalorder %s23, 1
      %s351 = scalar_select %p350, %s23, 1
      %p352 = scmp.lt.s32.totalorder %s349, 15
      %s353 = scalar_select %p352, %s349, 15
      %s354 = smul.addr %s353, 2
      %s355 = smul.addr %s351, 32
      %s356 = sadd.s32 %s354, %s355
      %s357 = smul.addr %s356, 8
      %s358 = scalar_lea.vmem %s1, %s357
      %p359 = pneg %p90
      %p360 = pneg %p87
      %s361 = smul.u32 %s24, 8
      %s362 = sadd.s32 %s361, 8
      %p363 = scmp.lt.s32.totalorder %s362, 15
      %s364 = scalar_select %p363, %s362, 15
      %p365 = scmp.lt.s32.totalorder %s23, 1
      %s366 = scalar_select %p365, %s23, 1
      %p367 = scmp.lt.s32.totalorder %s364, 15
      %s368 = scalar_select %p367, %s364, 15
      %s369 = smul.addr %s368, 2
      %s370 = smul.addr %s366, 32
      %s371 = sadd.s32 %s369, %s370
      %s372 = smul.addr %s371, 8
      %s373 = scalar_lea.vmem %s2, %s372
      %p374 = pneg %p126
      %p375 = pneg %p123
      %p376 = pneg %p147
      %p377 = pneg %p144
      %p378 = pneg %p168
      %p379 = pneg %p165
      %p380 = pneg %p189
      %p381 = pneg %p186
      %p382 = pneg %p217
      %p383 = pneg %p214
      %s384 = smul.u32 8, %s24
      %p385 = scmp.lt.s32.totalorder %s23, 1
      %s386 = scalar_select %p385, %s23, 1
      %p387 = scmp.lt.s32.totalorder %s384, 15
      %s388 = scalar_select %p387, %s384, 15
      %s389 = smul.addr %s388, 2
      %s390 = smul.addr %s386, 32
      %s391 = sadd.s32 %s389, %s390
      %s392 = smul.addr %s391, 8
      %s393 = scalar_lea.vmem %s6, %s392
      %p394 = pneg %p245
      %p395 = pneg %p242
      %p396 = scmp.lt.s32.totalorder %s23, 1
      %s397 = scalar_select %p396, %s23, 1
      %p398 = scmp.lt.s32.totalorder %s24, 1
      %s399 = scalar_select %p398, %s24, 1
      %s400 = smul.addr %s397, 2
      %s401 = sadd.s32 %s399, %s400
      %s402 = smul.addr %s401, 2
      %s403 = scalar_lea.vmem %s7, %s402
      %s404 = smul.u32 8, %s24
      %p405 = scmp.lt.s32.totalorder %s23, 1
      %s406 = scalar_select %p405, %s23, 1
      %p407 = scmp.lt.s32.totalorder %s404, 15
      %s408 = scalar_select %p407, %s404, 15
      %s409 = smul.addr %s408, 2
      %s410 = smul.addr %s406, 32
      %s411 = sadd.s32 %s409, %s410
      %s412 = smul.addr %s411, 8
      %s413 = scalar_lea.vmem %s0, %s412
      %s414 = smul.u32 8, %s24
      %s415 = smul.u32 %s24, 8
      %s416 = ssub.s32 %s415, 1
      %p417 = scmp.gt.s32.totalorder %s416, 0
      %s418 = scalar_select %p417, %s416, 0
      %p419 = scmp.lt.s32.totalorder %s23, 1
      %s420 = scalar_select %p419, %s23, 1
      %p421 = scmp.lt.s32.totalorder %s418, 15
      %s422 = scalar_select %p421, %s418, 15
      %s423 = smul.addr %s422, 2
      %s424 = smul.addr %s420, 32
      %s425 = sadd.s32 %s423, %s424
      %s426 = smul.addr %s425, 8
      %s427 = scalar_lea.vmem %s1, %s426
      %s428 = smul.u32 %s24, 8
      %s429 = ssub.s32 %s428, 1
      %p430 = scmp.gt.s32.totalorder %s429, 0
      %s431 = scalar_select %p430, %s429, 0
      %s432 = smul.u32 %s24, 8
      %s433 = sadd.s32 %s432, 8
      %p434 = scmp.lt.s32.totalorder %s433, 15
      %s435 = scalar_select %p434, %s433, 15
      %p436 = scmp.lt.s32.totalorder %s23, 1
      %s437 = scalar_select %p436, %s23, 1
      %p438 = scmp.lt.s32.totalorder %s435, 15
      %s439 = scalar_select %p438, %s435, 15
      %s440 = smul.addr %s439, 2
      %s441 = smul.addr %s437, 32
      %s442 = sadd.s32 %s440, %s441
      %s443 = smul.addr %s442, 8
      %s444 = scalar_lea.vmem %s2, %s443
      %s445 = smul.u32 %s24, 8
      %s446 = sadd.s32 %s445, 8
      %p447 = scmp.lt.s32.totalorder %s446, 15
      %s448 = scalar_select %p447, %s446, 15
      %s449 = smul.u32 8, %s24
      %p450 = scmp.lt.s32.totalorder %s23, 1
      %s451 = scalar_select %p450, %s23, 1
      %p452 = scmp.lt.s32.totalorder %s449, 15
      %s453 = scalar_select %p452, %s449, 15
      %s454 = smul.addr %s453, 2
      %s455 = smul.addr %s451, 32
      %s456 = sadd.s32 %s454, %s455
      %s457 = smul.addr %s456, 8
      %s458 = scalar_lea.vmem %s6, %s457
      %s459 = smul.u32 8, %s24
      %p460 = scmp.lt.s32.totalorder %s23, 1
      %s461 = scalar_select %p460, %s23, 1
      %p462 = scmp.lt.s32.totalorder %s24, 1
      %s463 = scalar_select %p462, %s24, 1
      %s464 = smul.addr %s461, 2
      %s465 = sadd.s32 %s463, %s464
      %s466 = smul.addr %s465, 2
      %s467 = scalar_lea.vmem %s7, %s466
      %v469 = vld [vmem:[%s3] sm:$0x1]
      %v470 = vld [vmem:[%s4] sm:$0x1]
      %471 = vst [vmem:[#allocation2] sm:$0xf] 0
      %472 = vst [vmem:[#allocation2 + $0x4] sm:$0xf] 0
      %473 = vst [vmem:[#allocation2 + $0x8] sm:$0x1] 0
      %474 = vst [vmem:[#allocation2 + $0xc] sm:$0xf] 0
      %475 = vst [vmem:[#allocation2 + $0x10] sm:$0xf] 0
      %476 = vst [vmem:[#allocation2 + $0x14] sm:$0x1] 0
      %477 = vst [vmem:[#allocation2 + $0x18] sm:$0xf] 0
      %478 = vst [vmem:[#allocation2 + $0x1c] sm:$0xf] 0
      %479 = vst [vmem:[#allocation2 + $0x20] sm:$0x1] 0
      %480 = vst [vmem:[#allocation2 + $0x24] sm:$0xf] 0
      %481 = vst [vmem:[#allocation2 + $0x28] sm:$0xf] 0
      %482 = vst [vmem:[#allocation2 + $0x2c] sm:$0x1] 0
      %483 = vst [vmem:[#allocation2 + $0x30] sm:$0xf] 0
      %484 = vst [vmem:[#allocation2 + $0x34] sm:$0xf] 0
      %485 = vst [vmem:[#allocation2 + $0x38] sm:$0x1] 0
      %486 = vst [vmem:[#allocation2 + $0x3c] sm:$0xf] 0
      %487 = vst [vmem:[#allocation2 + $0x40] sm:$0xf] 0
      %488 = vst [vmem:[#allocation2 + $0x44] sm:$0x1] 0
      %489 = vst [vmem:[#allocation2 + $0x48] sm:$0xf] 0
      %490 = vst [vmem:[#allocation2 + $0x4c] sm:$0xf] 0
      %491 = vst [vmem:[#allocation2 + $0x50] sm:$0x1] 0
      %492 = vst [vmem:[#allocation2 + $0x54] sm:$0xf] 0
      %493 = vst [vmem:[#allocation2 + $0x58] sm:$0xf] 0
      %494 = vst [vmem:[#allocation2 + $0x5c] sm:$0x1] 0
      %495 = vst [vmem:[#allocation2 + $0x60] sm:$0xf] 0
      %496 = vst [vmem:[#allocation2 + $0x64] sm:$0xf] 0
      %497 = vst [vmem:[#allocation2 + $0x68] sm:$0x1] 0
      %498 = vst [vmem:[#allocation2 + $0x6c] sm:$0xf] 0
      %499 = vst [vmem:[#allocation2 + $0x70] sm:$0xf] 0
      %500 = vst [vmem:[#allocation2 + $0x74] sm:$0x1] 0
      %v501 = vld [vmem:[%s413] sm:$0xff]
      %v502 = vld [vmem:[%s413 + $0x8] sm:$0xff]
      %v503 = vld [vmem:[%s413 + $0x10] sm:$0xff]
      %v504 = vld [vmem:[%s413 + $0x18] sm:$0xff]
      %v505 = vld [vmem:[%s413 + $0x20] sm:$0xff]
      %v506 = vld [vmem:[%s413 + $0x28] sm:$0xff]
      %v507 = vld [vmem:[%s413 + $0x30] sm:$0xff]
      %v508 = vld [vmem:[%s413 + $0x38] sm:$0xff]
      %v509 = vld [vmem:[%s413 + $0x40] sm:$0xff]
      %v510 = vld [vmem:[%s413 + $0x48] sm:$0xff]
      %v511 = vld [vmem:[%s413 + $0x50] sm:$0xff]
      %v512 = vld [vmem:[%s413 + $0x58] sm:$0xff]
      %v513 = vld [vmem:[%s413 + $0x60] sm:$0xff]
      %v514 = vld [vmem:[%s413 + $0x68] sm:$0xff]
      %v515 = vld [vmem:[%s413 + $0x70] sm:$0xff]
      %v516 = vld [vmem:[%s413 + $0x78] sm:$0xff]
      %v518 = vlaneseq
      %v519 = vshrl.u32 %v518, 7
      %v520 = vsub.s32 0, %v519
      %v521 = vrot.slane %v469, %v520
      %v523 = vmul.f32 %v501, %v521
      %v524 = vmul.f32 %v502, %v521
      %v525 = vmul.f32 %v503, %v521
      %v526 = vmul.f32 %v504, %v521
      %v527 = vmul.f32 %v505, %v521
      %v528 = vmul.f32 %v506, %v521
      %v529 = vmul.f32 %v507, %v521
      %v530 = vmul.f32 %v508, %v521
      %v531 = vmul.f32 %v509, %v521
      %v532 = vmul.f32 %v510, %v521
      %v533 = vmul.f32 %v511, %v521
      %v534 = vmul.f32 %v512, %v521
      %v535 = vmul.f32 %v513, %v521
      %v536 = vmul.f32 %v514, %v521
      %v537 = vmul.f32 %v515, %v521
      %v538 = vmul.f32 %v516, %v521
      %v540 = vlaneseq
      %v541 = vshrl.u32 %v540, 7
      %v542 = vsub.s32 0, %v541
      %v543 = vrot.slane %v470, %v542
      %v545 = vadd.f32 %v523, %v543
      %v546 = vadd.f32 %v524, %v543
      %v547 = vadd.f32 %v525, %v543
      %v548 = vadd.f32 %v526, %v543
      %v549 = vadd.f32 %v527, %v543
      %v550 = vadd.f32 %v528, %v543
      %v551 = vadd.f32 %v529, %v543
      %v552 = vadd.f32 %v530, %v543
      %v553 = vadd.f32 %v531, %v543
      %v554 = vadd.f32 %v532, %v543
      %v555 = vadd.f32 %v533, %v543
      %v556 = vadd.f32 %v534, %v543
      %v557 = vadd.f32 %v535, %v543
      %v558 = vadd.f32 %v536, %v543
      %v559 = vadd.f32 %v537, %v543
      %v560 = vadd.f32 %v538, %v543
      %v561 = vmax.f32 %v545, 0.0
      %v562 = vmax.f32 %v546, 0.0
      %v563 = vmax.f32 %v547, 0.0
      %v564 = vmax.f32 %v548, 0.0
      %v565 = vmax.f32 %v549, 0.0
      %v566 = vmax.f32 %v550, 0.0
      %v567 = vmax.f32 %v551, 0.0
      %v568 = vmax.f32 %v552, 0.0
      %v569 = vmax.f32 %v553, 0.0
      %v570 = vmax.f32 %v554, 0.0
      %v571 = vmax.f32 %v555, 0.0
      %v572 = vmax.f32 %v556, 0.0
      %v573 = vmax.f32 %v557, 0.0
      %v574 = vmax.f32 %v558, 0.0
      %v575 = vmax.f32 %v559, 0.0
      %v576 = vmax.f32 %v560, 0.0
      %v577 = vpack.c.bf16 %v562, %v561
      %v578 = vpack.c.bf16 %v564, %v563
      %v579 = vpack.c.bf16 %v566, %v565
      %v580 = vpack.c.bf16 %v568, %v567
      %v581 = vpack.c.bf16 %v570, %v569
      %v582 = vpack.c.bf16 %v572, %v571
      %v583 = vpack.c.bf16 %v574, %v573
      %v584 = vpack.c.bf16 %v576, %v575
      %v593 = vunpack.c.l.b16 %v577
      %v594 = vunpack.c.h.b16 %v577
      %v595 = vunpack.c.l.b16 %v578
      %v596 = vunpack.c.h.b16 %v578
      %v597 = vunpack.c.l.b16 %v579
      %v598 = vunpack.c.h.b16 %v579
      %v599 = vunpack.c.l.b16 %v580
      %v600 = vunpack.c.h.b16 %v580
      %v601 = vunpack.c.l.b16 %v581
      %v602 = vunpack.c.h.b16 %v581
      %v603 = vunpack.c.l.b16 %v582
      %v604 = vunpack.c.h.b16 %v582
      %v605 = vunpack.c.l.b16 %v583
      %v606 = vunpack.c.h.b16 %v583
      %v607 = vunpack.c.l.b16 %v584
      %v608 = vunpack.c.h.b16 %v584
      %v609 = vpack.c.b16 %v593, %v593
      %v610 = vpack.c.b16 %v594, %v594
      %v611 = vpack.c.b16 %v595, %v595
      %v612 = vpack.c.b16 %v596, %v596
      %v613 = vpack.c.b16 %v597, %v597
      %v614 = vpack.c.b16 %v598, %v598
      %v615 = vpack.c.b16 %v599, %v599
      %v616 = vpack.c.b16 %v600, %v600
      %v617 = vpack.c.b16 %v601, %v601
      %v618 = vpack.c.b16 %v602, %v602
      %v619 = vpack.c.b16 %v603, %v603
      %v620 = vpack.c.b16 %v604, %v604
      %v621 = vpack.c.b16 %v605, %v605
      %v622 = vpack.c.b16 %v606, %v606
      %v623 = vpack.c.b16 %v607, %v607
      %v624 = vpack.c.b16 %v608, %v608
      %vm625 = vsmask.f32 256
      %vm626 = vsmask.f32 4368
      %vm627 = vmor %vm625, %vm626
      %v629 = vshrl.u32 %v609, 16
      %v631 = vrot.slane %v629, 7
      %v632 = vshll.u32 %v609, 16
      %v634 = vor.u32 %v631, %v632
      %v635 = vrot.slane %v631, 4
      %v637 = vshrl.u32 %v610, 16
      %v639 = vrot.slane %v637, 7
      %v640 = vshll.u32 %v610, 16
      %v642 = vor.u32 %v639, %v640
      %v643 = vsel %vm627, %v635, %v642
      %v644 = vrot.slane %v639, 4
      %v646 = vshrl.u32 %v611, 16
      %v648 = vrot.slane %v646, 7
      %v649 = vshll.u32 %v611, 16
      %v651 = vor.u32 %v648, %v649
      %v652 = vrot.slane %v648, 4
      %v654 = vshrl.u32 %v612, 16
      %v656 = vrot.slane %v654, 7
      %v657 = vshll.u32 %v612, 16
      %v659 = vor.u32 %v656, %v657
      %v660 = vsel %vm627, %v652, %v659
      %v661 = vrot.slane %v656, 4
      %v663 = vshrl.u32 %v613, 16
      %v665 = vrot.slane %v663, 7
      %v666 = vshll.u32 %v613, 16
      %v668 = vor.u32 %v665, %v666
      %v669 = vrot.slane %v665, 4
      %v671 = vshrl.u32 %v614, 16
      %v673 = vrot.slane %v671, 7
      %v674 = vshll.u32 %v614, 16
      %v676 = vor.u32 %v673, %v674
      %v677 = vsel %vm627, %v669, %v676
      %v678 = vrot.slane %v673, 4
      %v680 = vshrl.u32 %v615, 16
      %v682 = vrot.slane %v680, 7
      %v683 = vshll.u32 %v615, 16
      %v685 = vor.u32 %v682, %v683
      %v686 = vrot.slane %v682, 4
      %v688 = vshrl.u32 %v616, 16
      %v690 = vrot.slane %v688, 7
      %v691 = vshll.u32 %v616, 16
      %v693 = vor.u32 %v690, %v691
      %v694 = vsel %vm627, %v686, %v693
      %v695 = vrot.slane %v690, 4
      %v697 = vshrl.u32 %v617, 16
      %v699 = vrot.slane %v697, 7
      %v700 = vshll.u32 %v617, 16
      %v702 = vor.u32 %v699, %v700
      %v703 = vrot.slane %v699, 4
      %v705 = vshrl.u32 %v618, 16
      %v707 = vrot.slane %v705, 7
      %v708 = vshll.u32 %v618, 16
      %v710 = vor.u32 %v707, %v708
      %v711 = vsel %vm627, %v703, %v710
      %v712 = vrot.slane %v707, 4
      %v714 = vshrl.u32 %v619, 16
      %v716 = vrot.slane %v714, 7
      %v717 = vshll.u32 %v619, 16
      %v719 = vor.u32 %v716, %v717
      %v720 = vrot.slane %v716, 4
      %v722 = vshrl.u32 %v620, 16
      %v724 = vrot.slane %v722, 7
      %v725 = vshll.u32 %v620, 16
      %v727 = vor.u32 %v724, %v725
      %v728 = vsel %vm627, %v720, %v727
      %v729 = vrot.slane %v724, 4
      %v731 = vshrl.u32 %v621, 16
      %v733 = vrot.slane %v731, 7
      %v734 = vshll.u32 %v621, 16
      %v736 = vor.u32 %v733, %v734
      %v737 = vrot.slane %v733, 4
      %v739 = vshrl.u32 %v622, 16
      %v741 = vrot.slane %v739, 7
      %v742 = vshll.u32 %v622, 16
      %v744 = vor.u32 %v741, %v742
      %v745 = vsel %vm627, %v737, %v744
      %v746 = vrot.slane %v741, 4
      %v748 = vshrl.u32 %v623, 16
      %v750 = vrot.slane %v748, 7
      %v751 = vshll.u32 %v623, 16
      %v753 = vor.u32 %v750, %v751
      %v754 = vrot.slane %v750, 4
      %v756 = vshrl.u32 %v624, 16
      %v758 = vrot.slane %v756, 7
      %v759 = vshll.u32 %v624, 16
      %v761 = vor.u32 %v758, %v759
      %v762 = vsel %vm627, %v754, %v761
      %v763 = vrot.slane %v758, 4
      %s788 = scalar_lea.vmem [#allocation2], 12
      %vm789 = vcmask 1043456
      %vm790 = vsmask.f32 7938
      %vm791 = vmand %vm789, %vm790
      %v792 = vld [vmem:[%s788] sm:$0xf]
      %v793 = vsel %vm791, %v634, %v792
      %794 = vst [vmem:[%s788] sm:$0xf] %v793
      %795 = vst [vmem:[%s788 + $0x4] sm:$0xf] %v643
      %vm796 = vcmask 1040384
      %vm797 = vmand %vm796, %vm625
      %v798 = vld [vmem:[%s788 + $0x8] sm:$0x1]
      %v799 = vsel %vm797, %v644, %v798
      %800 = vst [vmem:[%s788 + $0x8] sm:$0x1] %v799
      %v801 = vld [vmem:[%s788 + $0xc] sm:$0xf]
      %v802 = vsel %vm791, %v651, %v801
      %803 = vst [vmem:[%s788 + $0xc] sm:$0xf] %v802
      %804 = vst [vmem:[%s788 + $0x10] sm:$0xf] %v660
      %v805 = vld [vmem:[%s788 + $0x14] sm:$0x1]
      %v806 = vsel %vm797, %v661, %v805
      %807 = vst [vmem:[%s788 + $0x14] sm:$0x1] %v806
      %v808 = vld [vmem:[%s788 + $0x18] sm:$0xf]
      %v809 = vsel %vm791, %v668, %v808
      %810 = vst [vmem:[%s788 + $0x18] sm:$0xf] %v809
      %811 = vst [vmem:[%s788 + $0x1c] sm:$0xf] %v677
      %v812 = vld [vmem:[%s788 + $0x20] sm:$0x1]
      %v813 = vsel %vm797, %v678, %v812
      %814 = vst [vmem:[%s788 + $0x20] sm:$0x1] %v813
      %v815 = vld [vmem:[%s788 + $0x24] sm:$0xf]
      %v816 = vsel %vm791, %v685, %v815
      %817 = vst [vmem:[%s788 + $0x24] sm:$0xf] %v816
      %818 = vst [vmem:[%s788 + $0x28] sm:$0xf] %v694
      %v819 = vld [vmem:[%s788 + $0x2c] sm:$0x1]
      %v820 = vsel %vm797, %v695, %v819
      %821 = vst [vmem:[%s788 + $0x2c] sm:$0x1] %v820
      %v822 = vld [vmem:[%s788 + $0x30] sm:$0xf]
      %v823 = vsel %vm791, %v702, %v822
      %824 = vst [vmem:[%s788 + $0x30] sm:$0xf] %v823
      %825 = vst [vmem:[%s788 + $0x34] sm:$0xf] %v711
      %v826 = vld [vmem:[%s788 + $0x38] sm:$0x1]
      %v827 = vsel %vm797, %v712, %v826
      %828 = vst [vmem:[%s788 + $0x38] sm:$0x1] %v827
      %v829 = vld [vmem:[%s788 + $0x3c] sm:$0xf]
      %v830 = vsel %vm791, %v719, %v829
      %831 = vst [vmem:[%s788 + $0x3c] sm:$0xf] %v830
      %832 = vst [vmem:[%s788 + $0x40] sm:$0xf] %v728
      %v833 = vld [vmem:[%s788 + $0x44] sm:$0x1]
      %v834 = vsel %vm797, %v729, %v833
      %835 = vst [vmem:[%s788 + $0x44] sm:$0x1] %v834
      %v836 = vld [vmem:[%s788 + $0x48] sm:$0xf]
      %v837 = vsel %vm791, %v736, %v836
      %838 = vst [vmem:[%s788 + $0x48] sm:$0xf] %v837
      %839 = vst [vmem:[%s788 + $0x4c] sm:$0xf] %v745
      %v840 = vld [vmem:[%s788 + $0x50] sm:$0x1]
      %v841 = vsel %vm797, %v746, %v840
      %842 = vst [vmem:[%s788 + $0x50] sm:$0x1] %v841
      %v843 = vld [vmem:[%s788 + $0x54] sm:$0xf]
      %v844 = vsel %vm791, %v753, %v843
      %845 = vst [vmem:[%s788 + $0x54] sm:$0xf] %v844
      %846 = vst [vmem:[%s788 + $0x58] sm:$0xf] %v762
      %v847 = vld [vmem:[%s788 + $0x5c] sm:$0x1]
      %v848 = vsel %vm797, %v763, %v847
      %849 = vst [vmem:[%s788 + $0x5c] sm:$0x1] %v848
      %p850 = scmp.gt.s32.totalorder %s24, 0
      // Predicated region
      $region45: #{double_conv_forward.4} parent=43 // pred_check
        %p851 = pneg %p850
      $region46: #{double_conv_forward.4} parent=43 // pred_check_branch
        %853 = sbr.rel (%p851) target = $region48
      $region47: #{double_conv_forward.4} parent=43 // pred_region
        %v854 = vld [vmem:[%s427] sm:$0xff]
        %v855 = vld [vmem:[%s427 + $0x8] sm:$0xff]
        %v856 = vmul.f32 %v854, %v521
        %v857 = vmul.f32 %v855, %v521
        %v858 = vadd.f32 %v856, %v543
        %v859 = vadd.f32 %v857, %v543
        %v860 = vmax.f32 %v858, 0.0
        %v861 = vmax.f32 %v859, 0.0
        %v862 = vpack.c.bf16 %v861, %v860
        %v864 = vunpack.c.l.b16 %v862
        %v865 = vunpack.c.h.b16 %v862
        %v866 = vpack.c.b16 %v864, %v864
        %v867 = vpack.c.b16 %v865, %v865
        %v869 = vshrl.u32 %v866, 16
        %v871 = vrot.slane %v869, 7
        %v872 = vshll.u32 %v866, 16
        %v874 = vor.u32 %v871, %v872
        %v875 = vrot.slane %v871, 4
        %v877 = vshrl.u32 %v867, 16
        %v879 = vrot.slane %v877, 7
        %v880 = vshll.u32 %v867, 16
        %v882 = vor.u32 %v879, %v880
        %v883 = vsel %vm627, %v875, %v882
        %v884 = vrot.slane %v879, 4
        %v888 = vld [vmem:[#allocation2] sm:$0xf]
        %v889 = vsel %vm791, %v874, %v888
        %890 = vst [vmem:[#allocation2] sm:$0xf] %v889
        %891 = vst [vmem:[#allocation2 + $0x4] sm:$0xf] %v883
        %v892 = vld [vmem:[#allocation2 + $0x8] sm:$0x1]
        %v893 = vsel %vm797, %v884, %v892
        %894 = vst [vmem:[#allocation2 + $0x8] sm:$0x1] %v893
      $region48: #{double_conv_forward.4} parent=43 // pred_fallthru
        _
      %p895 = scmp.lt.s32.totalorder %s24, 1
      // Predicated region
      $region49: #{double_conv_forward.4} parent=43 // pred_check
        %p896 = pneg %p895
      $region50: #{double_conv_forward.4} parent=43 // pred_check_branch
        %898 = sbr.rel (%p896) target = $region52
      $region51: #{double_conv_forward.4} parent=43 // pred_region
        %v899 = vld [vmem:[%s444] sm:$0xff]
        %v900 = vld [vmem:[%s444 + $0x8] sm:$0xff]
        %v901 = vmul.f32 %v899, %v521
        %v902 = vmul.f32 %v900, %v521
        %v903 = vadd.f32 %v901, %v543
        %v904 = vadd.f32 %v902, %v543
        %v905 = vmax.f32 %v903, 0.0
        %v906 = vmax.f32 %v904, 0.0
        %v907 = vpack.c.bf16 %v906, %v905
        %v909 = vunpack.c.l.b16 %v907
        %v910 = vunpack.c.h.b16 %v907
        %v911 = vpack.c.b16 %v909, %v909
        %v912 = vpack.c.b16 %v910, %v910
        %v914 = vshrl.u32 %v911, 16
        %v916 = vrot.slane %v914, 7
        %v917 = vshll.u32 %v911, 16
        %v919 = vor.u32 %v916, %v917
        %v920 = vrot.slane %v916, 4
        %v922 = vshrl.u32 %v912, 16
        %v924 = vrot.slane %v922, 7
        %v925 = vshll.u32 %v912, 16
        %v927 = vor.u32 %v924, %v925
        %v928 = vsel %vm627, %v920, %v927
        %v929 = vrot.slane %v924, 4
        %s933 = scalar_lea.vmem [#allocation2], 108
        %v934 = vld [vmem:[%s933] sm:$0xf]
        %v935 = vsel %vm791, %v919, %v934
        %936 = vst [vmem:[%s933] sm:$0xf] %v935
        %937 = vst [vmem:[%s933 + $0x4] sm:$0xf] %v928
        %v938 = vld [vmem:[%s933 + $0x8] sm:$0x1]
        %v939 = vsel %vm797, %v929, %v938
        %940 = vst [vmem:[%s933 + $0x8] sm:$0x1] %v939
      $region52: #{double_conv_forward.4} parent=43 // pred_fallthru
        _
      %v941 = vld [vmem:[#allocation2] sm:$0xf]
      %v942 = vld [vmem:[#allocation2 + $0x4] sm:$0xf]
      %v943 = vld [vmem:[#allocation2 + $0xc] sm:$0xf]
      %v944 = vld [vmem:[#allocation2 + $0x10] sm:$0xf]
      %v945 = vld [vmem:[#allocation2 + $0x18] sm:$0xf]
      %v946 = vld [vmem:[#allocation2 + $0x1c] sm:$0xf]
      %v947 = vld [vmem:[#allocation2 + $0x24] sm:$0xf]
      %v948 = vld [vmem:[#allocation2 + $0x28] sm:$0xf]
      %v949 = vld [vmem:[#allocation2 + $0x30] sm:$0xf]
      %v950 = vld [vmem:[#allocation2 + $0x34] sm:$0xf]
      %v951 = vld [vmem:[#allocation2 + $0x3c] sm:$0xf]
      %v952 = vld [vmem:[#allocation2 + $0x40] sm:$0xf]
      %v953 = vld [vmem:[#allocation2 + $0x48] sm:$0xf]
      %v954 = vld [vmem:[#allocation2 + $0x4c] sm:$0xf]
      %v955 = vld [vmem:[#allocation2 + $0x54] sm:$0xf]
      %v956 = vld [vmem:[#allocation2 + $0x58] sm:$0xf]
      %v957 = vld [vmem:[%s5] sm:$0xf]
      %v958 = vld [vmem:[%s5 + $0x4] sm:$0xf]
      %v959 = vld [vmem:[%s5 + $0x8] sm:$0xf]
      %v960 = vld [vmem:[%s5 + $0xc] sm:$0xf]
      %v961 = vld [vmem:[%s5 + $0x10] sm:$0xf]
      %v962 = vld [vmem:[%s5 + $0x14] sm:$0xf]
      %v963 = vld [vmem:[%s5 + $0x18] sm:$0xf]
      %v964 = vld [vmem:[%s5 + $0x1c] sm:$0xf]
      %v965 = vld [vmem:[%s5 + $0x20] sm:$0xf]
      %v966 = vld [vmem:[%s5 + $0x24] sm:$0xf]
      %v967 = vld [vmem:[%s5 + $0x28] sm:$0xf]
      %v968 = vld [vmem:[%s5 + $0x2c] sm:$0xf]
      %v969 = vld [vmem:[%s5 + $0x30] sm:$0xf]
      %v970 = vld [vmem:[%s5 + $0x34] sm:$0xf]
      %v971 = vld [vmem:[%s5 + $0x38] sm:$0xf]
      %v972 = vld [vmem:[%s5 + $0x3c] sm:$0xf]
      %v973 = vld [vmem:[#allocation2 + $0x8] sm:$0x1]
      %v974 = vld [vmem:[#allocation2 + $0x14] sm:$0x1]
      %v975 = vld [vmem:[#allocation2 + $0x20] sm:$0x1]
      %v976 = vld [vmem:[#allocation2 + $0x2c] sm:$0x1]
      %v977 = vld [vmem:[#allocation2 + $0x38] sm:$0x1]
      %v978 = vld [vmem:[#allocation2 + $0x44] sm:$0x1]
      %v979 = vld [vmem:[#allocation2 + $0x50] sm:$0x1]
      %v980 = vld [vmem:[#allocation2 + $0x5c] sm:$0x1]
      %vm981 = vsmask.f32 3328
      %vm982 = vsmask.f32 7440
      %vm983 = vmor %vm981, %vm982
      %v985 = vshrl.u32 %v941, 16
      %v987 = vrot.slane %v985, 4
      %v988 = vshll.u32 %v941, 16
      %v990 = vrot.slane %v988, 5
      %v991 = vor.u32 %v987, %v990
      %v992 = vrot.slane %v991, 4
      %v994 = vshll.u32 %v942, 16
      %v996 = vrot.slane %v994, 5
      %v997 = vsel %vm983, %v992, %v996
      %v998 = vshrl.u32 %v942, 16
      %v1000 = vrot.slane %v998, 4
      %v1001 = vor.u32 %v1000, %v996
      %v1002 = vrot.slane %v1001, 4
      %v1004 = vshll.u32 %v973, 16
      %v1006 = vrot.slane %v1004, 5
      %v1007 = vsel %vm983, %v1002, %v1006
      %v1009 = vshrl.u32 %v943, 16
      %v1011 = vrot.slane %v1009, 4
      %v1012 = vshll.u32 %v943, 16
      %v1014 = vrot.slane %v1012, 5
      %v1015 = vor.u32 %v1011, %v1014
      %v1016 = vrot.slane %v1015, 4
      %v1018 = vshll.u32 %v944, 16
      %v1020 = vrot.slane %v1018, 5
      %v1021 = vsel %vm983, %v1016, %v1020
      %v1022 = vshrl.u32 %v944, 16
      %v1024 = vrot.slane %v1022, 4
      %v1025 = vor.u32 %v1024, %v1020
      %v1026 = vrot.slane %v1025, 4
      %v1028 = vshll.u32 %v974, 16
      %v1030 = vrot.slane %v1028, 5
      %v1031 = vsel %vm983, %v1026, %v1030
      %v1033 = vshrl.u32 %v945, 16
      %v1035 = vrot.slane %v1033, 4
      %v1036 = vshll.u32 %v945, 16
      %v1038 = vrot.slane %v1036, 5
      %v1039 = vor.u32 %v1035, %v1038
      %v1040 = vrot.slane %v1039, 4
      %v1042 = vshll.u32 %v946, 16
      %v1044 = vrot.slane %v1042, 5
      %v1045 = vsel %vm983, %v1040, %v1044
      %v1046 = vshrl.u32 %v946, 16
      %v1048 = vrot.slane %v1046, 4
      %v1049 = vor.u32 %v1048, %v1044
      %v1050 = vrot.slane %v1049, 4
      %v1052 = vshll.u32 %v975, 16
      %v1054 = vrot.slane %v1052, 5
      %v1055 = vsel %vm983, %v1050, %v1054
      %v1057 = vshrl.u32 %v947, 16
      %v1059 = vrot.slane %v1057, 4
      %v1060 = vshll.u32 %v947, 16
      %v1062 = vrot.slane %v1060, 5
      %v1063 = vor.u32 %v1059, %v1062
      %v1064 = vrot.slane %v1063, 4
      %v1066 = vshll.u32 %v948, 16
      %v1068 = vrot.slane %v1066, 5
      %v1069 = vsel %vm983, %v1064, %v1068
      %v1070 = vshrl.u32 %v948, 16
      %v1072 = vrot.slane %v1070, 4
      %v1073 = vor.u32 %v1072, %v1068
      %v1074 = vrot.slane %v1073, 4
      %v1076 = vshll.u32 %v976, 16
      %v1078 = vrot.slane %v1076, 5
      %v1079 = vsel %vm983, %v1074, %v1078
      %v1081 = vshrl.u32 %v949, 16
      %v1083 = vrot.slane %v1081, 4
      %v1084 = vshll.u32 %v949, 16
      %v1086 = vrot.slane %v1084, 5
      %v1087 = vor.u32 %v1083, %v1086
      %v1088 = vrot.slane %v1087, 4
      %v1090 = vshll.u32 %v950, 16
      %v1092 = vrot.slane %v1090, 5
      %v1093 = vsel %vm983, %v1088, %v1092
      %v1094 = vshrl.u32 %v950, 16
      %v1096 = vrot.slane %v1094, 4
      %v1097 = vor.u32 %v1096, %v1092
      %v1098 = vrot.slane %v1097, 4
      %v1100 = vshll.u32 %v977, 16
      %v1102 = vrot.slane %v1100, 5
      %v1103 = vsel %vm983, %v1098, %v1102
      %v1105 = vshrl.u32 %v951, 16
      %v1107 = vrot.slane %v1105, 4
      %v1108 = vshll.u32 %v951, 16
      %v1110 = vrot.slane %v1108, 5
      %v1111 = vor.u32 %v1107, %v1110
      %v1112 = vrot.slane %v1111, 4
      %v1114 = vshll.u32 %v952, 16
      %v1116 = vrot.slane %v1114, 5
      %v1117 = vsel %vm983, %v1112, %v1116
      %v1118 = vshrl.u32 %v952, 16
      %v1120 = vrot.slane %v1118, 4
      %v1121 = vor.u32 %v1120, %v1116
      %v1122 = vrot.slane %v1121, 4
      %v1124 = vshll.u32 %v978, 16
      %v1126 = vrot.slane %v1124, 5
      %v1127 = vsel %vm983, %v1122, %v1126
      %v1129 = vshrl.u32 %v953, 16
      %v1131 = vrot.slane %v1129, 4
      %v1132 = vshll.u32 %v953, 16
      %v1134 = vrot.slane %v1132, 5
      %v1135 = vor.u32 %v1131, %v1134
      %v1136 = vrot.slane %v1135, 4
      %v1138 = vshll.u32 %v954, 16
      %v1140 = vrot.slane %v1138, 5
      %v1141 = vsel %vm983, %v1136, %v1140
      %v1142 = vshrl.u32 %v954, 16
      %v1144 = vrot.slane %v1142, 4
      %v1145 = vor.u32 %v1144, %v1140
      %v1146 = vrot.slane %v1145, 4
      %v1148 = vshll.u32 %v979, 16
      %v1150 = vrot.slane %v1148, 5
      %v1151 = vsel %vm983, %v1146, %v1150
      %v1153 = vshrl.u32 %v955, 16
      %v1155 = vrot.slane %v1153, 4
      %v1156 = vshll.u32 %v955, 16
      %v1158 = vrot.slane %v1156, 5
      %v1159 = vor.u32 %v1155, %v1158
      %v1160 = vrot.slane %v1159, 4
      %v1162 = vshll.u32 %v956, 16
      %v1164 = vrot.slane %v1162, 5
      %v1165 = vsel %vm983, %v1160, %v1164
      %v1166 = vshrl.u32 %v956, 16
      %v1168 = vrot.slane %v1166, 4
      %v1169 = vor.u32 %v1168, %v1164
      %v1170 = vrot.slane %v1169, 4
      %v1172 = vshll.u32 %v980, 16
      %v1174 = vrot.slane %v1172, 5
      %v1175 = vsel %vm983, %v1170, %v1174
      %s1176 = scalar_lea.vmem %s5, 64
      %v1177 = vld [vmem:[%s1176] sm:$0xf]
      %v1178 = vld [vmem:[%s1176 + $0x4] sm:$0xf]
      %v1179 = vld [vmem:[%s1176 + $0x8] sm:$0xf]
      %v1180 = vld [vmem:[%s1176 + $0xc] sm:$0xf]
      %v1181 = vld [vmem:[%s1176 + $0x10] sm:$0xf]
      %v1182 = vld [vmem:[%s1176 + $0x14] sm:$0xf]
      %v1183 = vld [vmem:[%s1176 + $0x18] sm:$0xf]
      %v1184 = vld [vmem:[%s1176 + $0x1c] sm:$0xf]
      %v1185 = vld [vmem:[%s1176 + $0x20] sm:$0xf]
      %v1186 = vld [vmem:[%s1176 + $0x24] sm:$0xf]
      %v1187 = vld [vmem:[%s1176 + $0x28] sm:$0xf]
      %v1188 = vld [vmem:[%s1176 + $0x2c] sm:$0xf]
      %v1189 = vld [vmem:[%s1176 + $0x30] sm:$0xf]
      %v1190 = vld [vmem:[%s1176 + $0x34] sm:$0xf]
      %v1191 = vld [vmem:[%s1176 + $0x38] sm:$0xf]
      %v1192 = vld [vmem:[%s1176 + $0x3c] sm:$0xf]
      %v1193 = vunpack.c.l.b16 %v997
      %v1194 = vunpack.c.l.b16 %v1007
      %v1195 = vunpack.c.l.b16 %v1021
      %v1196 = vunpack.c.l.b16 %v1031
      %v1197 = vunpack.c.l.b16 %v1045
      %v1198 = vunpack.c.l.b16 %v1055
      %v1199 = vunpack.c.l.b16 %v1069
      %v1200 = vunpack.c.l.b16 %v1079
      %v1201 = vunpack.c.l.b16 %v1093
      %v1202 = vunpack.c.l.b16 %v1103
      %v1203 = vunpack.c.l.b16 %v1117
      %v1204 = vunpack.c.l.b16 %v1127
      %v1205 = vunpack.c.l.b16 %v1141
      %v1206 = vunpack.c.l.b16 %v1151
      %v1207 = vunpack.c.l.b16 %v1165
      %v1208 = vunpack.c.l.b16 %v1175
      %v1209 = vpack.c.b16 %v1194, %v1193
      %v1210 = vpack.c.b16 %v1196, %v1195
      %v1211 = vpack.c.b16 %v1198, %v1197
      %v1212 = vpack.c.b16 %v1200, %v1199
      %v1213 = vpack.c.b16 %v1202, %v1201
      %v1214 = vpack.c.b16 %v1204, %v1203
      %v1215 = vpack.c.b16 %v1206, %v1205
      %v1216 = vpack.c.b16 %v1208, %v1207
      %v1241 = vunpack.c.l.b16 %v1177
      %v1242 = vunpack.c.l.b16 %v1178
      %v1243 = vunpack.c.l.b16 %v1179
      %v1244 = vunpack.c.l.b16 %v1180
      %v1245 = vunpack.c.l.b16 %v1181
      %v1246 = vunpack.c.l.b16 %v1182
      %v1247 = vunpack.c.l.b16 %v1183
      %v1248 = vunpack.c.l.b16 %v1184
      %v1249 = vunpack.c.l.b16 %v1185
      %v1250 = vunpack.c.l.b16 %v1186
      %v1251 = vunpack.c.l.b16 %v1187
      %v1252 = vunpack.c.l.b16 %v1188
      %v1253 = vunpack.c.l.b16 %v1189
      %v1254 = vunpack.c.l.b16 %v1190
      %v1255 = vunpack.c.l.b16 %v1191
      %v1256 = vunpack.c.l.b16 %v1192
      %v1257 = vpack.c.b16 %v1242, %v1241
      %v1258 = vpack.c.b16 %v1244, %v1243
      %v1259 = vpack.c.b16 %v1246, %v1245
      %v1260 = vpack.c.b16 %v1248, %v1247
      %v1261 = vpack.c.b16 %v1250, %v1249
      %v1262 = vpack.c.b16 %v1252, %v1251
      %v1263 = vpack.c.b16 %v1254, %v1253
      %v1264 = vpack.c.b16 %v1256, %v1255
      %1273 = vmatprep.subr.bf16.mxu0 0
      %1274 = vmatpush1.bf16.msra.mxu0 %v1257
      %1275 = vmatprep.subr.bf16.mxu0 0
      %1276 = vmatpush1.bf16.msra.mxu0 %v1258
      %1277 = vmatprep.subr.bf16.mxu0 0
      %1278 = vmatpush1.bf16.msra.mxu0 %v1259
      %1279 = vmatprep.subr.bf16.mxu0 0
      %1280 = vmatpush1.bf16.msra.mxu0 %v1260
      %1281 = vmatprep.subr.bf16.mxu0 0
      %1282 = vmatpush1.bf16.msra.mxu0 %v1261
      %1283 = vmatprep.subr.bf16.mxu0 0
      %1284 = vmatpush1.bf16.msra.mxu0 %v1262
      %1285 = vmatprep.subr.bf16.mxu0 0
      %1286 = vmatpush1.bf16.msra.mxu0 %v1263
      %1287 = vmatprep.subr.bf16.mxu0 0
      %1288 = vmatpush1.bf16.msra.mxu0 %v1264
      %1289 = vmatprep.subr.bf16.mxu0 0
      %1290 = vmatpush1.bf16.msra.mxu0 0
      %1291 = vmatprep.subr.bf16.mxu0 0
      %1292 = vmatpush1.bf16.msra.mxu0 0
      %1293 = vmatprep.subr.bf16.mxu0 0
      %1294 = vmatpush1.bf16.msra.mxu0 0
      %1295 = vmatprep.subr.bf16.mxu0 0
      %1296 = vmatpush1.bf16.msra.mxu0 0
      %1297 = vmatprep.subr.bf16.mxu0 0
      %1298 = vmatpush1.bf16.msra.mxu0 0
      %1299 = vmatprep.subr.bf16.mxu0 0
      %1300 = vmatpush1.bf16.msra.mxu0 0
      %1301 = vmatprep.subr.bf16.mxu0 0
      %1302 = vmatpush1.bf16.msra.mxu0 0
      %1303 = vmatprep.subr.bf16.mxu0 0
      %1304 = vmatpush1.bf16.msra.mxu0 0
      %1305 = vmatprep.mubr.bf16.mxu0 0
      %1306 = vmatmul.mubr.bf16.gmra.mrb[0].mxu0 %v1209
      %v1307 = vpop.f32.mrb[0].mxu0
      %v1308 = vadd.f32 0.0, %v1307
      %v1309 = vpop.f32.mrb[0].mxu0
      %v1310 = vpop.f32.mrb[0].mxu0
      %v1311 = vadd.f32 0.0, %v1310
      %v1312 = vpop.f32.mrb[0].mxu0
      %1313 = vmatprep.mubr.bf16.mxu0 0
      %1314 = vmatmul.mubr.bf16.gmra.mrb[0].mxu0 %v1210
      %v1315 = vpop.f32.mrb[0].mxu0
      %v1316 = vadd.f32 0.0, %v1315
      %v1317 = vpop.f32.mrb[0].mxu0
      %v1318 = vpop.f32.mrb[0].mxu0
      %v1319 = vadd.f32 0.0, %v1318
      %v1320 = vpop.f32.mrb[0].mxu0
      %1321 = vmatprep.mubr.bf16.mxu0 0
      %1322 = vmatmul.mubr.bf16.gmra.mrb[0].mxu0 %v1211
      %v1323 = vpop.f32.mrb[0].mxu0
      %v1324 = vadd.f32 0.0, %v1323
      %v1325 = vpop.f32.mrb[0].mxu0
      %v1326 = vpop.f32.mrb[0].mxu0
      %v1327 = vadd.f32 0.0, %v1326
      %v1328 = vpop.f32.mrb[0].mxu0
      %1329 = vmatprep.mubr.bf16.mxu0 0
      %1330 = vmatmul.mubr.bf16.gmra.mrb[0].mxu0 %v1212
      %v1331 = vpop.f32.mrb[0].mxu0
      %v1332 = vadd.f32 0.0, %v1331
      %v1333 = vpop.f32.mrb[0].mxu0
      %v1334 = vpop.f32.mrb[0].mxu0
      %v1335 = vadd.f32 0.0, %v1334
      %v1336 = vpop.f32.mrb[0].mxu0
      %1337 = vmatprep.mubr.bf16.mxu0 0
      %1338 = vmatmul.mubr.bf16.gmra.mrb[0].mxu0 %v1213
      %v1339 = vpop.f32.mrb[0].mxu0
      %v1340 = vadd.f32 0.0, %v1339
      %v1341 = vpop.f32.mrb[0].mxu0
      %v1342 = vpop.f32.mrb[0].mxu0
      %v1343 = vadd.f32 0.0, %v1342
      %v1344 = vpop.f32.mrb[0].mxu0
      %1345 = vmatprep.mubr.bf16.mxu0 0
      %1346 = vmatmul.mubr.bf16.gmra.mrb[0].mxu0 %v1214
      %v1347 = vpop.f32.mrb[0].mxu0
      %v1348 = vadd.f32 0.0, %v1347
      %v1349 = vpop.f32.mrb[0].mxu0
      %v1350 = vpop.f32.mrb[0].mxu0
      %v1351 = vadd.f32 0.0, %v1350
      %v1352 = vpop.f32.mrb[0].mxu0
      %1353 = vmatprep.mubr.bf16.mxu0 0
      %1354 = vmatmul.mubr.bf16.gmra.mrb[0].mxu0 %v1215
      %v1355 = vpop.f32.mrb[0].mxu0
      %v1356 = vadd.f32 0.0, %v1355
      %v1357 = vpop.f32.mrb[0].mxu0
      %v1358 = vpop.f32.mrb[0].mxu0
      %v1359 = vadd.f32 0.0, %v1358
      %v1360 = vpop.f32.mrb[0].mxu0
      %1361 = vmatprep.mubr.bf16.mxu0 0
      %1362 = vmatmul.mubr.bf16.gmra.mrb[0].mxu0 %v1216
      %v1363 = vpop.f32.mrb[0].mxu0
      %v1364 = vadd.f32 0.0, %v1363
      %v1365 = vpop.f32.mrb[0].mxu0
      %v1366 = vpop.f32.mrb[0].mxu0
      %v1367 = vadd.f32 0.0, %v1366
      %v1368 = vpop.f32.mrb[0].mxu0
      %1369 = vdwg.mxu0
      %v1386 = vunpack.c.l.b16 %v941
      %v1387 = vunpack.c.l.b16 %v942
      %v1388 = vunpack.c.l.b16 %v943
      %v1389 = vunpack.c.l.b16 %v944
      %v1390 = vunpack.c.l.b16 %v945
      %v1391 = vunpack.c.l.b16 %v946
      %v1392 = vunpack.c.l.b16 %v947
      %v1393 = vunpack.c.l.b16 %v948
      %v1394 = vunpack.c.l.b16 %v949
      %v1395 = vunpack.c.l.b16 %v950
      %v1396 = vunpack.c.l.b16 %v951
      %v1397 = vunpack.c.l.b16 %v952
      %v1398 = vunpack.c.l.b16 %v953
      %v1399 = vunpack.c.l.b16 %v954
      %v1400 = vunpack.c.l.b16 %v955
      %v1401 = vunpack.c.l.b16 %v956
      %v1402 = vpack.c.b16 %v1387, %v1386
      %v1403 = vpack.c.b16 %v1389, %v1388
      %v1404 = vpack.c.b16 %v1391, %v1390
      %v1405 = vpack.c.b16 %v1393, %v1392
      %v1406 = vpack.c.b16 %v1395, %v1394
      %v1407 = vpack.c.b16 %v1397, %v1396
      %v1408 = vpack.c.b16 %v1399, %v1398
      %v1409 = vpack.c.b16 %v1401, %v1400
      %v1434 = vunpack.c.l.b16 %v957
      %v1435 = vunpack.c.l.b16 %v958
      %v1436 = vunpack.c.l.b16 %v959
      %v1437 = vunpack.c.l.b16 %v960
      %v1438 = vunpack.c.l.b16 %v961
      %v1439 = vunpack.c.l.b16 %v962
      %v1440 = vunpack.c.l.b16 %v963
      %v1441 = vunpack.c.l.b16 %v964
      %v1442 = vunpack.c.l.b16 %v965
      %v1443 = vunpack.c.l.b16 %v966
      %v1444 = vunpack.c.l.b16 %v967
      %v1445 = vunpack.c.l.b16 %v968
      %v1446 = vunpack.c.l.b16 %v969
      %v1447 = vunpack.c.l.b16 %v970
      %v1448 = vunpack.c.l.b16 %v971
      %v1449 = vunpack.c.l.b16 %v972
      %v1450 = vpack.c.b16 %v1435, %v1434
      %v1451 = vpack.c.b16 %v1437, %v1436
      %v1452 = vpack.c.b16 %v1439, %v1438
      %v1453 = vpack.c.b16 %v1441, %v1440
      %v1454 = vpack.c.b16 %v1443, %v1442
      %v1455 = vpack.c.b16 %v1445, %v1444
      %v1456 = vpack.c.b16 %v1447, %v1446
      %v1457 = vpack.c.b16 %v1449, %v1448
      %1466 = vmatprep.subr.bf16.mxu0 0
      %1467 = vmatpush1.bf16.msra.mxu0 %v1450
      %1468 = vmatprep.subr.bf16.mxu0 0
      %1469 = vmatpush1.bf16.msra.mxu0 %v1451
      %1470 = vmatprep.subr.bf16.mxu0 0
      %1471 = vmatpush1.bf16.msra.mxu0 %v1452
      %1472 = vmatprep.subr.bf16.mxu0 0
      %1473 = vmatpush1.bf16.msra.mxu0 %v1453
      %1474 = vmatprep.subr.bf16.mxu0 0
      %1475 = vmatpush1.bf16.msra.mxu0 %v1454
      %1476 = vmatprep.subr.bf16.mxu0 0
      %1477 = vmatpush1.bf16.msra.mxu0 %v1455
      %1478 = vmatprep.subr.bf16.mxu0 0
      %1479 = vmatpush1.bf16.msra.mxu0 %v1456
      %1480 = vmatprep.subr.bf16.mxu0 0
      %1481 = vmatpush1.bf16.msra.mxu0 %v1457
      %1482 = vmatprep.subr.bf16.mxu0 0
      %1483 = vmatpush1.bf16.msra.mxu0 0
      %1484 = vmatprep.subr.bf16.mxu0 0
      %1485 = vmatpush1.bf16.msra.mxu0 0
      %1486 = vmatprep.subr.bf16.mxu0 0
      %1487 = vmatpush1.bf16.msra.mxu0 0
      %1488 = vmatprep.subr.bf16.mxu0 0
      %1489 = vmatpush1.bf16.msra.mxu0 0
      %1490 = vmatprep.subr.bf16.mxu0 0
      %1491 = vmatpush1.bf16.msra.mxu0 0
      %1492 = vmatprep.subr.bf16.mxu0 0
      %1493 = vmatpush1.bf16.msra.mxu0 0
      %1494 = vmatprep.subr.bf16.mxu0 0
      %1495 = vmatpush1.bf16.msra.mxu0 0
      %1496 = vmatprep.subr.bf16.mxu0 0
      %1497 = vmatpush1.bf16.msra.mxu0 0
      %1498 = vmatprep.mubr.bf16.mxu0 0
      %1499 = vmatmul.mubr.bf16.gmra.mrb[0].mxu0 %v1402
      %v1500 = vpop.f32.mrb[0].mxu0
      %v1501 = vadd.f32 %v1308, %v1500
      %v1502 = vpop.f32.mrb[0].mxu0
      %v1503 = vpop.f32.mrb[0].mxu0
      %v1504 = vadd.f32 %v1311, %v1503
      %v1505 = vpop.f32.mrb[0].mxu0
      %1506 = vmatprep.mubr.bf16.mxu0 0
      %1507 = vmatmul.mubr.bf16.gmra.mrb[0].mxu0 %v1403
      %v1508 = vpop.f32.mrb[0].mxu0
      %v1509 = vadd.f32 %v1316, %v1508
      %v1510 = vpop.f32.mrb[0].mxu0
      %v1511 = vpop.f32.mrb[0].mxu0
      %v1512 = vadd.f32 %v1319, %v1511
      %v1513 = vpop.f32.mrb[0].mxu0
      %1514 = vmatprep.mubr.bf16.mxu0 0
      %1515 = vmatmul.mubr.bf16.gmra.mrb[0].mxu0 %v1404
      %v1516 = vpop.f32.mrb[0].mxu0
      %v1517 = vadd.f32 %v1324, %v1516
      %v1518 = vpop.f32.mrb[0].mxu0
      %v1519 = vpop.f32.mrb[0].mxu0
      %v1520 = vadd.f32 %v1327, %v1519
      %v1521 = vpop.f32.mrb[0].mxu0
      %1522 = vmatprep.mubr.bf16.mxu0 0
      %1523 = vmatmul.mubr.bf16.gmra.mrb[0].mxu0 %v1405
      %v1524 = vpop.f32.mrb[0].mxu0
      %v1525 = vadd.f32 %v1332, %v1524
      %v1526 = vpop.f32.mrb[0].mxu0
      %v1527 = vpop.f32.mrb[0].mxu0
      %v1528 = vadd.f32 %v1335, %v1527
      %v1529 = vpop.f32.mrb[0].mxu0
      %1530 = vmatprep.mubr.bf16.mxu0 0
      %1531 = vmatmul.mubr.bf16.gmra.mrb[0].mxu0 %v1406
      %v1532 = vpop.f32.mrb[0].mxu0
      %v1533 = vadd.f32 %v1340, %v1532
      %v1534 = vpop.f32.mrb[0].mxu0
      %v1535 = vpop.f32.mrb[0].mxu0
      %v1536 = vadd.f32 %v1343, %v1535
      %v1537 = vpop.f32.mrb[0].mxu0
      %1538 = vmatprep.mubr.bf16.mxu0 0
      %1539 = vmatmul.mubr.bf16.gmra.mrb[0].mxu0 %v1407
      %v1540 = vpop.f32.mrb[0].mxu0
      %v1541 = vadd.f32 %v1348, %v1540
      %v1542 = vpop.f32.mrb[0].mxu0
      %v1543 = vpop.f32.mrb[0].mxu0
      %v1544 = vadd.f32 %v1351, %v1543
      %v1545 = vpop.f32.mrb[0].mxu0
      %1546 = vmatprep.mubr.bf16.mxu0 0
      %1547 = vmatmul.mubr.bf16.gmra.mrb[0].mxu0 %v1408
      %v1548 = vpop.f32.mrb[0].mxu0
      %v1549 = vadd.f32 %v1356, %v1548
      %v1550 = vpop.f32.mrb[0].mxu0
      %v1551 = vpop.f32.mrb[0].mxu0
      %v1552 = vadd.f32 %v1359, %v1551
      %v1553 = vpop.f32.mrb[0].mxu0
      %1554 = vmatprep.mubr.bf16.mxu0 0
      %1555 = vmatmul.mubr.bf16.gmra.mrb[0].mxu0 %v1409
      %v1556 = vpop.f32.mrb[0].mxu0
      %v1557 = vadd.f32 %v1364, %v1556
      %v1558 = vpop.f32.mrb[0].mxu0
      %v1559 = vpop.f32.mrb[0].mxu0
      %v1560 = vadd.f32 %v1367, %v1559
      %v1561 = vpop.f32.mrb[0].mxu0
      %1562 = vdwg.mxu0
      %v1563 = vld [vmem:[#allocation2] sm:$0xe]
      %v1564 = vld [vmem:[#allocation2 + $0xc] sm:$0xe]
      %v1565 = vld [vmem:[#allocation2 + $0x18] sm:$0xe]
      %v1566 = vld [vmem:[#allocation2 + $0x24] sm:$0xe]
      %v1567 = vld [vmem:[#allocation2 + $0x30] sm:$0xe]
      %v1568 = vld [vmem:[#allocation2 + $0x3c] sm:$0xe]
      %v1569 = vld [vmem:[#allocation2 + $0x48] sm:$0xe]
      %v1570 = vld [vmem:[#allocation2 + $0x54] sm:$0xe]
      %vm1587 = vcmask 1042432
      %vm1588 = vcmask 1046532
      %vm1589 = vmor %vm1587, %vm1588
      %v1590 = vrot.slane %v1563, 5
      %v1591 = vrot.slane %v1590, 4
      %v1592 = vrot.slane %v942, 5
      %v1593 = vsel %vm1589, %v1591, %v1592
      %v1594 = vrot.slane %v1592, 4
      %v1595 = vrot.slane %v973, 5
      %v1596 = vsel %vm1589, %v1594, %v1595
      %v1597 = vrot.slane %v1564, 5
      %v1598 = vrot.slane %v1597, 4
      %v1599 = vrot.slane %v944, 5
      %v1600 = vsel %vm1589, %v1598, %v1599
      %v1601 = vrot.slane %v1599, 4
      %v1602 = vrot.slane %v974, 5
      %v1603 = vsel %vm1589, %v1601, %v1602
      %v1604 = vrot.slane %v1565, 5
      %v1605 = vrot.slane %v1604, 4
      %v1606 = vrot.slane %v946, 5
      %v1607 = vsel %vm1589, %v1605, %v1606
      %v1608 = vrot.slane %v1606, 4
      %v1609 = vrot.slane %v975, 5
      %v1610 = vsel %vm1589, %v1608, %v1609
      %v1611 = vrot.slane %v1566, 5
      %v1612 = vrot.slane %v1611, 4
      %v1613 = vrot.slane %v948, 5
      %v1614 = vsel %vm1589, %v1612, %v1613
      %v1615 = vrot.slane %v1613, 4
      %v1616 = vrot.slane %v976, 5
      %v1617 = vsel %vm1589, %v1615, %v1616
      %v1618 = vrot.slane %v1567, 5
      %v1619 = vrot.slane %v1618, 4
      %v1620 = vrot.slane %v950, 5
      %v1621 = vsel %vm1589, %v1619, %v1620
      %v1622 = vrot.slane %v1620, 4
      %v1623 = vrot.slane %v977, 5
      %v1624 = vsel %vm1589, %v1622, %v1623
      %v1625 = vrot.slane %v1568, 5
      %v1626 = vrot.slane %v1625, 4
      %v1627 = vrot.slane %v952, 5
      %v1628 = vsel %vm1589, %v1626, %v1627
      %v1629 = vrot.slane %v1627, 4
      %v1630 = vrot.slane %v978, 5
      %v1631 = vsel %vm1589, %v1629, %v1630
      %v1632 = vrot.slane %v1569, 5
      %v1633 = vrot.slane %v1632, 4
      %v1634 = vrot.slane %v954, 5
      %v1635 = vsel %vm1589, %v1633, %v1634
      %v1636 = vrot.slane %v1634, 4
      %v1637 = vrot.slane %v979, 5
      %v1638 = vsel %vm1589, %v1636, %v1637
      %v1639 = vrot.slane %v1570, 5
      %v1640 = vrot.slane %v1639, 4
      %v1641 = vrot.slane %v956, 5
      %v1642 = vsel %vm1589, %v1640, %v1641
      %v1643 = vrot.slane %v1641, 4
      %v1644 = vrot.slane %v980, 5
      %v1645 = vsel %vm1589, %v1643, %v1644
      %s1646 = scalar_lea.vmem %s5, 128
      %v1647 = vld [vmem:[%s1646] sm:$0xf]
      %v1648 = vld [vmem:[%s1646 + $0x4] sm:$0xf]
      %v1649 = vld [vmem:[%s1646 + $0x8] sm:$0xf]
      %v1650 = vld [vmem:[%s1646 + $0xc] sm:$0xf]
      %v1651 = vld [vmem:[%s1646 + $0x10] sm:$0xf]
      %v1652 = vld [vmem:[%s1646 + $0x14] sm:$0xf]
      %v1653 = vld [vmem:[%s1646 + $0x18] sm:$0xf]
      %v1654 = vld [vmem:[%s1646 + $0x1c] sm:$0xf]
      %v1655 = vld [vmem:[%s1646 + $0x20] sm:$0xf]
      %v1656 = vld [vmem:[%s1646 + $0x24] sm:$0xf]
      %v1657 = vld [vmem:[%s1646 + $0x28] sm:$0xf]
      %v1658 = vld [vmem:[%s1646 + $0x2c] sm:$0xf]
      %v1659 = vld [vmem:[%s1646 + $0x30] sm:$0xf]
      %v1660 = vld [vmem:[%s1646 + $0x34] sm:$0xf]
      %v1661 = vld [vmem:[%s1646 + $0x38] sm:$0xf]
      %v1662 = vld [vmem:[%s1646 + $0x3c] sm:$0xf]
      %v1663 = vunpack.c.l.b16 %v1593
      %v1664 = vunpack.c.l.b16 %v1596
      %v1665 = vunpack.c.l.b16 %v1600
      %v1666 = vunpack.c.l.b16 %v1603
      %v1667 = vunpack.c.l.b16 %v1607
      %v1668 = vunpack.c.l.b16 %v1610
      %v1669 = vunpack.c.l.b16 %v1614
      %v1670 = vunpack.c.l.b16 %v1617
      %v1671 = vunpack.c.l.b16 %v1621
      %v1672 = vunpack.c.l.b16 %v1624
      %v1673 = vunpack.c.l.b16 %v1628
      %v1674 = vunpack.c.l.b16 %v1631
      %v1675 = vunpack.c.l.b16 %v1635
      %v1676 = vunpack.c.l.b16 %v1638
      %v1677 = vunpack.c.l.b16 %v1642
      %v1678 = vunpack.c.l.b16 %v1645
      %v1679 = vpack.c.b16 %v1664, %v1663
      %v1680 = vpack.c.b16 %v1666, %v1665
      %v1681 = vpack.c.b16 %v1668, %v1667
      %v1682 = vpack.c.b16 %v1670, %v1669
      %v1683 = vpack.c.b16 %v1672, %v1671
      %v1684 = vpack.c.b16 %v1674, %v1673
      %v1685 = vpack.c.b16 %v1676, %v1675
      %v1686 = vpack.c.b16 %v1678, %v1677
      %v1711 = vunpack.c.l.b16 %v1647
      %v1712 = vunpack.c.l.b16 %v1648
      %v1713 = vunpack.c.l.b16 %v1649
      %v1714 = vunpack.c.l.b16 %v1650
      %v1715 = vunpack.c.l.b16 %v1651
      %v1716 = vunpack.c.l.b16 %v1652
      %v1717 = vunpack.c.l.b16 %v1653
      %v1718 = vunpack.c.l.b16 %v1654
      %v1719 = vunpack.c.l.b16 %v1655
      %v1720 = vunpack.c.l.b16 %v1656
      %v1721 = vunpack.c.l.b16 %v1657
      %v1722 = vunpack.c.l.b16 %v1658
      %v1723 = vunpack.c.l.b16 %v1659
      %v1724 = vunpack.c.l.b16 %v1660
      %v1725 = vunpack.c.l.b16 %v1661
      %v1726 = vunpack.c.l.b16 %v1662
      %v1727 = vpack.c.b16 %v1712, %v1711
      %v1728 = vpack.c.b16 %v1714, %v1713
      %v1729 = vpack.c.b16 %v1716, %v1715
      %v1730 = vpack.c.b16 %v1718, %v1717
      %v1731 = vpack.c.b16 %v1720, %v1719
      %v1732 = vpack.c.b16 %v1722, %v1721
      %v1733 = vpack.c.b16 %v1724, %v1723
      %v1734 = vpack.c.b16 %v1726, %v1725
      %1743 = vmatprep.subr.bf16.mxu0 0
      %1744 = vmatpush1.bf16.msra.mxu0 %v1727
      %1745 = vmatprep.subr.bf16.mxu0 0
      %1746 = vmatpush1.bf16.msra.mxu0 %v1728
      %1747 = vmatprep.subr.bf16.mxu0 0
      %1748 = vmatpush1.bf16.msra.mxu0 %v1729
      %1749 = vmatprep.subr.bf16.mxu0 0
      %1750 = vmatpush1.bf16.msra.mxu0 %v1730
      %1751 = vmatprep.subr.bf16.mxu0 0
      %1752 = vmatpush1.bf16.msra.mxu0 %v1731
      %1753 = vmatprep.subr.bf16.mxu0 0
      %1754 = vmatpush1.bf16.msra.mxu0 %v1732
      %1755 = vmatprep.subr.bf16.mxu0 0
      %1756 = vmatpush1.bf16.msra.mxu0 %v1733
      %1757 = vmatprep.subr.bf16.mxu0 0
      %1758 = vmatpush1.bf16.msra.mxu0 %v1734
      %1759 = vmatprep.subr.bf16.mxu0 0
      %1760 = vmatpush1.bf16.msra.mxu0 0
      %1761 = vmatprep.subr.bf16.mxu0 0
      %1762 = vmatpush1.bf16.msra.mxu0 0
      %1763 = vmatprep.subr.bf16.mxu0 0
      %1764 = vmatpush1.bf16.msra.mxu0 0
      %1765 = vmatprep.subr.bf16.mxu0 0
      %1766 = vmatpush1.bf16.msra.mxu0 0
      %1767 = vmatprep.subr.bf16.mxu0 0
      %1768 = vmatpush1.bf16.msra.mxu0 0
      %1769 = vmatprep.subr.bf16.mxu0 0
      %1770 = vmatpush1.bf16.msra.mxu0 0
      %1771 = vmatprep.subr.bf16.mxu0 0
      %1772 = vmatpush1.bf16.msra.mxu0 0
      %1773 = vmatprep.subr.bf16.mxu0 0
      %1774 = vmatpush1.bf16.msra.mxu0 0
      %1775 = vmatprep.mubr.bf16.mxu0 0
      %1776 = vmatmul.mubr.bf16.gmra.mrb[0].mxu0 %v1679
      %v1777 = vpop.f32.mrb[0].mxu0
      %v1778 = vadd.f32 0.0, %v1777
      %v1779 = vpop.f32.mrb[0].mxu0
      %v1780 = vpop.f32.mrb[0].mxu0
      %v1781 = vadd.f32 0.0, %v1780
      %v1782 = vpop.f32.mrb[0].mxu0
      %1783 = vmatprep.mubr.bf16.mxu0 0
      %1784 = vmatmul.mubr.bf16.gmra.mrb[0].mxu0 %v1680
      %v1785 = vpop.f32.mrb[0].mxu0
      %v1786 = vadd.f32 0.0, %v1785
      %v1787 = vpop.f32.mrb[0].mxu0
      %v1788 = vpop.f32.mrb[0].mxu0
      %v1789 = vadd.f32 0.0, %v1788
      %v1790 = vpop.f32.mrb[0].mxu0
      %1791 = vmatprep.mubr.bf16.mxu0 0
      %1792 = vmatmul.mubr.bf16.gmra.mrb[0].mxu0 %v1681
      %v1793 = vpop.f32.mrb[0].mxu0
      %v1794 = vadd.f32 0.0, %v1793
      %v1795 = vpop.f32.mrb[0].mxu0
      %v1796 = vpop.f32.mrb[0].mxu0
      %v1797 = vadd.f32 0.0, %v1796
      %v1798 = vpop.f32.mrb[0].mxu0
      %1799 = vmatprep.mubr.bf16.mxu0 0
      %1800 = vmatmul.mubr.bf16.gmra.mrb[0].mxu0 %v1682
      %v1801 = vpop.f32.mrb[0].mxu0
      %v1802 = vadd.f32 0.0, %v1801
      %v1803 = vpop.f32.mrb[0].mxu0
      %v1804 = vpop.f32.mrb[0].mxu0
      %v1805 = vadd.f32 0.0, %v1804
      %v1806 = vpop.f32.mrb[0].mxu0
      %1807 = vmatprep.mubr.bf16.mxu0 0
      %1808 = vmatmul.mubr.bf16.gmra.mrb[0].mxu0 %v1683
      %v1809 = vpop.f32.mrb[0].mxu0
      %v1810 = vadd.f32 0.0, %v1809
      %v1811 = vpop.f32.mrb[0].mxu0
      %v1812 = vpop.f32.mrb[0].mxu0
      %v1813 = vadd.f32 0.0, %v1812
      %v1814 = vpop.f32.mrb[0].mxu0
      %1815 = vmatprep.mubr.bf16.mxu0 0
      %1816 = vmatmul.mubr.bf16.gmra.mrb[0].mxu0 %v1684
      %v1817 = vpop.f32.mrb[0].mxu0
      %v1818 = vadd.f32 0.0, %v1817
      %v1819 = vpop.f32.mrb[0].mxu0
      %v1820 = vpop.f32.mrb[0].mxu0
      %v1821 = vadd.f32 0.0, %v1820
      %v1822 = vpop.f32.mrb[0].mxu0
      %1823 = vmatprep.mubr.bf16.mxu0 0
      %1824 = vmatmul.mubr.bf16.gmra.mrb[0].mxu0 %v1685
      %v1825 = vpop.f32.mrb[0].mxu0
      %v1826 = vadd.f32 0.0, %v1825
      %v1827 = vpop.f32.mrb[0].mxu0
      %v1828 = vpop.f32.mrb[0].mxu0
      %v1829 = vadd.f32 0.0, %v1828
      %v1830 = vpop.f32.mrb[0].mxu0
      %1831 = vmatprep.mubr.bf16.mxu0 0
      %1832 = vmatmul.mubr.bf16.gmra.mrb[0].mxu0 %v1686
      %v1833 = vpop.f32.mrb[0].mxu0
      %v1834 = vadd.f32 0.0, %v1833
      %v1835 = vpop.f32.mrb[0].mxu0
      %v1836 = vpop.f32.mrb[0].mxu0
      %v1837 = vadd.f32 0.0, %v1836
      %v1838 = vpop.f32.mrb[0].mxu0
      %1839 = vdwg.mxu0
      %v1840 = vadd.f32 %v1501, %v1778
      %v1841 = vadd.f32 %v1504, %v1781
      %v1842 = vadd.f32 %v1509, %v1786
      %v1843 = vadd.f32 %v1512, %v1789
      %v1844 = vadd.f32 %v1517, %v1794
      %v1845 = vadd.f32 %v1520, %v1797
      %v1846 = vadd.f32 %v1525, %v1802
      %v1847 = vadd.f32 %v1528, %v1805
      %v1848 = vadd.f32 %v1533, %v1810
      %v1849 = vadd.f32 %v1536, %v1813
      %v1850 = vadd.f32 %v1541, %v1818
      %v1851 = vadd.f32 %v1544, %v1821
      %v1852 = vadd.f32 %v1549, %v1826
      %v1853 = vadd.f32 %v1552, %v1829
      %v1854 = vadd.f32 %v1557, %v1834
      %v1855 = vadd.f32 %v1560, %v1837
      %v1856 = vld [vmem:[%s788] sm:$0xf]
      %v1857 = vld [vmem:[%s788 + $0x4] sm:$0xf]
      %v1858 = vld [vmem:[%s788 + $0xc] sm:$0xf]
      %v1859 = vld [vmem:[%s788 + $0x10] sm:$0xf]
      %v1860 = vld [vmem:[%s788 + $0x18] sm:$0xf]
      %v1861 = vld [vmem:[%s788 + $0x1c] sm:$0xf]
      %v1862 = vld [vmem:[%s788 + $0x24] sm:$0xf]
      %v1863 = vld [vmem:[%s788 + $0x28] sm:$0xf]
      %v1864 = vld [vmem:[%s788 + $0x30] sm:$0xf]
      %v1865 = vld [vmem:[%s788 + $0x34] sm:$0xf]
      %v1866 = vld [vmem:[%s788 + $0x3c] sm:$0xf]
      %v1867 = vld [vmem:[%s788 + $0x40] sm:$0xf]
      %v1868 = vld [vmem:[%s788 + $0x48] sm:$0xf]
      %v1869 = vld [vmem:[%s788 + $0x4c] sm:$0xf]
      %v1870 = vld [vmem:[%s788 + $0x54] sm:$0xf]
      %v1871 = vld [vmem:[%s788 + $0x58] sm:$0xf]
      %s1872 = scalar_lea.vmem %s5, 192
      %v1873 = vld [vmem:[%s1872] sm:$0xf]
      %v1874 = vld [vmem:[%s1872 + $0x4] sm:$0xf]
      %v1875 = vld [vmem:[%s1872 + $0x8] sm:$0xf]
      %v1876 = vld [vmem:[%s1872 + $0xc] sm:$0xf]
      %v1877 = vld [vmem:[%s1872 + $0x10] sm:$0xf]
      %v1878 = vld [vmem:[%s1872 + $0x14] sm:$0xf]
      %v1879 = vld [vmem:[%s1872 + $0x18] sm:$0xf]
      %v1880 = vld [vmem:[%s1872 + $0x1c] sm:$0xf]
      %v1881 = vld [vmem:[%s1872 + $0x20] sm:$0xf]
      %v1882 = vld [vmem:[%s1872 + $0x24] sm:$0xf]
      %v1883 = vld [vmem:[%s1872 + $0x28] sm:$0xf]
      %v1884 = vld [vmem:[%s1872 + $0x2c] sm:$0xf]
      %v1885 = vld [vmem:[%s1872 + $0x30] sm:$0xf]
      %v1886 = vld [vmem:[%s1872 + $0x34] sm:$0xf]
      %v1887 = vld [vmem:[%s1872 + $0x38] sm:$0xf]
      %v1888 = vld [vmem:[%s1872 + $0x3c] sm:$0xf]
      %v1905 = vunpack.c.l.b16 %v1856
      %v1906 = vunpack.c.l.b16 %v1857
      %v1907 = vunpack.c.l.b16 %v1858
      %v1908 = vunpack.c.l.b16 %v1859
      %v1909 = vunpack.c.l.b16 %v1860
      %v1910 = vunpack.c.l.b16 %v1861
      %v1911 = vunpack.c.l.b16 %v1862
      %v1912 = vunpack.c.l.b16 %v1863
      %v1913 = vunpack.c.l.b16 %v1864
      %v1914 = vunpack.c.l.b16 %v1865
      %v1915 = vunpack.c.l.b16 %v1866
      %v1916 = vunpack.c.l.b16 %v1867
      %v1917 = vunpack.c.l.b16 %v1868
      %v1918 = vunpack.c.l.b16 %v1869
      %v1919 = vunpack.c.l.b16 %v1870
      %v1920 = vunpack.c.l.b16 %v1871
      %v1921 = vpack.c.b16 %v1906, %v1905
      %v1922 = vpack.c.b16 %v1908, %v1907
      %v1923 = vpack.c.b16 %v1910, %v1909
      %v1924 = vpack.c.b16 %v1912, %v1911
      %v1925 = vpack.c.b16 %v1914, %v1913
      %v1926 = vpack.c.b16 %v1916, %v1915
      %v1927 = vpack.c.b16 %v1918, %v1917
      %v1928 = vpack.c.b16 %v1920, %v1919
      %v1953 = vunpack.c.l.b16 %v1873
      %v1954 = vunpack.c.l.b16 %v1874
      %v1955 = vunpack.c.l.b16 %v1875
      %v1956 = vunpack.c.l.b16 %v1876
      %v1957 = vunpack.c.l.b16 %v1877
      %v1958 = vunpack.c.l.b16 %v1878
      %v1959 = vunpack.c.l.b16 %v1879
      %v1960 = vunpack.c.l.b16 %v1880
      %v1961 = vunpack.c.l.b16 %v1881
      %v1962 = vunpack.c.l.b16 %v1882
      %v1963 = vunpack.c.l.b16 %v1883
      %v1964 = vunpack.c.l.b16 %v1884
      %v1965 = vunpack.c.l.b16 %v1885
      %v1966 = vunpack.c.l.b16 %v1886
      %v1967 = vunpack.c.l.b16 %v1887
      %v1968 = vunpack.c.l.b16 %v1888
      %v1969 = vpack.c.b16 %v1954, %v1953
      %v1970 = vpack.c.b16 %v1956, %v1955
      %v1971 = vpack.c.b16 %v1958, %v1957
      %v1972 = vpack.c.b16 %v1960, %v1959
      %v1973 = vpack.c.b16 %v1962, %v1961
      %v1974 = vpack.c.b16 %v1964, %v1963
      %v1975 = vpack.c.b16 %v1966, %v1965
      %v1976 = vpack.c.b16 %v1968, %v1967
      %1985 = vmatprep.subr.bf16.mxu0 0
      %1986 = vmatpush1.bf16.msra.mxu0 %v1969
      %1987 = vmatprep.subr.bf16.mxu0 0
      %1988 = vmatpush1.bf16.msra.mxu0 %v1970
      %1989 = vmatprep.subr.bf16.mxu0 0
      %1990 = vmatpush1.bf16.msra.mxu0 %v1971
      %1991 = vmatprep.subr.bf16.mxu0 0
      %1992 = vmatpush1.bf16.msra.mxu0 %v1972
      %1993 = vmatprep.subr.bf16.mxu0 0
      %1994 = vmatpush1.bf16.msra.mxu0 %v1973
      %1995 = vmatprep.subr.bf16.mxu0 0
      %1996 = vmatpush1.bf16.msra.mxu0 %v1974
      %1997 = vmatprep.subr.bf16.mxu0 0
      %1998 = vmatpush1.bf16.msra.mxu0 %v1975
      %1999 = vmatprep.subr.bf16.mxu0 0
      %2000 = vmatpush1.bf16.msra.mxu0 %v1976
      %2001 = vmatprep.subr.bf16.mxu0 0
      %2002 = vmatpush1.bf16.msra.mxu0 0
      %2003 = vmatprep.subr.bf16.mxu0 0
      %2004 = vmatpush1.bf16.msra.mxu0 0
      %2005 = vmatprep.subr.bf16.mxu0 0
      %2006 = vmatpush1.bf16.msra.mxu0 0
      %2007 = vmatprep.subr.bf16.mxu0 0
      %2008 = vmatpush1.bf16.msra.mxu0 0
      %2009 = vmatprep.subr.bf16.mxu0 0
      %2010 = vmatpush1.bf16.msra.mxu0 0
      %2011 = vmatprep.subr.bf16.mxu0 0
      %2012 = vmatpush1.bf16.msra.mxu0 0
      %2013 = vmatprep.subr.bf16.mxu0 0
      %2014 = vmatpush1.bf16.msra.mxu0 0
      %2015 = vmatprep.subr.bf16.mxu0 0
      %2016 = vmatpush1.bf16.msra.mxu0 0
      %2017 = vmatprep.mubr.bf16.mxu0 0
      %2018 = vmatmul.mubr.bf16.gmra.mrb[0].mxu0 %v1921
      %v2019 = vpop.f32.mrb[0].mxu0
      %v2020 = vadd.f32 0.0, %v2019
      %v2021 = vpop.f32.mrb[0].mxu0
      %v2022 = vpop.f32.mrb[0].mxu0
      %v2023 = vadd.f32 0.0, %v2022
      %v2024 = vpop.f32.mrb[0].mxu0
      %2025 = vmatprep.mubr.bf16.mxu0 0
      %2026 = vmatmul.mubr.bf16.gmra.mrb[0].mxu0 %v1922
      %v2027 = vpop.f32.mrb[0].mxu0
      %v2028 = vadd.f32 0.0, %v2027
      %v2029 = vpop.f32.mrb[0].mxu0
      %v2030 = vpop.f32.mrb[0].mxu0
      %v2031 = vadd.f32 0.0, %v2030
      %v2032 = vpop.f32.mrb[0].mxu0
      %2033 = vmatprep.mubr.bf16.mxu0 0
      %2034 = vmatmul.mubr.bf16.gmra.mrb[0].mxu0 %v1923
      %v2035 = vpop.f32.mrb[0].mxu0
      %v2036 = vadd.f32 0.0, %v2035
      %v2037 = vpop.f32.mrb[0].mxu0
      %v2038 = vpop.f32.mrb[0].mxu0
      %v2039 = vadd.f32 0.0, %v2038
      %v2040 = vpop.f32.mrb[0].mxu0
      %2041 = vmatprep.mubr.bf16.mxu0 0
      %2042 = vmatmul.mubr.bf16.gmra.mrb[0].mxu0 %v1924
      %v2043 = vpop.f32.mrb[0].mxu0
      %v2044 = vadd.f32 0.0, %v2043
      %v2045 = vpop.f32.mrb[0].mxu0
      %v2046 = vpop.f32.mrb[0].mxu0
      %v2047 = vadd.f32 0.0, %v2046
      %v2048 = vpop.f32.mrb[0].mxu0
      %2049 = vmatprep.mubr.bf16.mxu0 0
      %2050 = vmatmul.mubr.bf16.gmra.mrb[0].mxu0 %v1925
      %v2051 = vpop.f32.mrb[0].mxu0
      %v2052 = vadd.f32 0.0, %v2051
      %v2053 = vpop.f32.mrb[0].mxu0
      %v2054 = vpop.f32.mrb[0].mxu0
      %v2055 = vadd.f32 0.0, %v2054
      %v2056 = vpop.f32.mrb[0].mxu0
      %2057 = vmatprep.mubr.bf16.mxu0 0
      %2058 = vmatmul.mubr.bf16.gmra.mrb[0].mxu0 %v1926
      %v2059 = vpop.f32.mrb[0].mxu0
      %v2060 = vadd.f32 0.0, %v2059
      %v2061 = vpop.f32.mrb[0].mxu0
      %v2062 = vpop.f32.mrb[0].mxu0
      %v2063 = vadd.f32 0.0, %v2062
      %v2064 = vpop.f32.mrb[0].mxu0
      %2065 = vmatprep.mubr.bf16.mxu0 0
      %2066 = vmatmul.mubr.bf16.gmra.mrb[0].mxu0 %v1927
      %v2067 = vpop.f32.mrb[0].mxu0
      %v2068 = vadd.f32 0.0, %v2067
      %v2069 = vpop.f32.mrb[0].mxu0
      %v2070 = vpop.f32.mrb[0].mxu0
      %v2071 = vadd.f32 0.0, %v2070
      %v2072 = vpop.f32.mrb[0].mxu0
      %2073 = vmatprep.mubr.bf16.mxu0 0
      %2074 = vmatmul.mubr.bf16.gmra.mrb[0].mxu0 %v1928
      %v2075 = vpop.f32.mrb[0].mxu0
      %v2076 = vadd.f32 0.0, %v2075
      %v2077 = vpop.f32.mrb[0].mxu0
      %v2078 = vpop.f32.mrb[0].mxu0
      %v2079 = vadd.f32 0.0, %v2078
      %v2080 = vpop.f32.mrb[0].mxu0
      %2081 = vdwg.mxu0
      %v2082 = vadd.f32 %v1840, %v2020
      %v2083 = vadd.f32 %v1841, %v2023
      %v2084 = vadd.f32 %v1842, %v2028
      %v2085 = vadd.f32 %v1843, %v2031
      %v2086 = vadd.f32 %v1844, %v2036
      %v2087 = vadd.f32 %v1845, %v2039
      %v2088 = vadd.f32 %v1846, %v2044
      %v2089 = vadd.f32 %v1847, %v2047
      %v2090 = vadd.f32 %v1848, %v2052
      %v2091 = vadd.f32 %v1849, %v2055
      %v2092 = vadd.f32 %v1850, %v2060
      %v2093 = vadd.f32 %v1851, %v2063
      %v2094 = vadd.f32 %v1852, %v2068
      %v2095 = vadd.f32 %v1853, %v2071
      %v2096 = vadd.f32 %v1854, %v2076
      %v2097 = vadd.f32 %v1855, %v2079
      %v2098 = vld [vmem:[%s788] sm:$0xf]
      %v2099 = vld [vmem:[%s788 + $0x4] sm:$0xf]
      %v2100 = vld [vmem:[%s788 + $0x8] sm:$0x1]
      %v2101 = vld [vmem:[%s788 + $0xc] sm:$0xf]
      %v2102 = vld [vmem:[%s788 + $0x10] sm:$0xf]
      %v2103 = vld [vmem:[%s788 + $0x14] sm:$0x1]
      %v2104 = vld [vmem:[%s788 + $0x18] sm:$0xf]
      %v2105 = vld [vmem:[%s788 + $0x1c] sm:$0xf]
      %v2106 = vld [vmem:[%s788 + $0x20] sm:$0x1]
      %v2107 = vld [vmem:[%s788 + $0x24] sm:$0xf]
      %v2108 = vld [vmem:[%s788 + $0x28] sm:$0xf]
      %v2109 = vld [vmem:[%s788 + $0x2c] sm:$0x1]
      %v2110 = vld [vmem:[%s788 + $0x30] sm:$0xf]
      %v2111 = vld [vmem:[%s788 + $0x34] sm:$0xf]
      %v2112 = vld [vmem:[%s788 + $0x38] sm:$0x1]
      %v2113 = vld [vmem:[%s788 + $0x3c] sm:$0xf]
      %v2114 = vld [vmem:[%s788 + $0x40] sm:$0xf]
      %v2115 = vld [vmem:[%s788 + $0x44] sm:$0x1]
      %v2116 = vld [vmem:[%s788 + $0x48] sm:$0xf]
      %v2117 = vld [vmem:[%s788 + $0x4c] sm:$0xf]
      %v2118 = vld [vmem:[%s788 + $0x50] sm:$0x1]
      %v2119 = vld [vmem:[%s788 + $0x54] sm:$0xf]
      %v2120 = vld [vmem:[%s788 + $0x58] sm:$0xf]
      %v2121 = vld [vmem:[%s788 + $0x5c] sm:$0x1]
      %v2123 = vshrl.u32 %v2098, 16
      %v2125 = vrot.slane %v2123, 4
      %v2126 = vshll.u32 %v2098, 16
      %v2128 = vrot.slane %v2126, 5
      %v2129 = vor.u32 %v2125, %v2128
      %v2130 = vrot.slane %v2129, 4
      %v2132 = vshll.u32 %v2099, 16
      %v2134 = vrot.slane %v2132, 5
      %v2135 = vsel %vm983, %v2130, %v2134
      %v2136 = vshrl.u32 %v2099, 16
      %v2138 = vrot.slane %v2136, 4
      %v2139 = vor.u32 %v2138, %v2134
      %v2140 = vrot.slane %v2139, 4
      %v2142 = vshll.u32 %v2100, 16
      %v2144 = vrot.slane %v2142, 5
      %v2145 = vsel %vm983, %v2140, %v2144
      %v2147 = vshrl.u32 %v2101, 16
      %v2149 = vrot.slane %v2147, 4
      %v2150 = vshll.u32 %v2101, 16
      %v2152 = vrot.slane %v2150, 5
      %v2153 = vor.u32 %v2149, %v2152
      %v2154 = vrot.slane %v2153, 4
      %v2156 = vshll.u32 %v2102, 16
      %v2158 = vrot.slane %v2156, 5
      %v2159 = vsel %vm983, %v2154, %v2158
      %v2160 = vshrl.u32 %v2102, 16
      %v2162 = vrot.slane %v2160, 4
      %v2163 = vor.u32 %v2162, %v2158
      %v2164 = vrot.slane %v2163, 4
      %v2166 = vshll.u32 %v2103, 16
      %v2168 = vrot.slane %v2166, 5
      %v2169 = vsel %vm983, %v2164, %v2168
      %v2171 = vshrl.u32 %v2104, 16
      %v2173 = vrot.slane %v2171, 4
      %v2174 = vshll.u32 %v2104, 16
      %v2176 = vrot.slane %v2174, 5
      %v2177 = vor.u32 %v2173, %v2176
      %v2178 = vrot.slane %v2177, 4
      %v2180 = vshll.u32 %v2105, 16
      %v2182 = vrot.slane %v2180, 5
      %v2183 = vsel %vm983, %v2178, %v2182
      %v2184 = vshrl.u32 %v2105, 16
      %v2186 = vrot.slane %v2184, 4
      %v2187 = vor.u32 %v2186, %v2182
      %v2188 = vrot.slane %v2187, 4
      %v2190 = vshll.u32 %v2106, 16
      %v2192 = vrot.slane %v2190, 5
      %v2193 = vsel %vm983, %v2188, %v2192
      %v2195 = vshrl.u32 %v2107, 16
      %v2197 = vrot.slane %v2195, 4
      %v2198 = vshll.u32 %v2107, 16
      %v2200 = vrot.slane %v2198, 5
      %v2201 = vor.u32 %v2197, %v2200
      %v2202 = vrot.slane %v2201, 4
      %v2204 = vshll.u32 %v2108, 16
      %v2206 = vrot.slane %v2204, 5
      %v2207 = vsel %vm983, %v2202, %v2206
      %v2208 = vshrl.u32 %v2108, 16
      %v2210 = vrot.slane %v2208, 4
      %v2211 = vor.u32 %v2210, %v2206
      %v2212 = vrot.slane %v2211, 4
      %v2214 = vshll.u32 %v2109, 16
      %v2216 = vrot.slane %v2214, 5
      %v2217 = vsel %vm983, %v2212, %v2216
      %v2219 = vshrl.u32 %v2110, 16
      %v2221 = vrot.slane %v2219, 4
      %v2222 = vshll.u32 %v2110, 16
      %v2224 = vrot.slane %v2222, 5
      %v2225 = vor.u32 %v2221, %v2224
      %v2226 = vrot.slane %v2225, 4
      %v2228 = vshll.u32 %v2111, 16
      %v2230 = vrot.slane %v2228, 5
      %v2231 = vsel %vm983, %v2226, %v2230
      %v2232 = vshrl.u32 %v2111, 16
      %v2234 = vrot.slane %v2232, 4
      %v2235 = vor.u32 %v2234, %v2230
      %v2236 = vrot.slane %v2235, 4
      %v2238 = vshll.u32 %v2112, 16
      %v2240 = vrot.slane %v2238, 5
      %v2241 = vsel %vm983, %v2236, %v2240
      %v2243 = vshrl.u32 %v2113, 16
      %v2245 = vrot.slane %v2243, 4
      %v2246 = vshll.u32 %v2113, 16
      %v2248 = vrot.slane %v2246, 5
      %v2249 = vor.u32 %v2245, %v2248
      %v2250 = vrot.slane %v2249, 4
      %v2252 = vshll.u32 %v2114, 16
      %v2254 = vrot.slane %v2252, 5
      %v2255 = vsel %vm983, %v2250, %v2254
      %v2256 = vshrl.u32 %v2114, 16
      %v2258 = vrot.slane %v2256, 4
      %v2259 = vor.u32 %v2258, %v2254
      %v2260 = vrot.slane %v2259, 4
      %v2262 = vshll.u32 %v2115, 16
      %v2264 = vrot.slane %v2262, 5
      %v2265 = vsel %vm983, %v2260, %v2264
      %v2267 = vshrl.u32 %v2116, 16
      %v2269 = vrot.slane %v2267, 4
      %v2270 = vshll.u32 %v2116, 16
      %v2272 = vrot.slane %v2270, 5
      %v2273 = vor.u32 %v2269, %v2272
      %v2274 = vrot.slane %v2273, 4
      %v2276 = vshll.u32 %v2117, 16
      %v2278 = vrot.slane %v2276, 5
      %v2279 = vsel %vm983, %v2274, %v2278
      %v2280 = vshrl.u32 %v2117, 16
      %v2282 = vrot.slane %v2280, 4
      %v2283 = vor.u32 %v2282, %v2278
      %v2284 = vrot.slane %v2283, 4
      %v2286 = vshll.u32 %v2118, 16
      %v2288 = vrot.slane %v2286, 5
      %v2289 = vsel %vm983, %v2284, %v2288
      %v2291 = vshrl.u32 %v2119, 16
      %v2293 = vrot.slane %v2291, 4
      %v2294 = vshll.u32 %v2119, 16
      %v2296 = vrot.slane %v2294, 5
      %v2297 = vor.u32 %v2293, %v2296
      %v2298 = vrot.slane %v2297, 4
      %v2300 = vshll.u32 %v2120, 16
      %v2302 = vrot.slane %v2300, 5
      %v2303 = vsel %vm983, %v2298, %v2302
      %v2304 = vshrl.u32 %v2120, 16
      %v2306 = vrot.slane %v2304, 4
      %v2307 = vor.u32 %v2306, %v2302
      %v2308 = vrot.slane %v2307, 4
      %v2310 = vshll.u32 %v2121, 16
      %v2312 = vrot.slane %v2310, 5
      %v2313 = vsel %vm983, %v2308, %v2312
      %s2314 = scalar_lea.vmem %s5, 256
      %v2315 = vld [vmem:[%s2314] sm:$0xf]
      %v2316 = vld [vmem:[%s2314 + $0x4] sm:$0xf]
      %v2317 = vld [vmem:[%s2314 + $0x8] sm:$0xf]
      %v2318 = vld [vmem:[%s2314 + $0xc] sm:$0xf]
      %v2319 = vld [vmem:[%s2314 + $0x10] sm:$0xf]
      %v2320 = vld [vmem:[%s2314 + $0x14] sm:$0xf]
      %v2321 = vld [vmem:[%s2314 + $0x18] sm:$0xf]
      %v2322 = vld [vmem:[%s2314 + $0x1c] sm:$0xf]
      %v2323 = vld [vmem:[%s2314 + $0x20] sm:$0xf]
      %v2324 = vld [vmem:[%s2314 + $0x24] sm:$0xf]
      %v2325 = vld [vmem:[%s2314 + $0x28] sm:$0xf]
      %v2326 = vld [vmem:[%s2314 + $0x2c] sm:$0xf]
      %v2327 = vld [vmem:[%s2314 + $0x30] sm:$0xf]
      %v2328 = vld [vmem:[%s2314 + $0x34] sm:$0xf]
      %v2329 = vld [vmem:[%s2314 + $0x38] sm:$0xf]
      %v2330 = vld [vmem:[%s2314 + $0x3c] sm:$0xf]
      %v2331 = vunpack.c.l.b16 %v2135
      %v2332 = vunpack.c.l.b16 %v2145
      %v2333 = vunpack.c.l.b16 %v2159
      %v2334 = vunpack.c.l.b16 %v2169
      %v2335 = vunpack.c.l.b16 %v2183
      %v2336 = vunpack.c.l.b16 %v2193
      %v2337 = vunpack.c.l.b16 %v2207
      %v2338 = vunpack.c.l.b16 %v2217
      %v2339 = vunpack.c.l.b16 %v2231
      %v2340 = vunpack.c.l.b16 %v2241
      %v2341 = vunpack.c.l.b16 %v2255
      %v2342 = vunpack.c.l.b16 %v2265
      %v2343 = vunpack.c.l.b16 %v2279
      %v2344 = vunpack.c.l.b16 %v2289
      %v2345 = vunpack.c.l.b16 %v2303
      %v2346 = vunpack.c.l.b16 %v2313
      %v2347 = vpack.c.b16 %v2332, %v2331
      %v2348 = vpack.c.b16 %v2334, %v2333
      %v2349 = vpack.c.b16 %v2336, %v2335
      %v2350 = vpack.c.b16 %v2338, %v2337
      %v2351 = vpack.c.b16 %v2340, %v2339
      %v2352 = vpack.c.b16 %v2342, %v2341
      %v2353 = vpack.c.b16 %v2344, %v2343
      %v2354 = vpack.c.b16 %v2346, %v2345
      %v2379 = vunpack.c.l.b16 %v2315
      %v2380 = vunpack.c.l.b16 %v2316
      %v2381 = vunpack.c.l.b16 %v2317
      %v2382 = vunpack.c.l.b16 %v2318
      %v2383 = vunpack.c.l.b16 %v2319
      %v2384 = vunpack.c.l.b16 %v2320
      %v2385 = vunpack.c.l.b16 %v2321
      %v2386 = vunpack.c.l.b16 %v2322
      %v2387 = vunpack.c.l.b16 %v2323
      %v2388 = vunpack.c.l.b16 %v2324
      %v2389 = vunpack.c.l.b16 %v2325
      %v2390 = vunpack.c.l.b16 %v2326
      %v2391 = vunpack.c.l.b16 %v2327
      %v2392 = vunpack.c.l.b16 %v2328
      %v2393 = vunpack.c.l.b16 %v2329
      %v2394 = vunpack.c.l.b16 %v2330
      %v2395 = vpack.c.b16 %v2380, %v2379
      %v2396 = vpack.c.b16 %v2382, %v2381
      %v2397 = vpack.c.b16 %v2384, %v2383
      %v2398 = vpack.c.b16 %v2386, %v2385
      %v2399 = vpack.c.b16 %v2388, %v2387
      %v2400 = vpack.c.b16 %v2390, %v2389
      %v2401 = vpack.c.b16 %v2392, %v2391
      %v2402 = vpack.c.b16 %v2394, %v2393
      %2411 = vmatprep.subr.bf16.mxu0 0
      %2412 = vmatpush1.bf16.msra.mxu0 %v2395
      %2413 = vmatprep.subr.bf16.mxu0 0
      %2414 = vmatpush1.bf16.msra.mxu0 %v2396
      %2415 = vmatprep.subr.bf16.mxu0 0
      %2416 = vmatpush1.bf16.msra.mxu0 %v2397
      %2417 = vmatprep.subr.bf16.mxu0 0
      %2418 = vmatpush1.bf16.msra.mxu0 %v2398
      %2419 = vmatprep.subr.bf16.mxu0 0
      %2420 = vmatpush1.bf16.msra.mxu0 %v2399
      %2421 = vmatprep.subr.bf16.mxu0 0
      %2422 = vmatpush1.bf16.msra.mxu0 %v2400
      %2423 = vmatprep.subr.bf16.mxu0 0
      %2424 = vmatpush1.bf16.msra.mxu0 %v2401
      %2425 = vmatprep.subr.bf16.mxu0 0
      %2426 = vmatpush1.bf16.msra.mxu0 %v2402
      %2427 = vmatprep.subr.bf16.mxu0 0
      %2428 = vmatpush1.bf16.msra.mxu0 0
      %2429 = vmatprep.subr.bf16.mxu0 0
      %2430 = vmatpush1.bf16.msra.mxu0 0
      %2431 = vmatprep.subr.bf16.mxu0 0
      %2432 = vmatpush1.bf16.msra.mxu0 0
      %2433 = vmatprep.subr.bf16.mxu0 0
      %2434 = vmatpush1.bf16.msra.mxu0 0
      %2435 = vmatprep.subr.bf16.mxu0 0
      %2436 = vmatpush1.bf16.msra.mxu0 0
      %2437 = vmatprep.subr.bf16.mxu0 0
      %2438 = vmatpush1.bf16.msra.mxu0 0
      %2439 = vmatprep.subr.bf16.mxu0 0
      %2440 = vmatpush1.bf16.msra.mxu0 0
      %2441 = vmatprep.subr.bf16.mxu0 0
      %2442 = vmatpush1.bf16.msra.mxu0 0
      %2443 = vmatprep.mubr.bf16.mxu0 0
      %2444 = vmatmul.mubr.bf16.gmra.mrb[0].mxu0 %v2347
      %v2445 = vpop.f32.mrb[0].mxu0
      %v2446 = vadd.f32 0.0, %v2445
      %v2447 = vpop.f32.mrb[0].mxu0
      %v2448 = vpop.f32.mrb[0].mxu0
      %v2449 = vadd.f32 0.0, %v2448
      %v2450 = vpop.f32.mrb[0].mxu0
      %2451 = vmatprep.mubr.bf16.mxu0 0
      %2452 = vmatmul.mubr.bf16.gmra.mrb[0].mxu0 %v2348
      %v2453 = vpop.f32.mrb[0].mxu0
      %v2454 = vadd.f32 0.0, %v2453
      %v2455 = vpop.f32.mrb[0].mxu0
      %v2456 = vpop.f32.mrb[0].mxu0
      %v2457 = vadd.f32 0.0, %v2456
      %v2458 = vpop.f32.mrb[0].mxu0
      %2459 = vmatprep.mubr.bf16.mxu0 0
      %2460 = vmatmul.mubr.bf16.gmra.mrb[0].mxu0 %v2349
      %v2461 = vpop.f32.mrb[0].mxu0
      %v2462 = vadd.f32 0.0, %v2461
      %v2463 = vpop.f32.mrb[0].mxu0
      %v2464 = vpop.f32.mrb[0].mxu0
      %v2465 = vadd.f32 0.0, %v2464
      %v2466 = vpop.f32.mrb[0].mxu0
      %2467 = vmatprep.mubr.bf16.mxu0 0
      %2468 = vmatmul.mubr.bf16.gmra.mrb[0].mxu0 %v2350
      %v2469 = vpop.f32.mrb[0].mxu0
      %v2470 = vadd.f32 0.0, %v2469
      %v2471 = vpop.f32.mrb[0].mxu0
      %v2472 = vpop.f32.mrb[0].mxu0
      %v2473 = vadd.f32 0.0, %v2472
      %v2474 = vpop.f32.mrb[0].mxu0
      %2475 = vmatprep.mubr.bf16.mxu0 0
      %2476 = vmatmul.mubr.bf16.gmra.mrb[0].mxu0 %v2351
      %v2477 = vpop.f32.mrb[0].mxu0
      %v2478 = vadd.f32 0.0, %v2477
      %v2479 = vpop.f32.mrb[0].mxu0
      %v2480 = vpop.f32.mrb[0].mxu0
      %v2481 = vadd.f32 0.0, %v2480
      %v2482 = vpop.f32.mrb[0].mxu0
      %2483 = vmatprep.mubr.bf16.mxu0 0
      %2484 = vmatmul.mubr.bf16.gmra.mrb[0].mxu0 %v2352
      %v2485 = vpop.f32.mrb[0].mxu0
      %v2486 = vadd.f32 0.0, %v2485
      %v2487 = vpop.f32.mrb[0].mxu0
      %v2488 = vpop.f32.mrb[0].mxu0
      %v2489 = vadd.f32 0.0, %v2488
      %v2490 = vpop.f32.mrb[0].mxu0
      %2491 = vmatprep.mubr.bf16.mxu0 0
      %2492 = vmatmul.mubr.bf16.gmra.mrb[0].mxu0 %v2353
      %v2493 = vpop.f32.mrb[0].mxu0
      %v2494 = vadd.f32 0.0, %v2493
      %v2495 = vpop.f32.mrb[0].mxu0
      %v2496 = vpop.f32.mrb[0].mxu0
      %v2497 = vadd.f32 0.0, %v2496
      %v2498 = vpop.f32.mrb[0].mxu0
      %2499 = vmatprep.mubr.bf16.mxu0 0
      %2500 = vmatmul.mubr.bf16.gmra.mrb[0].mxu0 %v2354
      %v2501 = vpop.f32.mrb[0].mxu0
      %v2502 = vadd.f32 0.0, %v2501
      %v2503 = vpop.f32.mrb[0].mxu0
      %v2504 = vpop.f32.mrb[0].mxu0
      %v2505 = vadd.f32 0.0, %v2504
      %v2506 = vpop.f32.mrb[0].mxu0
      %2507 = vdwg.mxu0
      %v2508 = vadd.f32 %v2082, %v2446
      %v2509 = vadd.f32 %v2083, %v2449
      %v2510 = vadd.f32 %v2084, %v2454
      %v2511 = vadd.f32 %v2085, %v2457
      %v2512 = vadd.f32 %v2086, %v2462
      %v2513 = vadd.f32 %v2087, %v2465
      %v2514 = vadd.f32 %v2088, %v2470
      %v2515 = vadd.f32 %v2089, %v2473
      %v2516 = vadd.f32 %v2090, %v2478
      %v2517 = vadd.f32 %v2091, %v2481
      %v2518 = vadd.f32 %v2092, %v2486
      %v2519 = vadd.f32 %v2093, %v2489
      %v2520 = vadd.f32 %v2094, %v2494
      %v2521 = vadd.f32 %v2095, %v2497
      %v2522 = vadd.f32 %v2096, %v2502
      %v2523 = vadd.f32 %v2097, %v2505
      %v2524 = vld [vmem:[%s788] sm:$0xe]
      %v2525 = vld [vmem:[%s788 + $0xc] sm:$0xe]
      %v2526 = vld [vmem:[%s788 + $0x18] sm:$0xe]
      %v2527 = vld [vmem:[%s788 + $0x24] sm:$0xe]
      %v2528 = vld [vmem:[%s788 + $0x30] sm:$0xe]
      %v2529 = vld [vmem:[%s788 + $0x3c] sm:$0xe]
      %v2530 = vld [vmem:[%s788 + $0x48] sm:$0xe]
      %v2531 = vld [vmem:[%s788 + $0x54] sm:$0xe]
      %v2556 = vrot.slane %v2524, 5
      %v2557 = vrot.slane %v2556, 4
      %v2558 = vrot.slane %v2099, 5
      %v2559 = vsel %vm1589, %v2557, %v2558
      %v2560 = vrot.slane %v2558, 4
      %v2561 = vrot.slane %v2100, 5
      %v2562 = vsel %vm1589, %v2560, %v2561
      %v2563 = vrot.slane %v2525, 5
      %v2564 = vrot.slane %v2563, 4
      %v2565 = vrot.slane %v2102, 5
      %v2566 = vsel %vm1589, %v2564, %v2565
      %v2567 = vrot.slane %v2565, 4
      %v2568 = vrot.slane %v2103, 5
      %v2569 = vsel %vm1589, %v2567, %v2568
      %v2570 = vrot.slane %v2526, 5
      %v2571 = vrot.slane %v2570, 4
      %v2572 = vrot.slane %v2105, 5
      %v2573 = vsel %vm1589, %v2571, %v2572
      %v2574 = vrot.slane %v2572, 4
      %v2575 = vrot.slane %v2106, 5
      %v2576 = vsel %vm1589, %v2574, %v2575
      %v2577 = vrot.slane %v2527, 5
      %v2578 = vrot.slane %v2577, 4
      %v2579 = vrot.slane %v2108, 5
      %v2580 = vsel %vm1589, %v2578, %v2579
      %v2581 = vrot.slane %v2579, 4
      %v2582 = vrot.slane %v2109, 5
      %v2583 = vsel %vm1589, %v2581, %v2582
      %v2584 = vrot.slane %v2528, 5
      %v2585 = vrot.slane %v2584, 4
      %v2586 = vrot.slane %v2111, 5
      %v2587 = vsel %vm1589, %v2585, %v2586
      %v2588 = vrot.slane %v2586, 4
      %v2589 = vrot.slane %v2112, 5
      %v2590 = vsel %vm1589, %v2588, %v2589
      %v2591 = vrot.slane %v2529, 5
      %v2592 = vrot.slane %v2591, 4
      %v2593 = vrot.slane %v2114, 5
      %v2594 = vsel %vm1589, %v2592, %v2593
      %v2595 = vrot.slane %v2593, 4
      %v2596 = vrot.slane %v2115, 5
      %v2597 = vsel %vm1589, %v2595, %v2596
      %v2598 = vrot.slane %v2530, 5
      %v2599 = vrot.slane %v2598, 4
      %v2600 = vrot.slane %v2117, 5
      %v2601 = vsel %vm1589, %v2599, %v2600
      %v2602 = vrot.slane %v2600, 4
      %v2603 = vrot.slane %v2118, 5
      %v2604 = vsel %vm1589, %v2602, %v2603
      %v2605 = vrot.slane %v2531, 5
      %v2606 = vrot.slane %v2605, 4
      %v2607 = vrot.slane %v2120, 5
      %v2608 = vsel %vm1589, %v2606, %v2607
      %v2609 = vrot.slane %v2607, 4
      %v2610 = vrot.slane %v2121, 5
      %v2611 = vsel %vm1589, %v2609, %v2610
      %s2612 = scalar_lea.vmem %s5, 320
      %v2613 = vld [vmem:[%s2612] sm:$0xf]
      %v2614 = vld [vmem:[%s2612 + $0x4] sm:$0xf]
      %v2615 = vld [vmem:[%s2612 + $0x8] sm:$0xf]
      %v2616 = vld [vmem:[%s2612 + $0xc] sm:$0xf]
      %v2617 = vld [vmem:[%s2612 + $0x10] sm:$0xf]
      %v2618 = vld [vmem:[%s2612 + $0x14] sm:$0xf]
      %v2619 = vld [vmem:[%s2612 + $0x18] sm:$0xf]
      %v2620 = vld [vmem:[%s2612 + $0x1c] sm:$0xf]
      %v2621 = vld [vmem:[%s2612 + $0x20] sm:$0xf]
      %v2622 = vld [vmem:[%s2612 + $0x24] sm:$0xf]
      %v2623 = vld [vmem:[%s2612 + $0x28] sm:$0xf]
      %v2624 = vld [vmem:[%s2612 + $0x2c] sm:$0xf]
      %v2625 = vld [vmem:[%s2612 + $0x30] sm:$0xf]
      %v2626 = vld [vmem:[%s2612 + $0x34] sm:$0xf]
      %v2627 = vld [vmem:[%s2612 + $0x38] sm:$0xf]
      %v2628 = vld [vmem:[%s2612 + $0x3c] sm:$0xf]
      %v2629 = vunpack.c.l.b16 %v2559
      %v2630 = vunpack.c.l.b16 %v2562
      %v2631 = vunpack.c.l.b16 %v2566
      %v2632 = vunpack.c.l.b16 %v2569
      %v2633 = vunpack.c.l.b16 %v2573
      %v2634 = vunpack.c.l.b16 %v2576
      %v2635 = vunpack.c.l.b16 %v2580
      %v2636 = vunpack.c.l.b16 %v2583
      %v2637 = vunpack.c.l.b16 %v2587
      %v2638 = vunpack.c.l.b16 %v2590
      %v2639 = vunpack.c.l.b16 %v2594
      %v2640 = vunpack.c.l.b16 %v2597
      %v2641 = vunpack.c.l.b16 %v2601
      %v2642 = vunpack.c.l.b16 %v2604
      %v2643 = vunpack.c.l.b16 %v2608
      %v2644 = vunpack.c.l.b16 %v2611
      %v2645 = vpack.c.b16 %v2630, %v2629
      %v2646 = vpack.c.b16 %v2632, %v2631
      %v2647 = vpack.c.b16 %v2634, %v2633
      %v2648 = vpack.c.b16 %v2636, %v2635
      %v2649 = vpack.c.b16 %v2638, %v2637
      %v2650 = vpack.c.b16 %v2640, %v2639
      %v2651 = vpack.c.b16 %v2642, %v2641
      %v2652 = vpack.c.b16 %v2644, %v2643
      %v2677 = vunpack.c.l.b16 %v2613
      %v2678 = vunpack.c.l.b16 %v2614
      %v2679 = vunpack.c.l.b16 %v2615
      %v2680 = vunpack.c.l.b16 %v2616
      %v2681 = vunpack.c.l.b16 %v2617
      %v2682 = vunpack.c.l.b16 %v2618
      %v2683 = vunpack.c.l.b16 %v2619
      %v2684 = vunpack.c.l.b16 %v2620
      %v2685 = vunpack.c.l.b16 %v2621
      %v2686 = vunpack.c.l.b16 %v2622
      %v2687 = vunpack.c.l.b16 %v2623
      %v2688 = vunpack.c.l.b16 %v2624
      %v2689 = vunpack.c.l.b16 %v2625
      %v2690 = vunpack.c.l.b16 %v2626
      %v2691 = vunpack.c.l.b16 %v2627
      %v2692 = vunpack.c.l.b16 %v2628
      %v2693 = vpack.c.b16 %v2678, %v2677
      %v2694 = vpack.c.b16 %v2680, %v2679
      %v2695 = vpack.c.b16 %v2682, %v2681
      %v2696 = vpack.c.b16 %v2684, %v2683
      %v2697 = vpack.c.b16 %v2686, %v2685
      %v2698 = vpack.c.b16 %v2688, %v2687
      %v2699 = vpack.c.b16 %v2690, %v2689
      %v2700 = vpack.c.b16 %v2692, %v2691
      %2709 = vmatprep.subr.bf16.mxu0 0
      %2710 = vmatpush1.bf16.msra.mxu0 %v2693
      %2711 = vmatprep.subr.bf16.mxu0 0
      %2712 = vmatpush1.bf16.msra.mxu0 %v2694
      %2713 = vmatprep.subr.bf16.mxu0 0
      %2714 = vmatpush1.bf16.msra.mxu0 %v2695
      %2715 = vmatprep.subr.bf16.mxu0 0
      %2716 = vmatpush1.bf16.msra.mxu0 %v2696
      %2717 = vmatprep.subr.bf16.mxu0 0
      %2718 = vmatpush1.bf16.msra.mxu0 %v2697
      %2719 = vmatprep.subr.bf16.mxu0 0
      %2720 = vmatpush1.bf16.msra.mxu0 %v2698
      %2721 = vmatprep.subr.bf16.mxu0 0
      %2722 = vmatpush1.bf16.msra.mxu0 %v2699
      %2723 = vmatprep.subr.bf16.mxu0 0
      %2724 = vmatpush1.bf16.msra.mxu0 %v2700
      %2725 = vmatprep.subr.bf16.mxu0 0
      %2726 = vmatpush1.bf16.msra.mxu0 0
      %2727 = vmatprep.subr.bf16.mxu0 0
      %2728 = vmatpush1.bf16.msra.mxu0 0
      %2729 = vmatprep.subr.bf16.mxu0 0
      %2730 = vmatpush1.bf16.msra.mxu0 0
      %2731 = vmatprep.subr.bf16.mxu0 0
      %2732 = vmatpush1.bf16.msra.mxu0 0
      %2733 = vmatprep.subr.bf16.mxu0 0
      %2734 = vmatpush1.bf16.msra.mxu0 0
      %2735 = vmatprep.subr.bf16.mxu0 0
      %2736 = vmatpush1.bf16.msra.mxu0 0
      %2737 = vmatprep.subr.bf16.mxu0 0
      %2738 = vmatpush1.bf16.msra.mxu0 0
      %2739 = vmatprep.subr.bf16.mxu0 0
      %2740 = vmatpush1.bf16.msra.mxu0 0
      %2741 = vmatprep.mubr.bf16.mxu0 0
      %2742 = vmatmul.mubr.bf16.gmra.mrb[0].mxu0 %v2645
      %v2743 = vpop.f32.mrb[0].mxu0
      %v2744 = vadd.f32 0.0, %v2743
      %v2745 = vpop.f32.mrb[0].mxu0
      %v2746 = vpop.f32.mrb[0].mxu0
      %v2747 = vadd.f32 0.0, %v2746
      %v2748 = vpop.f32.mrb[0].mxu0
      %2749 = vmatprep.mubr.bf16.mxu0 0
      %2750 = vmatmul.mubr.bf16.gmra.mrb[0].mxu0 %v2646
      %v2751 = vpop.f32.mrb[0].mxu0
      %v2752 = vadd.f32 0.0, %v2751
      %v2753 = vpop.f32.mrb[0].mxu0
      %v2754 = vpop.f32.mrb[0].mxu0
      %v2755 = vadd.f32 0.0, %v2754
      %v2756 = vpop.f32.mrb[0].mxu0
      %2757 = vmatprep.mubr.bf16.mxu0 0
      %2758 = vmatmul.mubr.bf16.gmra.mrb[0].mxu0 %v2647
      %v2759 = vpop.f32.mrb[0].mxu0
      %v2760 = vadd.f32 0.0, %v2759
      %v2761 = vpop.f32.mrb[0].mxu0
      %v2762 = vpop.f32.mrb[0].mxu0
      %v2763 = vadd.f32 0.0, %v2762
      %v2764 = vpop.f32.mrb[0].mxu0
      %2765 = vmatprep.mubr.bf16.mxu0 0
      %2766 = vmatmul.mubr.bf16.gmra.mrb[0].mxu0 %v2648
      %v2767 = vpop.f32.mrb[0].mxu0
      %v2768 = vadd.f32 0.0, %v2767
      %v2769 = vpop.f32.mrb[0].mxu0
      %v2770 = vpop.f32.mrb[0].mxu0
      %v2771 = vadd.f32 0.0, %v2770
      %v2772 = vpop.f32.mrb[0].mxu0
      %2773 = vmatprep.mubr.bf16.mxu0 0
      %2774 = vmatmul.mubr.bf16.gmra.mrb[0].mxu0 %v2649
      %v2775 = vpop.f32.mrb[0].mxu0
      %v2776 = vadd.f32 0.0, %v2775
      %v2777 = vpop.f32.mrb[0].mxu0
      %v2778 = vpop.f32.mrb[0].mxu0
      %v2779 = vadd.f32 0.0, %v2778
      %v2780 = vpop.f32.mrb[0].mxu0
      %2781 = vmatprep.mubr.bf16.mxu0 0
      %2782 = vmatmul.mubr.bf16.gmra.mrb[0].mxu0 %v2650
      %v2783 = vpop.f32.mrb[0].mxu0
      %v2784 = vadd.f32 0.0, %v2783
      %v2785 = vpop.f32.mrb[0].mxu0
      %v2786 = vpop.f32.mrb[0].mxu0
      %v2787 = vadd.f32 0.0, %v2786
      %v2788 = vpop.f32.mrb[0].mxu0
      %2789 = vmatprep.mubr.bf16.mxu0 0
      %2790 = vmatmul.mubr.bf16.gmra.mrb[0].mxu0 %v2651
      %v2791 = vpop.f32.mrb[0].mxu0
      %v2792 = vadd.f32 0.0, %v2791
      %v2793 = vpop.f32.mrb[0].mxu0
      %v2794 = vpop.f32.mrb[0].mxu0
      %v2795 = vadd.f32 0.0, %v2794
      %v2796 = vpop.f32.mrb[0].mxu0
      %2797 = vmatprep.mubr.bf16.mxu0 0
      %2798 = vmatmul.mubr.bf16.gmra.mrb[0].mxu0 %v2652
      %v2799 = vpop.f32.mrb[0].mxu0
      %v2800 = vadd.f32 0.0, %v2799
      %v2801 = vpop.f32.mrb[0].mxu0
      %v2802 = vpop.f32.mrb[0].mxu0
      %v2803 = vadd.f32 0.0, %v2802
      %v2804 = vpop.f32.mrb[0].mxu0
      %2805 = vdwg.mxu0
      %v2806 = vadd.f32 %v2508, %v2744
      %v2807 = vadd.f32 %v2509, %v2747
      %v2808 = vadd.f32 %v2510, %v2752
      %v2809 = vadd.f32 %v2511, %v2755
      %v2810 = vadd.f32 %v2512, %v2760
      %v2811 = vadd.f32 %v2513, %v2763
      %v2812 = vadd.f32 %v2514, %v2768
      %v2813 = vadd.f32 %v2515, %v2771
      %v2814 = vadd.f32 %v2516, %v2776
      %v2815 = vadd.f32 %v2517, %v2779
      %v2816 = vadd.f32 %v2518, %v2784
      %v2817 = vadd.f32 %v2519, %v2787
      %v2818 = vadd.f32 %v2520, %v2792
      %v2819 = vadd.f32 %v2521, %v2795
      %v2820 = vadd.f32 %v2522, %v2800
      %v2821 = vadd.f32 %v2523, %v2803
      %s2822 = scalar_lea.vmem [#allocation2], 24
      %v2823 = vld [vmem:[%s2822] sm:$0xf]
      %v2824 = vld [vmem:[%s2822 + $0x4] sm:$0xf]
      %v2825 = vld [vmem:[%s2822 + $0xc] sm:$0xf]
      %v2826 = vld [vmem:[%s2822 + $0x10] sm:$0xf]
      %v2827 = vld [vmem:[%s2822 + $0x18] sm:$0xf]
      %v2828 = vld [vmem:[%s2822 + $0x1c] sm:$0xf]
      %v2829 = vld [vmem:[%s2822 + $0x24] sm:$0xf]
      %v2830 = vld [vmem:[%s2822 + $0x28] sm:$0xf]
      %v2831 = vld [vmem:[%s2822 + $0x30] sm:$0xf]
      %v2832 = vld [vmem:[%s2822 + $0x34] sm:$0xf]
      %v2833 = vld [vmem:[%s2822 + $0x3c] sm:$0xf]
      %v2834 = vld [vmem:[%s2822 + $0x40] sm:$0xf]
      %v2835 = vld [vmem:[%s2822 + $0x48] sm:$0xf]
      %v2836 = vld [vmem:[%s2822 + $0x4c] sm:$0xf]
      %v2837 = vld [vmem:[%s2822 + $0x54] sm:$0xf]
      %v2838 = vld [vmem:[%s2822 + $0x58] sm:$0xf]
      %s2839 = scalar_lea.vmem %s5, 384
      %v2840 = vld [vmem:[%s2839] sm:$0xf]
      %v2841 = vld [vmem:[%s2839 + $0x4] sm:$0xf]
      %v2842 = vld [vmem:[%s2839 + $0x8] sm:$0xf]
      %v2843 = vld [vmem:[%s2839 + $0xc] sm:$0xf]
      %v2844 = vld [vmem:[%s2839 + $0x10] sm:$0xf]
      %v2845 = vld [vmem:[%s2839 + $0x14] sm:$0xf]
      %v2846 = vld [vmem:[%s2839 + $0x18] sm:$0xf]
      %v2847 = vld [vmem:[%s2839 + $0x1c] sm:$0xf]
      %v2848 = vld [vmem:[%s2839 + $0x20] sm:$0xf]
      %v2849 = vld [vmem:[%s2839 + $0x24] sm:$0xf]
      %v2850 = vld [vmem:[%s2839 + $0x28] sm:$0xf]
      %v2851 = vld [vmem:[%s2839 + $0x2c] sm:$0xf]
      %v2852 = vld [vmem:[%s2839 + $0x30] sm:$0xf]
      %v2853 = vld [vmem:[%s2839 + $0x34] sm:$0xf]
      %v2854 = vld [vmem:[%s2839 + $0x38] sm:$0xf]
      %v2855 = vld [vmem:[%s2839 + $0x3c] sm:$0xf]
      %v2872 = vunpack.c.l.b16 %v2823
      %v2873 = vunpack.c.l.b16 %v2824
      %v2874 = vunpack.c.l.b16 %v2825
      %v2875 = vunpack.c.l.b16 %v2826
      %v2876 = vunpack.c.l.b16 %v2827
      %v2877 = vunpack.c.l.b16 %v2828
      %v2878 = vunpack.c.l.b16 %v2829
      %v2879 = vunpack.c.l.b16 %v2830
      %v2880 = vunpack.c.l.b16 %v2831
      %v2881 = vunpack.c.l.b16 %v2832
      %v2882 = vunpack.c.l.b16 %v2833
      %v2883 = vunpack.c.l.b16 %v2834
      %v2884 = vunpack.c.l.b16 %v2835
      %v2885 = vunpack.c.l.b16 %v2836
      %v2886 = vunpack.c.l.b16 %v2837
      %v2887 = vunpack.c.l.b16 %v2838
      %v2888 = vpack.c.b16 %v2873, %v2872
      %v2889 = vpack.c.b16 %v2875, %v2874
      %v2890 = vpack.c.b16 %v2877, %v2876
      %v2891 = vpack.c.b16 %v2879, %v2878
      %v2892 = vpack.c.b16 %v2881, %v2880
      %v2893 = vpack.c.b16 %v2883, %v2882
      %v2894 = vpack.c.b16 %v2885, %v2884
      %v2895 = vpack.c.b16 %v2887, %v2886
      %v2920 = vunpack.c.l.b16 %v2840
      %v2921 = vunpack.c.l.b16 %v2841
      %v2922 = vunpack.c.l.b16 %v2842
      %v2923 = vunpack.c.l.b16 %v2843
      %v2924 = vunpack.c.l.b16 %v2844
      %v2925 = vunpack.c.l.b16 %v2845
      %v2926 = vunpack.c.l.b16 %v2846
      %v2927 = vunpack.c.l.b16 %v2847
      %v2928 = vunpack.c.l.b16 %v2848
      %v2929 = vunpack.c.l.b16 %v2849
      %v2930 = vunpack.c.l.b16 %v2850
      %v2931 = vunpack.c.l.b16 %v2851
      %v2932 = vunpack.c.l.b16 %v2852
      %v2933 = vunpack.c.l.b16 %v2853
      %v2934 = vunpack.c.l.b16 %v2854
      %v2935 = vunpack.c.l.b16 %v2855
      %v2936 = vpack.c.b16 %v2921, %v2920
      %v2937 = vpack.c.b16 %v2923, %v2922
      %v2938 = vpack.c.b16 %v2925, %v2924
      %v2939 = vpack.c.b16 %v2927, %v2926
      %v2940 = vpack.c.b16 %v2929, %v2928
      %v2941 = vpack.c.b16 %v2931, %v2930
      %v2942 = vpack.c.b16 %v2933, %v2932
      %v2943 = vpack.c.b16 %v2935, %v2934
      %2952 = vmatprep.subr.bf16.mxu0 0
      %2953 = vmatpush1.bf16.msra.mxu0 %v2936
      %2954 = vmatprep.subr.bf16.mxu0 0
      %2955 = vmatpush1.bf16.msra.mxu0 %v2937
      %2956 = vmatprep.subr.bf16.mxu0 0
      %2957 = vmatpush1.bf16.msra.mxu0 %v2938
      %2958 = vmatprep.subr.bf16.mxu0 0
      %2959 = vmatpush1.bf16.msra.mxu0 %v2939
      %2960 = vmatprep.subr.bf16.mxu0 0
      %2961 = vmatpush1.bf16.msra.mxu0 %v2940
      %2962 = vmatprep.subr.bf16.mxu0 0
      %2963 = vmatpush1.bf16.msra.mxu0 %v2941
      %2964 = vmatprep.subr.bf16.mxu0 0
      %2965 = vmatpush1.bf16.msra.mxu0 %v2942
      %2966 = vmatprep.subr.bf16.mxu0 0
      %2967 = vmatpush1.bf16.msra.mxu0 %v2943
      %2968 = vmatprep.subr.bf16.mxu0 0
      %2969 = vmatpush1.bf16.msra.mxu0 0
      %2970 = vmatprep.subr.bf16.mxu0 0
      %2971 = vmatpush1.bf16.msra.mxu0 0
      %2972 = vmatprep.subr.bf16.mxu0 0
      %2973 = vmatpush1.bf16.msra.mxu0 0
      %2974 = vmatprep.subr.bf16.mxu0 0
      %2975 = vmatpush1.bf16.msra.mxu0 0
      %2976 = vmatprep.subr.bf16.mxu0 0
      %2977 = vmatpush1.bf16.msra.mxu0 0
      %2978 = vmatprep.subr.bf16.mxu0 0
      %2979 = vmatpush1.bf16.msra.mxu0 0
      %2980 = vmatprep.subr.bf16.mxu0 0
      %2981 = vmatpush1.bf16.msra.mxu0 0
      %2982 = vmatprep.subr.bf16.mxu0 0
      %2983 = vmatpush1.bf16.msra.mxu0 0
      %2984 = vmatprep.mubr.bf16.mxu0 0
      %2985 = vmatmul.mubr.bf16.gmra.mrb[0].mxu0 %v2888
      %v2986 = vpop.f32.mrb[0].mxu0
      %v2987 = vadd.f32 0.0, %v2986
      %v2988 = vpop.f32.mrb[0].mxu0
      %v2989 = vpop.f32.mrb[0].mxu0
      %v2990 = vadd.f32 0.0, %v2989
      %v2991 = vpop.f32.mrb[0].mxu0
      %2992 = vmatprep.mubr.bf16.mxu0 0
      %2993 = vmatmul.mubr.bf16.gmra.mrb[0].mxu0 %v2889
      %v2994 = vpop.f32.mrb[0].mxu0
      %v2995 = vadd.f32 0.0, %v2994
      %v2996 = vpop.f32.mrb[0].mxu0
      %v2997 = vpop.f32.mrb[0].mxu0
      %v2998 = vadd.f32 0.0, %v2997
      %v2999 = vpop.f32.mrb[0].mxu0
      %3000 = vmatprep.mubr.bf16.mxu0 0
      %3001 = vmatmul.mubr.bf16.gmra.mrb[0].mxu0 %v2890
      %v3002 = vpop.f32.mrb[0].mxu0
      %v3003 = vadd.f32 0.0, %v3002
      %v3004 = vpop.f32.mrb[0].mxu0
      %v3005 = vpop.f32.mrb[0].mxu0
      %v3006 = vadd.f32 0.0, %v3005
      %v3007 = vpop.f32.mrb[0].mxu0
      %3008 = vmatprep.mubr.bf16.mxu0 0
      %3009 = vmatmul.mubr.bf16.gmra.mrb[0].mxu0 %v2891
      %v3010 = vpop.f32.mrb[0].mxu0
      %v3011 = vadd.f32 0.0, %v3010
      %v3012 = vpop.f32.mrb[0].mxu0
      %v3013 = vpop.f32.mrb[0].mxu0
      %v3014 = vadd.f32 0.0, %v3013
      %v3015 = vpop.f32.mrb[0].mxu0
      %3016 = vmatprep.mubr.bf16.mxu0 0
      %3017 = vmatmul.mubr.bf16.gmra.mrb[0].mxu0 %v2892
      %v3018 = vpop.f32.mrb[0].mxu0
      %v3019 = vadd.f32 0.0, %v3018
      %v3020 = vpop.f32.mrb[0].mxu0
      %v3021 = vpop.f32.mrb[0].mxu0
      %v3022 = vadd.f32 0.0, %v3021
      %v3023 = vpop.f32.mrb[0].mxu0
      %3024 = vmatprep.mubr.bf16.mxu0 0
      %3025 = vmatmul.mubr.bf16.gmra.mrb[0].mxu0 %v2893
      %v3026 = vpop.f32.mrb[0].mxu0
      %v3027 = vadd.f32 0.0, %v3026
      %v3028 = vpop.f32.mrb[0].mxu0
      %v3029 = vpop.f32.mrb[0].mxu0
      %v3030 = vadd.f32 0.0, %v3029
      %v3031 = vpop.f32.mrb[0].mxu0
      %3032 = vmatprep.mubr.bf16.mxu0 0
      %3033 = vmatmul.mubr.bf16.gmra.mrb[0].mxu0 %v2894
      %v3034 = vpop.f32.mrb[0].mxu0
      %v3035 = vadd.f32 0.0, %v3034
      %v3036 = vpop.f32.mrb[0].mxu0
      %v3037 = vpop.f32.mrb[0].mxu0
      %v3038 = vadd.f32 0.0, %v3037
      %v3039 = vpop.f32.mrb[0].mxu0
      %3040 = vmatprep.mubr.bf16.mxu0 0
      %3041 = vmatmul.mubr.bf16.gmra.mrb[0].mxu0 %v2895
      %v3042 = vpop.f32.mrb[0].mxu0
      %v3043 = vadd.f32 0.0, %v3042
      %v3044 = vpop.f32.mrb[0].mxu0
      %v3045 = vpop.f32.mrb[0].mxu0
      %v3046 = vadd.f32 0.0, %v3045
      %v3047 = vpop.f32.mrb[0].mxu0
      %3048 = vdwg.mxu0
      %v3049 = vadd.f32 %v2806, %v2987
      %v3050 = vadd.f32 %v2807, %v2990
      %v3051 = vadd.f32 %v2808, %v2995
      %v3052 = vadd.f32 %v2809, %v2998
      %v3053 = vadd.f32 %v2810, %v3003
      %v3054 = vadd.f32 %v2811, %v3006
      %v3055 = vadd.f32 %v2812, %v3011
      %v3056 = vadd.f32 %v2813, %v3014
      %v3057 = vadd.f32 %v2814, %v3019
      %v3058 = vadd.f32 %v2815, %v3022
      %v3059 = vadd.f32 %v2816, %v3027
      %v3060 = vadd.f32 %v2817, %v3030
      %v3061 = vadd.f32 %v2818, %v3035
      %v3062 = vadd.f32 %v2819, %v3038
      %v3063 = vadd.f32 %v2820, %v3043
      %v3064 = vadd.f32 %v2821, %v3046
      %v3065 = vld [vmem:[%s2822] sm:$0xf]
      %v3066 = vld [vmem:[%s2822 + $0x4] sm:$0xf]
      %v3067 = vld [vmem:[%s2822 + $0x8] sm:$0x1]
      %v3068 = vld [vmem:[%s2822 + $0xc] sm:$0xf]
      %v3069 = vld [vmem:[%s2822 + $0x10] sm:$0xf]
      %v3070 = vld [vmem:[%s2822 + $0x14] sm:$0x1]
      %v3071 = vld [vmem:[%s2822 + $0x18] sm:$0xf]
      %v3072 = vld [vmem:[%s2822 + $0x1c] sm:$0xf]
      %v3073 = vld [vmem:[%s2822 + $0x20] sm:$0x1]
      %v3074 = vld [vmem:[%s2822 + $0x24] sm:$0xf]
      %v3075 = vld [vmem:[%s2822 + $0x28] sm:$0xf]
      %v3076 = vld [vmem:[%s2822 + $0x2c] sm:$0x1]
      %v3077 = vld [vmem:[%s2822 + $0x30] sm:$0xf]
      %v3078 = vld [vmem:[%s2822 + $0x34] sm:$0xf]
      %v3079 = vld [vmem:[%s2822 + $0x38] sm:$0x1]
      %v3080 = vld [vmem:[%s2822 + $0x3c] sm:$0xf]
      %v3081 = vld [vmem:[%s2822 + $0x40] sm:$0xf]
      %v3082 = vld [vmem:[%s2822 + $0x44] sm:$0x1]
      %v3083 = vld [vmem:[%s2822 + $0x48] sm:$0xf]
      %v3084 = vld [vmem:[%s2822 + $0x4c] sm:$0xf]
      %v3085 = vld [vmem:[%s2822 + $0x50] sm:$0x1]
      %v3086 = vld [vmem:[%s2822 + $0x54] sm:$0xf]
      %v3087 = vld [vmem:[%s2822 + $0x58] sm:$0xf]
      %v3088 = vld [vmem:[%s2822 + $0x5c] sm:$0x1]
      %v3090 = vshrl.u32 %v3065, 16
      %v3092 = vrot.slane %v3090, 4
      %v3093 = vshll.u32 %v3065, 16
      %v3095 = vrot.slane %v3093, 5
      %v3096 = vor.u32 %v3092, %v3095
      %v3097 = vrot.slane %v3096, 4
      %v3099 = vshll.u32 %v3066, 16
      %v3101 = vrot.slane %v3099, 5
      %v3102 = vsel %vm983, %v3097, %v3101
      %v3103 = vshrl.u32 %v3066, 16
      %v3105 = vrot.slane %v3103, 4
      %v3106 = vor.u32 %v3105, %v3101
      %v3107 = vrot.slane %v3106, 4
      %v3109 = vshll.u32 %v3067, 16
      %v3111 = vrot.slane %v3109, 5
      %v3112 = vsel %vm983, %v3107, %v3111
      %v3114 = vshrl.u32 %v3068, 16
      %v3116 = vrot.slane %v3114, 4
      %v3117 = vshll.u32 %v3068, 16
      %v3119 = vrot.slane %v3117, 5
      %v3120 = vor.u32 %v3116, %v3119
      %v3121 = vrot.slane %v3120, 4
      %v3123 = vshll.u32 %v3069, 16
      %v3125 = vrot.slane %v3123, 5
      %v3126 = vsel %vm983, %v3121, %v3125
      %v3127 = vshrl.u32 %v3069, 16
      %v3129 = vrot.slane %v3127, 4
      %v3130 = vor.u32 %v3129, %v3125
      %v3131 = vrot.slane %v3130, 4
      %v3133 = vshll.u32 %v3070, 16
      %v3135 = vrot.slane %v3133, 5
      %v3136 = vsel %vm983, %v3131, %v3135
      %v3138 = vshrl.u32 %v3071, 16
      %v3140 = vrot.slane %v3138, 4
      %v3141 = vshll.u32 %v3071, 16
      %v3143 = vrot.slane %v3141, 5
      %v3144 = vor.u32 %v3140, %v3143
      %v3145 = vrot.slane %v3144, 4
      %v3147 = vshll.u32 %v3072, 16
      %v3149 = vrot.slane %v3147, 5
      %v3150 = vsel %vm983, %v3145, %v3149
      %v3151 = vshrl.u32 %v3072, 16
      %v3153 = vrot.slane %v3151, 4
      %v3154 = vor.u32 %v3153, %v3149
      %v3155 = vrot.slane %v3154, 4
      %v3157 = vshll.u32 %v3073, 16
      %v3159 = vrot.slane %v3157, 5
      %v3160 = vsel %vm983, %v3155, %v3159
      %v3162 = vshrl.u32 %v3074, 16
      %v3164 = vrot.slane %v3162, 4
      %v3165 = vshll.u32 %v3074, 16
      %v3167 = vrot.slane %v3165, 5
      %v3168 = vor.u32 %v3164, %v3167
      %v3169 = vrot.slane %v3168, 4
      %v3171 = vshll.u32 %v3075, 16
      %v3173 = vrot.slane %v3171, 5
      %v3174 = vsel %vm983, %v3169, %v3173
      %v3175 = vshrl.u32 %v3075, 16
      %v3177 = vrot.slane %v3175, 4
      %v3178 = vor.u32 %v3177, %v3173
      %v3179 = vrot.slane %v3178, 4
      %v3181 = vshll.u32 %v3076, 16
      %v3183 = vrot.slane %v3181, 5
      %v3184 = vsel %vm983, %v3179, %v3183
      %v3186 = vshrl.u32 %v3077, 16
      %v3188 = vrot.slane %v3186, 4
      %v3189 = vshll.u32 %v3077, 16
      %v3191 = vrot.slane %v3189, 5
      %v3192 = vor.u32 %v3188, %v3191
      %v3193 = vrot.slane %v3192, 4
      %v3195 = vshll.u32 %v3078, 16
      %v3197 = vrot.slane %v3195, 5
      %v3198 = vsel %vm983, %v3193, %v3197
      %v3199 = vshrl.u32 %v3078, 16
      %v3201 = vrot.slane %v3199, 4
      %v3202 = vor.u32 %v3201, %v3197
      %v3203 = vrot.slane %v3202, 4
      %v3205 = vshll.u32 %v3079, 16
      %v3207 = vrot.slane %v3205, 5
      %v3208 = vsel %vm983, %v3203, %v3207
      %v3210 = vshrl.u32 %v3080, 16
      %v3212 = vrot.slane %v3210, 4
      %v3213 = vshll.u32 %v3080, 16
      %v3215 = vrot.slane %v3213, 5
      %v3216 = vor.u32 %v3212, %v3215
      %v3217 = vrot.slane %v3216, 4
      %v3219 = vshll.u32 %v3081, 16
      %v3221 = vrot.slane %v3219, 5
      %v3222 = vsel %vm983, %v3217, %v3221
      %v3223 = vshrl.u32 %v3081, 16
      %v3225 = vrot.slane %v3223, 4
      %v3226 = vor.u32 %v3225, %v3221
      %v3227 = vrot.slane %v3226, 4
      %v3229 = vshll.u32 %v3082, 16
      %v3231 = vrot.slane %v3229, 5
      %v3232 = vsel %vm983, %v3227, %v3231
      %v3234 = vshrl.u32 %v3083, 16
      %v3236 = vrot.slane %v3234, 4
      %v3237 = vshll.u32 %v3083, 16
      %v3239 = vrot.slane %v3237, 5
      %v3240 = vor.u32 %v3236, %v3239
      %v3241 = vrot.slane %v3240, 4
      %v3243 = vshll.u32 %v3084, 16
      %v3245 = vrot.slane %v3243, 5
      %v3246 = vsel %vm983, %v3241, %v3245
      %v3247 = vshrl.u32 %v3084, 16
      %v3249 = vrot.slane %v3247, 4
      %v3250 = vor.u32 %v3249, %v3245
      %v3251 = vrot.slane %v3250, 4
      %v3253 = vshll.u32 %v3085, 16
      %v3255 = vrot.slane %v3253, 5
      %v3256 = vsel %vm983, %v3251, %v3255
      %v3258 = vshrl.u32 %v3086, 16
      %v3260 = vrot.slane %v3258, 4
      %v3261 = vshll.u32 %v3086, 16
      %v3263 = vrot.slane %v3261, 5
      %v3264 = vor.u32 %v3260, %v3263
      %v3265 = vrot.slane %v3264, 4
      %v3267 = vshll.u32 %v3087, 16
      %v3269 = vrot.slane %v3267, 5
      %v3270 = vsel %vm983, %v3265, %v3269
      %v3271 = vshrl.u32 %v3087, 16
      %v3273 = vrot.slane %v3271, 4
      %v3274 = vor.u32 %v3273, %v3269
      %v3275 = vrot.slane %v3274, 4
      %v3277 = vshll.u32 %v3088, 16
      %v3279 = vrot.slane %v3277, 5
      %v3280 = vsel %vm983, %v3275, %v3279
      %s3281 = scalar_lea.vmem %s5, 448
      %v3282 = vld [vmem:[%s3281] sm:$0xf]
      %v3283 = vld [vmem:[%s3281 + $0x4] sm:$0xf]
      %v3284 = vld [vmem:[%s3281 + $0x8] sm:$0xf]
      %v3285 = vld [vmem:[%s3281 + $0xc] sm:$0xf]
      %v3286 = vld [vmem:[%s3281 + $0x10] sm:$0xf]
      %v3287 = vld [vmem:[%s3281 + $0x14] sm:$0xf]
      %v3288 = vld [vmem:[%s3281 + $0x18] sm:$0xf]
      %v3289 = vld [vmem:[%s3281 + $0x1c] sm:$0xf]
      %v3290 = vld [vmem:[%s3281 + $0x20] sm:$0xf]
      %v3291 = vld [vmem:[%s3281 + $0x24] sm:$0xf]
      %v3292 = vld [vmem:[%s3281 + $0x28] sm:$0xf]
      %v3293 = vld [vmem:[%s3281 + $0x2c] sm:$0xf]
      %v3294 = vld [vmem:[%s3281 + $0x30] sm:$0xf]
      %v3295 = vld [vmem:[%s3281 + $0x34] sm:$0xf]
      %v3296 = vld [vmem:[%s3281 + $0x38] sm:$0xf]
      %v3297 = vld [vmem:[%s3281 + $0x3c] sm:$0xf]
      %v3298 = vunpack.c.l.b16 %v3102
      %v3299 = vunpack.c.l.b16 %v3112
      %v3300 = vunpack.c.l.b16 %v3126
      %v3301 = vunpack.c.l.b16 %v3136
      %v3302 = vunpack.c.l.b16 %v3150
      %v3303 = vunpack.c.l.b16 %v3160
      %v3304 = vunpack.c.l.b16 %v3174
      %v3305 = vunpack.c.l.b16 %v3184
      %v3306 = vunpack.c.l.b16 %v3198
      %v3307 = vunpack.c.l.b16 %v3208
      %v3308 = vunpack.c.l.b16 %v3222
      %v3309 = vunpack.c.l.b16 %v3232
      %v3310 = vunpack.c.l.b16 %v3246
      %v3311 = vunpack.c.l.b16 %v3256
      %v3312 = vunpack.c.l.b16 %v3270
      %v3313 = vunpack.c.l.b16 %v3280
      %v3314 = vpack.c.b16 %v3299, %v3298
      %v3315 = vpack.c.b16 %v3301, %v3300
      %v3316 = vpack.c.b16 %v3303, %v3302
      %v3317 = vpack.c.b16 %v3305, %v3304
      %v3318 = vpack.c.b16 %v3307, %v3306
      %v3319 = vpack.c.b16 %v3309, %v3308
      %v3320 = vpack.c.b16 %v3311, %v3310
      %v3321 = vpack.c.b16 %v3313, %v3312
      %v3346 = vunpack.c.l.b16 %v3282
      %v3347 = vunpack.c.l.b16 %v3283
      %v3348 = vunpack.c.l.b16 %v3284
      %v3349 = vunpack.c.l.b16 %v3285
      %v3350 = vunpack.c.l.b16 %v3286
      %v3351 = vunpack.c.l.b16 %v3287
      %v3352 = vunpack.c.l.b16 %v3288
      %v3353 = vunpack.c.l.b16 %v3289
      %v3354 = vunpack.c.l.b16 %v3290
      %v3355 = vunpack.c.l.b16 %v3291
      %v3356 = vunpack.c.l.b16 %v3292
      %v3357 = vunpack.c.l.b16 %v3293
      %v3358 = vunpack.c.l.b16 %v3294
      %v3359 = vunpack.c.l.b16 %v3295
      %v3360 = vunpack.c.l.b16 %v3296
      %v3361 = vunpack.c.l.b16 %v3297
      %v3362 = vpack.c.b16 %v3347, %v3346
      %v3363 = vpack.c.b16 %v3349, %v3348
      %v3364 = vpack.c.b16 %v3351, %v3350
      %v3365 = vpack.c.b16 %v3353, %v3352
      %v3366 = vpack.c.b16 %v3355, %v3354
      %v3367 = vpack.c.b16 %v3357, %v3356
      %v3368 = vpack.c.b16 %v3359, %v3358
      %v3369 = vpack.c.b16 %v3361, %v3360
      %3378 = vmatprep.subr.bf16.mxu0 0
      %3379 = vmatpush1.bf16.msra.mxu0 %v3362
      %3380 = vmatprep.subr.bf16.mxu0 0
      %3381 = vmatpush1.bf16.msra.mxu0 %v3363
      %3382 = vmatprep.subr.bf16.mxu0 0
      %3383 = vmatpush1.bf16.msra.mxu0 %v3364
      %3384 = vmatprep.subr.bf16.mxu0 0
      %3385 = vmatpush1.bf16.msra.mxu0 %v3365
      %3386 = vmatprep.subr.bf16.mxu0 0
      %3387 = vmatpush1.bf16.msra.mxu0 %v3366
      %3388 = vmatprep.subr.bf16.mxu0 0
      %3389 = vmatpush1.bf16.msra.mxu0 %v3367
      %3390 = vmatprep.subr.bf16.mxu0 0
      %3391 = vmatpush1.bf16.msra.mxu0 %v3368
      %3392 = vmatprep.subr.bf16.mxu0 0
      %3393 = vmatpush1.bf16.msra.mxu0 %v3369
      %3394 = vmatprep.subr.bf16.mxu0 0
      %3395 = vmatpush1.bf16.msra.mxu0 0
      %3396 = vmatprep.subr.bf16.mxu0 0
      %3397 = vmatpush1.bf16.msra.mxu0 0
      %3398 = vmatprep.subr.bf16.mxu0 0
      %3399 = vmatpush1.bf16.msra.mxu0 0
      %3400 = vmatprep.subr.bf16.mxu0 0
      %3401 = vmatpush1.bf16.msra.mxu0 0
      %3402 = vmatprep.subr.bf16.mxu0 0
      %3403 = vmatpush1.bf16.msra.mxu0 0
      %3404 = vmatprep.subr.bf16.mxu0 0
      %3405 = vmatpush1.bf16.msra.mxu0 0
      %3406 = vmatprep.subr.bf16.mxu0 0
      %3407 = vmatpush1.bf16.msra.mxu0 0
      %3408 = vmatprep.subr.bf16.mxu0 0
      %3409 = vmatpush1.bf16.msra.mxu0 0
      %3410 = vmatprep.mubr.bf16.mxu0 0
      %3411 = vmatmul.mubr.bf16.gmra.mrb[0].mxu0 %v3314
      %v3412 = vpop.f32.mrb[0].mxu0
      %v3413 = vadd.f32 0.0, %v3412
      %v3414 = vpop.f32.mrb[0].mxu0
      %v3415 = vpop.f32.mrb[0].mxu0
      %v3416 = vadd.f32 0.0, %v3415
      %v3417 = vpop.f32.mrb[0].mxu0
      %3418 = vmatprep.mubr.bf16.mxu0 0
      %3419 = vmatmul.mubr.bf16.gmra.mrb[0].mxu0 %v3315
      %v3420 = vpop.f32.mrb[0].mxu0
      %v3421 = vadd.f32 0.0, %v3420
      %v3422 = vpop.f32.mrb[0].mxu0
      %v3423 = vpop.f32.mrb[0].mxu0
      %v3424 = vadd.f32 0.0, %v3423
      %v3425 = vpop.f32.mrb[0].mxu0
      %3426 = vmatprep.mubr.bf16.mxu0 0
      %3427 = vmatmul.mubr.bf16.gmra.mrb[0].mxu0 %v3316
      %v3428 = vpop.f32.mrb[0].mxu0
      %v3429 = vadd.f32 0.0, %v3428
      %v3430 = vpop.f32.mrb[0].mxu0
      %v3431 = vpop.f32.mrb[0].mxu0
      %v3432 = vadd.f32 0.0, %v3431
      %v3433 = vpop.f32.mrb[0].mxu0
      %3434 = vmatprep.mubr.bf16.mxu0 0
      %3435 = vmatmul.mubr.bf16.gmra.mrb[0].mxu0 %v3317
      %v3436 = vpop.f32.mrb[0].mxu0
      %v3437 = vadd.f32 0.0, %v3436
      %v3438 = vpop.f32.mrb[0].mxu0
      %v3439 = vpop.f32.mrb[0].mxu0
      %v3440 = vadd.f32 0.0, %v3439
      %v3441 = vpop.f32.mrb[0].mxu0
      %3442 = vmatprep.mubr.bf16.mxu0 0
      %3443 = vmatmul.mubr.bf16.gmra.mrb[0].mxu0 %v3318
      %v3444 = vpop.f32.mrb[0].mxu0
      %v3445 = vadd.f32 0.0, %v3444
      %v3446 = vpop.f32.mrb[0].mxu0
      %v3447 = vpop.f32.mrb[0].mxu0
      %v3448 = vadd.f32 0.0, %v3447
      %v3449 = vpop.f32.mrb[0].mxu0
      %3450 = vmatprep.mubr.bf16.mxu0 0
      %3451 = vmatmul.mubr.bf16.gmra.mrb[0].mxu0 %v3319
      %v3452 = vpop.f32.mrb[0].mxu0
      %v3453 = vadd.f32 0.0, %v3452
      %v3454 = vpop.f32.mrb[0].mxu0
      %v3455 = vpop.f32.mrb[0].mxu0
      %v3456 = vadd.f32 0.0, %v3455
      %v3457 = vpop.f32.mrb[0].mxu0
      %3458 = vmatprep.mubr.bf16.mxu0 0
      %3459 = vmatmul.mubr.bf16.gmra.mrb[0].mxu0 %v3320
      %v3460 = vpop.f32.mrb[0].mxu0
      %v3461 = vadd.f32 0.0, %v3460
      %v3462 = vpop.f32.mrb[0].mxu0
      %v3463 = vpop.f32.mrb[0].mxu0
      %v3464 = vadd.f32 0.0, %v3463
      %v3465 = vpop.f32.mrb[0].mxu0
      %3466 = vmatprep.mubr.bf16.mxu0 0
      %3467 = vmatmul.mubr.bf16.gmra.mrb[0].mxu0 %v3321
      %v3468 = vpop.f32.mrb[0].mxu0
      %v3469 = vadd.f32 0.0, %v3468
      %v3470 = vpop.f32.mrb[0].mxu0
      %v3471 = vpop.f32.mrb[0].mxu0
      %v3472 = vadd.f32 0.0, %v3471
      %v3473 = vpop.f32.mrb[0].mxu0
      %3474 = vdwg.mxu0
      %v3475 = vadd.f32 %v3049, %v3413
      %v3476 = vadd.f32 %v3050, %v3416
      %v3477 = vadd.f32 %v3051, %v3421
      %v3478 = vadd.f32 %v3052, %v3424
      %v3479 = vadd.f32 %v3053, %v3429
      %v3480 = vadd.f32 %v3054, %v3432
      %v3481 = vadd.f32 %v3055, %v3437
      %v3482 = vadd.f32 %v3056, %v3440
      %v3483 = vadd.f32 %v3057, %v3445
      %v3484 = vadd.f32 %v3058, %v3448
      %v3485 = vadd.f32 %v3059, %v3453
      %v3486 = vadd.f32 %v3060, %v3456
      %v3487 = vadd.f32 %v3061, %v3461
      %v3488 = vadd.f32 %v3062, %v3464
      %v3489 = vadd.f32 %v3063, %v3469
      %v3490 = vadd.f32 %v3064, %v3472
      %v3491 = vld [vmem:[%s2822] sm:$0xe]
      %v3492 = vld [vmem:[%s2822 + $0xc] sm:$0xe]
      %v3493 = vld [vmem:[%s2822 + $0x18] sm:$0xe]
      %v3494 = vld [vmem:[%s2822 + $0x24] sm:$0xe]
      %v3495 = vld [vmem:[%s2822 + $0x30] sm:$0xe]
      %v3496 = vld [vmem:[%s2822 + $0x3c] sm:$0xe]
      %v3497 = vld [vmem:[%s2822 + $0x48] sm:$0xe]
      %v3498 = vld [vmem:[%s2822 + $0x54] sm:$0xe]
      %v3523 = vrot.slane %v3491, 5
      %v3524 = vrot.slane %v3523, 4
      %v3525 = vrot.slane %v3066, 5
      %v3526 = vsel %vm1589, %v3524, %v3525
      %v3527 = vrot.slane %v3525, 4
      %v3528 = vrot.slane %v3067, 5
      %v3529 = vsel %vm1589, %v3527, %v3528
      %v3530 = vrot.slane %v3492, 5
      %v3531 = vrot.slane %v3530, 4
      %v3532 = vrot.slane %v3069, 5
      %v3533 = vsel %vm1589, %v3531, %v3532
      %v3534 = vrot.slane %v3532, 4
      %v3535 = vrot.slane %v3070, 5
      %v3536 = vsel %vm1589, %v3534, %v3535
      %v3537 = vrot.slane %v3493, 5
      %v3538 = vrot.slane %v3537, 4
      %v3539 = vrot.slane %v3072, 5
      %v3540 = vsel %vm1589, %v3538, %v3539
      %v3541 = vrot.slane %v3539, 4
      %v3542 = vrot.slane %v3073, 5
      %v3543 = vsel %vm1589, %v3541, %v3542
      %v3544 = vrot.slane %v3494, 5
      %v3545 = vrot.slane %v3544, 4
      %v3546 = vrot.slane %v3075, 5
      %v3547 = vsel %vm1589, %v3545, %v3546
      %v3548 = vrot.slane %v3546, 4
      %v3549 = vrot.slane %v3076, 5
      %v3550 = vsel %vm1589, %v3548, %v3549
      %v3551 = vrot.slane %v3495, 5
      %v3552 = vrot.slane %v3551, 4
      %v3553 = vrot.slane %v3078, 5
      %v3554 = vsel %vm1589, %v3552, %v3553
      %v3555 = vrot.slane %v3553, 4
      %v3556 = vrot.slane %v3079, 5
      %v3557 = vsel %vm1589, %v3555, %v3556
      %v3558 = vrot.slane %v3496, 5
      %v3559 = vrot.slane %v3558, 4
      %v3560 = vrot.slane %v3081, 5
      %v3561 = vsel %vm1589, %v3559, %v3560
      %v3562 = vrot.slane %v3560, 4
      %v3563 = vrot.slane %v3082, 5
      %v3564 = vsel %vm1589, %v3562, %v3563
      %v3565 = vrot.slane %v3497, 5
      %v3566 = vrot.slane %v3565, 4
      %v3567 = vrot.slane %v3084, 5
      %v3568 = vsel %vm1589, %v3566, %v3567
      %v3569 = vrot.slane %v3567, 4
      %v3570 = vrot.slane %v3085, 5
      %v3571 = vsel %vm1589, %v3569, %v3570
      %v3572 = vrot.slane %v3498, 5
      %v3573 = vrot.slane %v3572, 4
      %v3574 = vrot.slane %v3087, 5
      %v3575 = vsel %vm1589, %v3573, %v3574
      %v3576 = vrot.slane %v3574, 4
      %v3577 = vrot.slane %v3088, 5
      %v3578 = vsel %vm1589, %v3576, %v3577
      %s3579 = scalar_lea.vmem %s5, 512
      %v3580 = vld [vmem:[%s3579] sm:$0xf]
      %v3581 = vld [vmem:[%s3579 + $0x4] sm:$0xf]
      %v3582 = vld [vmem:[%s3579 + $0x8] sm:$0xf]
      %v3583 = vld [vmem:[%s3579 + $0xc] sm:$0xf]
      %v3584 = vld [vmem:[%s3579 + $0x10] sm:$0xf]
      %v3585 = vld [vmem:[%s3579 + $0x14] sm:$0xf]
      %v3586 = vld [vmem:[%s3579 + $0x18] sm:$0xf]
      %v3587 = vld [vmem:[%s3579 + $0x1c] sm:$0xf]
      %v3588 = vld [vmem:[%s3579 + $0x20] sm:$0xf]
      %v3589 = vld [vmem:[%s3579 + $0x24] sm:$0xf]
      %v3590 = vld [vmem:[%s3579 + $0x28] sm:$0xf]
      %v3591 = vld [vmem:[%s3579 + $0x2c] sm:$0xf]
      %v3592 = vld [vmem:[%s3579 + $0x30] sm:$0xf]
      %v3593 = vld [vmem:[%s3579 + $0x34] sm:$0xf]
      %v3594 = vld [vmem:[%s3579 + $0x38] sm:$0xf]
      %v3595 = vld [vmem:[%s3579 + $0x3c] sm:$0xf]
      %v3596 = vunpack.c.l.b16 %v3526
      %v3597 = vunpack.c.l.b16 %v3529
      %v3598 = vunpack.c.l.b16 %v3533
      %v3599 = vunpack.c.l.b16 %v3536
      %v3600 = vunpack.c.l.b16 %v3540
      %v3601 = vunpack.c.l.b16 %v3543
      %v3602 = vunpack.c.l.b16 %v3547
      %v3603 = vunpack.c.l.b16 %v3550
      %v3604 = vunpack.c.l.b16 %v3554
      %v3605 = vunpack.c.l.b16 %v3557
      %v3606 = vunpack.c.l.b16 %v3561
      %v3607 = vunpack.c.l.b16 %v3564
      %v3608 = vunpack.c.l.b16 %v3568
      %v3609 = vunpack.c.l.b16 %v3571
      %v3610 = vunpack.c.l.b16 %v3575
      %v3611 = vunpack.c.l.b16 %v3578
      %v3612 = vpack.c.b16 %v3597, %v3596
      %v3613 = vpack.c.b16 %v3599, %v3598
      %v3614 = vpack.c.b16 %v3601, %v3600
      %v3615 = vpack.c.b16 %v3603, %v3602
      %v3616 = vpack.c.b16 %v3605, %v3604
      %v3617 = vpack.c.b16 %v3607, %v3606
      %v3618 = vpack.c.b16 %v3609, %v3608
      %v3619 = vpack.c.b16 %v3611, %v3610
      %v3644 = vunpack.c.l.b16 %v3580
      %v3645 = vunpack.c.l.b16 %v3581
      %v3646 = vunpack.c.l.b16 %v3582
      %v3647 = vunpack.c.l.b16 %v3583
      %v3648 = vunpack.c.l.b16 %v3584
      %v3649 = vunpack.c.l.b16 %v3585
      %v3650 = vunpack.c.l.b16 %v3586
      %v3651 = vunpack.c.l.b16 %v3587
      %v3652 = vunpack.c.l.b16 %v3588
      %v3653 = vunpack.c.l.b16 %v3589
      %v3654 = vunpack.c.l.b16 %v3590
      %v3655 = vunpack.c.l.b16 %v3591
      %v3656 = vunpack.c.l.b16 %v3592
      %v3657 = vunpack.c.l.b16 %v3593
      %v3658 = vunpack.c.l.b16 %v3594
      %v3659 = vunpack.c.l.b16 %v3595
      %v3660 = vpack.c.b16 %v3645, %v3644
      %v3661 = vpack.c.b16 %v3647, %v3646
      %v3662 = vpack.c.b16 %v3649, %v3648
      %v3663 = vpack.c.b16 %v3651, %v3650
      %v3664 = vpack.c.b16 %v3653, %v3652
      %v3665 = vpack.c.b16 %v3655, %v3654
      %v3666 = vpack.c.b16 %v3657, %v3656
      %v3667 = vpack.c.b16 %v3659, %v3658
      %3676 = vmatprep.subr.bf16.mxu0 0
      %3677 = vmatpush1.bf16.msra.mxu0 %v3660
      %3678 = vmatprep.subr.bf16.mxu0 0
      %3679 = vmatpush1.bf16.msra.mxu0 %v3661
      %3680 = vmatprep.subr.bf16.mxu0 0
      %3681 = vmatpush1.bf16.msra.mxu0 %v3662
      %3682 = vmatprep.subr.bf16.mxu0 0
      %3683 = vmatpush1.bf16.msra.mxu0 %v3663
      %3684 = vmatprep.subr.bf16.mxu0 0
      %3685 = vmatpush1.bf16.msra.mxu0 %v3664
      %3686 = vmatprep.subr.bf16.mxu0 0
      %3687 = vmatpush1.bf16.msra.mxu0 %v3665
      %3688 = vmatprep.subr.bf16.mxu0 0
      %3689 = vmatpush1.bf16.msra.mxu0 %v3666
      %3690 = vmatprep.subr.bf16.mxu0 0
      %3691 = vmatpush1.bf16.msra.mxu0 %v3667
      %3692 = vmatprep.subr.bf16.mxu0 0
      %3693 = vmatpush1.bf16.msra.mxu0 0
      %3694 = vmatprep.subr.bf16.mxu0 0
      %3695 = vmatpush1.bf16.msra.mxu0 0
      %3696 = vmatprep.subr.bf16.mxu0 0
      %3697 = vmatpush1.bf16.msra.mxu0 0
      %3698 = vmatprep.subr.bf16.mxu0 0
      %3699 = vmatpush1.bf16.msra.mxu0 0
      %3700 = vmatprep.subr.bf16.mxu0 0
      %3701 = vmatpush1.bf16.msra.mxu0 0
      %3702 = vmatprep.subr.bf16.mxu0 0
      %3703 = vmatpush1.bf16.msra.mxu0 0
      %3704 = vmatprep.subr.bf16.mxu0 0
      %3705 = vmatpush1.bf16.msra.mxu0 0
      %3706 = vmatprep.subr.bf16.mxu0 0
      %3707 = vmatpush1.bf16.msra.mxu0 0
      %3708 = vmatprep.mubr.bf16.mxu0 0
      %3709 = vmatmul.mubr.bf16.gmra.mrb[0].mxu0 %v3612
      %v3710 = vpop.f32.mrb[0].mxu0
      %v3711 = vadd.f32 0.0, %v3710
      %v3712 = vpop.f32.mrb[0].mxu0
      %v3713 = vpop.f32.mrb[0].mxu0
      %v3714 = vadd.f32 0.0, %v3713
      %v3715 = vpop.f32.mrb[0].mxu0
      %3716 = vmatprep.mubr.bf16.mxu0 0
      %3717 = vmatmul.mubr.bf16.gmra.mrb[0].mxu0 %v3613
      %v3718 = vpop.f32.mrb[0].mxu0
      %v3719 = vadd.f32 0.0, %v3718
      %v3720 = vpop.f32.mrb[0].mxu0
      %v3721 = vpop.f32.mrb[0].mxu0
      %v3722 = vadd.f32 0.0, %v3721
      %v3723 = vpop.f32.mrb[0].mxu0
      %3724 = vmatprep.mubr.bf16.mxu0 0
      %3725 = vmatmul.mubr.bf16.gmra.mrb[0].mxu0 %v3614
      %v3726 = vpop.f32.mrb[0].mxu0
      %v3727 = vadd.f32 0.0, %v3726
      %v3728 = vpop.f32.mrb[0].mxu0
      %v3729 = vpop.f32.mrb[0].mxu0
      %v3730 = vadd.f32 0.0, %v3729
      %v3731 = vpop.f32.mrb[0].mxu0
      %3732 = vmatprep.mubr.bf16.mxu0 0
      %3733 = vmatmul.mubr.bf16.gmra.mrb[0].mxu0 %v3615
      %v3734 = vpop.f32.mrb[0].mxu0
      %v3735 = vadd.f32 0.0, %v3734
      %v3736 = vpop.f32.mrb[0].mxu0
      %v3737 = vpop.f32.mrb[0].mxu0
      %v3738 = vadd.f32 0.0, %v3737
      %v3739 = vpop.f32.mrb[0].mxu0
      %3740 = vmatprep.mubr.bf16.mxu0 0
      %3741 = vmatmul.mubr.bf16.gmra.mrb[0].mxu0 %v3616
      %v3742 = vpop.f32.mrb[0].mxu0
      %v3743 = vadd.f32 0.0, %v3742
      %v3744 = vpop.f32.mrb[0].mxu0
      %v3745 = vpop.f32.mrb[0].mxu0
      %v3746 = vadd.f32 0.0, %v3745
      %v3747 = vpop.f32.mrb[0].mxu0
      %3748 = vmatprep.mubr.bf16.mxu0 0
      %3749 = vmatmul.mubr.bf16.gmra.mrb[0].mxu0 %v3617
      %v3750 = vpop.f32.mrb[0].mxu0
      %v3751 = vadd.f32 0.0, %v3750
      %v3752 = vpop.f32.mrb[0].mxu0
      %v3753 = vpop.f32.mrb[0].mxu0
      %v3754 = vadd.f32 0.0, %v3753
      %v3755 = vpop.f32.mrb[0].mxu0
      %3756 = vmatprep.mubr.bf16.mxu0 0
      %3757 = vmatmul.mubr.bf16.gmra.mrb[0].mxu0 %v3618
      %v3758 = vpop.f32.mrb[0].mxu0
      %v3759 = vadd.f32 0.0, %v3758
      %v3760 = vpop.f32.mrb[0].mxu0
      %v3761 = vpop.f32.mrb[0].mxu0
      %v3762 = vadd.f32 0.0, %v3761
      %v3763 = vpop.f32.mrb[0].mxu0
      %3764 = vmatprep.mubr.bf16.mxu0 0
      %3765 = vmatmul.mubr.bf16.gmra.mrb[0].mxu0 %v3619
      %v3766 = vpop.f32.mrb[0].mxu0
      %v3767 = vadd.f32 0.0, %v3766
      %v3768 = vpop.f32.mrb[0].mxu0
      %v3769 = vpop.f32.mrb[0].mxu0
      %v3770 = vadd.f32 0.0, %v3769
      %v3771 = vpop.f32.mrb[0].mxu0
      %3772 = vdwg.mxu0
      %v3773 = vadd.f32 %v3475, %v3711
      %v3774 = vadd.f32 %v3476, %v3714
      %v3775 = vadd.f32 %v3477, %v3719
      %v3776 = vadd.f32 %v3478, %v3722
      %v3777 = vadd.f32 %v3479, %v3727
      %v3778 = vadd.f32 %v3480, %v3730
      %v3779 = vadd.f32 %v3481, %v3735
      %v3780 = vadd.f32 %v3482, %v3738
      %v3781 = vadd.f32 %v3483, %v3743
      %v3782 = vadd.f32 %v3484, %v3746
      %v3783 = vadd.f32 %v3485, %v3751
      %v3784 = vadd.f32 %v3486, %v3754
      %v3785 = vadd.f32 %v3487, %v3759
      %v3786 = vadd.f32 %v3488, %v3762
      %v3787 = vadd.f32 %v3489, %v3767
      %v3788 = vadd.f32 %v3490, %v3770
      %3789 = vst [vmem:[%s458] sm:$0xff] %v3773
      %3790 = vst [vmem:[%s458 + $0x8] sm:$0xff] %v3774
      %3791 = vst [vmem:[%s458 + $0x10] sm:$0xff] %v3775
      %3792 = vst [vmem:[%s458 + $0x18] sm:$0xff] %v3776
      %3793 = vst [vmem:[%s458 + $0x20] sm:$0xff] %v3777
      %3794 = vst [vmem:[%s458 + $0x28] sm:$0xff] %v3778
      %3795 = vst [vmem:[%s458 + $0x30] sm:$0xff] %v3779
      %3796 = vst [vmem:[%s458 + $0x38] sm:$0xff] %v3780
      %3797 = vst [vmem:[%s458 + $0x40] sm:$0xff] %v3781
      %3798 = vst [vmem:[%s458 + $0x48] sm:$0xff] %v3782
      %3799 = vst [vmem:[%s458 + $0x50] sm:$0xff] %v3783
      %3800 = vst [vmem:[%s458 + $0x58] sm:$0xff] %v3784
      %3801 = vst [vmem:[%s458 + $0x60] sm:$0xff] %v3785
      %3802 = vst [vmem:[%s458 + $0x68] sm:$0xff] %v3786
      %3803 = vst [vmem:[%s458 + $0x70] sm:$0xff] %v3787
      %3804 = vst [vmem:[%s458 + $0x78] sm:$0xff] %v3788
      %v3805 = vadd.f32 %v3773, %v3774
      %v3806 = vadd.f32 %v3805, %v3775
      %v3807 = vadd.f32 %v3806, %v3776
      %v3808 = vadd.f32 %v3807, %v3777
      %v3809 = vadd.f32 %v3808, %v3778
      %v3810 = vadd.f32 %v3809, %v3779
      %v3811 = vadd.f32 %v3810, %v3780
      %v3812 = vadd.f32 %v3811, %v3781
      %v3813 = vadd.f32 %v3812, %v3782
      %v3814 = vadd.f32 %v3813, %v3783
      %v3815 = vadd.f32 %v3814, %v3784
      %v3816 = vadd.f32 %v3815, %v3785
      %v3817 = vadd.f32 %v3816, %v3786
      %v3818 = vadd.f32 %v3817, %v3787
      %v3819 = vadd.f32 %v3818, %v3788
      %v3820 = vrot.slane %v3819, 4
      %v3821 = vadd.f32 %v3819, %v3820
      %v3822 = vrot.slane %v3821, 2
      %v3823 = vadd.f32 %v3821, %v3822
      %v3824 = vrot.slane %v3823, 1
      %v3825 = vadd.f32 %v3823, %v3824
      %v3826 = vmul.f32 %v3773, %v3773
      %v3827 = vmul.f32 %v3774, %v3774
      %v3828 = vmul.f32 %v3775, %v3775
      %v3829 = vmul.f32 %v3776, %v3776
      %v3830 = vmul.f32 %v3777, %v3777
      %v3831 = vmul.f32 %v3778, %v3778
      %v3832 = vmul.f32 %v3779, %v3779
      %v3833 = vmul.f32 %v3780, %v3780
      %v3834 = vmul.f32 %v3781, %v3781
      %v3835 = vmul.f32 %v3782, %v3782
      %v3836 = vmul.f32 %v3783, %v3783
      %v3837 = vmul.f32 %v3784, %v3784
      %v3838 = vmul.f32 %v3785, %v3785
      %v3839 = vmul.f32 %v3786, %v3786
      %v3840 = vmul.f32 %v3787, %v3787
      %v3841 = vmul.f32 %v3788, %v3788
      %v3842 = vadd.f32 %v3826, %v3827
      %v3843 = vadd.f32 %v3842, %v3828
      %v3844 = vadd.f32 %v3843, %v3829
      %v3845 = vadd.f32 %v3844, %v3830
      %v3846 = vadd.f32 %v3845, %v3831
      %v3847 = vadd.f32 %v3846, %v3832
      %v3848 = vadd.f32 %v3847, %v3833
      %v3849 = vadd.f32 %v3848, %v3834
      %v3850 = vadd.f32 %v3849, %v3835
      %v3851 = vadd.f32 %v3850, %v3836
      %v3852 = vadd.f32 %v3851, %v3837
      %v3853 = vadd.f32 %v3852, %v3838
      %v3854 = vadd.f32 %v3853, %v3839
      %v3855 = vadd.f32 %v3854, %v3840
      %v3856 = vadd.f32 %v3855, %v3841
      %v3857 = vrot.slane %v3856, 4
      %v3858 = vadd.f32 %v3856, %v3857
      %v3859 = vrot.slane %v3858, 2
      %v3860 = vadd.f32 %v3858, %v3859
      %v3861 = vrot.slane %v3860, 1
      %v3862 = vadd.f32 %v3860, %v3861
      %vm3863 = vcmask 1040384
      %v3864 = vsel %vm3863, %v3825, %v3862
      %3865 = vst [vmem:[%s467] sm:$0x3] %v3864
      %s3866 = smul.u32 8, %s24
      %p3867 = scmp.lt.s32.totalorder %s23, 1
      %s3868 = scalar_select %p3867, %s23, 1
      %p3869 = scmp.lt.s32.totalorder %s3866, 15
      %s3870 = scalar_select %p3869, %s3866, 15
      %s3871 = smul.addr %s3870, 2
      %s3872 = smul.addr %s3868, 32
      %s3873 = sadd.s32 %s3871, %s3872
      %s3874 = smul.addr %s3873, 8
      %s3875 = scalar_lea.vmem %s6, %s3874
      %p3876 = scmp.lt.s32.totalorder %s23, 1
      %s3877 = scalar_select %p3876, %s23, 1
      %p3878 = scmp.lt.s32.totalorder %s24, 1
      %s3879 = scalar_select %p3878, %s24, 1
      %s3880 = smul.addr %s3877, 2
      %s3881 = sadd.s32 %s3879, %s3880
      %s3882 = smul.addr %s3881, 2
      %s3883 = scalar_lea.vmem %s7, %s3882
      // Predicated region
      $region53: #{double_conv_forward.4} parent=43 // pred_check
        %p3884 = pneg %p214
      $region54: #{double_conv_forward.4} parent=43 // pred_check_branch
        %3886 = sbr.rel (%p3884) target = $region56
      $region55: #{double_conv_forward.4} parent=43 // pred_region
        %s3887 = smul.u32 8, %s24
      $region56: #{double_conv_forward.4} parent=43 // pred_fallthru
        _
      // Predicated region
      $region57: #{double_conv_forward.4} parent=43 // pred_check
        %p3888 = pneg %p242
      $region58: #{double_conv_forward.4} parent=43 // pred_check_branch
        %3890 = sbr.rel (%p3888) target = $region60
      $region59: #{double_conv_forward.4} parent=43 // pred_region
        _
      $region60: #{double_conv_forward.4} parent=43 // pred_fallthru
        _
    $region44: #{double_conv_forward.4} parent=5 // pred_fallthru
      _
    %p3891 = scmp.le.s32.totalorder 2, %s14
    // Predicated region
    $region61: #{double_conv_forward.4} parent=5 // pred_check
      %p3892 = pneg %p3891
    $region62: #{double_conv_forward.4} parent=5 // pred_check_branch
      %3894 = sbr.rel (%p3892) target = $region64
    $region63: #{double_conv_forward.4} parent=5 // pred_region
      %s3895 = ssub.s32 %s14, 2
      // Predicated region
      $region65: #{double_conv_forward.4} parent=63 // pred_check
        %p3896 = pneg %p220
      $region66: #{double_conv_forward.4} parent=63 // pred_check_branch
        %3898 = sbr.rel (%p3896) target = $region68
      $region67: #{double_conv_forward.4} parent=63 // pred_region
        %s3899 = smul.u32 8, %s26
        %p3900 = scmp.lt.s32.totalorder %s25, 1
        %s3901 = scalar_select %p3900, %s25, 1
        %p3902 = scmp.lt.s32.totalorder %s3899, 15
        %s3903 = scalar_select %p3902, %s3899, 15
        %s3904 = smul.addr %s3903, 2
        %s3905 = smul.addr %s3901, 32
        %s3906 = sadd.s32 %s3904, %s3905
        %s3907 = smul.addr %s3906, 8
        %s3908 = scalar_lea.vmem %s6, %s3907
      $region68: #{double_conv_forward.4} parent=63 // pred_fallthru
        _
      // Predicated region
      $region69: #{double_conv_forward.4} parent=63 // pred_check
        %p3909 = pneg %p248
      $region70: #{double_conv_forward.4} parent=63 // pred_check_branch
        %3911 = sbr.rel (%p3909) target = $region72
      $region71: #{double_conv_forward.4} parent=63 // pred_region
        %p3912 = scmp.lt.s32.totalorder %s25, 1
        %s3913 = scalar_select %p3912, %s25, 1
        %p3914 = scmp.lt.s32.totalorder %s26, 1
        %s3915 = scalar_select %p3914, %s26, 1
        %s3916 = smul.addr %s3913, 2
        %s3917 = sadd.s32 %s3915, %s3916
        %s3918 = smul.addr %s3917, 2
        %s3919 = scalar_lea.vmem %s7, %s3918
      $region72: #{double_conv_forward.4} parent=63 // pred_fallthru
        _
    $region64: #{double_conv_forward.4} parent=5 // pred_fallthru
      _
  $region6: #{double_conv_forward.4} parent=0 // loop_footer
    %s18 = sadd.s32 1, %s14
  $region7: #{double_conv_forward.4} parent=0 // loop_footer_branch
    %13 = sbr.rel target = $region3
  $region8: #{double_conv_forward.4} parent=0 // loop_exit
    _

</llo_original>
